<compile_context>
chip_gen: v7x
topology: tpu7x:2x2x1
jax: 0.10.0
libtpu: 0.0.40
codegen_flags: <defaults>
</compile_context>

<pallas_src>
import jax
import jax.numpy as jnp
import numpy as np
from jax.experimental import pallas as pl
from jax.experimental.pallas import tpu as pltpu


# Geometry implied by the module (fc1 expects 64*5*5 => input must be 3x32x32).
H_IN, W_IN, C_IN = 32, 32, 3
K = 4
OH1, OW1, C1 = 29, 29, 32          # conv1 output
Q1 = 16                            # per-channel padded half-width: 32*16 = 512 lanes/half
PH1, PW1 = 14, 14                  # pool1 output
OH2, OW2, C2 = 11, 11, 64          # conv2 output
Q2 = 6                             # per-channel padded half-width: 64*6 = 384 lanes/half
PH2, PW2 = 5, 5                    # pool2 output

LANES1 = 2 * C1 * Q1               # 1024 (even-ow half | odd-ow half)
LANES2 = 2 * C2 * Q2               # 768

NUM_CLASSES = 10
OUT_LANES = 128                    # fc4 padded to a full lane-dense store


# ----------------------------------------------------------------------------
# Fused kernel: whole forward pass for one batch element
# ----------------------------------------------------------------------------
def _fused_cnn_kernel(alpha_ref, x_ref,
                      w1_ref, b1_ref, w2_ref, b2_ref,
                      fw1_ref, fb1_ref, fw2_ref, fb2_ref,
                      fw3_ref, fb3_ref, fw4_ref, fb4_ref,
                      out_ref,
                      c1_ref, p1_ref, c2_ref, p2_ref):
    a = alpha_ref[0, 0]

    def prelu(v):
        return jnp.where(v >= 0.0, v, a * v)

    half1 = C1 * Q1     # 512  (128-aligned lane split)
    half2 = C2 * Q2     # 384  (128-aligned lane split)

    # ---------------- conv1 (3 -> 32, k=4) + PReLU --------------------------
    # x_ref block: (1, 32, 96) with lane index = ci*32 + w.
    acc = jnp.dot(x_ref[0, 0:OH1, :], w1_ref[0],
                  preferred_element_type=jnp.float32)
    for di in range(1, K):
        acc = acc + jnp.dot(x_ref[0, di:di + OH1, :], w1_ref[di],
                            preferred_element_type=jnp.float32)
    y = prelu(acc + b1_ref[...])                                     # (29, 1024)

    # ---------------- maxpool 2x2 -------------------------------------------
    # width: even/odd output columns live in the two 512-lane halves
    c1_ref[...] = jnp.maximum(y[:, 0:half1], y[:, half1:2 * half1])  # (29, 512)
    # height: pair rows (2p, 2p+1)  (floor mode: conv row 28 unused)
    for p in range(PH1):
        p1_ref[p:p + 1, :] = jnp.maximum(c1_ref[2 * p:2 * p + 1, :],
                                         c1_ref[2 * p + 1:2 * p + 2, :])

    # ---------------- conv2 (32 -> 64, k=4) + PReLU -------------------------
    acc = jnp.dot(p1_ref[0:OH2, :], w2_ref[0],
                  preferred_element_type=jnp.float32)
    for di in range(1, K):
        acc = acc + jnp.dot(p1_ref[di:di + OH2, :], w2_ref[di],
                            preferred_element_type=jnp.float32)
    y = prelu(acc + b2_ref[...])                                     # (11, 768)

    c2_ref[...] = jnp.maximum(y[:, 0:half2], y[:, half2:2 * half2])  # (11, 384)
    for p in range(PH2):
        p2_ref[p:p + 1, :] = jnp.maximum(c2_ref[2 * p:2 * p + 1, :],
                                         c2_ref[2 * p + 1:2 * p + 2, :])

    # ---------------- fc1..fc4 (flatten folded into fw1 lowering) -----------
    z = jnp.dot(p2_ref[0:1, :], fw1_ref[0], preferred_element_type=jnp.float32)
    for r in range(1, PH2):
        z = z + jnp.dot(p2_ref[r:r + 1, :], fw1_ref[r],
                        preferred_element_type=jnp.float32)
    z = prelu(z + fb1_ref[...])
    z = prelu(jnp.dot(z, fw2_ref[...], preferred_element_type=jnp.float32) + fb2_ref[...])
    z = prelu(jnp.dot(z, fw3_ref[...], preferred_element_type=jnp.float32) + fb3_ref[...])
    z = jnp.dot(z, fw4_ref[...], preferred_element_type=jnp.float32) + fb4_ref[...]
    out_ref[0] = z.astype(out_ref.dtype)     # (1, 128) unmasked lane-dense store


# ----------------------------------------------------------------------------
# Forward-pass wrapper: one pallas_call for the whole network
# ----------------------------------------------------------------------------
@jax.jit
def cnn_forward(x_nchw, prepared):
    n = x_nchw.shape[0]
    assert x_nchw.shape[1:] == (C_IN, H_IN, W_IN)
    # NCHW -> (N, H, C*W): lane index = ci*32 + w (channel-major, width-fastest)
    x2d = jnp.transpose(x_nchw, (0, 2, 1, 3)).reshape(n, H_IN, C_IN * W_IN)

    out = pl.pallas_call(
        _fused_cnn_kernel,
        out_shape=jax.ShapeDtypeStruct((n, 1, OUT_LANES), jnp.float32),
        grid=(n,),
        in_specs=[
            pl.BlockSpec(memory_space=pltpu.MemorySpace.SMEM),              # PReLU alpha
            pl.BlockSpec((1, H_IN, C_IN * W_IN), lambda i: (i, 0, 0)),      # input image
            pl.BlockSpec((K, C_IN * W_IN, LANES1), lambda i: (0, 0, 0)),    # conv1 banded weights
            pl.BlockSpec((1, LANES1), lambda i: (0, 0)),                    # conv1 bias lanes
            pl.BlockSpec((K, C1 * Q1, LANES2), lambda i: (0, 0, 0)),        # conv2 banded weights
            pl.BlockSpec((1, LANES2), lambda i: (0, 0)),                    # conv2 bias lanes
            pl.BlockSpec((PH2, C2 * Q2, 150), lambda i: (0, 0, 0)),         # fc1 (row-split)
            pl.BlockSpec((1, 150), lambda i: (0, 0)),
            pl.BlockSpec((150, 100), lambda i: (0, 0)),                     # fc2 (K, N)
            pl.BlockSpec((1, 100), lambda i: (0, 0)),
            pl.BlockSpec((100, 50), lambda i: (0, 0)),                      # fc3
            pl.BlockSpec((1, 50), lambda i: (0, 0)),
            pl.BlockSpec((50, OUT_LANES), lambda i: (0, 0)),                # fc4 (lane-padded)
            pl.BlockSpec((1, OUT_LANES), lambda i: (0, 0)),
        ],
        out_specs=pl.BlockSpec((1, 1, OUT_LANES), lambda i: (i, 0, 0)),
        scratch_shapes=[
            pltpu.VMEM((OH1, C1 * Q1), jnp.float32),   # width-pooled conv1
            pltpu.VMEM((PH1, C1 * Q1), jnp.float32),   # pooled conv1
            pltpu.VMEM((OH2, C2 * Q2), jnp.float32),   # width-pooled conv2
            pltpu.VMEM((PH2, C2 * Q2), jnp.float32),   # pooled conv2
        ],
        compiler_params=pltpu.CompilerParams(
            dimension_semantics=("parallel",),
            vmem_limit_bytes=32 * 1024 * 1024,
        ),
    )(prepared["alpha"], x2d,
      prepared["w1"], prepared["b1"], prepared["w2"], prepared["b2"],
      prepared["fw1"], prepared["fb1"], prepared["fw2"], prepared["fb2"],
      prepared["fw3"], prepared["fb3"], prepared["fw4"], prepared["fb4"])
    # Drop the zero-padded lanes (10 real logits).
    return out.reshape(n, OUT_LANES)[:, :NUM_CLASSES]


# ----------------------------------------------------------------------------
# One-time host-side weight lowering (layout plumbing moved out of the hot path)
# ----------------------------------------------------------------------------
def _lower_conv(w_oihw, in_wpad, out_w, out_qpad):
    """Lower a PyTorch OIHW conv weight to K banded matrices.

    Input lanes  : ci*in_wpad + w_in            (channel-major, width-fastest)
    Output lanes : parity*(Cout*out_qpad) + co*out_qpad + q, with ow = 2q+parity
    Unused (padding) lanes get zero rows/columns, so garbage lanes carried
    through pooling never affect the result.
    """
    w = np.asarray(w_oihw, np.float32)
    cout, cin, k, _ = w.shape
    half = cout * out_qpad
    lowered = np.zeros((k, cin * in_wpad, 2 * half), np.float32)
    co = np.arange(cout)
    for di in range(k):
        for dj in range(k):
            for ow in range(out_w):
                w_in = ow + dj
                q, parity = divmod(ow, 2)
                l_out = parity * half + co * out_qpad + q
                for ci in range(cin):
                    lowered[di, ci * in_wpad + w_in, l_out] = w[:, ci, di, dj]
    return lowered


def _lower_bias(b, out_qpad):
    half = np.repeat(np.asarray(b, np.float32), out_qpad)
    return np.concatenate([half, half])[None, :]


def _lower_fc1(fw1):
    """fc1 weight (150, 1600) -> (5, 64*Q2, 150); folds PyTorch's
    x.view(-1, 64*5*5) NCHW flatten into the weight layout."""
    fw1 = np.asarray(fw1, np.float32)
    lowered = np.zeros((PH2, C2 * Q2, fw1.shape[0]), np.float32)
    for r in range(PH2):
        for co in range(C2):
            for q in range(PW2):
                lowered[r, co * Q2 + q, :] = fw1[:, co * (PH2 * PW2) + r * PW2 + q]
    return lowered


def _lower_fc4(fw4, fb4, pad_to=OUT_LANES):
    """fc4 (10, 50) -> (50, 128) with zero columns beyond 10 so the kernel's
    final store is a full lane-dense vst; real logits are sliced in the wrapper."""
    fw4 = np.asarray(fw4, np.float32)
    fb4 = np.asarray(fb4, np.float32)
    n_out, n_in = fw4.shape
    w = np.zeros((n_in, pad_to), np.float32)
    w[:, :n_out] = fw4.T
    b = np.zeros((1, pad_to), np.float32)
    b[0, :n_out] = fb4
    return w, b


def prepare_params(params):
    """Run once: pre-lower all weights into the kernel's layouts."""
    fw4, fb4 = _lower_fc4(params["fw4"], params["fb4"])
    return {
        "alpha": jnp.asarray(params["prelu"], jnp.float32),
        "w1": jnp.asarray(_lower_conv(params["w1"], W_IN, OW1, Q1)),    # (4, 96, 1024)
        "b1": jnp.asarray(_lower_bias(params["b1"], Q1)),               # (1, 1024)
        "w2": jnp.asarray(_lower_conv(params["w2"], Q1, OW2, Q2)),      # (4, 512, 768)
        "b2": jnp.asarray(_lower_bias(params["b2"], Q2)),               # (1, 768)
        "fw1": jnp.asarray(_lower_fc1(params["fw1"])),                  # (5, 384, 150)
        "fb1": jnp.asarray(np.asarray(params["fb1"], np.float32)[None, :]),
        "fw2": jnp.asarray(np.asarray(params["fw2"], np.float32).T),    # (150, 100)
        "fb2": jnp.asarray(np.asarray(params["fb2"], np.float32)[None, :]),
        "fw3": jnp.asarray(np.asarray(params["fw3"], np.float32).T),    # (100, 50)
        "fb3": jnp.asarray(np.asarray(params["fb3"], np.float32)[None, :]),
        "fw4": jnp.asarray(fw4),                                        # (50, 128)
        "fb4": jnp.asarray(fb4),                                        # (1, 128)
    }
    # TODO(synk): optionally cast lowered weights (and in-kernel dot inputs) to
    # bf16 on v6e/v7x to halve weight DMA bytes; kept f32 for exact validation.


# ----------------------------------------------------------------------------
# Pure-JAX reference (numerical validation only)
# ----------------------------------------------------------------------------
def reference_forward(x_nchw, params):
    a = params["prelu"][0, 0]
    prelu = lambda v: jnp.where(v >= 0.0, v, a * v)
    dn = ("NCHW", "OIHW", "NCHW")

    y = jax.lax.conv_general_dilated(x_nchw, params["w1"], (1, 1), "VALID",
                                     dimension_numbers=dn)
    y = prelu(y + params["b1"][None, :, None, None])
    y = jax.lax.reduce_window(y, -jnp.inf, jax.lax.max, (1, 1, 2, 2), (1, 1, 2, 2), "VALID")
    y = jax.lax.conv_general_dilated(y, params["w2"], (1, 1), "VALID",
                                     dimension_numbers=dn)
    y = prelu(y + params["b2"][None, :, None, None])
    y = jax.lax.reduce_window(y, -jnp.inf, jax.lax.max, (1, 1, 2, 2), (1, 1, 2, 2), "VALID")
    y = y.reshape(y.shape[0], -1)
    y = y @ params["fw1"].T + params["fb1"]
    y = prelu(y) @ params["fw2"].T + params["fb2"]
    y = prelu(y) @ params["fw3"].T + params["fb3"]
    y = prelu(y) @ params["fw4"].T + params["fb4"]
    return y


# ----------------------------------------------------------------------------
# Deterministic parameter init (shapes from CNNNetwrok.__init__)
# ----------------------------------------------------------------------------
def init_params(key):
    ks = jax.random.split(key, 12)

    def u(k, shape, fan_in):
        bound = 1.0 / np.sqrt(fan_in)
        return jax.random.uniform(k, shape, jnp.float32, -bound, bound)

    return {
        "w1": u(ks[0], (32, 3, 4, 4), 3 * 16),
        "b1": u(ks[1], (32,), 3 * 16),
        "w2": u(ks[2], (64, 32, 4, 4), 32 * 16),
        "b2": u(ks[3], (64,), 32 * 16),
        "fw1": u(ks[4], (150, 64 * 5 * 5), 64 * 5 * 5),
        "fb1": u(ks[5], (150,), 64 * 5 * 5),
        "fw2": u(ks[6], (100, 150), 150),
        "fb2": u(ks[7], (100,), 150),
        "fw3": u(ks[8], (50, 100), 100),
        "fb3": u(ks[9], (50,), 100),
        "fw4": u(ks[10], (10, 50), 50),
        "fb4": u(ks[11], (10,), 50),
        # nn.PReLU() default: single learnable alpha initialized to 0.25
        # (self.slope = 0.01 is unused in the PyTorch forward)
        "prelu": jnp.full((1, 1), 0.25, jnp.float32),
    }


if __name__ == "__main__":
    key = jax.random.PRNGKey(0)
    pk, xk = jax.random.split(key)
    params = init_params(pk)
    prepared = prepare_params(params)

    # Input must be 3x32x32 for the fc1 (64*5*5) flatten to be valid.
    x = jax.random.normal(xk, (2, 3, 32, 32), dtype=jnp.float32)

    out = cnn_forward(x, prepared)
    out = jax.block_until_ready(out)
    assert out.shape == (2, 10), out.shape

    ref = reference_forward(x, params)
    np.testing.assert_allclose(np.asarray(out), np.asarray(ref), rtol=1e-3, atol=1e-3)

    print("KERNEL_OK")
</pallas_src>

<mosaic_0001>
module attributes {stable_mosaic.version = 11 : i64} {
  func.func @_fused_cnn_kernel(%arg0: i32, %arg1: memref<1x1xf32, #tpu.memory_space<smem>>, %arg2: memref<1x32x96xf32, #tpu.memory_space<vmem>>, %arg3: memref<4x96x1024xf32, #tpu.memory_space<vmem>>, %arg4: memref<1x1024xf32, #tpu.memory_space<vmem>>, %arg5: memref<4x512x768xf32, #tpu.memory_space<vmem>>, %arg6: memref<1x768xf32, #tpu.memory_space<vmem>>, %arg7: memref<5x384x150xf32, #tpu.memory_space<vmem>>, %arg8: memref<1x150xf32, #tpu.memory_space<vmem>>, %arg9: memref<150x100xf32, #tpu.memory_space<vmem>>, %arg10: memref<1x100xf32, #tpu.memory_space<vmem>>, %arg11: memref<100x50xf32, #tpu.memory_space<vmem>>, %arg12: memref<1x50xf32, #tpu.memory_space<vmem>>, %arg13: memref<50x128xf32, #tpu.memory_space<vmem>>, %arg14: memref<1x128xf32, #tpu.memory_space<vmem>>, %arg15: memref<1x1x128xf32, #tpu.memory_space<vmem>>, %arg16: memref<29x512xf32, #tpu.memory_space<vmem>>, %arg17: memref<14x512xf32, #tpu.memory_space<vmem>>, %arg18: memref<11x384xf32, #tpu.memory_space<vmem>>, %arg19: memref<5x384xf32, #tpu.memory_space<vmem>>) attributes {dimension_semantics = [#tpu.dimension_semantics<parallel>], iteration_bounds = array<i64: 2>, scalar_prefetch = 0 : i64, scratch_operands = 4 : i64, tpu.core_type = #tpu.core_type<tc>, window_params = [{transform_indices = @transform_0, window_bounds = array<i64: 1, 1>}, {transform_indices = @transform_1, window_bounds = array<i64: 1, 32, 96>}, {pipeline_mode = #tpu.pipeline_mode<synchronous>, transform_indices = @transform_2, window_bounds = array<i64: 4, 96, 1024>}, {pipeline_mode = #tpu.pipeline_mode<synchronous>, transform_indices = @transform_3, window_bounds = array<i64: 1, 1024>}, {pipeline_mode = #tpu.pipeline_mode<synchronous>, transform_indices = @transform_4, window_bounds = array<i64: 4, 512, 768>}, {pipeline_mode = #tpu.pipeline_mode<synchronous>, transform_indices = @transform_5, window_bounds = array<i64: 1, 768>}, {pipeline_mode = #tpu.pipeline_mode<synchronous>, transform_indices = @transform_6, window_bounds = array<i64: 5, 384, 150>}, {pipeline_mode = #tpu.pipeline_mode<synchronous>, transform_indices = @transform_7, window_bounds = array<i64: 1, 150>}, {pipeline_mode = #tpu.pipeline_mode<synchronous>, transform_indices = @transform_8, window_bounds = array<i64: 150, 100>}, {pipeline_mode = #tpu.pipeline_mode<synchronous>, transform_indices = @transform_9, window_bounds = array<i64: 1, 100>}, {pipeline_mode = #tpu.pipeline_mode<synchronous>, transform_indices = @transform_10, window_bounds = array<i64: 100, 50>}, {pipeline_mode = #tpu.pipeline_mode<synchronous>, transform_indices = @transform_11, window_bounds = array<i64: 1, 50>}, {pipeline_mode = #tpu.pipeline_mode<synchronous>, transform_indices = @transform_12, window_bounds = array<i64: 50, 128>}, {pipeline_mode = #tpu.pipeline_mode<synchronous>, transform_indices = @transform_13, window_bounds = array<i64: 1, 128>}, {transform_indices = @transform_14, window_bounds = array<i64: 1, 1, 128>}]} {
    %c0 = arith.constant 0 : index
    %c0_0 = arith.constant 0 : index
    %0 = memref.load %arg1[%c0, %c0_0] : memref<1x1xf32, #tpu.memory_space<smem>>
    %c0_1 = arith.constant 0 : index
    %c0_2 = arith.constant 0 : index
    %c0_3 = arith.constant 0 : index
    %1 = vector.load %arg2[%c0_1, %c0_2, %c0_3] : memref<1x32x96xf32, #tpu.memory_space<vmem>>, vector<1x29x96xf32>
    %2 = vector.shape_cast %1 : vector<1x29x96xf32> to vector<29x96xf32>
    %c0_4 = arith.constant 0 : index
    %c0_5 = arith.constant 0 : index
    %c0_6 = arith.constant 0 : index
    %3 = vector.load %arg3[%c0_4, %c0_5, %c0_6] : memref<4x96x1024xf32, #tpu.memory_space<vmem>>, vector<1x96x1024xf32>
    %4 = vector.shape_cast %3 : vector<1x96x1024xf32> to vector<96x1024xf32>
    %cst = arith.constant dense<0.000000e+00> : vector<29x1024xf32>
    %5 = tpu.matmul %2, %4, %cst {dimension_numbers = #tpu.dot_dimension_numbers<[1], [0], [0], [1], [0, 0, 1, 1], [], []>} : vector<29x96xf32>, vector<96x1024xf32>, vector<29x1024xf32> -> vector<29x1024xf32>
    %c0_7 = arith.constant 0 : index
    %c1 = arith.constant 1 : index
    %c0_8 = arith.constant 0 : index
    %6 = vector.load %arg2[%c0_7, %c1, %c0_8] : memref<1x32x96xf32, #tpu.memory_space<vmem>>, vector<1x29x96xf32>
    %7 = vector.shape_cast %6 : vector<1x29x96xf32> to vector<29x96xf32>
    %c1_9 = arith.constant 1 : index
    %c0_10 = arith.constant 0 : index
    %c0_11 = arith.constant 0 : index
    %8 = vector.load %arg3[%c1_9, %c0_10, %c0_11] : memref<4x96x1024xf32, #tpu.memory_space<vmem>>, vector<1x96x1024xf32>
    %9 = vector.shape_cast %8 : vector<1x96x1024xf32> to vector<96x1024xf32>
    %cst_12 = arith.constant dense<0.000000e+00> : vector<29x1024xf32>
    %10 = tpu.matmul %7, %9, %cst_12 {dimension_numbers = #tpu.dot_dimension_numbers<[1], [0], [0], [1], [0, 0, 1, 1], [], []>} : vector<29x96xf32>, vector<96x1024xf32>, vector<29x1024xf32> -> vector<29x1024xf32>
    %11 = arith.addf %5, %10 : vector<29x1024xf32>
    %c0_13 = arith.constant 0 : index
    %c2 = arith.constant 2 : index
    %c0_14 = arith.constant 0 : index
    %12 = vector.load %arg2[%c0_13, %c2, %c0_14] : memref<1x32x96xf32, #tpu.memory_space<vmem>>, vector<1x29x96xf32>
    %13 = vector.shape_cast %12 : vector<1x29x96xf32> to vector<29x96xf32>
    %c2_15 = arith.constant 2 : index
    %c0_16 = arith.constant 0 : index
    %c0_17 = arith.constant 0 : index
    %14 = vector.load %arg3[%c2_15, %c0_16, %c0_17] : memref<4x96x1024xf32, #tpu.memory_space<vmem>>, vector<1x96x1024xf32>
    %15 = vector.shape_cast %14 : vector<1x96x1024xf32> to vector<96x1024xf32>
    %cst_18 = arith.constant dense<0.000000e+00> : vector<29x1024xf32>
    %16 = tpu.matmul %13, %15, %cst_18 {dimension_numbers = #tpu.dot_dimension_numbers<[1], [0], [0], [1], [0, 0, 1, 1], [], []>} : vector<29x96xf32>, vector<96x1024xf32>, vector<29x1024xf32> -> vector<29x1024xf32>
    %17 = arith.addf %11, %16 : vector<29x1024xf32>
    %c0_19 = arith.constant 0 : index
    %c3 = arith.constant 3 : index
    %c0_20 = arith.constant 0 : index
    %18 = vector.load %arg2[%c0_19, %c3, %c0_20] : memref<1x32x96xf32, #tpu.memory_space<vmem>>, vector<1x29x96xf32>
    %19 = vector.shape_cast %18 : vector<1x29x96xf32> to vector<29x96xf32>
    %c3_21 = arith.constant 3 : index
    %c0_22 = arith.constant 0 : index
    %c0_23 = arith.constant 0 : index
    %20 = vector.load %arg3[%c3_21, %c0_22, %c0_23] : memref<4x96x1024xf32, #tpu.memory_space<vmem>>, vector<1x96x1024xf32>
    %21 = vector.shape_cast %20 : vector<1x96x1024xf32> to vector<96x1024xf32>
    %cst_24 = arith.constant dense<0.000000e+00> : vector<29x1024xf32>
    %22 = tpu.matmul %19, %21, %cst_24 {dimension_numbers = #tpu.dot_dimension_numbers<[1], [0], [0], [1], [0, 0, 1, 1], [], []>} : vector<29x96xf32>, vector<96x1024xf32>, vector<29x1024xf32> -> vector<29x1024xf32>
    %23 = arith.addf %17, %22 : vector<29x1024xf32>
    %c0_25 = arith.constant 0 : index
    %c0_26 = arith.constant 0 : index
    %24 = vector.load %arg4[%c0_25, %c0_26] : memref<1x1024xf32, #tpu.memory_space<vmem>>, vector<1x1024xf32>
    %25 = vector.broadcast %24 : vector<1x1024xf32> to vector<29x1024xf32>
    %26 = arith.addf %23, %25 : vector<29x1024xf32>
    %cst_27 = arith.constant 0.000000e+00 : f32
    %27 = vector.broadcast %cst_27 : f32 to vector<29x1024xf32>
    %28 = arith.cmpf oge, %26, %27 : vector<29x1024xf32>
    %29 = vector.broadcast %0 : f32 to vector<29x1024xf32>
    %30 = arith.mulf %29, %26 : vector<29x1024xf32>
    %31 = arith.select %28, %26, %30 : vector<29x1024xi1>, vector<29x1024xf32>
    %32 = vector.extract_strided_slice %31 {offsets = [0, 0], sizes = [29, 512], strides = [1, 1]} : vector<29x1024xf32> to vector<29x512xf32>
    %33 = vector.extract_strided_slice %31 {offsets = [0, 512], sizes = [29, 512], strides = [1, 1]} : vector<29x1024xf32> to vector<29x512xf32>
    %34 = arith.maximumf %32, %33 : vector<29x512xf32>
    %c0_28 = arith.constant 0 : index
    %c0_29 = arith.constant 0 : index
    %35 = vector.load %arg16[%c0_28, %c0_29] : memref<29x512xf32, #tpu.memory_space<vmem>>, vector<29x512xf32>
    tpu.vector_store %arg16[%c0_28, %c0_29], %34 {strides = array<i32>} : memref<29x512xf32, #tpu.memory_space<vmem>>, vector<29x512xf32>,
    %c0_30 = arith.constant 0 : index
    %c0_31 = arith.constant 0 : index
    %36 = vector.load %arg16[%c0_30, %c0_31] : memref<29x512xf32, #tpu.memory_space<vmem>>, vector<1x512xf32>
    %c1_32 = arith.constant 1 : index
    %c0_33 = arith.constant 0 : index
    %37 = vector.load %arg16[%c1_32, %c0_33] : memref<29x512xf32, #tpu.memory_space<vmem>>, vector<1x512xf32>
    %38 = arith.maximumf %36, %37 : vector<1x512xf32>
    %c0_34 = arith.constant 0 : index
    %c0_35 = arith.constant 0 : index
    %39 = vector.load %arg17[%c0_34, %c0_35] : memref<14x512xf32, #tpu.memory_space<vmem>>, vector<1x512xf32>
    tpu.vector_store %arg17[%c0_34, %c0_35], %38 {strides = array<i32>} : memref<14x512xf32, #tpu.memory_space<vmem>>, vector<1x512xf32>,
    %c2_36 = arith.constant 2 : index
    %c0_37 = arith.constant 0 : index
    %40 = vector.load %arg16[%c2_36, %c0_37] : memref<29x512xf32, #tpu.memory_space<vmem>>, vector<1x512xf32>
    %c3_38 = arith.constant 3 : index
    %c0_39 = arith.constant 0 : index
    %41 = vector.load %arg16[%c3_38, %c0_39] : memref<29x512xf32, #tpu.memory_space<vmem>>, vector<1x512xf32>
    %42 = arith.maximumf %40, %41 : vector<1x512xf32>
    %c1_40 = arith.constant 1 : index
    %c0_41 = arith.constant 0 : index
    %43 = vector.load %arg17[%c1_40, %c0_41] : memref<14x512xf32, #tpu.memory_space<vmem>>, vector<1x512xf32>
    tpu.vector_store %arg17[%c1_40, %c0_41], %42 {strides = array<i32>} : memref<14x512xf32, #tpu.memory_space<vmem>>, vector<1x512xf32>,
    %c4 = arith.constant 4 : index
    %c0_42 = arith.constant 0 : index
    %44 = vector.load %arg16[%c4, %c0_42] : memref<29x512xf32, #tpu.memory_space<vmem>>, vector<1x512xf32>
    %c5 = arith.constant 5 : index
    %c0_43 = arith.constant 0 : index
    %45 = vector.load %arg16[%c5, %c0_43] : memref<29x512xf32, #tpu.memory_space<vmem>>, vector<1x512xf32>
    %46 = arith.maximumf %44, %45 : vector<1x512xf32>
    %c2_44 = arith.constant 2 : index
    %c0_45 = arith.constant 0 : index
    %47 = vector.load %arg17[%c2_44, %c0_45] : memref<14x512xf32, #tpu.memory_space<vmem>>, vector<1x512xf32>
    tpu.vector_store %arg17[%c2_44, %c0_45], %46 {strides = array<i32>} : memref<14x512xf32, #tpu.memory_space<vmem>>, vector<1x512xf32>,
    %c6 = arith.constant 6 : index
    %c0_46 = arith.constant 0 : index
    %48 = vector.load %arg16[%c6, %c0_46] : memref<29x512xf32, #tpu.memory_space<vmem>>, vector<1x512xf32>
    %c7 = arith.constant 7 : index
    %c0_47 = arith.constant 0 : index
    %49 = vector.load %arg16[%c7, %c0_47] : memref<29x512xf32, #tpu.memory_space<vmem>>, vector<1x512xf32>
    %50 = arith.maximumf %48, %49 : vector<1x512xf32>
    %c3_48 = arith.constant 3 : index
    %c0_49 = arith.constant 0 : index
    %51 = vector.load %arg17[%c3_48, %c0_49] : memref<14x512xf32, #tpu.memory_space<vmem>>, vector<1x512xf32>
    tpu.vector_store %arg17[%c3_48, %c0_49], %50 {strides = array<i32>} : memref<14x512xf32, #tpu.memory_space<vmem>>, vector<1x512xf32>,
    %c8 = arith.constant 8 : index
    %c0_50 = arith.constant 0 : index
    %52 = vector.load %arg16[%c8, %c0_50] : memref<29x512xf32, #tpu.memory_space<vmem>>, vector<1x512xf32>
    %c9 = arith.constant 9 : index
    %c0_51 = arith.constant 0 : index
    %53 = vector.load %arg16[%c9, %c0_51] : memref<29x512xf32, #tpu.memory_space<vmem>>, vector<1x512xf32>
    %54 = arith.maximumf %52, %53 : vector<1x512xf32>
    %c4_52 = arith.constant 4 : index
    %c0_53 = arith.constant 0 : index
    %55 = vector.load %arg17[%c4_52, %c0_53] : memref<14x512xf32, #tpu.memory_space<vmem>>, vector<1x512xf32>
    tpu.vector_store %arg17[%c4_52, %c0_53], %54 {strides = array<i32>} : memref<14x512xf32, #tpu.memory_space<vmem>>, vector<1x512xf32>,
    %c10 = arith.constant 10 : index
    %c0_54 = arith.constant 0 : index
    %56 = vector.load %arg16[%c10, %c0_54] : memref<29x512xf32, #tpu.memory_space<vmem>>, vector<1x512xf32>
    %c11 = arith.constant 11 : index
    %c0_55 = arith.constant 0 : index
    %57 = vector.load %arg16[%c11, %c0_55] : memref<29x512xf32, #tpu.memory_space<vmem>>, vector<1x512xf32>
    %58 = arith.maximumf %56, %57 : vector<1x512xf32>
    %c5_56 = arith.constant 5 : index
    %c0_57 = arith.constant 0 : index
    %59 = vector.load %arg17[%c5_56, %c0_57] : memref<14x512xf32, #tpu.memory_space<vmem>>, vector<1x512xf32>
    tpu.vector_store %arg17[%c5_56, %c0_57], %58 {strides = array<i32>} : memref<14x512xf32, #tpu.memory_space<vmem>>, vector<1x512xf32>,
    %c12 = arith.constant 12 : index
    %c0_58 = arith.constant 0 : index
    %60 = vector.load %arg16[%c12, %c0_58] : memref<29x512xf32, #tpu.memory_space<vmem>>, vector<1x512xf32>
    %c13 = arith.constant 13 : index
    %c0_59 = arith.constant 0 : index
    %61 = vector.load %arg16[%c13, %c0_59] : memref<29x512xf32, #tpu.memory_space<vmem>>, vector<1x512xf32>
    %62 = arith.maximumf %60, %61 : vector<1x512xf32>
    %c6_60 = arith.constant 6 : index
    %c0_61 = arith.constant 0 : index
    %63 = vector.load %arg17[%c6_60, %c0_61] : memref<14x512xf32, #tpu.memory_space<vmem>>, vector<1x512xf32>
    tpu.vector_store %arg17[%c6_60, %c0_61], %62 {strides = array<i32>} : memref<14x512xf32, #tpu.memory_space<vmem>>, vector<1x512xf32>,
    %c14 = arith.constant 14 : index
    %c0_62 = arith.constant 0 : index
    %64 = vector.load %arg16[%c14, %c0_62] : memref<29x512xf32, #tpu.memory_space<vmem>>, vector<1x512xf32>
    %c15 = arith.constant 15 : index
    %c0_63 = arith.constant 0 : index
    %65 = vector.load %arg16[%c15, %c0_63] : memref<29x512xf32, #tpu.memory_space<vmem>>, vector<1x512xf32>
    %66 = arith.maximumf %64, %65 : vector<1x512xf32>
    %c7_64 = arith.constant 7 : index
    %c0_65 = arith.constant 0 : index
    %67 = vector.load %arg17[%c7_64, %c0_65] : memref<14x512xf32, #tpu.memory_space<vmem>>, vector<1x512xf32>
    tpu.vector_store %arg17[%c7_64, %c0_65], %66 {strides = array<i32>} : memref<14x512xf32, #tpu.memory_space<vmem>>, vector<1x512xf32>,
    %c16 = arith.constant 16 : index
    %c0_66 = arith.constant 0 : index
    %68 = vector.load %arg16[%c16, %c0_66] : memref<29x512xf32, #tpu.memory_space<vmem>>, vector<1x512xf32>
    %c17 = arith.constant 17 : index
    %c0_67 = arith.constant 0 : index
    %69 = vector.load %arg16[%c17, %c0_67] : memref<29x512xf32, #tpu.memory_space<vmem>>, vector<1x512xf32>
    %70 = arith.maximumf %68, %69 : vector<1x512xf32>
    %c8_68 = arith.constant 8 : index
    %c0_69 = arith.constant 0 : index
    %71 = vector.load %arg17[%c8_68, %c0_69] : memref<14x512xf32, #tpu.memory_space<vmem>>, vector<1x512xf32>
    tpu.vector_store %arg17[%c8_68, %c0_69], %70 {strides = array<i32>} : memref<14x512xf32, #tpu.memory_space<vmem>>, vector<1x512xf32>,
    %c18 = arith.constant 18 : index
    %c0_70 = arith.constant 0 : index
    %72 = vector.load %arg16[%c18, %c0_70] : memref<29x512xf32, #tpu.memory_space<vmem>>, vector<1x512xf32>
    %c19 = arith.constant 19 : index
    %c0_71 = arith.constant 0 : index
    %73 = vector.load %arg16[%c19, %c0_71] : memref<29x512xf32, #tpu.memory_space<vmem>>, vector<1x512xf32>
    %74 = arith.maximumf %72, %73 : vector<1x512xf32>
    %c9_72 = arith.constant 9 : index
    %c0_73 = arith.constant 0 : index
    %75 = vector.load %arg17[%c9_72, %c0_73] : memref<14x512xf32, #tpu.memory_space<vmem>>, vector<1x512xf32>
    tpu.vector_store %arg17[%c9_72, %c0_73], %74 {strides = array<i32>} : memref<14x512xf32, #tpu.memory_space<vmem>>, vector<1x512xf32>,
    %c20 = arith.constant 20 : index
    %c0_74 = arith.constant 0 : index
    %76 = vector.load %arg16[%c20, %c0_74] : memref<29x512xf32, #tpu.memory_space<vmem>>, vector<1x512xf32>
    %c21 = arith.constant 21 : index
    %c0_75 = arith.constant 0 : index
    %77 = vector.load %arg16[%c21, %c0_75] : memref<29x512xf32, #tpu.memory_space<vmem>>, vector<1x512xf32>
    %78 = arith.maximumf %76, %77 : vector<1x512xf32>
    %c10_76 = arith.constant 10 : index
    %c0_77 = arith.constant 0 : index
    %79 = vector.load %arg17[%c10_76, %c0_77] : memref<14x512xf32, #tpu.memory_space<vmem>>, vector<1x512xf32>
    tpu.vector_store %arg17[%c10_76, %c0_77], %78 {strides = array<i32>} : memref<14x512xf32, #tpu.memory_space<vmem>>, vector<1x512xf32>,
    %c22 = arith.constant 22 : index
    %c0_78 = arith.constant 0 : index
    %80 = vector.load %arg16[%c22, %c0_78] : memref<29x512xf32, #tpu.memory_space<vmem>>, vector<1x512xf32>
    %c23 = arith.constant 23 : index
    %c0_79 = arith.constant 0 : index
    %81 = vector.load %arg16[%c23, %c0_79] : memref<29x512xf32, #tpu.memory_space<vmem>>, vector<1x512xf32>
    %82 = arith.maximumf %80, %81 : vector<1x512xf32>
    %c11_80 = arith.constant 11 : index
    %c0_81 = arith.constant 0 : index
    %83 = vector.load %arg17[%c11_80, %c0_81] : memref<14x512xf32, #tpu.memory_space<vmem>>, vector<1x512xf32>
    tpu.vector_store %arg17[%c11_80, %c0_81], %82 {strides = array<i32>} : memref<14x512xf32, #tpu.memory_space<vmem>>, vector<1x512xf32>,
    %c24 = arith.constant 24 : index
    %c0_82 = arith.constant 0 : index
    %84 = vector.load %arg16[%c24, %c0_82] : memref<29x512xf32, #tpu.memory_space<vmem>>, vector<1x512xf32>
    %c25 = arith.constant 25 : index
    %c0_83 = arith.constant 0 : index
    %85 = vector.load %arg16[%c25, %c0_83] : memref<29x512xf32, #tpu.memory_space<vmem>>, vector<1x512xf32>
    %86 = arith.maximumf %84, %85 : vector<1x512xf32>
    %c12_84 = arith.constant 12 : index
    %c0_85 = arith.constant 0 : index
    %87 = vector.load %arg17[%c12_84, %c0_85] : memref<14x512xf32, #tpu.memory_space<vmem>>, vector<1x512xf32>
    tpu.vector_store %arg17[%c12_84, %c0_85], %86 {strides = array<i32>} : memref<14x512xf32, #tpu.memory_space<vmem>>, vector<1x512xf32>,
    %c26 = arith.constant 26 : index
    %c0_86 = arith.constant 0 : index
    %88 = vector.load %arg16[%c26, %c0_86] : memref<29x512xf32, #tpu.memory_space<vmem>>, vector<1x512xf32>
    %c27 = arith.constant 27 : index
    %c0_87 = arith.constant 0 : index
    %89 = vector.load %arg16[%c27, %c0_87] : memref<29x512xf32, #tpu.memory_space<vmem>>, vector<1x512xf32>
    %90 = arith.maximumf %88, %89 : vector<1x512xf32>
    %c13_88 = arith.constant 13 : index
    %c0_89 = arith.constant 0 : index
    %91 = vector.load %arg17[%c13_88, %c0_89] : memref<14x512xf32, #tpu.memory_space<vmem>>, vector<1x512xf32>
    tpu.vector_store %arg17[%c13_88, %c0_89], %90 {strides = array<i32>} : memref<14x512xf32, #tpu.memory_space<vmem>>, vector<1x512xf32>,
    %c0_90 = arith.constant 0 : index
    %c0_91 = arith.constant 0 : index
    %92 = vector.load %arg17[%c0_90, %c0_91] : memref<14x512xf32, #tpu.memory_space<vmem>>, vector<11x512xf32>
    %c0_92 = arith.constant 0 : index
    %c0_93 = arith.constant 0 : index
    %c0_94 = arith.constant 0 : index
    %93 = vector.load %arg5[%c0_92, %c0_93, %c0_94] : memref<4x512x768xf32, #tpu.memory_space<vmem>>, vector<1x512x768xf32>
    %94 = vector.shape_cast %93 : vector<1x512x768xf32> to vector<512x768xf32>
    %cst_95 = arith.constant dense<0.000000e+00> : vector<11x768xf32>
    %95 = tpu.matmul %92, %94, %cst_95 {dimension_numbers = #tpu.dot_dimension_numbers<[1], [0], [0], [1], [0, 0, 1, 1], [], []>} : vector<11x512xf32>, vector<512x768xf32>, vector<11x768xf32> -> vector<11x768xf32>
    %c1_96 = arith.constant 1 : index
    %c0_97 = arith.constant 0 : index
    %96 = vector.load %arg17[%c1_96, %c0_97] : memref<14x512xf32, #tpu.memory_space<vmem>>, vector<11x512xf32>
    %c1_98 = arith.constant 1 : index
    %c0_99 = arith.constant 0 : index
    %c0_100 = arith.constant 0 : index
    %97 = vector.load %arg5[%c1_98, %c0_99, %c0_100] : memref<4x512x768xf32, #tpu.memory_space<vmem>>, vector<1x512x768xf32>
    %98 = vector.shape_cast %97 : vector<1x512x768xf32> to vector<512x768xf32>
    %cst_101 = arith.constant dense<0.000000e+00> : vector<11x768xf32>
    %99 = tpu.matmul %96, %98, %cst_101 {dimension_numbers = #tpu.dot_dimension_numbers<[1], [0], [0], [1], [0, 0, 1, 1], [], []>} : vector<11x512xf32>, vector<512x768xf32>, vector<11x768xf32> -> vector<11x768xf32>
    %100 = arith.addf %95, %99 : vector<11x768xf32>
    %c2_102 = arith.constant 2 : index
    %c0_103 = arith.constant 0 : index
    %101 = vector.load %arg17[%c2_102, %c0_103] : memref<14x512xf32, #tpu.memory_space<vmem>>, vector<11x512xf32>
    %c2_104 = arith.constant 2 : index
    %c0_105 = arith.constant 0 : index
    %c0_106 = arith.constant 0 : index
    %102 = vector.load %arg5[%c2_104, %c0_105, %c0_106] : memref<4x512x768xf32, #tpu.memory_space<vmem>>, vector<1x512x768xf32>
    %103 = vector.shape_cast %102 : vector<1x512x768xf32> to vector<512x768xf32>
    %cst_107 = arith.constant dense<0.000000e+00> : vector<11x768xf32>
    %104 = tpu.matmul %101, %103, %cst_107 {dimension_numbers = #tpu.dot_dimension_numbers<[1], [0], [0], [1], [0, 0, 1, 1], [], []>} : vector<11x512xf32>, vector<512x768xf32>, vector<11x768xf32> -> vector<11x768xf32>
    %105 = arith.addf %100, %104 : vector<11x768xf32>
    %c3_108 = arith.constant 3 : index
    %c0_109 = arith.constant 0 : index
    %106 = vector.load %arg17[%c3_108, %c0_109] : memref<14x512xf32, #tpu.memory_space<vmem>>, vector<11x512xf32>
    %c3_110 = arith.constant 3 : index
    %c0_111 = arith.constant 0 : index
    %c0_112 = arith.constant 0 : index
    %107 = vector.load %arg5[%c3_110, %c0_111, %c0_112] : memref<4x512x768xf32, #tpu.memory_space<vmem>>, vector<1x512x768xf32>
    %108 = vector.shape_cast %107 : vector<1x512x768xf32> to vector<512x768xf32>
    %cst_113 = arith.constant dense<0.000000e+00> : vector<11x768xf32>
    %109 = tpu.matmul %106, %108, %cst_113 {dimension_numbers = #tpu.dot_dimension_numbers<[1], [0], [0], [1], [0, 0, 1, 1], [], []>} : vector<11x512xf32>, vector<512x768xf32>, vector<11x768xf32> -> vector<11x768xf32>
    %110 = arith.addf %105, %109 : vector<11x768xf32>
    %c0_114 = arith.constant 0 : index
    %c0_115 = arith.constant 0 : index
    %111 = vector.load %arg6[%c0_114, %c0_115] : memref<1x768xf32, #tpu.memory_space<vmem>>, vector<1x768xf32>
    %112 = vector.broadcast %111 : vector<1x768xf32> to vector<11x768xf32>
    %113 = arith.addf %110, %112 : vector<11x768xf32>
    %cst_116 = arith.constant 0.000000e+00 : f32
    %114 = vector.broadcast %cst_116 : f32 to vector<11x768xf32>
    %115 = arith.cmpf oge, %113, %114 : vector<11x768xf32>
    %116 = vector.broadcast %0 : f32 to vector<11x768xf32>
    %117 = arith.mulf %116, %113 : vector<11x768xf32>
    %118 = arith.select %115, %113, %117 : vector<11x768xi1>, vector<11x768xf32>
    %119 = vector.extract_strided_slice %118 {offsets = [0, 0], sizes = [11, 384], strides = [1, 1]} : vector<11x768xf32> to vector<11x384xf32>
    %120 = vector.extract_strided_slice %118 {offsets = [0, 384], sizes = [11, 384], strides = [1, 1]} : vector<11x768xf32> to vector<11x384xf32>
    %121 = arith.maximumf %119, %120 : vector<11x384xf32>
    %c0_117 = arith.constant 0 : index
    %c0_118 = arith.constant 0 : index
    %122 = vector.load %arg18[%c0_117, %c0_118] : memref<11x384xf32, #tpu.memory_space<vmem>>, vector<11x384xf32>
    tpu.vector_store %arg18[%c0_117, %c0_118], %121 {strides = array<i32>} : memref<11x384xf32, #tpu.memory_space<vmem>>, vector<11x384xf32>,
    %c0_119 = arith.constant 0 : index
    %c0_120 = arith.constant 0 : index
    %123 = vector.load %arg18[%c0_119, %c0_120] : memref<11x384xf32, #tpu.memory_space<vmem>>, vector<1x384xf32>
    %c1_121 = arith.constant 1 : index
    %c0_122 = arith.constant 0 : index
    %124 = vector.load %arg18[%c1_121, %c0_122] : memref<11x384xf32, #tpu.memory_space<vmem>>, vector<1x384xf32>
    %125 = arith.maximumf %123, %124 : vector<1x384xf32>
    %c0_123 = arith.constant 0 : index
    %c0_124 = arith.constant 0 : index
    %126 = vector.load %arg19[%c0_123, %c0_124] : memref<5x384xf32, #tpu.memory_space<vmem>>, vector<1x384xf32>
    tpu.vector_store %arg19[%c0_123, %c0_124], %125 {strides = array<i32>} : memref<5x384xf32, #tpu.memory_space<vmem>>, vector<1x384xf32>,
    %c2_125 = arith.constant 2 : index
    %c0_126 = arith.constant 0 : index
    %127 = vector.load %arg18[%c2_125, %c0_126] : memref<11x384xf32, #tpu.memory_space<vmem>>, vector<1x384xf32>
    %c3_127 = arith.constant 3 : index
    %c0_128 = arith.constant 0 : index
    %128 = vector.load %arg18[%c3_127, %c0_128] : memref<11x384xf32, #tpu.memory_space<vmem>>, vector<1x384xf32>
    %129 = arith.maximumf %127, %128 : vector<1x384xf32>
    %c1_129 = arith.constant 1 : index
    %c0_130 = arith.constant 0 : index
    %130 = vector.load %arg19[%c1_129, %c0_130] : memref<5x384xf32, #tpu.memory_space<vmem>>, vector<1x384xf32>
    tpu.vector_store %arg19[%c1_129, %c0_130], %129 {strides = array<i32>} : memref<5x384xf32, #tpu.memory_space<vmem>>, vector<1x384xf32>,
    %c4_131 = arith.constant 4 : index
    %c0_132 = arith.constant 0 : index
    %131 = vector.load %arg18[%c4_131, %c0_132] : memref<11x384xf32, #tpu.memory_space<vmem>>, vector<1x384xf32>
    %c5_133 = arith.constant 5 : index
    %c0_134 = arith.constant 0 : index
    %132 = vector.load %arg18[%c5_133, %c0_134] : memref<11x384xf32, #tpu.memory_space<vmem>>, vector<1x384xf32>
    %133 = arith.maximumf %131, %132 : vector<1x384xf32>
    %c2_135 = arith.constant 2 : index
    %c0_136 = arith.constant 0 : index
    %134 = vector.load %arg19[%c2_135, %c0_136] : memref<5x384xf32, #tpu.memory_space<vmem>>, vector<1x384xf32>
    tpu.vector_store %arg19[%c2_135, %c0_136], %133 {strides = array<i32>} : memref<5x384xf32, #tpu.memory_space<vmem>>, vector<1x384xf32>,
    %c6_137 = arith.constant 6 : index
    %c0_138 = arith.constant 0 : index
    %135 = vector.load %arg18[%c6_137, %c0_138] : memref<11x384xf32, #tpu.memory_space<vmem>>, vector<1x384xf32>
    %c7_139 = arith.constant 7 : index
    %c0_140 = arith.constant 0 : index
    %136 = vector.load %arg18[%c7_139, %c0_140] : memref<11x384xf32, #tpu.memory_space<vmem>>, vector<1x384xf32>
    %137 = arith.maximumf %135, %136 : vector<1x384xf32>
    %c3_141 = arith.constant 3 : index
    %c0_142 = arith.constant 0 : index
    %138 = vector.load %arg19[%c3_141, %c0_142] : memref<5x384xf32, #tpu.memory_space<vmem>>, vector<1x384xf32>
    tpu.vector_store %arg19[%c3_141, %c0_142], %137 {strides = array<i32>} : memref<5x384xf32, #tpu.memory_space<vmem>>, vector<1x384xf32>,
    %c8_143 = arith.constant 8 : index
    %c0_144 = arith.constant 0 : index
    %139 = vector.load %arg18[%c8_143, %c0_144] : memref<11x384xf32, #tpu.memory_space<vmem>>, vector<1x384xf32>
    %c9_145 = arith.constant 9 : index
    %c0_146 = arith.constant 0 : index
    %140 = vector.load %arg18[%c9_145, %c0_146] : memref<11x384xf32, #tpu.memory_space<vmem>>, vector<1x384xf32>
    %141 = arith.maximumf %139, %140 : vector<1x384xf32>
    %c4_147 = arith.constant 4 : index
    %c0_148 = arith.constant 0 : index
    %142 = vector.load %arg19[%c4_147, %c0_148] : memref<5x384xf32, #tpu.memory_space<vmem>>, vector<1x384xf32>
    tpu.vector_store %arg19[%c4_147, %c0_148], %141 {strides = array<i32>} : memref<5x384xf32, #tpu.memory_space<vmem>>, vector<1x384xf32>,
    %c0_149 = arith.constant 0 : index
    %c0_150 = arith.constant 0 : index
    %143 = vector.load %arg19[%c0_149, %c0_150] : memref<5x384xf32, #tpu.memory_space<vmem>>, vector<1x384xf32>
    %c0_151 = arith.constant 0 : index
    %c0_152 = arith.constant 0 : index
    %c0_153 = arith.constant 0 : index
    %144 = vector.load %arg7[%c0_151, %c0_152, %c0_153] : memref<5x384x150xf32, #tpu.memory_space<vmem>>, vector<1x384x150xf32>
    %145 = vector.shape_cast %144 : vector<1x384x150xf32> to vector<384x150xf32>
    %cst_154 = arith.constant dense<0.000000e+00> : vector<1x150xf32>
    %146 = tpu.matmul %143, %145, %cst_154 {dimension_numbers = #tpu.dot_dimension_numbers<[1], [0], [0], [1], [0, 0, 1, 1], [], []>} : vector<1x384xf32>, vector<384x150xf32>, vector<1x150xf32> -> vector<1x150xf32>
    %c1_155 = arith.constant 1 : index
    %c0_156 = arith.constant 0 : index
    %147 = vector.load %arg19[%c1_155, %c0_156] : memref<5x384xf32, #tpu.memory_space<vmem>>, vector<1x384xf32>
    %c1_157 = arith.constant 1 : index
    %c0_158 = arith.constant 0 : index
    %c0_159 = arith.constant 0 : index
    %148 = vector.load %arg7[%c1_157, %c0_158, %c0_159] : memref<5x384x150xf32, #tpu.memory_space<vmem>>, vector<1x384x150xf32>
    %149 = vector.shape_cast %148 : vector<1x384x150xf32> to vector<384x150xf32>
    %cst_160 = arith.constant dense<0.000000e+00> : vector<1x150xf32>
    %150 = tpu.matmul %147, %149, %cst_160 {dimension_numbers = #tpu.dot_dimension_numbers<[1], [0], [0], [1], [0, 0, 1, 1], [], []>} : vector<1x384xf32>, vector<384x150xf32>, vector<1x150xf32> -> vector<1x150xf32>
    %151 = arith.addf %146, %150 : vector<1x150xf32>
    %c2_161 = arith.constant 2 : index
    %c0_162 = arith.constant 0 : index
    %152 = vector.load %arg19[%c2_161, %c0_162] : memref<5x384xf32, #tpu.memory_space<vmem>>, vector<1x384xf32>
    %c2_163 = arith.constant 2 : index
    %c0_164 = arith.constant 0 : index
    %c0_165 = arith.constant 0 : index
    %153 = vector.load %arg7[%c2_163, %c0_164, %c0_165] : memref<5x384x150xf32, #tpu.memory_space<vmem>>, vector<1x384x150xf32>
    %154 = vector.shape_cast %153 : vector<1x384x150xf32> to vector<384x150xf32>
    %cst_166 = arith.constant dense<0.000000e+00> : vector<1x150xf32>
    %155 = tpu.matmul %152, %154, %cst_166 {dimension_numbers = #tpu.dot_dimension_numbers<[1], [0], [0], [1], [0, 0, 1, 1], [], []>} : vector<1x384xf32>, vector<384x150xf32>, vector<1x150xf32> -> vector<1x150xf32>
    %156 = arith.addf %151, %155 : vector<1x150xf32>
    %c3_167 = arith.constant 3 : index
    %c0_168 = arith.constant 0 : index
    %157 = vector.load %arg19[%c3_167, %c0_168] : memref<5x384xf32, #tpu.memory_space<vmem>>, vector<1x384xf32>
    %c3_169 = arith.constant 3 : index
    %c0_170 = arith.constant 0 : index
    %c0_171 = arith.constant 0 : index
    %158 = vector.load %arg7[%c3_169, %c0_170, %c0_171] : memref<5x384x150xf32, #tpu.memory_space<vmem>>, vector<1x384x150xf32>
    %159 = vector.shape_cast %158 : vector<1x384x150xf32> to vector<384x150xf32>
    %cst_172 = arith.constant dense<0.000000e+00> : vector<1x150xf32>
    %160 = tpu.matmul %157, %159, %cst_172 {dimension_numbers = #tpu.dot_dimension_numbers<[1], [0], [0], [1], [0, 0, 1, 1], [], []>} : vector<1x384xf32>, vector<384x150xf32>, vector<1x150xf32> -> vector<1x150xf32>
    %161 = arith.addf %156, %160 : vector<1x150xf32>
    %c4_173 = arith.constant 4 : index
    %c0_174 = arith.constant 0 : index
    %162 = vector.load %arg19[%c4_173, %c0_174] : memref<5x384xf32, #tpu.memory_space<vmem>>, vector<1x384xf32>
    %c4_175 = arith.constant 4 : index
    %c0_176 = arith.constant 0 : index
    %c0_177 = arith.constant 0 : index
    %163 = vector.load %arg7[%c4_175, %c0_176, %c0_177] : memref<5x384x150xf32, #tpu.memory_space<vmem>>, vector<1x384x150xf32>
    %164 = vector.shape_cast %163 : vector<1x384x150xf32> to vector<384x150xf32>
    %cst_178 = arith.constant dense<0.000000e+00> : vector<1x150xf32>
    %165 = tpu.matmul %162, %164, %cst_178 {dimension_numbers = #tpu.dot_dimension_numbers<[1], [0], [0], [1], [0, 0, 1, 1], [], []>} : vector<1x384xf32>, vector<384x150xf32>, vector<1x150xf32> -> vector<1x150xf32>
    %166 = arith.addf %161, %165 : vector<1x150xf32>
    %c0_179 = arith.constant 0 : index
    %c0_180 = arith.constant 0 : index
    %167 = vector.load %arg8[%c0_179, %c0_180] : memref<1x150xf32, #tpu.memory_space<vmem>>, vector<1x150xf32>
    %168 = arith.addf %166, %167 : vector<1x150xf32>
    %cst_181 = arith.constant 0.000000e+00 : f32
    %169 = vector.broadcast %cst_181 : f32 to vector<1x150xf32>
    %170 = arith.cmpf oge, %168, %169 : vector<1x150xf32>
    %171 = vector.broadcast %0 : f32 to vector<1x150xf32>
    %172 = arith.mulf %171, %168 : vector<1x150xf32>
    %173 = arith.select %170, %168, %172 : vector<1x150xi1>, vector<1x150xf32>
    %c0_182 = arith.constant 0 : index
    %c0_183 = arith.constant 0 : index
    %174 = vector.load %arg9[%c0_182, %c0_183] : memref<150x100xf32, #tpu.memory_space<vmem>>, vector<150x100xf32>
    %cst_184 = arith.constant dense<0.000000e+00> : vector<1x100xf32>
    %175 = tpu.matmul %173, %174, %cst_184 {dimension_numbers = #tpu.dot_dimension_numbers<[1], [0], [0], [1], [0, 0, 1, 1], [], []>} : vector<1x150xf32>, vector<150x100xf32>, vector<1x100xf32> -> vector<1x100xf32>
    %c0_185 = arith.constant 0 : index
    %c0_186 = arith.constant 0 : index
    %176 = vector.load %arg10[%c0_185, %c0_186] : memref<1x100xf32, #tpu.memory_space<vmem>>, vector<1x100xf32>
    %177 = arith.addf %175, %176 : vector<1x100xf32>
    %cst_187 = arith.constant 0.000000e+00 : f32
    %178 = vector.broadcast %cst_187 : f32 to vector<1x100xf32>
    %179 = arith.cmpf oge, %177, %178 : vector<1x100xf32>
    %180 = vector.broadcast %0 : f32 to vector<1x100xf32>
    %181 = arith.mulf %180, %177 : vector<1x100xf32>
    %182 = arith.select %179, %177, %181 : vector<1x100xi1>, vector<1x100xf32>
    %c0_188 = arith.constant 0 : index
    %c0_189 = arith.constant 0 : index
    %183 = vector.load %arg11[%c0_188, %c0_189] : memref<100x50xf32, #tpu.memory_space<vmem>>, vector<100x50xf32>
    %cst_190 = arith.constant dense<0.000000e+00> : vector<1x50xf32>
    %184 = tpu.matmul %182, %183, %cst_190 {dimension_numbers = #tpu.dot_dimension_numbers<[1], [0], [0], [1], [0, 0, 1, 1], [], []>} : vector<1x100xf32>, vector<100x50xf32>, vector<1x50xf32> -> vector<1x50xf32>
    %c0_191 = arith.constant 0 : index
    %c0_192 = arith.constant 0 : index
    %185 = vector.load %arg12[%c0_191, %c0_192] : memref<1x50xf32, #tpu.memory_space<vmem>>, vector<1x50xf32>
    %186 = arith.addf %184, %185 : vector<1x50xf32>
    %cst_193 = arith.constant 0.000000e+00 : f32
    %187 = vector.broadcast %cst_193 : f32 to vector<1x50xf32>
    %188 = arith.cmpf oge, %186, %187 : vector<1x50xf32>
    %189 = vector.broadcast %0 : f32 to vector<1x50xf32>
    %190 = arith.mulf %189, %186 : vector<1x50xf32>
    %191 = arith.select %188, %186, %190 : vector<1x50xi1>, vector<1x50xf32>
    %c0_194 = arith.constant 0 : index
    %c0_195 = arith.constant 0 : index
    %192 = vector.load %arg13[%c0_194, %c0_195] : memref<50x128xf32, #tpu.memory_space<vmem>>, vector<50x128xf32>
    %cst_196 = arith.constant dense<0.000000e+00> : vector<1x128xf32>
    %193 = tpu.matmul %191, %192, %cst_196 {dimension_numbers = #tpu.dot_dimension_numbers<[1], [0], [0], [1], [0, 0, 1, 1], [], []>} : vector<1x50xf32>, vector<50x128xf32>, vector<1x128xf32> -> vector<1x128xf32>
    %c0_197 = arith.constant 0 : index
    %c0_198 = arith.constant 0 : index
    %194 = vector.load %arg14[%c0_197, %c0_198] : memref<1x128xf32, #tpu.memory_space<vmem>>, vector<1x128xf32>
    %195 = arith.addf %193, %194 : vector<1x128xf32>
    %c0_199 = arith.constant 0 : index
    %c0_200 = arith.constant 0 : index
    %c0_201 = arith.constant 0 : index
    %196 = vector.load %arg15[%c0_199, %c0_200, %c0_201] : memref<1x1x128xf32, #tpu.memory_space<vmem>>, vector<1x1x128xf32>
    %197 = vector.shape_cast %196 : vector<1x1x128xf32> to vector<1x128xf32>
    %198 = vector.shape_cast %195 : vector<1x128xf32> to vector<1x1x128xf32>
    tpu.vector_store %arg15[%c0_199, %c0_200, %c0_201], %198 {strides = array<i32>} : memref<1x1x128xf32, #tpu.memory_space<vmem>>, vector<1x1x128xf32>,
    return
  }
  func.func @transform_0(%arg0: i32) -> (i32, i32) {
    %c0_i32 = arith.constant 0 : i32
    %c0_i32_0 = arith.constant 0 : i32
    %c0_i32_1 = arith.constant 0 : i32
    return %c0_i32, %c0_i32_0 : i32, i32
  }
  func.func @transform_1(%arg0: i32) -> (i32, i32, i32) {
    %c0_i32 = arith.constant 0 : i32
    %c0_i32_0 = arith.constant 0 : i32
    %c0_i32_1 = arith.constant 0 : i32
    return %arg0, %c0_i32, %c0_i32_0 : i32, i32, i32
  }
  func.func @transform_2(%arg0: i32) -> (i32, i32, i32) {
    %c0_i32 = arith.constant 0 : i32
    %c0_i32_0 = arith.constant 0 : i32
    %c0_i32_1 = arith.constant 0 : i32
    %c0_i32_2 = arith.constant 0 : i32
    return %c0_i32, %c0_i32_0, %c0_i32_1 : i32, i32, i32
  }
  func.func @transform_3(%arg0: i32) -> (i32, i32) {
    %c0_i32 = arith.constant 0 : i32
    %c0_i32_0 = arith.constant 0 : i32
    %c0_i32_1 = arith.constant 0 : i32
    return %c0_i32, %c0_i32_0 : i32, i32
  }
  func.func @transform_4(%arg0: i32) -> (i32, i32, i32) {
    %c0_i32 = arith.constant 0 : i32
    %c0_i32_0 = arith.constant 0 : i32
    %c0_i32_1 = arith.constant 0 : i32
    %c0_i32_2 = arith.constant 0 : i32
    return %c0_i32, %c0_i32_0, %c0_i32_1 : i32, i32, i32
  }
  func.func @transform_5(%arg0: i32) -> (i32, i32) {
    %c0_i32 = arith.constant 0 : i32
    %c0_i32_0 = arith.constant 0 : i32
    %c0_i32_1 = arith.constant 0 : i32
    return %c0_i32, %c0_i32_0 : i32, i32
  }
  func.func @transform_6(%arg0: i32) -> (i32, i32, i32) {
    %c0_i32 = arith.constant 0 : i32
    %c0_i32_0 = arith.constant 0 : i32
    %c0_i32_1 = arith.constant 0 : i32
    %c0_i32_2 = arith.constant 0 : i32
    return %c0_i32, %c0_i32_0, %c0_i32_1 : i32, i32, i32
  }
  func.func @transform_7(%arg0: i32) -> (i32, i32) {
    %c0_i32 = arith.constant 0 : i32
    %c0_i32_0 = arith.constant 0 : i32
    %c0_i32_1 = arith.constant 0 : i32
    return %c0_i32, %c0_i32_0 : i32, i32
  }
  func.func @transform_8(%arg0: i32) -> (i32, i32) {
    %c0_i32 = arith.constant 0 : i32
    %c0_i32_0 = arith.constant 0 : i32
    %c0_i32_1 = arith.constant 0 : i32
    return %c0_i32, %c0_i32_0 : i32, i32
  }
  func.func @transform_9(%arg0: i32) -> (i32, i32) {
    %c0_i32 = arith.constant 0 : i32
    %c0_i32_0 = arith.constant 0 : i32
    %c0_i32_1 = arith.constant 0 : i32
    return %c0_i32, %c0_i32_0 : i32, i32
  }
  func.func @transform_10(%arg0: i32) -> (i32, i32) {
    %c0_i32 = arith.constant 0 : i32
    %c0_i32_0 = arith.constant 0 : i32
    %c0_i32_1 = arith.constant 0 : i32
    return %c0_i32, %c0_i32_0 : i32, i32
  }
  func.func @transform_11(%arg0: i32) -> (i32, i32) {
    %c0_i32 = arith.constant 0 : i32
    %c0_i32_0 = arith.constant 0 : i32
    %c0_i32_1 = arith.constant 0 : i32
    return %c0_i32, %c0_i32_0 : i32, i32
  }
  func.func @transform_12(%arg0: i32) -> (i32, i32) {
    %c0_i32 = arith.constant 0 : i32
    %c0_i32_0 = arith.constant 0 : i32
    %c0_i32_1 = arith.constant 0 : i32
    return %c0_i32, %c0_i32_0 : i32, i32
  }
  func.func @transform_13(%arg0: i32) -> (i32, i32) {
    %c0_i32 = arith.constant 0 : i32
    %c0_i32_0 = arith.constant 0 : i32
    %c0_i32_1 = arith.constant 0 : i32
    return %c0_i32, %c0_i32_0 : i32, i32
  }
  func.func @transform_14(%arg0: i32) -> (i32, i32, i32) {
    %c0_i32 = arith.constant 0 : i32
    %c0_i32_0 = arith.constant 0 : i32
    %c0_i32_1 = arith.constant 0 : i32
    return %arg0, %c0_i32, %c0_i32_0 : i32, i32, i32
  }
}

</mosaic_0001>

<llo_original>
// kernel: cnn_forward.1
$region0: #{cnn_forward.1}
  #allocation0 [shape = 'u32[]', space=smem, size = 0x4, offset = 0x4, fixed_abs, tag = 'smem constant byte address 0x4 - core index']
  #allocation1 [shape = 'u32[144,128]{1,0:T(1,128)}', space=vmem, size = 0x12000, scoped, tag = 'internal scratch']
  #allocation2 [shape = 'f32[29,512]{1,0:T(8,128)}', space=vmem, size = 0x10000, scoped, tag = 'scratch operand']
  #allocation3 [shape = 'f32[14,512]{1,0:T(8,128)}', space=vmem, size = 0x8000, scoped, tag = 'scratch operand']
  #allocation4 [shape = 'f32[11,384]{1,0:T(8,128)}', space=vmem, size = 0x6000, scoped, tag = 'scratch operand']
  #allocation5 [shape = 'f32[5,384]{1,0:T(8,128)}', space=vmem, size = 0x3000, scoped, tag = 'scratch operand']
  #allocation6 [shape = 'f32[1,1]{1,0:T(1,128)S(6)}', space=smem, size = 0x200, scoped, tag = 'scoped memory for cnn_forward.1']
  %s0 = inlined_call_operand.<no memory space> [shape: f32[1,1], index: 0, kind: input, shape index: {}]
  %s1 = inlined_call_operand.vmem [shape: f32[2,32,96], index: 1, kind: input, shape index: {}]
  %s2 = inlined_call_operand.vmem [shape: f32[4,96,1024], index: 2, kind: input, shape index: {}]
  %s3 = inlined_call_operand.vmem [shape: f32[1,1024], index: 3, kind: input, shape index: {}]
  %s4 = inlined_call_operand.hbm [shape: f32[4,512,768], index: 4, kind: input, shape index: {}]
  %s5 = inlined_call_operand.vmem [shape: f32[1,768], index: 5, kind: input, shape index: {}]
  %s6 = inlined_call_operand.vmem [shape: f32[5,384,150], index: 6, kind: input, shape index: {}]
  %s7 = inlined_call_operand.vmem [shape: f32[1,150], index: 7, kind: input, shape index: {}]
  %s8 = inlined_call_operand.vmem [shape: f32[150,100], index: 8, kind: input, shape index: {}]
  %s9 = inlined_call_operand.vmem [shape: f32[1,100], index: 9, kind: input, shape index: {}]
  %s10 = inlined_call_operand.vmem [shape: f32[100,50], index: 10, kind: input, shape index: {}]
  %s11 = inlined_call_operand.vmem [shape: f32[1,50], index: 11, kind: input, shape index: {}]
  %s12 = inlined_call_operand.vmem [shape: f32[50,128], index: 12, kind: input, shape index: {}]
  %s13 = inlined_call_operand.vmem [shape: f32[1,128], index: 13, kind: input, shape index: {}]
  %s14 = inlined_call_operand.hbm [shape: f32[2,1,128], index: 14, kind: output, shape index: {}]
  %s15 = sld [smem:[#allocation0]]
  $region93: #{cnn_forward.1} parent=0
    _
  %s17 = ssub.s32 1, %s15
  %s18 = scalar_select 0, %s17, %s15
  %19 = sst [smem:[#allocation6]] %s0
  $region1: #{cnn_forward.1} parent=0
    #allocation7 [shape = 'u8[6291456]{0}', space=vmem, size = 0x600000, scoped, tag = 'input window, operand 4, single buffered']
    #allocation8 [shape = 's32[2]{0}', space=sflag, size = 0x8, scoped, tag = 'scoped memory for cnn_forward.1']
    #allocation9 [shape = 's32[2]{0}', space=sflag, size = 0x8, scoped, tag = 'scoped memory for cnn_forward.1']
    #allocation10 [shape = 'u8[1024]{0}', space=vmem, size = 0x400, scoped, tag = 'output window, operand 0']
    %20 = vsyncpa [#allocation8], 0
    %21 = vsyncpa [#allocation9], 0
    %s22 = scalar_lea.sflag [#allocation9], 1
    %23 = vsyncpa %s22, 0
    loop: start=0, step=1, limit=4
    $region2: #{cnn_forward.1} parent=1 // loop_pre_header
      _
    $region3: #{cnn_forward.1} parent=1 // loop_header
      %s25 = sphi 0, %s29
      %p26 = scmp.ge.s32.totalorder %s25, 4
      %s33 = sphi 0, %s33
      %s35 = sphi 0, %s33
      %s36 = sphi 0, %s35
      %s50 = sphi 0, %s36
      %s56 = sphi 0, %s58
      %s59 = sphi 0, %s56
      %s60 = sphi 0, %s59
      %s76 = sphi 0, %s60
      %s80 = sphi 0, %s80
      %s82 = sphi 0, %s80
      %s83 = sphi 0, %s82
      %s97 = sphi 0, %s83
      %s101 = sphi 0, %s101
      %s103 = sphi 0, %s101
      %s104 = sphi 0, %s103
      %s118 = sphi 0, %s104
      %s122 = sphi 0, %s122
      %s124 = sphi 0, %s122
      %s125 = sphi 0, %s124
      %s139 = sphi 0, %s125
      %s143 = sphi 0, %s143
      %s145 = sphi 0, %s143
      %s146 = sphi 0, %s145
      %s160 = sphi 0, %s146
      %s164 = sphi 0, %s164
      %s166 = sphi 0, %s164
      %s167 = sphi 0, %s166
      %s181 = sphi 0, %s167
      %s185 = sphi 0, %s185
      %s187 = sphi 0, %s185
      %s188 = sphi 0, %s187
      %s202 = sphi 0, %s188
      %s206 = sphi 0, %s206
      %s208 = sphi 0, %s206
      %s209 = sphi 0, %s208
      %s223 = sphi 0, %s209
      %s227 = sphi 0, %s227
      %s229 = sphi 0, %s227
      %s230 = sphi 0, %s229
      %s244 = sphi 0, %s230
      %s248 = sphi 0, %s248
      %s250 = sphi 0, %s248
      %s251 = sphi 0, %s250
      %s265 = sphi 0, %s251
      %s269 = sphi 0, %s269
      %s271 = sphi 0, %s269
      %s272 = sphi 0, %s271
      %s286 = sphi 0, %s272
      %s290 = sphi 0, %s290
      %s292 = sphi 0, %s290
      %s293 = sphi 0, %s292
      %s307 = sphi 0, %s293
      %s311 = sphi 0, %s311
      %s313 = sphi 0, %s311
      %s314 = sphi 0, %s313
      %s328 = sphi 0, %s314
      %s334 = sphi 0, %s336
      %s337 = sphi 0, %s334
      %s338 = sphi 0, %s337
      %s354 = sphi 0, %s338
    $region4: #{cnn_forward.1} parent=1 // loop_header_branch
      %28 = sbr.rel (%p26) target = $region8
    $region5: #{cnn_forward.1} parent=1 // loop_body
      %s30 = ssub.s32 %s25, 1
      %s31 = ssub.s32 %s25, 2
      %s32 = sadd.s32 %s25, 1
      %s34 = sadd.s32 %s33, 1
      %p37 = scmp.eq.s32.totalorder %s25, 1
      %p38 = scmp.ne.s32.totalorder %s33, %s35
      %p39 = scmp.eq.s32.totalorder %s25, 0
      %p40 = por %p38, %p39
      %p41 = scmp.ne.s32.totalorder %s33, %s35
      %p42 = scmp.eq.s32.totalorder %s30, 1
      %p43 = por %p41, %p42
      %p44 = scmp.ne.s32.totalorder %s35, %s36
      %p45 = scmp.eq.s32.totalorder %s30, 0
      %p46 = por %p44, %p45
      %p47 = scmp.ne.s32.totalorder %s35, %s36
      %p48 = scmp.eq.s32.totalorder %s31, 1
      %p49 = por %p47, %p48
      %p51 = scmp.ne.s32.totalorder %s36, %s50
      %p52 = scmp.eq.s32.totalorder %s31, 0
      %p53 = por %p51, %p52
      %s54 = ssub.s32 %s25, %s32
      %p55 = scmp.eq.s32.totalorder %s54, 0
      %s57 = sadd.s32 %s56, 1
      %s58 = scalar_select %p55, %s56, %s57
      %p61 = pneg %p55
      %p62 = scmp.eq.s32.totalorder %s25, 1
      %p63 = por %p61, %p62
      %p64 = scmp.ne.s32.totalorder %s56, %s59
      %p65 = scmp.eq.s32.totalorder %s25, 0
      %p66 = por %p64, %p65
      %p67 = scmp.ne.s32.totalorder %s56, %s59
      %p68 = scmp.eq.s32.totalorder %s30, 1
      %p69 = por %p67, %p68
      %p70 = scmp.ne.s32.totalorder %s59, %s60
      %p71 = scmp.eq.s32.totalorder %s30, 0
      %p72 = por %p70, %p71
      %p73 = scmp.ne.s32.totalorder %s59, %s60
      %p74 = scmp.eq.s32.totalorder %s31, 1
      %p75 = por %p73, %p74
      %p77 = scmp.ne.s32.totalorder %s60, %s76
      %p78 = scmp.eq.s32.totalorder %s31, 0
      %p79 = por %p77, %p78
      %s81 = sadd.s32 %s80, 1
      %p84 = scmp.eq.s32.totalorder %s25, 1
      %p85 = scmp.ne.s32.totalorder %s80, %s82
      %p86 = scmp.eq.s32.totalorder %s25, 0
      %p87 = por %p85, %p86
      %p88 = scmp.ne.s32.totalorder %s80, %s82
      %p89 = scmp.eq.s32.totalorder %s30, 1
      %p90 = por %p88, %p89
      %p91 = scmp.ne.s32.totalorder %s82, %s83
      %p92 = scmp.eq.s32.totalorder %s30, 0
      %p93 = por %p91, %p92
      %p94 = scmp.ne.s32.totalorder %s82, %s83
      %p95 = scmp.eq.s32.totalorder %s31, 1
      %p96 = por %p94, %p95
      %p98 = scmp.ne.s32.totalorder %s83, %s97
      %p99 = scmp.eq.s32.totalorder %s31, 0
      %p100 = por %p98, %p99
      %s102 = sadd.s32 %s101, 1
      %p105 = scmp.eq.s32.totalorder %s25, 1
      %p106 = scmp.ne.s32.totalorder %s101, %s103
      %p107 = scmp.eq.s32.totalorder %s25, 0
      %p108 = por %p106, %p107
      %p109 = scmp.ne.s32.totalorder %s101, %s103
      %p110 = scmp.eq.s32.totalorder %s30, 1
      %p111 = por %p109, %p110
      %p112 = scmp.ne.s32.totalorder %s103, %s104
      %p113 = scmp.eq.s32.totalorder %s30, 0
      %p114 = por %p112, %p113
      %p115 = scmp.ne.s32.totalorder %s103, %s104
      %p116 = scmp.eq.s32.totalorder %s31, 1
      %p117 = por %p115, %p116
      %p119 = scmp.ne.s32.totalorder %s104, %s118
      %p120 = scmp.eq.s32.totalorder %s31, 0
      %p121 = por %p119, %p120
      %s123 = sadd.s32 %s122, 1
      %p126 = scmp.eq.s32.totalorder %s25, 1
      %p127 = scmp.ne.s32.totalorder %s122, %s124
      %p128 = scmp.eq.s32.totalorder %s25, 0
      %p129 = por %p127, %p128
      %p130 = scmp.ne.s32.totalorder %s122, %s124
      %p131 = scmp.eq.s32.totalorder %s30, 1
      %p132 = por %p130, %p131
      %p133 = scmp.ne.s32.totalorder %s124, %s125
      %p134 = scmp.eq.s32.totalorder %s30, 0
      %p135 = por %p133, %p134
      %p136 = scmp.ne.s32.totalorder %s124, %s125
      %p137 = scmp.eq.s32.totalorder %s31, 1
      %p138 = por %p136, %p137
      %p140 = scmp.ne.s32.totalorder %s125, %s139
      %p141 = scmp.eq.s32.totalorder %s31, 0
      %p142 = por %p140, %p141
      %s144 = sadd.s32 %s143, 1
      %p147 = scmp.eq.s32.totalorder %s25, 1
      %p148 = scmp.ne.s32.totalorder %s143, %s145
      %p149 = scmp.eq.s32.totalorder %s25, 0
      %p150 = por %p148, %p149
      %p151 = scmp.ne.s32.totalorder %s143, %s145
      %p152 = scmp.eq.s32.totalorder %s30, 1
      %p153 = por %p151, %p152
      %p154 = scmp.ne.s32.totalorder %s145, %s146
      %p155 = scmp.eq.s32.totalorder %s30, 0
      %p156 = por %p154, %p155
      %p157 = scmp.ne.s32.totalorder %s145, %s146
      %p158 = scmp.eq.s32.totalorder %s31, 1
      %p159 = por %p157, %p158
      %p161 = scmp.ne.s32.totalorder %s146, %s160
      %p162 = scmp.eq.s32.totalorder %s31, 0
      %p163 = por %p161, %p162
      %s165 = sadd.s32 %s164, 1
      %p168 = scmp.eq.s32.totalorder %s25, 1
      %p169 = scmp.ne.s32.totalorder %s164, %s166
      %p170 = scmp.eq.s32.totalorder %s25, 0
      %p171 = por %p169, %p170
      %p172 = scmp.ne.s32.totalorder %s164, %s166
      %p173 = scmp.eq.s32.totalorder %s30, 1
      %p174 = por %p172, %p173
      %p175 = scmp.ne.s32.totalorder %s166, %s167
      %p176 = scmp.eq.s32.totalorder %s30, 0
      %p177 = por %p175, %p176
      %p178 = scmp.ne.s32.totalorder %s166, %s167
      %p179 = scmp.eq.s32.totalorder %s31, 1
      %p180 = por %p178, %p179
      %p182 = scmp.ne.s32.totalorder %s167, %s181
      %p183 = scmp.eq.s32.totalorder %s31, 0
      %p184 = por %p182, %p183
      %s186 = sadd.s32 %s185, 1
      %p189 = scmp.eq.s32.totalorder %s25, 1
      %p190 = scmp.ne.s32.totalorder %s185, %s187
      %p191 = scmp.eq.s32.totalorder %s25, 0
      %p192 = por %p190, %p191
      %p193 = scmp.ne.s32.totalorder %s185, %s187
      %p194 = scmp.eq.s32.totalorder %s30, 1
      %p195 = por %p193, %p194
      %p196 = scmp.ne.s32.totalorder %s187, %s188
      %p197 = scmp.eq.s32.totalorder %s30, 0
      %p198 = por %p196, %p197
      %p199 = scmp.ne.s32.totalorder %s187, %s188
      %p200 = scmp.eq.s32.totalorder %s31, 1
      %p201 = por %p199, %p200
      %p203 = scmp.ne.s32.totalorder %s188, %s202
      %p204 = scmp.eq.s32.totalorder %s31, 0
      %p205 = por %p203, %p204
      %s207 = sadd.s32 %s206, 1
      %p210 = scmp.eq.s32.totalorder %s25, 1
      %p211 = scmp.ne.s32.totalorder %s206, %s208
      %p212 = scmp.eq.s32.totalorder %s25, 0
      %p213 = por %p211, %p212
      %p214 = scmp.ne.s32.totalorder %s206, %s208
      %p215 = scmp.eq.s32.totalorder %s30, 1
      %p216 = por %p214, %p215
      %p217 = scmp.ne.s32.totalorder %s208, %s209
      %p218 = scmp.eq.s32.totalorder %s30, 0
      %p219 = por %p217, %p218
      %p220 = scmp.ne.s32.totalorder %s208, %s209
      %p221 = scmp.eq.s32.totalorder %s31, 1
      %p222 = por %p220, %p221
      %p224 = scmp.ne.s32.totalorder %s209, %s223
      %p225 = scmp.eq.s32.totalorder %s31, 0
      %p226 = por %p224, %p225
      %s228 = sadd.s32 %s227, 1
      %p231 = scmp.eq.s32.totalorder %s25, 1
      %p232 = scmp.ne.s32.totalorder %s227, %s229
      %p233 = scmp.eq.s32.totalorder %s25, 0
      %p234 = por %p232, %p233
      %p235 = scmp.ne.s32.totalorder %s227, %s229
      %p236 = scmp.eq.s32.totalorder %s30, 1
      %p237 = por %p235, %p236
      %p238 = scmp.ne.s32.totalorder %s229, %s230
      %p239 = scmp.eq.s32.totalorder %s30, 0
      %p240 = por %p238, %p239
      %p241 = scmp.ne.s32.totalorder %s229, %s230
      %p242 = scmp.eq.s32.totalorder %s31, 1
      %p243 = por %p241, %p242
      %p245 = scmp.ne.s32.totalorder %s230, %s244
      %p246 = scmp.eq.s32.totalorder %s31, 0
      %p247 = por %p245, %p246
      %s249 = sadd.s32 %s248, 1
      %p252 = scmp.eq.s32.totalorder %s25, 1
      %p253 = scmp.ne.s32.totalorder %s248, %s250
      %p254 = scmp.eq.s32.totalorder %s25, 0
      %p255 = por %p253, %p254
      %p256 = scmp.ne.s32.totalorder %s248, %s250
      %p257 = scmp.eq.s32.totalorder %s30, 1
      %p258 = por %p256, %p257
      %p259 = scmp.ne.s32.totalorder %s250, %s251
      %p260 = scmp.eq.s32.totalorder %s30, 0
      %p261 = por %p259, %p260
      %p262 = scmp.ne.s32.totalorder %s250, %s251
      %p263 = scmp.eq.s32.totalorder %s31, 1
      %p264 = por %p262, %p263
      %p266 = scmp.ne.s32.totalorder %s251, %s265
      %p267 = scmp.eq.s32.totalorder %s31, 0
      %p268 = por %p266, %p267
      %s270 = sadd.s32 %s269, 1
      %p273 = scmp.eq.s32.totalorder %s25, 1
      %p274 = scmp.ne.s32.totalorder %s269, %s271
      %p275 = scmp.eq.s32.totalorder %s25, 0
      %p276 = por %p274, %p275
      %p277 = scmp.ne.s32.totalorder %s269, %s271
      %p278 = scmp.eq.s32.totalorder %s30, 1
      %p279 = por %p277, %p278
      %p280 = scmp.ne.s32.totalorder %s271, %s272
      %p281 = scmp.eq.s32.totalorder %s30, 0
      %p282 = por %p280, %p281
      %p283 = scmp.ne.s32.totalorder %s271, %s272
      %p284 = scmp.eq.s32.totalorder %s31, 1
      %p285 = por %p283, %p284
      %p287 = scmp.ne.s32.totalorder %s272, %s286
      %p288 = scmp.eq.s32.totalorder %s31, 0
      %p289 = por %p287, %p288
      %s291 = sadd.s32 %s290, 1
      %p294 = scmp.eq.s32.totalorder %s25, 1
      %p295 = scmp.ne.s32.totalorder %s290, %s292
      %p296 = scmp.eq.s32.totalorder %s25, 0
      %p297 = por %p295, %p296
      %p298 = scmp.ne.s32.totalorder %s290, %s292
      %p299 = scmp.eq.s32.totalorder %s30, 1
      %p300 = por %p298, %p299
      %p301 = scmp.ne.s32.totalorder %s292, %s293
      %p302 = scmp.eq.s32.totalorder %s30, 0
      %p303 = por %p301, %p302
      %p304 = scmp.ne.s32.totalorder %s292, %s293
      %p305 = scmp.eq.s32.totalorder %s31, 1
      %p306 = por %p304, %p305
      %p308 = scmp.ne.s32.totalorder %s293, %s307
      %p309 = scmp.eq.s32.totalorder %s31, 0
      %p310 = por %p308, %p309
      %s312 = sadd.s32 %s311, 1
      %p315 = scmp.eq.s32.totalorder %s25, 1
      %p316 = scmp.ne.s32.totalorder %s311, %s313
      %p317 = scmp.eq.s32.totalorder %s25, 0
      %p318 = por %p316, %p317
      %p319 = scmp.ne.s32.totalorder %s311, %s313
      %p320 = scmp.eq.s32.totalorder %s30, 1
      %p321 = por %p319, %p320
      %p322 = scmp.ne.s32.totalorder %s313, %s314
      %p323 = scmp.eq.s32.totalorder %s30, 0
      %p324 = por %p322, %p323
      %p325 = scmp.ne.s32.totalorder %s313, %s314
      %p326 = scmp.eq.s32.totalorder %s31, 1
      %p327 = por %p325, %p326
      %p329 = scmp.ne.s32.totalorder %s314, %s328
      %p330 = scmp.eq.s32.totalorder %s31, 0
      %p331 = por %p329, %p330
      %s332 = ssub.s32 %s25, %s32
      %p333 = scmp.eq.s32.totalorder %s332, 0
      %s335 = sadd.s32 %s334, 1
      %s336 = scalar_select %p333, %s334, %s335
      %p339 = pneg %p333
      %p340 = scmp.eq.s32.totalorder %s25, 1
      %p341 = por %p339, %p340
      %p342 = scmp.ne.s32.totalorder %s334, %s337
      %p343 = scmp.eq.s32.totalorder %s25, 0
      %p344 = por %p342, %p343
      %p345 = scmp.ne.s32.totalorder %s334, %s337
      %p346 = scmp.eq.s32.totalorder %s30, 1
      %p347 = por %p345, %p346
      %p348 = scmp.ne.s32.totalorder %s337, %s338
      %p349 = scmp.eq.s32.totalorder %s30, 0
      %p350 = por %p348, %p349
      %p351 = scmp.ne.s32.totalorder %s337, %s338
      %p352 = scmp.eq.s32.totalorder %s31, 1
      %p353 = por %p351, %p352
      %p355 = scmp.ne.s32.totalorder %s338, %s354
      %p356 = scmp.eq.s32.totalorder %s31, 0
      %p357 = por %p355, %p356
      %p358 = scmp.le.s32.totalorder 1, %s25
      %p359 = scmp.lt.s32.totalorder %s25, 3
      %p360 = pnand %p358, %p359
      %p361 = pneg %p360
      // Predicated region
      $region9: #{cnn_forward.1} parent=5 // pred_check
        _
      $region10: #{cnn_forward.1} parent=5 // pred_check_branch
        %363 = sbr.rel (%p360) target = $region12
      $region11: #{cnn_forward.1} parent=5 // pred_region
        %s364 = ssub.s32 %s25, 1
        // Predicated region
        $region13: #{cnn_forward.1} parent=11 // pred_check
          %p365 = pneg %p46
        $region14: #{cnn_forward.1} parent=11 // pred_check_branch
          %367 = sbr.rel (%p365) target = $region16
        $region15: #{cnn_forward.1} parent=11 // pred_region
          _
        $region16: #{cnn_forward.1} parent=11 // pred_fallthru
          _
        // Predicated region
        $region17: #{cnn_forward.1} parent=11 // pred_check
          %p368 = pneg %p93
        $region18: #{cnn_forward.1} parent=11 // pred_check_branch
          %370 = sbr.rel (%p368) target = $region20
        $region19: #{cnn_forward.1} parent=11 // pred_region
          _
        $region20: #{cnn_forward.1} parent=11 // pred_fallthru
          _
        // Predicated region
        $region21: #{cnn_forward.1} parent=11 // pred_check
          %p371 = pneg %p114
        $region22: #{cnn_forward.1} parent=11 // pred_check_branch
          %373 = sbr.rel (%p371) target = $region24
        $region23: #{cnn_forward.1} parent=11 // pred_region
          _
        $region24: #{cnn_forward.1} parent=11 // pred_fallthru
          _
        // Predicated region
        $region25: #{cnn_forward.1} parent=11 // pred_check
          %p374 = pneg %p135
        $region26: #{cnn_forward.1} parent=11 // pred_check_branch
          %376 = sbr.rel (%p374) target = $region28
        $region27: #{cnn_forward.1} parent=11 // pred_region
          %s378 = ssub.s32 196608, 196608
          %379 = vsyncadd [#allocation8], %s378
          %s380 = sshll.u32 [#allocation7], 4
          %s381 = int_to_ptr.vmem [resolvable:$true] %s380
          %386 = dma.hbm_to_vmem [thread:$0]  %s4, 196608, %s381, [#allocation8], 768, 768, 48
        $region28: #{cnn_forward.1} parent=11 // pred_fallthru
          _
        // Predicated region
        $region29: #{cnn_forward.1} parent=11 // pred_check
          %p387 = pneg %p156
        $region30: #{cnn_forward.1} parent=11 // pred_check_branch
          %389 = sbr.rel (%p387) target = $region32
        $region31: #{cnn_forward.1} parent=11 // pred_region
          _
        $region32: #{cnn_forward.1} parent=11 // pred_fallthru
          _
        // Predicated region
        $region33: #{cnn_forward.1} parent=11 // pred_check
          %p390 = pneg %p177
        $region34: #{cnn_forward.1} parent=11 // pred_check_branch
          %392 = sbr.rel (%p390) target = $region36
        $region35: #{cnn_forward.1} parent=11 // pred_region
          _
        $region36: #{cnn_forward.1} parent=11 // pred_fallthru
          _
        // Predicated region
        $region37: #{cnn_forward.1} parent=11 // pred_check
          %p393 = pneg %p198
        $region38: #{cnn_forward.1} parent=11 // pred_check_branch
          %395 = sbr.rel (%p393) target = $region40
        $region39: #{cnn_forward.1} parent=11 // pred_region
          _
        $region40: #{cnn_forward.1} parent=11 // pred_fallthru
          _
        // Predicated region
        $region41: #{cnn_forward.1} parent=11 // pred_check
          %p396 = pneg %p219
        $region42: #{cnn_forward.1} parent=11 // pred_check_branch
          %398 = sbr.rel (%p396) target = $region44
        $region43: #{cnn_forward.1} parent=11 // pred_region
          _
        $region44: #{cnn_forward.1} parent=11 // pred_fallthru
          _
        // Predicated region
        $region45: #{cnn_forward.1} parent=11 // pred_check
          %p399 = pneg %p240
        $region46: #{cnn_forward.1} parent=11 // pred_check_branch
          %401 = sbr.rel (%p399) target = $region48
        $region47: #{cnn_forward.1} parent=11 // pred_region
          _
        $region48: #{cnn_forward.1} parent=11 // pred_fallthru
          _
        // Predicated region
        $region49: #{cnn_forward.1} parent=11 // pred_check
          %p402 = pneg %p261
        $region50: #{cnn_forward.1} parent=11 // pred_check_branch
          %404 = sbr.rel (%p402) target = $region52
        $region51: #{cnn_forward.1} parent=11 // pred_region
          _
        $region52: #{cnn_forward.1} parent=11 // pred_fallthru
          _
        // Predicated region
        $region53: #{cnn_forward.1} parent=11 // pred_check
          %p405 = pneg %p282
        $region54: #{cnn_forward.1} parent=11 // pred_check_branch
          %407 = sbr.rel (%p405) target = $region56
        $region55: #{cnn_forward.1} parent=11 // pred_region
          _
        $region56: #{cnn_forward.1} parent=11 // pred_fallthru
          _
        // Predicated region
        $region57: #{cnn_forward.1} parent=11 // pred_check
          %p408 = pneg %p303
        $region58: #{cnn_forward.1} parent=11 // pred_check_branch
          %410 = sbr.rel (%p408) target = $region60
        $region59: #{cnn_forward.1} parent=11 // pred_region
          _
        $region60: #{cnn_forward.1} parent=11 // pred_fallthru
          _
        // Predicated region
        $region61: #{cnn_forward.1} parent=11 // pred_check
          %p411 = pneg %p324
        $region62: #{cnn_forward.1} parent=11 // pred_check_branch
          %413 = sbr.rel (%p411) target = $region64
        $region63: #{cnn_forward.1} parent=11 // pred_region
          _
        $region64: #{cnn_forward.1} parent=11 // pred_fallthru
          _
      $region12: #{cnn_forward.1} parent=5 // pred_fallthru
        _
      %p414 = scmp.lt.s32.totalorder %s25, 2
      // Predicated region
      $region65: #{cnn_forward.1} parent=5 // pred_check
        %p415 = pneg %p414
      $region66: #{cnn_forward.1} parent=5 // pred_check_branch
        %417 = sbr.rel (%p415) target = $region68
      $region67: #{cnn_forward.1} parent=5 // pred_region
        // Predicated region
        $region69: #{cnn_forward.1} parent=67 // pred_check
          %p418 = pneg %p66
        $region70: #{cnn_forward.1} parent=67 // pred_check_branch
          %420 = sbr.rel (%p418) target = $region72
        $region71: #{cnn_forward.1} parent=67 // pred_region
          %p421 = scmp.lt.s32.totalorder %s25, 1
          %s422 = scalar_select %p421, %s25, 1
          %s423 = smul.addr %s422, 4
          %s424 = smul.addr %s423, 8
          %s425 = scalar_lea.vmem %s1, %s424
        $region72: #{cnn_forward.1} parent=67 // pred_fallthru
          _
      $region68: #{cnn_forward.1} parent=5 // pred_fallthru
        _
      %p426 = scmp.le.s32.totalorder 1, %s25
      %p427 = scmp.lt.s32.totalorder %s25, 3
      %p428 = pnand %p426, %p427
      %p429 = pneg %p428
      // Predicated region
      $region73: #{cnn_forward.1} parent=5 // pred_check
        _
      $region74: #{cnn_forward.1} parent=5 // pred_check_branch
        %431 = sbr.rel (%p428) target = $region76
      $region75: #{cnn_forward.1} parent=5 // pred_region
        %s432 = ssub.s32 %s25, 1
        // Predicated region
        $region77: #{cnn_forward.1} parent=75 // pred_check
          %p433 = pneg %p135
        $region78: #{cnn_forward.1} parent=75 // pred_check_branch
          %435 = sbr.rel (%p433) target = $region80
        $region79: #{cnn_forward.1} parent=75 // pred_region
          %436 = dma.done [#allocation8], 196608
        $region80: #{cnn_forward.1} parent=75 // pred_fallthru
          _
        %p437 = pneg %p46
        %p438 = pneg %p43
        %p439 = scmp.lt.s32.totalorder %s30, 1
        %s440 = scalar_select %p439, %s30, 1
        %s441 = smul.addr %s440, 4
        %s442 = smul.addr %s441, 8
        %s443 = scalar_lea.vmem %s1, %s442
        %p444 = pneg %p72
        %p445 = pneg %p69
        %p446 = pneg %p93
        %p447 = pneg %p90
        %p448 = pneg %p114
        %p449 = pneg %p111
        %p450 = pneg %p135
        %p451 = pneg %p132
        %p452 = pneg %p156
        %p453 = pneg %p153
        %p454 = pneg %p177
        %p455 = pneg %p174
        %p456 = pneg %p198
        %p457 = pneg %p195
        %p458 = pneg %p219
        %p459 = pneg %p216
        %p460 = pneg %p240
        %p461 = pneg %p237
        %p462 = pneg %p261
        %p463 = pneg %p258
        %p464 = pneg %p282
        %p465 = pneg %p279
        %p466 = pneg %p303
        %p467 = pneg %p300
        %p468 = pneg %p324
        %p469 = pneg %p321
        %p470 = pneg %p350
        %p471 = pneg %p347
        %s472 = sand.u32 %s337, 1
        %s473 = scalar_lea.sflag [#allocation9], %s472
        %s474 = sand.u32 %s337, 1
        %s475 = scalar_lea.vmem [#allocation10], %s474
        %p476 = scmp.lt.s32.totalorder %s30, 1
        %s477 = scalar_select %p476, %s30, 1
        %s478 = smul.addr %s477, 4
        %s479 = smul.addr %s478, 8
        %s480 = scalar_lea.vmem %s1, %s479
        %s481 = sld [smem:[#allocation6]]
        %v482 = vld [vmem:[%s480] sm:$0xff]
        %v483 = vld [vmem:[%s480 + $0x8] sm:$0xff]
        %v484 = vld [vmem:[%s480 + $0x10] sm:$0xff]
        %v485 = vld [vmem:[%s480 + $0x18] sm:$0x1f]
        %v486 = vld [vmem:[%s2] sm:$0xff]
        %v487 = vld [vmem:[%s2 + $0x8] sm:$0xff]
        %v488 = vld [vmem:[%s2 + $0x10] sm:$0xff]
        %v489 = vld [vmem:[%s2 + $0x18] sm:$0xff]
        %v490 = vld [vmem:[%s2 + $0x20] sm:$0xff]
        %v491 = vld [vmem:[%s2 + $0x28] sm:$0xff]
        %v492 = vld [vmem:[%s2 + $0x30] sm:$0xff]
        %v493 = vld [vmem:[%s2 + $0x38] sm:$0xff]
        %v494 = vld [vmem:[%s2 + $0x40] sm:$0xff]
        %v495 = vld [vmem:[%s2 + $0x48] sm:$0xff]
        %v496 = vld [vmem:[%s2 + $0x50] sm:$0xff]
        %v497 = vld [vmem:[%s2 + $0x58] sm:$0xff]
        %v498 = vld [vmem:[%s2 + $0x60] sm:$0xff]
        %v499 = vld [vmem:[%s2 + $0x68] sm:$0xff]
        %v500 = vld [vmem:[%s2 + $0x70] sm:$0xff]
        %v501 = vld [vmem:[%s2 + $0x78] sm:$0xff]
        %v502 = vld [vmem:[%s2 + $0x80] sm:$0xff]
        %v503 = vld [vmem:[%s2 + $0x88] sm:$0xff]
        %v504 = vld [vmem:[%s2 + $0x90] sm:$0xff]
        %v505 = vld [vmem:[%s2 + $0x98] sm:$0xff]
        %v506 = vld [vmem:[%s2 + $0xa0] sm:$0xff]
        %v507 = vld [vmem:[%s2 + $0xa8] sm:$0xff]
        %v508 = vld [vmem:[%s2 + $0xb0] sm:$0xff]
        %v509 = vld [vmem:[%s2 + $0xb8] sm:$0xff]
        %v510 = vld [vmem:[%s2 + $0xc0] sm:$0xff]
        %v511 = vld [vmem:[%s2 + $0xc8] sm:$0xff]
        %v512 = vld [vmem:[%s2 + $0xd0] sm:$0xff]
        %v513 = vld [vmem:[%s2 + $0xd8] sm:$0xff]
        %v514 = vld [vmem:[%s2 + $0xe0] sm:$0xff]
        %v515 = vld [vmem:[%s2 + $0xe8] sm:$0xff]
        %v516 = vld [vmem:[%s2 + $0xf0] sm:$0xff]
        %v517 = vld [vmem:[%s2 + $0xf8] sm:$0xff]
        %v518 = vld [vmem:[%s2 + $0x100] sm:$0xff]
        %v519 = vld [vmem:[%s2 + $0x108] sm:$0xff]
        %v520 = vld [vmem:[%s2 + $0x110] sm:$0xff]
        %v521 = vld [vmem:[%s2 + $0x118] sm:$0xff]
        %v522 = vld [vmem:[%s2 + $0x120] sm:$0xff]
        %v523 = vld [vmem:[%s2 + $0x128] sm:$0xff]
        %v524 = vld [vmem:[%s2 + $0x130] sm:$0xff]
        %v525 = vld [vmem:[%s2 + $0x138] sm:$0xff]
        %v526 = vld [vmem:[%s2 + $0x140] sm:$0xff]
        %v527 = vld [vmem:[%s2 + $0x148] sm:$0xff]
        %v528 = vld [vmem:[%s2 + $0x150] sm:$0xff]
        %v529 = vld [vmem:[%s2 + $0x158] sm:$0xff]
        %v530 = vld [vmem:[%s2 + $0x160] sm:$0xff]
        %v531 = vld [vmem:[%s2 + $0x168] sm:$0xff]
        %v532 = vld [vmem:[%s2 + $0x170] sm:$0xff]
        %v533 = vld [vmem:[%s2 + $0x178] sm:$0xff]
        %v534 = vld [vmem:[%s2 + $0x180] sm:$0xff]
        %v535 = vld [vmem:[%s2 + $0x188] sm:$0xff]
        %v536 = vld [vmem:[%s2 + $0x190] sm:$0xff]
        %v537 = vld [vmem:[%s2 + $0x198] sm:$0xff]
        %v538 = vld [vmem:[%s2 + $0x1a0] sm:$0xff]
        %v539 = vld [vmem:[%s2 + $0x1a8] sm:$0xff]
        %v540 = vld [vmem:[%s2 + $0x1b0] sm:$0xff]
        %v541 = vld [vmem:[%s2 + $0x1b8] sm:$0xff]
        %v542 = vld [vmem:[%s2 + $0x1c0] sm:$0xff]
        %v543 = vld [vmem:[%s2 + $0x1c8] sm:$0xff]
        %v544 = vld [vmem:[%s2 + $0x1d0] sm:$0xff]
        %v545 = vld [vmem:[%s2 + $0x1d8] sm:$0xff]
        %v546 = vld [vmem:[%s2 + $0x1e0] sm:$0xff]
        %v547 = vld [vmem:[%s2 + $0x1e8] sm:$0xff]
        %v548 = vld [vmem:[%s2 + $0x1f0] sm:$0xff]
        %v549 = vld [vmem:[%s2 + $0x1f8] sm:$0xff]
        %v550 = vld [vmem:[%s2 + $0x200] sm:$0xff]
        %v551 = vld [vmem:[%s2 + $0x208] sm:$0xff]
        %v552 = vld [vmem:[%s2 + $0x210] sm:$0xff]
        %v553 = vld [vmem:[%s2 + $0x218] sm:$0xff]
        %v554 = vld [vmem:[%s2 + $0x220] sm:$0xff]
        %v555 = vld [vmem:[%s2 + $0x228] sm:$0xff]
        %v556 = vld [vmem:[%s2 + $0x230] sm:$0xff]
        %v557 = vld [vmem:[%s2 + $0x238] sm:$0xff]
        %v558 = vld [vmem:[%s2 + $0x240] sm:$0xff]
        %v559 = vld [vmem:[%s2 + $0x248] sm:$0xff]
        %v560 = vld [vmem:[%s2 + $0x250] sm:$0xff]
        %v561 = vld [vmem:[%s2 + $0x258] sm:$0xff]
        %v562 = vld [vmem:[%s2 + $0x260] sm:$0xff]
        %v563 = vld [vmem:[%s2 + $0x268] sm:$0xff]
        %v564 = vld [vmem:[%s2 + $0x270] sm:$0xff]
        %v565 = vld [vmem:[%s2 + $0x278] sm:$0xff]
        %v566 = vld [vmem:[%s2 + $0x280] sm:$0xff]
        %v567 = vld [vmem:[%s2 + $0x288] sm:$0xff]
        %v568 = vld [vmem:[%s2 + $0x290] sm:$0xff]
        %v569 = vld [vmem:[%s2 + $0x298] sm:$0xff]
        %v570 = vld [vmem:[%s2 + $0x2a0] sm:$0xff]
        %v571 = vld [vmem:[%s2 + $0x2a8] sm:$0xff]
        %v572 = vld [vmem:[%s2 + $0x2b0] sm:$0xff]
        %v573 = vld [vmem:[%s2 + $0x2b8] sm:$0xff]
        %v574 = vld [vmem:[%s2 + $0x2c0] sm:$0xff]
        %v575 = vld [vmem:[%s2 + $0x2c8] sm:$0xff]
        %v576 = vld [vmem:[%s2 + $0x2d0] sm:$0xff]
        %v577 = vld [vmem:[%s2 + $0x2d8] sm:$0xff]
        %v578 = vld [vmem:[%s2 + $0x2e0] sm:$0xff]
        %v579 = vld [vmem:[%s2 + $0x2e8] sm:$0xff]
        %v580 = vld [vmem:[%s2 + $0x2f0] sm:$0xff]
        %v581 = vld [vmem:[%s2 + $0x2f8] sm:$0xff]
        %v582 = vld [vmem:[%s480 + $0x1] sm:$0xff]
        %v583 = vld [vmem:[%s480 + $0x9] sm:$0xff]
        %v584 = vld [vmem:[%s480 + $0x11] sm:$0xff]
        %v585 = vld [vmem:[%s480 + $0x19] sm:$0x1f]
        %s586 = scalar_lea.vmem %s2, 768
        %v587 = vld [vmem:[%s586] sm:$0xff]
        %v588 = vld [vmem:[%s586 + $0x8] sm:$0xff]
        %v589 = vld [vmem:[%s586 + $0x10] sm:$0xff]
        %v590 = vld [vmem:[%s586 + $0x18] sm:$0xff]
        %v591 = vld [vmem:[%s586 + $0x20] sm:$0xff]
        %v592 = vld [vmem:[%s586 + $0x28] sm:$0xff]
        %v593 = vld [vmem:[%s586 + $0x30] sm:$0xff]
        %v594 = vld [vmem:[%s586 + $0x38] sm:$0xff]
        %v595 = vld [vmem:[%s586 + $0x40] sm:$0xff]
        %v596 = vld [vmem:[%s586 + $0x48] sm:$0xff]
        %v597 = vld [vmem:[%s586 + $0x50] sm:$0xff]
        %v598 = vld [vmem:[%s586 + $0x58] sm:$0xff]
        %v599 = vld [vmem:[%s586 + $0x60] sm:$0xff]
        %v600 = vld [vmem:[%s586 + $0x68] sm:$0xff]
        %v601 = vld [vmem:[%s586 + $0x70] sm:$0xff]
        %v602 = vld [vmem:[%s586 + $0x78] sm:$0xff]
        %v603 = vld [vmem:[%s586 + $0x80] sm:$0xff]
        %v604 = vld [vmem:[%s586 + $0x88] sm:$0xff]
        %v605 = vld [vmem:[%s586 + $0x90] sm:$0xff]
        %v606 = vld [vmem:[%s586 + $0x98] sm:$0xff]
        %v607 = vld [vmem:[%s586 + $0xa0] sm:$0xff]
        %v608 = vld [vmem:[%s586 + $0xa8] sm:$0xff]
        %v609 = vld [vmem:[%s586 + $0xb0] sm:$0xff]
        %v610 = vld [vmem:[%s586 + $0xb8] sm:$0xff]
        %v611 = vld [vmem:[%s586 + $0xc0] sm:$0xff]
        %v612 = vld [vmem:[%s586 + $0xc8] sm:$0xff]
        %v613 = vld [vmem:[%s586 + $0xd0] sm:$0xff]
        %v614 = vld [vmem:[%s586 + $0xd8] sm:$0xff]
        %v615 = vld [vmem:[%s586 + $0xe0] sm:$0xff]
        %v616 = vld [vmem:[%s586 + $0xe8] sm:$0xff]
        %v617 = vld [vmem:[%s586 + $0xf0] sm:$0xff]
        %v618 = vld [vmem:[%s586 + $0xf8] sm:$0xff]
        %v619 = vld [vmem:[%s586 + $0x100] sm:$0xff]
        %v620 = vld [vmem:[%s586 + $0x108] sm:$0xff]
        %v621 = vld [vmem:[%s586 + $0x110] sm:$0xff]
        %v622 = vld [vmem:[%s586 + $0x118] sm:$0xff]
        %v623 = vld [vmem:[%s586 + $0x120] sm:$0xff]
        %v624 = vld [vmem:[%s586 + $0x128] sm:$0xff]
        %v625 = vld [vmem:[%s586 + $0x130] sm:$0xff]
        %v626 = vld [vmem:[%s586 + $0x138] sm:$0xff]
        %v627 = vld [vmem:[%s586 + $0x140] sm:$0xff]
        %v628 = vld [vmem:[%s586 + $0x148] sm:$0xff]
        %v629 = vld [vmem:[%s586 + $0x150] sm:$0xff]
        %v630 = vld [vmem:[%s586 + $0x158] sm:$0xff]
        %v631 = vld [vmem:[%s586 + $0x160] sm:$0xff]
        %v632 = vld [vmem:[%s586 + $0x168] sm:$0xff]
        %v633 = vld [vmem:[%s586 + $0x170] sm:$0xff]
        %v634 = vld [vmem:[%s586 + $0x178] sm:$0xff]
        %v635 = vld [vmem:[%s586 + $0x180] sm:$0xff]
        %v636 = vld [vmem:[%s586 + $0x188] sm:$0xff]
        %v637 = vld [vmem:[%s586 + $0x190] sm:$0xff]
        %v638 = vld [vmem:[%s586 + $0x198] sm:$0xff]
        %v639 = vld [vmem:[%s586 + $0x1a0] sm:$0xff]
        %v640 = vld [vmem:[%s586 + $0x1a8] sm:$0xff]
        %v641 = vld [vmem:[%s586 + $0x1b0] sm:$0xff]
        %v642 = vld [vmem:[%s586 + $0x1b8] sm:$0xff]
        %v643 = vld [vmem:[%s586 + $0x1c0] sm:$0xff]
        %v644 = vld [vmem:[%s586 + $0x1c8] sm:$0xff]
        %v645 = vld [vmem:[%s586 + $0x1d0] sm:$0xff]
        %v646 = vld [vmem:[%s586 + $0x1d8] sm:$0xff]
        %v647 = vld [vmem:[%s586 + $0x1e0] sm:$0xff]
        %v648 = vld [vmem:[%s586 + $0x1e8] sm:$0xff]
        %v649 = vld [vmem:[%s586 + $0x1f0] sm:$0xff]
        %v650 = vld [vmem:[%s586 + $0x1f8] sm:$0xff]
        %v651 = vld [vmem:[%s586 + $0x200] sm:$0xff]
        %v652 = vld [vmem:[%s586 + $0x208] sm:$0xff]
        %v653 = vld [vmem:[%s586 + $0x210] sm:$0xff]
        %v654 = vld [vmem:[%s586 + $0x218] sm:$0xff]
        %v655 = vld [vmem:[%s586 + $0x220] sm:$0xff]
        %v656 = vld [vmem:[%s586 + $0x228] sm:$0xff]
        %v657 = vld [vmem:[%s586 + $0x230] sm:$0xff]
        %v658 = vld [vmem:[%s586 + $0x238] sm:$0xff]
        %v659 = vld [vmem:[%s586 + $0x240] sm:$0xff]
        %v660 = vld [vmem:[%s586 + $0x248] sm:$0xff]
        %v661 = vld [vmem:[%s586 + $0x250] sm:$0xff]
        %v662 = vld [vmem:[%s586 + $0x258] sm:$0xff]
        %v663 = vld [vmem:[%s586 + $0x260] sm:$0xff]
        %v664 = vld [vmem:[%s586 + $0x268] sm:$0xff]
        %v665 = vld [vmem:[%s586 + $0x270] sm:$0xff]
        %v666 = vld [vmem:[%s586 + $0x278] sm:$0xff]
        %v667 = vld [vmem:[%s586 + $0x280] sm:$0xff]
        %v668 = vld [vmem:[%s586 + $0x288] sm:$0xff]
        %v669 = vld [vmem:[%s586 + $0x290] sm:$0xff]
        %v670 = vld [vmem:[%s586 + $0x298] sm:$0xff]
        %v671 = vld [vmem:[%s586 + $0x2a0] sm:$0xff]
        %v672 = vld [vmem:[%s586 + $0x2a8] sm:$0xff]
        %v673 = vld [vmem:[%s586 + $0x2b0] sm:$0xff]
        %v674 = vld [vmem:[%s586 + $0x2b8] sm:$0xff]
        %v675 = vld [vmem:[%s586 + $0x2c0] sm:$0xff]
        %v676 = vld [vmem:[%s586 + $0x2c8] sm:$0xff]
        %v677 = vld [vmem:[%s586 + $0x2d0] sm:$0xff]
        %v678 = vld [vmem:[%s586 + $0x2d8] sm:$0xff]
        %v679 = vld [vmem:[%s586 + $0x2e0] sm:$0xff]
        %v680 = vld [vmem:[%s586 + $0x2e8] sm:$0xff]
        %v681 = vld [vmem:[%s586 + $0x2f0] sm:$0xff]
        %v682 = vld [vmem:[%s586 + $0x2f8] sm:$0xff]
        %vm683 = vcmask 785408
        %v685 = vsel %vm683, %v582, 0
        %v688 = vsel %vm683, %v583, 0
        %v691 = vsel %vm683, %v584, 0
        %v694 = vsel %vm683, %v585, 0
        %696 = vmatprep.subr.mxu0 %v588
        %697 = vmatpush1.msra.mxu0 %v587
        %698 = vmatprep.subr.mxu0 %v596
        %699 = vmatpush1.msra.mxu0 %v595
        %700 = vmatprep.subr.mxu0 %v604
        %701 = vmatpush1.msra.mxu0 %v603
        %702 = vmatprep.subr.mxu0 %v612
        %703 = vmatpush1.msra.mxu0 %v611
        %704 = vmatprep.subr.mxu0 %v620
        %705 = vmatpush1.msra.mxu0 %v619
        %706 = vmatprep.subr.mxu0 %v628
        %707 = vmatpush1.msra.mxu0 %v627
        %708 = vmatprep.subr.mxu0 %v636
        %709 = vmatpush1.msra.mxu0 %v635
        %710 = vmatprep.subr.mxu0 %v644
        %711 = vmatpush1.msra.mxu0 %v643
        %712 = vmatprep.subr.mxu0 %v652
        %713 = vmatpush1.msra.mxu0 %v651
        %714 = vmatprep.subr.mxu0 %v660
        %715 = vmatpush1.msra.mxu0 %v659
        %716 = vmatprep.subr.mxu0 %v668
        %717 = vmatpush1.msra.mxu0 %v667
        %718 = vmatprep.subr.mxu0 %v676
        %719 = vmatpush1.msra.mxu0 %v675
        %720 = vmatprep.subr.mxu0 0.0
        %721 = vmatpush1.msra.mxu0 0.0
        %722 = vmatprep.subr.mxu0 0.0
        %723 = vmatpush1.msra.mxu0 0.0
        %724 = vmatprep.subr.mxu0 0.0
        %725 = vmatpush1.msra.mxu0 0.0
        %726 = vmatprep.subr.mxu0 0.0
        %727 = vmatpush1.msra.mxu0 0.0
        %728 = vmatprep.subr.mxu0 0.0
        %729 = vmatpush1.msra.mxu0 0.0
        %730 = vmatprep.subr.mxu0 0.0
        %731 = vmatpush1.msra.mxu0 0.0
        %732 = vmatprep.subr.mxu0 0.0
        %733 = vmatpush1.msra.mxu0 0.0
        %734 = vmatprep.subr.mxu0 0.0
        %735 = vmatpush1.msra.mxu0 0.0
        %736 = vmatprep.subr.mxu0 0.0
        %737 = vmatpush1.msra.mxu0 0.0
        %738 = vmatprep.subr.mxu0 0.0
        %739 = vmatpush1.msra.mxu0 0.0
        %740 = vmatprep.subr.mxu0 0.0
        %741 = vmatpush1.msra.mxu0 0.0
        %742 = vmatprep.subr.mxu0 0.0
        %743 = vmatpush1.msra.mxu0 0.0
        %744 = vmatprep.subr.mxu0 0.0
        %745 = vmatpush1.msra.mxu0 0.0
        %746 = vmatprep.subr.mxu0 0.0
        %747 = vmatpush1.msra.mxu0 0.0
        %748 = vmatprep.subr.mxu0 0.0
        %749 = vmatpush1.msra.mxu0 0.0
        %750 = vmatprep.subr.mxu0 0.0
        %751 = vmatpush1.msra.mxu0 0.0
        %752 = vmatprep.subr.mxu0 0.0
        %753 = vmatpush1.msra.mxu0 0.0
        %754 = vmatprep.subr.mxu0 0.0
        %755 = vmatpush1.msra.mxu0 0.0
        %756 = vmatprep.subr.mxu0 0.0
        %757 = vmatpush1.msra.mxu0 0.0
        %758 = vmatprep.subr.mxu0 0.0
        %759 = vmatpush1.msra.mxu0 0.0
        %760 = vmatprep.mubr.f32.mxu0 0.0
        %761 = vmatmul.mubr.f32.gmra.mrb[0].mxu0 %v685
        %v762 = vpop.f32.mrb[0].mxu0
        %v763 = vadd.f32 0.0, %v762
        %v764 = vpop.f32.mrb[0].mxu0
        %v765 = vadd.f32 0.0, %v764
        %766 = vmatprep.mubr.f32.mxu0 0.0
        %767 = vmatmul.mubr.f32.gmra.mrb[0].mxu0 %v688
        %v768 = vpop.f32.mrb[0].mxu0
        %v769 = vadd.f32 0.0, %v768
        %v770 = vpop.f32.mrb[0].mxu0
        %v771 = vadd.f32 0.0, %v770
        %772 = vmatprep.mubr.f32.mxu0 0.0
        %773 = vmatmul.mubr.f32.gmra.mrb[0].mxu0 %v691
        %v774 = vpop.f32.mrb[0].mxu0
        %v775 = vadd.f32 0.0, %v774
        %v776 = vpop.f32.mrb[0].mxu0
        %v777 = vadd.f32 0.0, %v776
        %778 = vmatprep.mubr.f32.mxu0 0.0
        %779 = vmatmul.mubr.f32.gmra.mrb[0].mxu0 %v694
        %v780 = vpop.f32.mrb[0].mxu0
        %v781 = vadd.f32 0.0, %v780
        %v782 = vpop.f32.mrb[0].mxu0
        %v783 = vadd.f32 0.0, %v782
        %784 = vdwg.mxu0
        %785 = vmatprep.subr.mxu0 %v590
        %786 = vmatpush1.msra.mxu0 %v589
        %787 = vmatprep.subr.mxu0 %v598
        %788 = vmatpush1.msra.mxu0 %v597
        %789 = vmatprep.subr.mxu0 %v606
        %790 = vmatpush1.msra.mxu0 %v605
        %791 = vmatprep.subr.mxu0 %v614
        %792 = vmatpush1.msra.mxu0 %v613
        %793 = vmatprep.subr.mxu0 %v622
        %794 = vmatpush1.msra.mxu0 %v621
        %795 = vmatprep.subr.mxu0 %v630
        %796 = vmatpush1.msra.mxu0 %v629
        %797 = vmatprep.subr.mxu0 %v638
        %798 = vmatpush1.msra.mxu0 %v637
        %799 = vmatprep.subr.mxu0 %v646
        %800 = vmatpush1.msra.mxu0 %v645
        %801 = vmatprep.subr.mxu0 %v654
        %802 = vmatpush1.msra.mxu0 %v653
        %803 = vmatprep.subr.mxu0 %v662
        %804 = vmatpush1.msra.mxu0 %v661
        %805 = vmatprep.subr.mxu0 %v670
        %806 = vmatpush1.msra.mxu0 %v669
        %807 = vmatprep.subr.mxu0 %v678
        %808 = vmatpush1.msra.mxu0 %v677
        %809 = vmatprep.subr.mxu0 0.0
        %810 = vmatpush1.msra.mxu0 0.0
        %811 = vmatprep.subr.mxu0 0.0
        %812 = vmatpush1.msra.mxu0 0.0
        %813 = vmatprep.subr.mxu0 0.0
        %814 = vmatpush1.msra.mxu0 0.0
        %815 = vmatprep.subr.mxu0 0.0
        %816 = vmatpush1.msra.mxu0 0.0
        %817 = vmatprep.subr.mxu0 0.0
        %818 = vmatpush1.msra.mxu0 0.0
        %819 = vmatprep.subr.mxu0 0.0
        %820 = vmatpush1.msra.mxu0 0.0
        %821 = vmatprep.subr.mxu0 0.0
        %822 = vmatpush1.msra.mxu0 0.0
        %823 = vmatprep.subr.mxu0 0.0
        %824 = vmatpush1.msra.mxu0 0.0
        %825 = vmatprep.subr.mxu0 0.0
        %826 = vmatpush1.msra.mxu0 0.0
        %827 = vmatprep.subr.mxu0 0.0
        %828 = vmatpush1.msra.mxu0 0.0
        %829 = vmatprep.subr.mxu0 0.0
        %830 = vmatpush1.msra.mxu0 0.0
        %831 = vmatprep.subr.mxu0 0.0
        %832 = vmatpush1.msra.mxu0 0.0
        %833 = vmatprep.subr.mxu0 0.0
        %834 = vmatpush1.msra.mxu0 0.0
        %835 = vmatprep.subr.mxu0 0.0
        %836 = vmatpush1.msra.mxu0 0.0
        %837 = vmatprep.subr.mxu0 0.0
        %838 = vmatpush1.msra.mxu0 0.0
        %839 = vmatprep.subr.mxu0 0.0
        %840 = vmatpush1.msra.mxu0 0.0
        %841 = vmatprep.subr.mxu0 0.0
        %842 = vmatpush1.msra.mxu0 0.0
        %843 = vmatprep.subr.mxu0 0.0
        %844 = vmatpush1.msra.mxu0 0.0
        %845 = vmatprep.subr.mxu0 0.0
        %846 = vmatpush1.msra.mxu0 0.0
        %847 = vmatprep.subr.mxu0 0.0
        %848 = vmatpush1.msra.mxu0 0.0
        %849 = vmatprep.mubr.f32.mxu0 0.0
        %850 = vmatmul.mubr.f32.gmra.mrb[0].mxu0 %v685
        %v851 = vpop.f32.mrb[0].mxu0
        %v852 = vadd.f32 0.0, %v851
        %v853 = vpop.f32.mrb[0].mxu0
        %v854 = vadd.f32 0.0, %v853
        %855 = vmatprep.mubr.f32.mxu0 0.0
        %856 = vmatmul.mubr.f32.gmra.mrb[0].mxu0 %v688
        %v857 = vpop.f32.mrb[0].mxu0
        %v858 = vadd.f32 0.0, %v857
        %v859 = vpop.f32.mrb[0].mxu0
        %v860 = vadd.f32 0.0, %v859
        %861 = vmatprep.mubr.f32.mxu0 0.0
        %862 = vmatmul.mubr.f32.gmra.mrb[0].mxu0 %v691
        %v863 = vpop.f32.mrb[0].mxu0
        %v864 = vadd.f32 0.0, %v863
        %v865 = vpop.f32.mrb[0].mxu0
        %v866 = vadd.f32 0.0, %v865
        %867 = vmatprep.mubr.f32.mxu0 0.0
        %868 = vmatmul.mubr.f32.gmra.mrb[0].mxu0 %v694
        %v869 = vpop.f32.mrb[0].mxu0
        %v870 = vadd.f32 0.0, %v869
        %v871 = vpop.f32.mrb[0].mxu0
        %v872 = vadd.f32 0.0, %v871
        %873 = vdwg.mxu0
        %874 = vmatprep.subr.mxu0 %v592
        %875 = vmatpush1.msra.mxu0 %v591
        %876 = vmatprep.subr.mxu0 %v600
        %877 = vmatpush1.msra.mxu0 %v599
        %878 = vmatprep.subr.mxu0 %v608
        %879 = vmatpush1.msra.mxu0 %v607
        %880 = vmatprep.subr.mxu0 %v616
        %881 = vmatpush1.msra.mxu0 %v615
        %882 = vmatprep.subr.mxu0 %v624
        %883 = vmatpush1.msra.mxu0 %v623
        %884 = vmatprep.subr.mxu0 %v632
        %885 = vmatpush1.msra.mxu0 %v631
        %886 = vmatprep.subr.mxu0 %v640
        %887 = vmatpush1.msra.mxu0 %v639
        %888 = vmatprep.subr.mxu0 %v648
        %889 = vmatpush1.msra.mxu0 %v647
        %890 = vmatprep.subr.mxu0 %v656
        %891 = vmatpush1.msra.mxu0 %v655
        %892 = vmatprep.subr.mxu0 %v664
        %893 = vmatpush1.msra.mxu0 %v663
        %894 = vmatprep.subr.mxu0 %v672
        %895 = vmatpush1.msra.mxu0 %v671
        %896 = vmatprep.subr.mxu0 %v680
        %897 = vmatpush1.msra.mxu0 %v679
        %898 = vmatprep.subr.mxu0 0.0
        %899 = vmatpush1.msra.mxu0 0.0
        %900 = vmatprep.subr.mxu0 0.0
        %901 = vmatpush1.msra.mxu0 0.0
        %902 = vmatprep.subr.mxu0 0.0
        %903 = vmatpush1.msra.mxu0 0.0
        %904 = vmatprep.subr.mxu0 0.0
        %905 = vmatpush1.msra.mxu0 0.0
        %906 = vmatprep.subr.mxu0 0.0
        %907 = vmatpush1.msra.mxu0 0.0
        %908 = vmatprep.subr.mxu0 0.0
        %909 = vmatpush1.msra.mxu0 0.0
        %910 = vmatprep.subr.mxu0 0.0
        %911 = vmatpush1.msra.mxu0 0.0
        %912 = vmatprep.subr.mxu0 0.0
        %913 = vmatpush1.msra.mxu0 0.0
        %914 = vmatprep.subr.mxu0 0.0
        %915 = vmatpush1.msra.mxu0 0.0
        %916 = vmatprep.subr.mxu0 0.0
        %917 = vmatpush1.msra.mxu0 0.0
        %918 = vmatprep.subr.mxu0 0.0
        %919 = vmatpush1.msra.mxu0 0.0
        %920 = vmatprep.subr.mxu0 0.0
        %921 = vmatpush1.msra.mxu0 0.0
        %922 = vmatprep.subr.mxu0 0.0
        %923 = vmatpush1.msra.mxu0 0.0
        %924 = vmatprep.subr.mxu0 0.0
        %925 = vmatpush1.msra.mxu0 0.0
        %926 = vmatprep.subr.mxu0 0.0
        %927 = vmatpush1.msra.mxu0 0.0
        %928 = vmatprep.subr.mxu0 0.0
        %929 = vmatpush1.msra.mxu0 0.0
        %930 = vmatprep.subr.mxu0 0.0
        %931 = vmatpush1.msra.mxu0 0.0
        %932 = vmatprep.subr.mxu0 0.0
        %933 = vmatpush1.msra.mxu0 0.0
        %934 = vmatprep.subr.mxu0 0.0
        %935 = vmatpush1.msra.mxu0 0.0
        %936 = vmatprep.subr.mxu0 0.0
        %937 = vmatpush1.msra.mxu0 0.0
        %938 = vmatprep.mubr.f32.mxu0 0.0
        %939 = vmatmul.mubr.f32.gmra.mrb[0].mxu0 %v685
        %v940 = vpop.f32.mrb[0].mxu0
        %v941 = vadd.f32 0.0, %v940
        %v942 = vpop.f32.mrb[0].mxu0
        %v943 = vadd.f32 0.0, %v942
        %944 = vmatprep.mubr.f32.mxu0 0.0
        %945 = vmatmul.mubr.f32.gmra.mrb[0].mxu0 %v688
        %v946 = vpop.f32.mrb[0].mxu0
        %v947 = vadd.f32 0.0, %v946
        %v948 = vpop.f32.mrb[0].mxu0
        %v949 = vadd.f32 0.0, %v948
        %950 = vmatprep.mubr.f32.mxu0 0.0
        %951 = vmatmul.mubr.f32.gmra.mrb[0].mxu0 %v691
        %v952 = vpop.f32.mrb[0].mxu0
        %v953 = vadd.f32 0.0, %v952
        %v954 = vpop.f32.mrb[0].mxu0
        %v955 = vadd.f32 0.0, %v954
        %956 = vmatprep.mubr.f32.mxu0 0.0
        %957 = vmatmul.mubr.f32.gmra.mrb[0].mxu0 %v694
        %v958 = vpop.f32.mrb[0].mxu0
        %v959 = vadd.f32 0.0, %v958
        %v960 = vpop.f32.mrb[0].mxu0
        %v961 = vadd.f32 0.0, %v960
        %962 = vdwg.mxu0
        %963 = vmatprep.subr.mxu0 %v594
        %964 = vmatpush1.msra.mxu0 %v593
        %965 = vmatprep.subr.mxu0 %v602
        %966 = vmatpush1.msra.mxu0 %v601
        %967 = vmatprep.subr.mxu0 %v610
        %968 = vmatpush1.msra.mxu0 %v609
        %969 = vmatprep.subr.mxu0 %v618
        %970 = vmatpush1.msra.mxu0 %v617
        %971 = vmatprep.subr.mxu0 %v626
        %972 = vmatpush1.msra.mxu0 %v625
        %973 = vmatprep.subr.mxu0 %v634
        %974 = vmatpush1.msra.mxu0 %v633
        %975 = vmatprep.subr.mxu0 %v642
        %976 = vmatpush1.msra.mxu0 %v641
        %977 = vmatprep.subr.mxu0 %v650
        %978 = vmatpush1.msra.mxu0 %v649
        %979 = vmatprep.subr.mxu0 %v658
        %980 = vmatpush1.msra.mxu0 %v657
        %981 = vmatprep.subr.mxu0 %v666
        %982 = vmatpush1.msra.mxu0 %v665
        %983 = vmatprep.subr.mxu0 %v674
        %984 = vmatpush1.msra.mxu0 %v673
        %985 = vmatprep.subr.mxu0 %v682
        %986 = vmatpush1.msra.mxu0 %v681
        %987 = vmatprep.subr.mxu0 0.0
        %988 = vmatpush1.msra.mxu0 0.0
        %989 = vmatprep.subr.mxu0 0.0
        %990 = vmatpush1.msra.mxu0 0.0
        %991 = vmatprep.subr.mxu0 0.0
        %992 = vmatpush1.msra.mxu0 0.0
        %993 = vmatprep.subr.mxu0 0.0
        %994 = vmatpush1.msra.mxu0 0.0
        %995 = vmatprep.subr.mxu0 0.0
        %996 = vmatpush1.msra.mxu0 0.0
        %997 = vmatprep.subr.mxu0 0.0
        %998 = vmatpush1.msra.mxu0 0.0
        %999 = vmatprep.subr.mxu0 0.0
        %1000 = vmatpush1.msra.mxu0 0.0
        %1001 = vmatprep.subr.mxu0 0.0
        %1002 = vmatpush1.msra.mxu0 0.0
        %1003 = vmatprep.subr.mxu0 0.0
        %1004 = vmatpush1.msra.mxu0 0.0
        %1005 = vmatprep.subr.mxu0 0.0
        %1006 = vmatpush1.msra.mxu0 0.0
        %1007 = vmatprep.subr.mxu0 0.0
        %1008 = vmatpush1.msra.mxu0 0.0
        %1009 = vmatprep.subr.mxu0 0.0
        %1010 = vmatpush1.msra.mxu0 0.0
        %1011 = vmatprep.subr.mxu0 0.0
        %1012 = vmatpush1.msra.mxu0 0.0
        %1013 = vmatprep.subr.mxu0 0.0
        %1014 = vmatpush1.msra.mxu0 0.0
        %1015 = vmatprep.subr.mxu0 0.0
        %1016 = vmatpush1.msra.mxu0 0.0
        %1017 = vmatprep.subr.mxu0 0.0
        %1018 = vmatpush1.msra.mxu0 0.0
        %1019 = vmatprep.subr.mxu0 0.0
        %1020 = vmatpush1.msra.mxu0 0.0
        %1021 = vmatprep.subr.mxu0 0.0
        %1022 = vmatpush1.msra.mxu0 0.0
        %1023 = vmatprep.subr.mxu0 0.0
        %1024 = vmatpush1.msra.mxu0 0.0
        %1025 = vmatprep.subr.mxu0 0.0
        %1026 = vmatpush1.msra.mxu0 0.0
        %1027 = vmatprep.mubr.f32.mxu0 0.0
        %1028 = vmatmul.mubr.f32.gmra.mrb[0].mxu0 %v685
        %v1029 = vpop.f32.mrb[0].mxu0
        %v1030 = vadd.f32 0.0, %v1029
        %v1031 = vpop.f32.mrb[0].mxu0
        %v1032 = vadd.f32 0.0, %v1031
        %1033 = vmatprep.mubr.f32.mxu0 0.0
        %1034 = vmatmul.mubr.f32.gmra.mrb[0].mxu0 %v688
        %v1035 = vpop.f32.mrb[0].mxu0
        %v1036 = vadd.f32 0.0, %v1035
        %v1037 = vpop.f32.mrb[0].mxu0
        %v1038 = vadd.f32 0.0, %v1037
        %1039 = vmatprep.mubr.f32.mxu0 0.0
        %1040 = vmatmul.mubr.f32.gmra.mrb[0].mxu0 %v691
        %v1041 = vpop.f32.mrb[0].mxu0
        %v1042 = vadd.f32 0.0, %v1041
        %v1043 = vpop.f32.mrb[0].mxu0
        %v1044 = vadd.f32 0.0, %v1043
        %1045 = vmatprep.mubr.f32.mxu0 0.0
        %1046 = vmatmul.mubr.f32.gmra.mrb[0].mxu0 %v694
        %v1047 = vpop.f32.mrb[0].mxu0
        %v1048 = vadd.f32 0.0, %v1047
        %v1049 = vpop.f32.mrb[0].mxu0
        %v1050 = vadd.f32 0.0, %v1049
        %1051 = vdwg.mxu0
        %v1053 = vsel %vm683, %v482, 0
        %v1056 = vsel %vm683, %v483, 0
        %v1059 = vsel %vm683, %v484, 0
        %v1062 = vsel %vm683, %v485, 0
        %1064 = vmatprep.subr.mxu0 %v487
        %1065 = vmatpush1.msra.mxu0 %v486
        %1066 = vmatprep.subr.mxu0 %v495
        %1067 = vmatpush1.msra.mxu0 %v494
        %1068 = vmatprep.subr.mxu0 %v503
        %1069 = vmatpush1.msra.mxu0 %v502
        %1070 = vmatprep.subr.mxu0 %v511
        %1071 = vmatpush1.msra.mxu0 %v510
        %1072 = vmatprep.subr.mxu0 %v519
        %1073 = vmatpush1.msra.mxu0 %v518
        %1074 = vmatprep.subr.mxu0 %v527
        %1075 = vmatpush1.msra.mxu0 %v526
        %1076 = vmatprep.subr.mxu0 %v535
        %1077 = vmatpush1.msra.mxu0 %v534
        %1078 = vmatprep.subr.mxu0 %v543
        %1079 = vmatpush1.msra.mxu0 %v542
        %1080 = vmatprep.subr.mxu0 %v551
        %1081 = vmatpush1.msra.mxu0 %v550
        %1082 = vmatprep.subr.mxu0 %v559
        %1083 = vmatpush1.msra.mxu0 %v558
        %1084 = vmatprep.subr.mxu0 %v567
        %1085 = vmatpush1.msra.mxu0 %v566
        %1086 = vmatprep.subr.mxu0 %v575
        %1087 = vmatpush1.msra.mxu0 %v574
        %1088 = vmatprep.subr.mxu0 0.0
        %1089 = vmatpush1.msra.mxu0 0.0
        %1090 = vmatprep.subr.mxu0 0.0
        %1091 = vmatpush1.msra.mxu0 0.0
        %1092 = vmatprep.subr.mxu0 0.0
        %1093 = vmatpush1.msra.mxu0 0.0
        %1094 = vmatprep.subr.mxu0 0.0
        %1095 = vmatpush1.msra.mxu0 0.0
        %1096 = vmatprep.subr.mxu0 0.0
        %1097 = vmatpush1.msra.mxu0 0.0
        %1098 = vmatprep.subr.mxu0 0.0
        %1099 = vmatpush1.msra.mxu0 0.0
        %1100 = vmatprep.subr.mxu0 0.0
        %1101 = vmatpush1.msra.mxu0 0.0
        %1102 = vmatprep.subr.mxu0 0.0
        %1103 = vmatpush1.msra.mxu0 0.0
        %1104 = vmatprep.subr.mxu0 0.0
        %1105 = vmatpush1.msra.mxu0 0.0
        %1106 = vmatprep.subr.mxu0 0.0
        %1107 = vmatpush1.msra.mxu0 0.0
        %1108 = vmatprep.subr.mxu0 0.0
        %1109 = vmatpush1.msra.mxu0 0.0
        %1110 = vmatprep.subr.mxu0 0.0
        %1111 = vmatpush1.msra.mxu0 0.0
        %1112 = vmatprep.subr.mxu0 0.0
        %1113 = vmatpush1.msra.mxu0 0.0
        %1114 = vmatprep.subr.mxu0 0.0
        %1115 = vmatpush1.msra.mxu0 0.0
        %1116 = vmatprep.subr.mxu0 0.0
        %1117 = vmatpush1.msra.mxu0 0.0
        %1118 = vmatprep.subr.mxu0 0.0
        %1119 = vmatpush1.msra.mxu0 0.0
        %1120 = vmatprep.subr.mxu0 0.0
        %1121 = vmatpush1.msra.mxu0 0.0
        %1122 = vmatprep.subr.mxu0 0.0
        %1123 = vmatpush1.msra.mxu0 0.0
        %1124 = vmatprep.subr.mxu0 0.0
        %1125 = vmatpush1.msra.mxu0 0.0
        %1126 = vmatprep.subr.mxu0 0.0
        %1127 = vmatpush1.msra.mxu0 0.0
        %1128 = vmatprep.mubr.f32.mxu0 0.0
        %1129 = vmatmul.mubr.f32.gmra.mrb[0].mxu0 %v1053
        %v1130 = vpop.f32.mrb[0].mxu0
        %v1131 = vadd.f32 %v763, %v1130
        %v1132 = vpop.f32.mrb[0].mxu0
        %v1133 = vadd.f32 %v765, %v1132
        %1134 = vmatprep.mubr.f32.mxu0 0.0
        %1135 = vmatmul.mubr.f32.gmra.mrb[0].mxu0 %v1056
        %v1136 = vpop.f32.mrb[0].mxu0
        %v1137 = vadd.f32 %v769, %v1136
        %v1138 = vpop.f32.mrb[0].mxu0
        %v1139 = vadd.f32 %v771, %v1138
        %1140 = vmatprep.mubr.f32.mxu0 0.0
        %1141 = vmatmul.mubr.f32.gmra.mrb[0].mxu0 %v1059
        %v1142 = vpop.f32.mrb[0].mxu0
        %v1143 = vadd.f32 %v775, %v1142
        %v1144 = vpop.f32.mrb[0].mxu0
        %v1145 = vadd.f32 %v777, %v1144
        %1146 = vmatprep.mubr.f32.mxu0 0.0
        %1147 = vmatmul.mubr.f32.gmra.mrb[0].mxu0 %v1062
        %v1148 = vpop.f32.mrb[0].mxu0
        %v1149 = vadd.f32 %v781, %v1148
        %v1150 = vpop.f32.mrb[0].mxu0
        %v1151 = vadd.f32 %v783, %v1150
        %1152 = vdwg.mxu0
        %1153 = vmatprep.subr.mxu0 %v489
        %1154 = vmatpush1.msra.mxu0 %v488
        %1155 = vmatprep.subr.mxu0 %v497
        %1156 = vmatpush1.msra.mxu0 %v496
        %1157 = vmatprep.subr.mxu0 %v505
        %1158 = vmatpush1.msra.mxu0 %v504
        %1159 = vmatprep.subr.mxu0 %v513
        %1160 = vmatpush1.msra.mxu0 %v512
        %1161 = vmatprep.subr.mxu0 %v521
        %1162 = vmatpush1.msra.mxu0 %v520
        %1163 = vmatprep.subr.mxu0 %v529
        %1164 = vmatpush1.msra.mxu0 %v528
        %1165 = vmatprep.subr.mxu0 %v537
        %1166 = vmatpush1.msra.mxu0 %v536
        %1167 = vmatprep.subr.mxu0 %v545
        %1168 = vmatpush1.msra.mxu0 %v544
        %1169 = vmatprep.subr.mxu0 %v553
        %1170 = vmatpush1.msra.mxu0 %v552
        %1171 = vmatprep.subr.mxu0 %v561
        %1172 = vmatpush1.msra.mxu0 %v560
        %1173 = vmatprep.subr.mxu0 %v569
        %1174 = vmatpush1.msra.mxu0 %v568
        %1175 = vmatprep.subr.mxu0 %v577
        %1176 = vmatpush1.msra.mxu0 %v576
        %1177 = vmatprep.subr.mxu0 0.0
        %1178 = vmatpush1.msra.mxu0 0.0
        %1179 = vmatprep.subr.mxu0 0.0
        %1180 = vmatpush1.msra.mxu0 0.0
        %1181 = vmatprep.subr.mxu0 0.0
        %1182 = vmatpush1.msra.mxu0 0.0
        %1183 = vmatprep.subr.mxu0 0.0
        %1184 = vmatpush1.msra.mxu0 0.0
        %1185 = vmatprep.subr.mxu0 0.0
        %1186 = vmatpush1.msra.mxu0 0.0
        %1187 = vmatprep.subr.mxu0 0.0
        %1188 = vmatpush1.msra.mxu0 0.0
        %1189 = vmatprep.subr.mxu0 0.0
        %1190 = vmatpush1.msra.mxu0 0.0
        %1191 = vmatprep.subr.mxu0 0.0
        %1192 = vmatpush1.msra.mxu0 0.0
        %1193 = vmatprep.subr.mxu0 0.0
        %1194 = vmatpush1.msra.mxu0 0.0
        %1195 = vmatprep.subr.mxu0 0.0
        %1196 = vmatpush1.msra.mxu0 0.0
        %1197 = vmatprep.subr.mxu0 0.0
        %1198 = vmatpush1.msra.mxu0 0.0
        %1199 = vmatprep.subr.mxu0 0.0
        %1200 = vmatpush1.msra.mxu0 0.0
        %1201 = vmatprep.subr.mxu0 0.0
        %1202 = vmatpush1.msra.mxu0 0.0
        %1203 = vmatprep.subr.mxu0 0.0
        %1204 = vmatpush1.msra.mxu0 0.0
        %1205 = vmatprep.subr.mxu0 0.0
        %1206 = vmatpush1.msra.mxu0 0.0
        %1207 = vmatprep.subr.mxu0 0.0
        %1208 = vmatpush1.msra.mxu0 0.0
        %1209 = vmatprep.subr.mxu0 0.0
        %1210 = vmatpush1.msra.mxu0 0.0
        %1211 = vmatprep.subr.mxu0 0.0
        %1212 = vmatpush1.msra.mxu0 0.0
        %1213 = vmatprep.subr.mxu0 0.0
        %1214 = vmatpush1.msra.mxu0 0.0
        %1215 = vmatprep.subr.mxu0 0.0
        %1216 = vmatpush1.msra.mxu0 0.0
        %1217 = vmatprep.mubr.f32.mxu0 0.0
        %1218 = vmatmul.mubr.f32.gmra.mrb[0].mxu0 %v1053
        %v1219 = vpop.f32.mrb[0].mxu0
        %v1220 = vadd.f32 %v852, %v1219
        %v1221 = vpop.f32.mrb[0].mxu0
        %v1222 = vadd.f32 %v854, %v1221
        %1223 = vmatprep.mubr.f32.mxu0 0.0
        %1224 = vmatmul.mubr.f32.gmra.mrb[0].mxu0 %v1056
        %v1225 = vpop.f32.mrb[0].mxu0
        %v1226 = vadd.f32 %v858, %v1225
        %v1227 = vpop.f32.mrb[0].mxu0
        %v1228 = vadd.f32 %v860, %v1227
        %1229 = vmatprep.mubr.f32.mxu0 0.0
        %1230 = vmatmul.mubr.f32.gmra.mrb[0].mxu0 %v1059
        %v1231 = vpop.f32.mrb[0].mxu0
        %v1232 = vadd.f32 %v864, %v1231
        %v1233 = vpop.f32.mrb[0].mxu0
        %v1234 = vadd.f32 %v866, %v1233
        %1235 = vmatprep.mubr.f32.mxu0 0.0
        %1236 = vmatmul.mubr.f32.gmra.mrb[0].mxu0 %v1062
        %v1237 = vpop.f32.mrb[0].mxu0
        %v1238 = vadd.f32 %v870, %v1237
        %v1239 = vpop.f32.mrb[0].mxu0
        %v1240 = vadd.f32 %v872, %v1239
        %1241 = vdwg.mxu0
        %1242 = vmatprep.subr.mxu0 %v491
        %1243 = vmatpush1.msra.mxu0 %v490
        %1244 = vmatprep.subr.mxu0 %v499
        %1245 = vmatpush1.msra.mxu0 %v498
        %1246 = vmatprep.subr.mxu0 %v507
        %1247 = vmatpush1.msra.mxu0 %v506
        %1248 = vmatprep.subr.mxu0 %v515
        %1249 = vmatpush1.msra.mxu0 %v514
        %1250 = vmatprep.subr.mxu0 %v523
        %1251 = vmatpush1.msra.mxu0 %v522
        %1252 = vmatprep.subr.mxu0 %v531
        %1253 = vmatpush1.msra.mxu0 %v530
        %1254 = vmatprep.subr.mxu0 %v539
        %1255 = vmatpush1.msra.mxu0 %v538
        %1256 = vmatprep.subr.mxu0 %v547
        %1257 = vmatpush1.msra.mxu0 %v546
        %1258 = vmatprep.subr.mxu0 %v555
        %1259 = vmatpush1.msra.mxu0 %v554
        %1260 = vmatprep.subr.mxu0 %v563
        %1261 = vmatpush1.msra.mxu0 %v562
        %1262 = vmatprep.subr.mxu0 %v571
        %1263 = vmatpush1.msra.mxu0 %v570
        %1264 = vmatprep.subr.mxu0 %v579
        %1265 = vmatpush1.msra.mxu0 %v578
        %1266 = vmatprep.subr.mxu0 0.0
        %1267 = vmatpush1.msra.mxu0 0.0
        %1268 = vmatprep.subr.mxu0 0.0
        %1269 = vmatpush1.msra.mxu0 0.0
        %1270 = vmatprep.subr.mxu0 0.0
        %1271 = vmatpush1.msra.mxu0 0.0
        %1272 = vmatprep.subr.mxu0 0.0
        %1273 = vmatpush1.msra.mxu0 0.0
        %1274 = vmatprep.subr.mxu0 0.0
        %1275 = vmatpush1.msra.mxu0 0.0
        %1276 = vmatprep.subr.mxu0 0.0
        %1277 = vmatpush1.msra.mxu0 0.0
        %1278 = vmatprep.subr.mxu0 0.0
        %1279 = vmatpush1.msra.mxu0 0.0
        %1280 = vmatprep.subr.mxu0 0.0
        %1281 = vmatpush1.msra.mxu0 0.0
        %1282 = vmatprep.subr.mxu0 0.0
        %1283 = vmatpush1.msra.mxu0 0.0
        %1284 = vmatprep.subr.mxu0 0.0
        %1285 = vmatpush1.msra.mxu0 0.0
        %1286 = vmatprep.subr.mxu0 0.0
        %1287 = vmatpush1.msra.mxu0 0.0
        %1288 = vmatprep.subr.mxu0 0.0
        %1289 = vmatpush1.msra.mxu0 0.0
        %1290 = vmatprep.subr.mxu0 0.0
        %1291 = vmatpush1.msra.mxu0 0.0
        %1292 = vmatprep.subr.mxu0 0.0
        %1293 = vmatpush1.msra.mxu0 0.0
        %1294 = vmatprep.subr.mxu0 0.0
        %1295 = vmatpush1.msra.mxu0 0.0
        %1296 = vmatprep.subr.mxu0 0.0
        %1297 = vmatpush1.msra.mxu0 0.0
        %1298 = vmatprep.subr.mxu0 0.0
        %1299 = vmatpush1.msra.mxu0 0.0
        %1300 = vmatprep.subr.mxu0 0.0
        %1301 = vmatpush1.msra.mxu0 0.0
        %1302 = vmatprep.subr.mxu0 0.0
        %1303 = vmatpush1.msra.mxu0 0.0
        %1304 = vmatprep.subr.mxu0 0.0
        %1305 = vmatpush1.msra.mxu0 0.0
        %1306 = vmatprep.mubr.f32.mxu0 0.0
        %1307 = vmatmul.mubr.f32.gmra.mrb[0].mxu0 %v1053
        %v1308 = vpop.f32.mrb[0].mxu0
        %v1309 = vadd.f32 %v941, %v1308
        %v1310 = vpop.f32.mrb[0].mxu0
        %v1311 = vadd.f32 %v943, %v1310
        %1312 = vmatprep.mubr.f32.mxu0 0.0
        %1313 = vmatmul.mubr.f32.gmra.mrb[0].mxu0 %v1056
        %v1314 = vpop.f32.mrb[0].mxu0
        %v1315 = vadd.f32 %v947, %v1314
        %v1316 = vpop.f32.mrb[0].mxu0
        %v1317 = vadd.f32 %v949, %v1316
        %1318 = vmatprep.mubr.f32.mxu0 0.0
        %1319 = vmatmul.mubr.f32.gmra.mrb[0].mxu0 %v1059
        %v1320 = vpop.f32.mrb[0].mxu0
        %v1321 = vadd.f32 %v953, %v1320
        %v1322 = vpop.f32.mrb[0].mxu0
        %v1323 = vadd.f32 %v955, %v1322
        %1324 = vmatprep.mubr.f32.mxu0 0.0
        %1325 = vmatmul.mubr.f32.gmra.mrb[0].mxu0 %v1062
        %v1326 = vpop.f32.mrb[0].mxu0
        %v1327 = vadd.f32 %v959, %v1326
        %v1328 = vpop.f32.mrb[0].mxu0
        %v1329 = vadd.f32 %v961, %v1328
        %1330 = vdwg.mxu0
        %1331 = vmatprep.subr.mxu0 %v493
        %1332 = vmatpush1.msra.mxu0 %v492
        %1333 = vmatprep.subr.mxu0 %v501
        %1334 = vmatpush1.msra.mxu0 %v500
        %1335 = vmatprep.subr.mxu0 %v509
        %1336 = vmatpush1.msra.mxu0 %v508
        %1337 = vmatprep.subr.mxu0 %v517
        %1338 = vmatpush1.msra.mxu0 %v516
        %1339 = vmatprep.subr.mxu0 %v525
        %1340 = vmatpush1.msra.mxu0 %v524
        %1341 = vmatprep.subr.mxu0 %v533
        %1342 = vmatpush1.msra.mxu0 %v532
        %1343 = vmatprep.subr.mxu0 %v541
        %1344 = vmatpush1.msra.mxu0 %v540
        %1345 = vmatprep.subr.mxu0 %v549
        %1346 = vmatpush1.msra.mxu0 %v548
        %1347 = vmatprep.subr.mxu0 %v557
        %1348 = vmatpush1.msra.mxu0 %v556
        %1349 = vmatprep.subr.mxu0 %v565
        %1350 = vmatpush1.msra.mxu0 %v564
        %1351 = vmatprep.subr.mxu0 %v573
        %1352 = vmatpush1.msra.mxu0 %v572
        %1353 = vmatprep.subr.mxu0 %v581
        %1354 = vmatpush1.msra.mxu0 %v580
        %1355 = vmatprep.subr.mxu0 0.0
        %1356 = vmatpush1.msra.mxu0 0.0
        %1357 = vmatprep.subr.mxu0 0.0
        %1358 = vmatpush1.msra.mxu0 0.0
        %1359 = vmatprep.subr.mxu0 0.0
        %1360 = vmatpush1.msra.mxu0 0.0
        %1361 = vmatprep.subr.mxu0 0.0
        %1362 = vmatpush1.msra.mxu0 0.0
        %1363 = vmatprep.subr.mxu0 0.0
        %1364 = vmatpush1.msra.mxu0 0.0
        %1365 = vmatprep.subr.mxu0 0.0
        %1366 = vmatpush1.msra.mxu0 0.0
        %1367 = vmatprep.subr.mxu0 0.0
        %1368 = vmatpush1.msra.mxu0 0.0
        %1369 = vmatprep.subr.mxu0 0.0
        %1370 = vmatpush1.msra.mxu0 0.0
        %1371 = vmatprep.subr.mxu0 0.0
        %1372 = vmatpush1.msra.mxu0 0.0
        %1373 = vmatprep.subr.mxu0 0.0
        %1374 = vmatpush1.msra.mxu0 0.0
        %1375 = vmatprep.subr.mxu0 0.0
        %1376 = vmatpush1.msra.mxu0 0.0
        %1377 = vmatprep.subr.mxu0 0.0
        %1378 = vmatpush1.msra.mxu0 0.0
        %1379 = vmatprep.subr.mxu0 0.0
        %1380 = vmatpush1.msra.mxu0 0.0
        %1381 = vmatprep.subr.mxu0 0.0
        %1382 = vmatpush1.msra.mxu0 0.0
        %1383 = vmatprep.subr.mxu0 0.0
        %1384 = vmatpush1.msra.mxu0 0.0
        %1385 = vmatprep.subr.mxu0 0.0
        %1386 = vmatpush1.msra.mxu0 0.0
        %1387 = vmatprep.subr.mxu0 0.0
        %1388 = vmatpush1.msra.mxu0 0.0
        %1389 = vmatprep.subr.mxu0 0.0
        %1390 = vmatpush1.msra.mxu0 0.0
        %1391 = vmatprep.subr.mxu0 0.0
        %1392 = vmatpush1.msra.mxu0 0.0
        %1393 = vmatprep.subr.mxu0 0.0
        %1394 = vmatpush1.msra.mxu0 0.0
        %1395 = vmatprep.mubr.f32.mxu0 0.0
        %1396 = vmatmul.mubr.f32.gmra.mrb[0].mxu0 %v1053
        %v1397 = vpop.f32.mrb[0].mxu0
        %v1398 = vadd.f32 %v1030, %v1397
        %v1399 = vpop.f32.mrb[0].mxu0
        %v1400 = vadd.f32 %v1032, %v1399
        %1401 = vmatprep.mubr.f32.mxu0 0.0
        %1402 = vmatmul.mubr.f32.gmra.mrb[0].mxu0 %v1056
        %v1403 = vpop.f32.mrb[0].mxu0
        %v1404 = vadd.f32 %v1036, %v1403
        %v1405 = vpop.f32.mrb[0].mxu0
        %v1406 = vadd.f32 %v1038, %v1405
        %1407 = vmatprep.mubr.f32.mxu0 0.0
        %1408 = vmatmul.mubr.f32.gmra.mrb[0].mxu0 %v1059
        %v1409 = vpop.f32.mrb[0].mxu0
        %v1410 = vadd.f32 %v1042, %v1409
        %v1411 = vpop.f32.mrb[0].mxu0
        %v1412 = vadd.f32 %v1044, %v1411
        %1413 = vmatprep.mubr.f32.mxu0 0.0
        %1414 = vmatmul.mubr.f32.gmra.mrb[0].mxu0 %v1062
        %v1415 = vpop.f32.mrb[0].mxu0
        %v1416 = vadd.f32 %v1048, %v1415
        %v1417 = vpop.f32.mrb[0].mxu0
        %v1418 = vadd.f32 %v1050, %v1417
        %1419 = vdwg.mxu0
        %v1420 = vld [vmem:[%s480 + $0x2] sm:$0xff]
        %v1421 = vld [vmem:[%s480 + $0xa] sm:$0xff]
        %v1422 = vld [vmem:[%s480 + $0x12] sm:$0xff]
        %v1423 = vld [vmem:[%s480 + $0x1a] sm:$0x1f]
        %s1424 = scalar_lea.vmem %s2, 1536
        %v1425 = vld [vmem:[%s1424] sm:$0xff]
        %v1426 = vld [vmem:[%s1424 + $0x8] sm:$0xff]
        %v1427 = vld [vmem:[%s1424 + $0x10] sm:$0xff]
        %v1428 = vld [vmem:[%s1424 + $0x18] sm:$0xff]
        %v1429 = vld [vmem:[%s1424 + $0x20] sm:$0xff]
        %v1430 = vld [vmem:[%s1424 + $0x28] sm:$0xff]
        %v1431 = vld [vmem:[%s1424 + $0x30] sm:$0xff]
        %v1432 = vld [vmem:[%s1424 + $0x38] sm:$0xff]
        %v1433 = vld [vmem:[%s1424 + $0x40] sm:$0xff]
        %v1434 = vld [vmem:[%s1424 + $0x48] sm:$0xff]
        %v1435 = vld [vmem:[%s1424 + $0x50] sm:$0xff]
        %v1436 = vld [vmem:[%s1424 + $0x58] sm:$0xff]
        %v1437 = vld [vmem:[%s1424 + $0x60] sm:$0xff]
        %v1438 = vld [vmem:[%s1424 + $0x68] sm:$0xff]
        %v1439 = vld [vmem:[%s1424 + $0x70] sm:$0xff]
        %v1440 = vld [vmem:[%s1424 + $0x78] sm:$0xff]
        %v1441 = vld [vmem:[%s1424 + $0x80] sm:$0xff]
        %v1442 = vld [vmem:[%s1424 + $0x88] sm:$0xff]
        %v1443 = vld [vmem:[%s1424 + $0x90] sm:$0xff]
        %v1444 = vld [vmem:[%s1424 + $0x98] sm:$0xff]
        %v1445 = vld [vmem:[%s1424 + $0xa0] sm:$0xff]
        %v1446 = vld [vmem:[%s1424 + $0xa8] sm:$0xff]
        %v1447 = vld [vmem:[%s1424 + $0xb0] sm:$0xff]
        %v1448 = vld [vmem:[%s1424 + $0xb8] sm:$0xff]
        %v1449 = vld [vmem:[%s1424 + $0xc0] sm:$0xff]
        %v1450 = vld [vmem:[%s1424 + $0xc8] sm:$0xff]
        %v1451 = vld [vmem:[%s1424 + $0xd0] sm:$0xff]
        %v1452 = vld [vmem:[%s1424 + $0xd8] sm:$0xff]
        %v1453 = vld [vmem:[%s1424 + $0xe0] sm:$0xff]
        %v1454 = vld [vmem:[%s1424 + $0xe8] sm:$0xff]
        %v1455 = vld [vmem:[%s1424 + $0xf0] sm:$0xff]
        %v1456 = vld [vmem:[%s1424 + $0xf8] sm:$0xff]
        %v1457 = vld [vmem:[%s1424 + $0x100] sm:$0xff]
        %v1458 = vld [vmem:[%s1424 + $0x108] sm:$0xff]
        %v1459 = vld [vmem:[%s1424 + $0x110] sm:$0xff]
        %v1460 = vld [vmem:[%s1424 + $0x118] sm:$0xff]
        %v1461 = vld [vmem:[%s1424 + $0x120] sm:$0xff]
        %v1462 = vld [vmem:[%s1424 + $0x128] sm:$0xff]
        %v1463 = vld [vmem:[%s1424 + $0x130] sm:$0xff]
        %v1464 = vld [vmem:[%s1424 + $0x138] sm:$0xff]
        %v1465 = vld [vmem:[%s1424 + $0x140] sm:$0xff]
        %v1466 = vld [vmem:[%s1424 + $0x148] sm:$0xff]
        %v1467 = vld [vmem:[%s1424 + $0x150] sm:$0xff]
        %v1468 = vld [vmem:[%s1424 + $0x158] sm:$0xff]
        %v1469 = vld [vmem:[%s1424 + $0x160] sm:$0xff]
        %v1470 = vld [vmem:[%s1424 + $0x168] sm:$0xff]
        %v1471 = vld [vmem:[%s1424 + $0x170] sm:$0xff]
        %v1472 = vld [vmem:[%s1424 + $0x178] sm:$0xff]
        %v1473 = vld [vmem:[%s1424 + $0x180] sm:$0xff]
        %v1474 = vld [vmem:[%s1424 + $0x188] sm:$0xff]
        %v1475 = vld [vmem:[%s1424 + $0x190] sm:$0xff]
        %v1476 = vld [vmem:[%s1424 + $0x198] sm:$0xff]
        %v1477 = vld [vmem:[%s1424 + $0x1a0] sm:$0xff]
        %v1478 = vld [vmem:[%s1424 + $0x1a8] sm:$0xff]
        %v1479 = vld [vmem:[%s1424 + $0x1b0] sm:$0xff]
        %v1480 = vld [vmem:[%s1424 + $0x1b8] sm:$0xff]
        %v1481 = vld [vmem:[%s1424 + $0x1c0] sm:$0xff]
        %v1482 = vld [vmem:[%s1424 + $0x1c8] sm:$0xff]
        %v1483 = vld [vmem:[%s1424 + $0x1d0] sm:$0xff]
        %v1484 = vld [vmem:[%s1424 + $0x1d8] sm:$0xff]
        %v1485 = vld [vmem:[%s1424 + $0x1e0] sm:$0xff]
        %v1486 = vld [vmem:[%s1424 + $0x1e8] sm:$0xff]
        %v1487 = vld [vmem:[%s1424 + $0x1f0] sm:$0xff]
        %v1488 = vld [vmem:[%s1424 + $0x1f8] sm:$0xff]
        %v1489 = vld [vmem:[%s1424 + $0x200] sm:$0xff]
        %v1490 = vld [vmem:[%s1424 + $0x208] sm:$0xff]
        %v1491 = vld [vmem:[%s1424 + $0x210] sm:$0xff]
        %v1492 = vld [vmem:[%s1424 + $0x218] sm:$0xff]
        %v1493 = vld [vmem:[%s1424 + $0x220] sm:$0xff]
        %v1494 = vld [vmem:[%s1424 + $0x228] sm:$0xff]
        %v1495 = vld [vmem:[%s1424 + $0x230] sm:$0xff]
        %v1496 = vld [vmem:[%s1424 + $0x238] sm:$0xff]
        %v1497 = vld [vmem:[%s1424 + $0x240] sm:$0xff]
        %v1498 = vld [vmem:[%s1424 + $0x248] sm:$0xff]
        %v1499 = vld [vmem:[%s1424 + $0x250] sm:$0xff]
        %v1500 = vld [vmem:[%s1424 + $0x258] sm:$0xff]
        %v1501 = vld [vmem:[%s1424 + $0x260] sm:$0xff]
        %v1502 = vld [vmem:[%s1424 + $0x268] sm:$0xff]
        %v1503 = vld [vmem:[%s1424 + $0x270] sm:$0xff]
        %v1504 = vld [vmem:[%s1424 + $0x278] sm:$0xff]
        %v1505 = vld [vmem:[%s1424 + $0x280] sm:$0xff]
        %v1506 = vld [vmem:[%s1424 + $0x288] sm:$0xff]
        %v1507 = vld [vmem:[%s1424 + $0x290] sm:$0xff]
        %v1508 = vld [vmem:[%s1424 + $0x298] sm:$0xff]
        %v1509 = vld [vmem:[%s1424 + $0x2a0] sm:$0xff]
        %v1510 = vld [vmem:[%s1424 + $0x2a8] sm:$0xff]
        %v1511 = vld [vmem:[%s1424 + $0x2b0] sm:$0xff]
        %v1512 = vld [vmem:[%s1424 + $0x2b8] sm:$0xff]
        %v1513 = vld [vmem:[%s1424 + $0x2c0] sm:$0xff]
        %v1514 = vld [vmem:[%s1424 + $0x2c8] sm:$0xff]
        %v1515 = vld [vmem:[%s1424 + $0x2d0] sm:$0xff]
        %v1516 = vld [vmem:[%s1424 + $0x2d8] sm:$0xff]
        %v1517 = vld [vmem:[%s1424 + $0x2e0] sm:$0xff]
        %v1518 = vld [vmem:[%s1424 + $0x2e8] sm:$0xff]
        %v1519 = vld [vmem:[%s1424 + $0x2f0] sm:$0xff]
        %v1520 = vld [vmem:[%s1424 + $0x2f8] sm:$0xff]
        %v1522 = vsel %vm683, %v1420, 0
        %v1525 = vsel %vm683, %v1421, 0
        %v1528 = vsel %vm683, %v1422, 0
        %v1531 = vsel %vm683, %v1423, 0
        %1533 = vmatprep.subr.mxu0 %v1426
        %1534 = vmatpush1.msra.mxu0 %v1425
        %1535 = vmatprep.subr.mxu0 %v1434
        %1536 = vmatpush1.msra.mxu0 %v1433
        %1537 = vmatprep.subr.mxu0 %v1442
        %1538 = vmatpush1.msra.mxu0 %v1441
        %1539 = vmatprep.subr.mxu0 %v1450
        %1540 = vmatpush1.msra.mxu0 %v1449
        %1541 = vmatprep.subr.mxu0 %v1458
        %1542 = vmatpush1.msra.mxu0 %v1457
        %1543 = vmatprep.subr.mxu0 %v1466
        %1544 = vmatpush1.msra.mxu0 %v1465
        %1545 = vmatprep.subr.mxu0 %v1474
        %1546 = vmatpush1.msra.mxu0 %v1473
        %1547 = vmatprep.subr.mxu0 %v1482
        %1548 = vmatpush1.msra.mxu0 %v1481
        %1549 = vmatprep.subr.mxu0 %v1490
        %1550 = vmatpush1.msra.mxu0 %v1489
        %1551 = vmatprep.subr.mxu0 %v1498
        %1552 = vmatpush1.msra.mxu0 %v1497
        %1553 = vmatprep.subr.mxu0 %v1506
        %1554 = vmatpush1.msra.mxu0 %v1505
        %1555 = vmatprep.subr.mxu0 %v1514
        %1556 = vmatpush1.msra.mxu0 %v1513
        %1557 = vmatprep.subr.mxu0 0.0
        %1558 = vmatpush1.msra.mxu0 0.0
        %1559 = vmatprep.subr.mxu0 0.0
        %1560 = vmatpush1.msra.mxu0 0.0
        %1561 = vmatprep.subr.mxu0 0.0
        %1562 = vmatpush1.msra.mxu0 0.0
        %1563 = vmatprep.subr.mxu0 0.0
        %1564 = vmatpush1.msra.mxu0 0.0
        %1565 = vmatprep.subr.mxu0 0.0
        %1566 = vmatpush1.msra.mxu0 0.0
        %1567 = vmatprep.subr.mxu0 0.0
        %1568 = vmatpush1.msra.mxu0 0.0
        %1569 = vmatprep.subr.mxu0 0.0
        %1570 = vmatpush1.msra.mxu0 0.0
        %1571 = vmatprep.subr.mxu0 0.0
        %1572 = vmatpush1.msra.mxu0 0.0
        %1573 = vmatprep.subr.mxu0 0.0
        %1574 = vmatpush1.msra.mxu0 0.0
        %1575 = vmatprep.subr.mxu0 0.0
        %1576 = vmatpush1.msra.mxu0 0.0
        %1577 = vmatprep.subr.mxu0 0.0
        %1578 = vmatpush1.msra.mxu0 0.0
        %1579 = vmatprep.subr.mxu0 0.0
        %1580 = vmatpush1.msra.mxu0 0.0
        %1581 = vmatprep.subr.mxu0 0.0
        %1582 = vmatpush1.msra.mxu0 0.0
        %1583 = vmatprep.subr.mxu0 0.0
        %1584 = vmatpush1.msra.mxu0 0.0
        %1585 = vmatprep.subr.mxu0 0.0
        %1586 = vmatpush1.msra.mxu0 0.0
        %1587 = vmatprep.subr.mxu0 0.0
        %1588 = vmatpush1.msra.mxu0 0.0
        %1589 = vmatprep.subr.mxu0 0.0
        %1590 = vmatpush1.msra.mxu0 0.0
        %1591 = vmatprep.subr.mxu0 0.0
        %1592 = vmatpush1.msra.mxu0 0.0
        %1593 = vmatprep.subr.mxu0 0.0
        %1594 = vmatpush1.msra.mxu0 0.0
        %1595 = vmatprep.subr.mxu0 0.0
        %1596 = vmatpush1.msra.mxu0 0.0
        %1597 = vmatprep.mubr.f32.mxu0 0.0
        %1598 = vmatmul.mubr.f32.gmra.mrb[0].mxu0 %v1522
        %v1599 = vpop.f32.mrb[0].mxu0
        %v1600 = vadd.f32 0.0, %v1599
        %v1601 = vpop.f32.mrb[0].mxu0
        %v1602 = vadd.f32 0.0, %v1601
        %1603 = vmatprep.mubr.f32.mxu0 0.0
        %1604 = vmatmul.mubr.f32.gmra.mrb[0].mxu0 %v1525
        %v1605 = vpop.f32.mrb[0].mxu0
        %v1606 = vadd.f32 0.0, %v1605
        %v1607 = vpop.f32.mrb[0].mxu0
        %v1608 = vadd.f32 0.0, %v1607
        %1609 = vmatprep.mubr.f32.mxu0 0.0
        %1610 = vmatmul.mubr.f32.gmra.mrb[0].mxu0 %v1528
        %v1611 = vpop.f32.mrb[0].mxu0
        %v1612 = vadd.f32 0.0, %v1611
        %v1613 = vpop.f32.mrb[0].mxu0
        %v1614 = vadd.f32 0.0, %v1613
        %1615 = vmatprep.mubr.f32.mxu0 0.0
        %1616 = vmatmul.mubr.f32.gmra.mrb[0].mxu0 %v1531
        %v1617 = vpop.f32.mrb[0].mxu0
        %v1618 = vadd.f32 0.0, %v1617
        %v1619 = vpop.f32.mrb[0].mxu0
        %v1620 = vadd.f32 0.0, %v1619
        %1621 = vdwg.mxu0
        %1622 = vmatprep.subr.mxu0 %v1428
        %1623 = vmatpush1.msra.mxu0 %v1427
        %1624 = vmatprep.subr.mxu0 %v1436
        %1625 = vmatpush1.msra.mxu0 %v1435
        %1626 = vmatprep.subr.mxu0 %v1444
        %1627 = vmatpush1.msra.mxu0 %v1443
        %1628 = vmatprep.subr.mxu0 %v1452
        %1629 = vmatpush1.msra.mxu0 %v1451
        %1630 = vmatprep.subr.mxu0 %v1460
        %1631 = vmatpush1.msra.mxu0 %v1459
        %1632 = vmatprep.subr.mxu0 %v1468
        %1633 = vmatpush1.msra.mxu0 %v1467
        %1634 = vmatprep.subr.mxu0 %v1476
        %1635 = vmatpush1.msra.mxu0 %v1475
        %1636 = vmatprep.subr.mxu0 %v1484
        %1637 = vmatpush1.msra.mxu0 %v1483
        %1638 = vmatprep.subr.mxu0 %v1492
        %1639 = vmatpush1.msra.mxu0 %v1491
        %1640 = vmatprep.subr.mxu0 %v1500
        %1641 = vmatpush1.msra.mxu0 %v1499
        %1642 = vmatprep.subr.mxu0 %v1508
        %1643 = vmatpush1.msra.mxu0 %v1507
        %1644 = vmatprep.subr.mxu0 %v1516
        %1645 = vmatpush1.msra.mxu0 %v1515
        %1646 = vmatprep.subr.mxu0 0.0
        %1647 = vmatpush1.msra.mxu0 0.0
        %1648 = vmatprep.subr.mxu0 0.0
        %1649 = vmatpush1.msra.mxu0 0.0
        %1650 = vmatprep.subr.mxu0 0.0
        %1651 = vmatpush1.msra.mxu0 0.0
        %1652 = vmatprep.subr.mxu0 0.0
        %1653 = vmatpush1.msra.mxu0 0.0
        %1654 = vmatprep.subr.mxu0 0.0
        %1655 = vmatpush1.msra.mxu0 0.0
        %1656 = vmatprep.subr.mxu0 0.0
        %1657 = vmatpush1.msra.mxu0 0.0
        %1658 = vmatprep.subr.mxu0 0.0
        %1659 = vmatpush1.msra.mxu0 0.0
        %1660 = vmatprep.subr.mxu0 0.0
        %1661 = vmatpush1.msra.mxu0 0.0
        %1662 = vmatprep.subr.mxu0 0.0
        %1663 = vmatpush1.msra.mxu0 0.0
        %1664 = vmatprep.subr.mxu0 0.0
        %1665 = vmatpush1.msra.mxu0 0.0
        %1666 = vmatprep.subr.mxu0 0.0
        %1667 = vmatpush1.msra.mxu0 0.0
        %1668 = vmatprep.subr.mxu0 0.0
        %1669 = vmatpush1.msra.mxu0 0.0
        %1670 = vmatprep.subr.mxu0 0.0
        %1671 = vmatpush1.msra.mxu0 0.0
        %1672 = vmatprep.subr.mxu0 0.0
        %1673 = vmatpush1.msra.mxu0 0.0
        %1674 = vmatprep.subr.mxu0 0.0
        %1675 = vmatpush1.msra.mxu0 0.0
        %1676 = vmatprep.subr.mxu0 0.0
        %1677 = vmatpush1.msra.mxu0 0.0
        %1678 = vmatprep.subr.mxu0 0.0
        %1679 = vmatpush1.msra.mxu0 0.0
        %1680 = vmatprep.subr.mxu0 0.0
        %1681 = vmatpush1.msra.mxu0 0.0
        %1682 = vmatprep.subr.mxu0 0.0
        %1683 = vmatpush1.msra.mxu0 0.0
        %1684 = vmatprep.subr.mxu0 0.0
        %1685 = vmatpush1.msra.mxu0 0.0
        %1686 = vmatprep.mubr.f32.mxu0 0.0
        %1687 = vmatmul.mubr.f32.gmra.mrb[0].mxu0 %v1522
        %v1688 = vpop.f32.mrb[0].mxu0
        %v1689 = vadd.f32 0.0, %v1688
        %v1690 = vpop.f32.mrb[0].mxu0
        %v1691 = vadd.f32 0.0, %v1690
        %1692 = vmatprep.mubr.f32.mxu0 0.0
        %1693 = vmatmul.mubr.f32.gmra.mrb[0].mxu0 %v1525
        %v1694 = vpop.f32.mrb[0].mxu0
        %v1695 = vadd.f32 0.0, %v1694
        %v1696 = vpop.f32.mrb[0].mxu0
        %v1697 = vadd.f32 0.0, %v1696
        %1698 = vmatprep.mubr.f32.mxu0 0.0
        %1699 = vmatmul.mubr.f32.gmra.mrb[0].mxu0 %v1528
        %v1700 = vpop.f32.mrb[0].mxu0
        %v1701 = vadd.f32 0.0, %v1700
        %v1702 = vpop.f32.mrb[0].mxu0
        %v1703 = vadd.f32 0.0, %v1702
        %1704 = vmatprep.mubr.f32.mxu0 0.0
        %1705 = vmatmul.mubr.f32.gmra.mrb[0].mxu0 %v1531
        %v1706 = vpop.f32.mrb[0].mxu0
        %v1707 = vadd.f32 0.0, %v1706
        %v1708 = vpop.f32.mrb[0].mxu0
        %v1709 = vadd.f32 0.0, %v1708
        %1710 = vdwg.mxu0
        %1711 = vmatprep.subr.mxu0 %v1430
        %1712 = vmatpush1.msra.mxu0 %v1429
        %1713 = vmatprep.subr.mxu0 %v1438
        %1714 = vmatpush1.msra.mxu0 %v1437
        %1715 = vmatprep.subr.mxu0 %v1446
        %1716 = vmatpush1.msra.mxu0 %v1445
        %1717 = vmatprep.subr.mxu0 %v1454
        %1718 = vmatpush1.msra.mxu0 %v1453
        %1719 = vmatprep.subr.mxu0 %v1462
        %1720 = vmatpush1.msra.mxu0 %v1461
        %1721 = vmatprep.subr.mxu0 %v1470
        %1722 = vmatpush1.msra.mxu0 %v1469
        %1723 = vmatprep.subr.mxu0 %v1478
        %1724 = vmatpush1.msra.mxu0 %v1477
        %1725 = vmatprep.subr.mxu0 %v1486
        %1726 = vmatpush1.msra.mxu0 %v1485
        %1727 = vmatprep.subr.mxu0 %v1494
        %1728 = vmatpush1.msra.mxu0 %v1493
        %1729 = vmatprep.subr.mxu0 %v1502
        %1730 = vmatpush1.msra.mxu0 %v1501
        %1731 = vmatprep.subr.mxu0 %v1510
        %1732 = vmatpush1.msra.mxu0 %v1509
        %1733 = vmatprep.subr.mxu0 %v1518
        %1734 = vmatpush1.msra.mxu0 %v1517
        %1735 = vmatprep.subr.mxu0 0.0
        %1736 = vmatpush1.msra.mxu0 0.0
        %1737 = vmatprep.subr.mxu0 0.0
        %1738 = vmatpush1.msra.mxu0 0.0
        %1739 = vmatprep.subr.mxu0 0.0
        %1740 = vmatpush1.msra.mxu0 0.0
        %1741 = vmatprep.subr.mxu0 0.0
        %1742 = vmatpush1.msra.mxu0 0.0
        %1743 = vmatprep.subr.mxu0 0.0
        %1744 = vmatpush1.msra.mxu0 0.0
        %1745 = vmatprep.subr.mxu0 0.0
        %1746 = vmatpush1.msra.mxu0 0.0
        %1747 = vmatprep.subr.mxu0 0.0
        %1748 = vmatpush1.msra.mxu0 0.0
        %1749 = vmatprep.subr.mxu0 0.0
        %1750 = vmatpush1.msra.mxu0 0.0
        %1751 = vmatprep.subr.mxu0 0.0
        %1752 = vmatpush1.msra.mxu0 0.0
        %1753 = vmatprep.subr.mxu0 0.0
        %1754 = vmatpush1.msra.mxu0 0.0
        %1755 = vmatprep.subr.mxu0 0.0
        %1756 = vmatpush1.msra.mxu0 0.0
        %1757 = vmatprep.subr.mxu0 0.0
        %1758 = vmatpush1.msra.mxu0 0.0
        %1759 = vmatprep.subr.mxu0 0.0
        %1760 = vmatpush1.msra.mxu0 0.0
        %1761 = vmatprep.subr.mxu0 0.0
        %1762 = vmatpush1.msra.mxu0 0.0
        %1763 = vmatprep.subr.mxu0 0.0
        %1764 = vmatpush1.msra.mxu0 0.0
        %1765 = vmatprep.subr.mxu0 0.0
        %1766 = vmatpush1.msra.mxu0 0.0
        %1767 = vmatprep.subr.mxu0 0.0
        %1768 = vmatpush1.msra.mxu0 0.0
        %1769 = vmatprep.subr.mxu0 0.0
        %1770 = vmatpush1.msra.mxu0 0.0
        %1771 = vmatprep.subr.mxu0 0.0
        %1772 = vmatpush1.msra.mxu0 0.0
        %1773 = vmatprep.subr.mxu0 0.0
        %1774 = vmatpush1.msra.mxu0 0.0
        %1775 = vmatprep.mubr.f32.mxu0 0.0
        %1776 = vmatmul.mubr.f32.gmra.mrb[0].mxu0 %v1522
        %v1777 = vpop.f32.mrb[0].mxu0
        %v1778 = vadd.f32 0.0, %v1777
        %v1779 = vpop.f32.mrb[0].mxu0
        %v1780 = vadd.f32 0.0, %v1779
        %1781 = vmatprep.mubr.f32.mxu0 0.0
        %1782 = vmatmul.mubr.f32.gmra.mrb[0].mxu0 %v1525
        %v1783 = vpop.f32.mrb[0].mxu0
        %v1784 = vadd.f32 0.0, %v1783
        %v1785 = vpop.f32.mrb[0].mxu0
        %v1786 = vadd.f32 0.0, %v1785
        %1787 = vmatprep.mubr.f32.mxu0 0.0
        %1788 = vmatmul.mubr.f32.gmra.mrb[0].mxu0 %v1528
        %v1789 = vpop.f32.mrb[0].mxu0
        %v1790 = vadd.f32 0.0, %v1789
        %v1791 = vpop.f32.mrb[0].mxu0
        %v1792 = vadd.f32 0.0, %v1791
        %1793 = vmatprep.mubr.f32.mxu0 0.0
        %1794 = vmatmul.mubr.f32.gmra.mrb[0].mxu0 %v1531
        %v1795 = vpop.f32.mrb[0].mxu0
        %v1796 = vadd.f32 0.0, %v1795
        %v1797 = vpop.f32.mrb[0].mxu0
        %v1798 = vadd.f32 0.0, %v1797
        %1799 = vdwg.mxu0
        %1800 = vmatprep.subr.mxu0 %v1432
        %1801 = vmatpush1.msra.mxu0 %v1431
        %1802 = vmatprep.subr.mxu0 %v1440
        %1803 = vmatpush1.msra.mxu0 %v1439
        %1804 = vmatprep.subr.mxu0 %v1448
        %1805 = vmatpush1.msra.mxu0 %v1447
        %1806 = vmatprep.subr.mxu0 %v1456
        %1807 = vmatpush1.msra.mxu0 %v1455
        %1808 = vmatprep.subr.mxu0 %v1464
        %1809 = vmatpush1.msra.mxu0 %v1463
        %1810 = vmatprep.subr.mxu0 %v1472
        %1811 = vmatpush1.msra.mxu0 %v1471
        %1812 = vmatprep.subr.mxu0 %v1480
        %1813 = vmatpush1.msra.mxu0 %v1479
        %1814 = vmatprep.subr.mxu0 %v1488
        %1815 = vmatpush1.msra.mxu0 %v1487
        %1816 = vmatprep.subr.mxu0 %v1496
        %1817 = vmatpush1.msra.mxu0 %v1495
        %1818 = vmatprep.subr.mxu0 %v1504
        %1819 = vmatpush1.msra.mxu0 %v1503
        %1820 = vmatprep.subr.mxu0 %v1512
        %1821 = vmatpush1.msra.mxu0 %v1511
        %1822 = vmatprep.subr.mxu0 %v1520
        %1823 = vmatpush1.msra.mxu0 %v1519
        %1824 = vmatprep.subr.mxu0 0.0
        %1825 = vmatpush1.msra.mxu0 0.0
        %1826 = vmatprep.subr.mxu0 0.0
        %1827 = vmatpush1.msra.mxu0 0.0
        %1828 = vmatprep.subr.mxu0 0.0
        %1829 = vmatpush1.msra.mxu0 0.0
        %1830 = vmatprep.subr.mxu0 0.0
        %1831 = vmatpush1.msra.mxu0 0.0
        %1832 = vmatprep.subr.mxu0 0.0
        %1833 = vmatpush1.msra.mxu0 0.0
        %1834 = vmatprep.subr.mxu0 0.0
        %1835 = vmatpush1.msra.mxu0 0.0
        %1836 = vmatprep.subr.mxu0 0.0
        %1837 = vmatpush1.msra.mxu0 0.0
        %1838 = vmatprep.subr.mxu0 0.0
        %1839 = vmatpush1.msra.mxu0 0.0
        %1840 = vmatprep.subr.mxu0 0.0
        %1841 = vmatpush1.msra.mxu0 0.0
        %1842 = vmatprep.subr.mxu0 0.0
        %1843 = vmatpush1.msra.mxu0 0.0
        %1844 = vmatprep.subr.mxu0 0.0
        %1845 = vmatpush1.msra.mxu0 0.0
        %1846 = vmatprep.subr.mxu0 0.0
        %1847 = vmatpush1.msra.mxu0 0.0
        %1848 = vmatprep.subr.mxu0 0.0
        %1849 = vmatpush1.msra.mxu0 0.0
        %1850 = vmatprep.subr.mxu0 0.0
        %1851 = vmatpush1.msra.mxu0 0.0
        %1852 = vmatprep.subr.mxu0 0.0
        %1853 = vmatpush1.msra.mxu0 0.0
        %1854 = vmatprep.subr.mxu0 0.0
        %1855 = vmatpush1.msra.mxu0 0.0
        %1856 = vmatprep.subr.mxu0 0.0
        %1857 = vmatpush1.msra.mxu0 0.0
        %1858 = vmatprep.subr.mxu0 0.0
        %1859 = vmatpush1.msra.mxu0 0.0
        %1860 = vmatprep.subr.mxu0 0.0
        %1861 = vmatpush1.msra.mxu0 0.0
        %1862 = vmatprep.subr.mxu0 0.0
        %1863 = vmatpush1.msra.mxu0 0.0
        %1864 = vmatprep.mubr.f32.mxu0 0.0
        %1865 = vmatmul.mubr.f32.gmra.mrb[0].mxu0 %v1522
        %v1866 = vpop.f32.mrb[0].mxu0
        %v1867 = vadd.f32 0.0, %v1866
        %v1868 = vpop.f32.mrb[0].mxu0
        %v1869 = vadd.f32 0.0, %v1868
        %1870 = vmatprep.mubr.f32.mxu0 0.0
        %1871 = vmatmul.mubr.f32.gmra.mrb[0].mxu0 %v1525
        %v1872 = vpop.f32.mrb[0].mxu0
        %v1873 = vadd.f32 0.0, %v1872
        %v1874 = vpop.f32.mrb[0].mxu0
        %v1875 = vadd.f32 0.0, %v1874
        %1876 = vmatprep.mubr.f32.mxu0 0.0
        %1877 = vmatmul.mubr.f32.gmra.mrb[0].mxu0 %v1528
        %v1878 = vpop.f32.mrb[0].mxu0
        %v1879 = vadd.f32 0.0, %v1878
        %v1880 = vpop.f32.mrb[0].mxu0
        %v1881 = vadd.f32 0.0, %v1880
        %1882 = vmatprep.mubr.f32.mxu0 0.0
        %1883 = vmatmul.mubr.f32.gmra.mrb[0].mxu0 %v1531
        %v1884 = vpop.f32.mrb[0].mxu0
        %v1885 = vadd.f32 0.0, %v1884
        %v1886 = vpop.f32.mrb[0].mxu0
        %v1887 = vadd.f32 0.0, %v1886
        %1888 = vdwg.mxu0
        %v1889 = vadd.f32 %v1131, %v1600
        %v1890 = vadd.f32 %v1133, %v1602
        %v1891 = vadd.f32 %v1220, %v1689
        %v1892 = vadd.f32 %v1222, %v1691
        %v1893 = vadd.f32 %v1309, %v1778
        %v1894 = vadd.f32 %v1311, %v1780
        %v1895 = vadd.f32 %v1398, %v1867
        %v1896 = vadd.f32 %v1400, %v1869
        %v1897 = vadd.f32 %v1137, %v1606
        %v1898 = vadd.f32 %v1139, %v1608
        %v1899 = vadd.f32 %v1226, %v1695
        %v1900 = vadd.f32 %v1228, %v1697
        %v1901 = vadd.f32 %v1315, %v1784
        %v1902 = vadd.f32 %v1317, %v1786
        %v1903 = vadd.f32 %v1404, %v1873
        %v1904 = vadd.f32 %v1406, %v1875
        %v1905 = vadd.f32 %v1143, %v1612
        %v1906 = vadd.f32 %v1145, %v1614
        %v1907 = vadd.f32 %v1232, %v1701
        %v1908 = vadd.f32 %v1234, %v1703
        %v1909 = vadd.f32 %v1321, %v1790
        %v1910 = vadd.f32 %v1323, %v1792
        %v1911 = vadd.f32 %v1410, %v1879
        %v1912 = vadd.f32 %v1412, %v1881
        %v1913 = vadd.f32 %v1149, %v1618
        %v1914 = vadd.f32 %v1151, %v1620
        %v1915 = vadd.f32 %v1238, %v1707
        %v1916 = vadd.f32 %v1240, %v1709
        %v1917 = vadd.f32 %v1327, %v1796
        %v1918 = vadd.f32 %v1329, %v1798
        %v1919 = vadd.f32 %v1416, %v1885
        %v1920 = vadd.f32 %v1418, %v1887
        %v1921 = vld [vmem:[%s480 + $0x3] sm:$0xff]
        %v1922 = vld [vmem:[%s480 + $0xb] sm:$0xff]
        %v1923 = vld [vmem:[%s480 + $0x13] sm:$0xff]
        %v1924 = vld [vmem:[%s480 + $0x1b] sm:$0x1f]
        %s1925 = scalar_lea.vmem %s2, 2304
        %v1926 = vld [vmem:[%s1925] sm:$0xff]
        %v1927 = vld [vmem:[%s1925 + $0x8] sm:$0xff]
        %v1928 = vld [vmem:[%s1925 + $0x10] sm:$0xff]
        %v1929 = vld [vmem:[%s1925 + $0x18] sm:$0xff]
        %v1930 = vld [vmem:[%s1925 + $0x20] sm:$0xff]
        %v1931 = vld [vmem:[%s1925 + $0x28] sm:$0xff]
        %v1932 = vld [vmem:[%s1925 + $0x30] sm:$0xff]
        %v1933 = vld [vmem:[%s1925 + $0x38] sm:$0xff]
        %v1934 = vld [vmem:[%s1925 + $0x40] sm:$0xff]
        %v1935 = vld [vmem:[%s1925 + $0x48] sm:$0xff]
        %v1936 = vld [vmem:[%s1925 + $0x50] sm:$0xff]
        %v1937 = vld [vmem:[%s1925 + $0x58] sm:$0xff]
        %v1938 = vld [vmem:[%s1925 + $0x60] sm:$0xff]
        %v1939 = vld [vmem:[%s1925 + $0x68] sm:$0xff]
        %v1940 = vld [vmem:[%s1925 + $0x70] sm:$0xff]
        %v1941 = vld [vmem:[%s1925 + $0x78] sm:$0xff]
        %v1942 = vld [vmem:[%s1925 + $0x80] sm:$0xff]
        %v1943 = vld [vmem:[%s1925 + $0x88] sm:$0xff]
        %v1944 = vld [vmem:[%s1925 + $0x90] sm:$0xff]
        %v1945 = vld [vmem:[%s1925 + $0x98] sm:$0xff]
        %v1946 = vld [vmem:[%s1925 + $0xa0] sm:$0xff]
        %v1947 = vld [vmem:[%s1925 + $0xa8] sm:$0xff]
        %v1948 = vld [vmem:[%s1925 + $0xb0] sm:$0xff]
        %v1949 = vld [vmem:[%s1925 + $0xb8] sm:$0xff]
        %v1950 = vld [vmem:[%s1925 + $0xc0] sm:$0xff]
        %v1951 = vld [vmem:[%s1925 + $0xc8] sm:$0xff]
        %v1952 = vld [vmem:[%s1925 + $0xd0] sm:$0xff]
        %v1953 = vld [vmem:[%s1925 + $0xd8] sm:$0xff]
        %v1954 = vld [vmem:[%s1925 + $0xe0] sm:$0xff]
        %v1955 = vld [vmem:[%s1925 + $0xe8] sm:$0xff]
        %v1956 = vld [vmem:[%s1925 + $0xf0] sm:$0xff]
        %v1957 = vld [vmem:[%s1925 + $0xf8] sm:$0xff]
        %v1958 = vld [vmem:[%s1925 + $0x100] sm:$0xff]
        %v1959 = vld [vmem:[%s1925 + $0x108] sm:$0xff]
        %v1960 = vld [vmem:[%s1925 + $0x110] sm:$0xff]
        %v1961 = vld [vmem:[%s1925 + $0x118] sm:$0xff]
        %v1962 = vld [vmem:[%s1925 + $0x120] sm:$0xff]
        %v1963 = vld [vmem:[%s1925 + $0x128] sm:$0xff]
        %v1964 = vld [vmem:[%s1925 + $0x130] sm:$0xff]
        %v1965 = vld [vmem:[%s1925 + $0x138] sm:$0xff]
        %v1966 = vld [vmem:[%s1925 + $0x140] sm:$0xff]
        %v1967 = vld [vmem:[%s1925 + $0x148] sm:$0xff]
        %v1968 = vld [vmem:[%s1925 + $0x150] sm:$0xff]
        %v1969 = vld [vmem:[%s1925 + $0x158] sm:$0xff]
        %v1970 = vld [vmem:[%s1925 + $0x160] sm:$0xff]
        %v1971 = vld [vmem:[%s1925 + $0x168] sm:$0xff]
        %v1972 = vld [vmem:[%s1925 + $0x170] sm:$0xff]
        %v1973 = vld [vmem:[%s1925 + $0x178] sm:$0xff]
        %v1974 = vld [vmem:[%s1925 + $0x180] sm:$0xff]
        %v1975 = vld [vmem:[%s1925 + $0x188] sm:$0xff]
        %v1976 = vld [vmem:[%s1925 + $0x190] sm:$0xff]
        %v1977 = vld [vmem:[%s1925 + $0x198] sm:$0xff]
        %v1978 = vld [vmem:[%s1925 + $0x1a0] sm:$0xff]
        %v1979 = vld [vmem:[%s1925 + $0x1a8] sm:$0xff]
        %v1980 = vld [vmem:[%s1925 + $0x1b0] sm:$0xff]
        %v1981 = vld [vmem:[%s1925 + $0x1b8] sm:$0xff]
        %v1982 = vld [vmem:[%s1925 + $0x1c0] sm:$0xff]
        %v1983 = vld [vmem:[%s1925 + $0x1c8] sm:$0xff]
        %v1984 = vld [vmem:[%s1925 + $0x1d0] sm:$0xff]
        %v1985 = vld [vmem:[%s1925 + $0x1d8] sm:$0xff]
        %v1986 = vld [vmem:[%s1925 + $0x1e0] sm:$0xff]
        %v1987 = vld [vmem:[%s1925 + $0x1e8] sm:$0xff]
        %v1988 = vld [vmem:[%s1925 + $0x1f0] sm:$0xff]
        %v1989 = vld [vmem:[%s1925 + $0x1f8] sm:$0xff]
        %v1990 = vld [vmem:[%s1925 + $0x200] sm:$0xff]
        %v1991 = vld [vmem:[%s1925 + $0x208] sm:$0xff]
        %v1992 = vld [vmem:[%s1925 + $0x210] sm:$0xff]
        %v1993 = vld [vmem:[%s1925 + $0x218] sm:$0xff]
        %v1994 = vld [vmem:[%s1925 + $0x220] sm:$0xff]
        %v1995 = vld [vmem:[%s1925 + $0x228] sm:$0xff]
        %v1996 = vld [vmem:[%s1925 + $0x230] sm:$0xff]
        %v1997 = vld [vmem:[%s1925 + $0x238] sm:$0xff]
        %v1998 = vld [vmem:[%s1925 + $0x240] sm:$0xff]
        %v1999 = vld [vmem:[%s1925 + $0x248] sm:$0xff]
        %v2000 = vld [vmem:[%s1925 + $0x250] sm:$0xff]
        %v2001 = vld [vmem:[%s1925 + $0x258] sm:$0xff]
        %v2002 = vld [vmem:[%s1925 + $0x260] sm:$0xff]
        %v2003 = vld [vmem:[%s1925 + $0x268] sm:$0xff]
        %v2004 = vld [vmem:[%s1925 + $0x270] sm:$0xff]
        %v2005 = vld [vmem:[%s1925 + $0x278] sm:$0xff]
        %v2006 = vld [vmem:[%s1925 + $0x280] sm:$0xff]
        %v2007 = vld [vmem:[%s1925 + $0x288] sm:$0xff]
        %v2008 = vld [vmem:[%s1925 + $0x290] sm:$0xff]
        %v2009 = vld [vmem:[%s1925 + $0x298] sm:$0xff]
        %v2010 = vld [vmem:[%s1925 + $0x2a0] sm:$0xff]
        %v2011 = vld [vmem:[%s1925 + $0x2a8] sm:$0xff]
        %v2012 = vld [vmem:[%s1925 + $0x2b0] sm:$0xff]
        %v2013 = vld [vmem:[%s1925 + $0x2b8] sm:$0xff]
        %v2014 = vld [vmem:[%s1925 + $0x2c0] sm:$0xff]
        %v2015 = vld [vmem:[%s1925 + $0x2c8] sm:$0xff]
        %v2016 = vld [vmem:[%s1925 + $0x2d0] sm:$0xff]
        %v2017 = vld [vmem:[%s1925 + $0x2d8] sm:$0xff]
        %v2018 = vld [vmem:[%s1925 + $0x2e0] sm:$0xff]
        %v2019 = vld [vmem:[%s1925 + $0x2e8] sm:$0xff]
        %v2020 = vld [vmem:[%s1925 + $0x2f0] sm:$0xff]
        %v2021 = vld [vmem:[%s1925 + $0x2f8] sm:$0xff]
        %v2023 = vsel %vm683, %v1921, 0
        %v2026 = vsel %vm683, %v1922, 0
        %v2029 = vsel %vm683, %v1923, 0
        %v2032 = vsel %vm683, %v1924, 0
        %2034 = vmatprep.subr.mxu0 %v1927
        %2035 = vmatpush1.msra.mxu0 %v1926
        %2036 = vmatprep.subr.mxu0 %v1935
        %2037 = vmatpush1.msra.mxu0 %v1934
        %2038 = vmatprep.subr.mxu0 %v1943
        %2039 = vmatpush1.msra.mxu0 %v1942
        %2040 = vmatprep.subr.mxu0 %v1951
        %2041 = vmatpush1.msra.mxu0 %v1950
        %2042 = vmatprep.subr.mxu0 %v1959
        %2043 = vmatpush1.msra.mxu0 %v1958
        %2044 = vmatprep.subr.mxu0 %v1967
        %2045 = vmatpush1.msra.mxu0 %v1966
        %2046 = vmatprep.subr.mxu0 %v1975
        %2047 = vmatpush1.msra.mxu0 %v1974
        %2048 = vmatprep.subr.mxu0 %v1983
        %2049 = vmatpush1.msra.mxu0 %v1982
        %2050 = vmatprep.subr.mxu0 %v1991
        %2051 = vmatpush1.msra.mxu0 %v1990
        %2052 = vmatprep.subr.mxu0 %v1999
        %2053 = vmatpush1.msra.mxu0 %v1998
        %2054 = vmatprep.subr.mxu0 %v2007
        %2055 = vmatpush1.msra.mxu0 %v2006
        %2056 = vmatprep.subr.mxu0 %v2015
        %2057 = vmatpush1.msra.mxu0 %v2014
        %2058 = vmatprep.subr.mxu0 0.0
        %2059 = vmatpush1.msra.mxu0 0.0
        %2060 = vmatprep.subr.mxu0 0.0
        %2061 = vmatpush1.msra.mxu0 0.0
        %2062 = vmatprep.subr.mxu0 0.0
        %2063 = vmatpush1.msra.mxu0 0.0
        %2064 = vmatprep.subr.mxu0 0.0
        %2065 = vmatpush1.msra.mxu0 0.0
        %2066 = vmatprep.subr.mxu0 0.0
        %2067 = vmatpush1.msra.mxu0 0.0
        %2068 = vmatprep.subr.mxu0 0.0
        %2069 = vmatpush1.msra.mxu0 0.0
        %2070 = vmatprep.subr.mxu0 0.0
        %2071 = vmatpush1.msra.mxu0 0.0
        %2072 = vmatprep.subr.mxu0 0.0
        %2073 = vmatpush1.msra.mxu0 0.0
        %2074 = vmatprep.subr.mxu0 0.0
        %2075 = vmatpush1.msra.mxu0 0.0
        %2076 = vmatprep.subr.mxu0 0.0
        %2077 = vmatpush1.msra.mxu0 0.0
        %2078 = vmatprep.subr.mxu0 0.0
        %2079 = vmatpush1.msra.mxu0 0.0
        %2080 = vmatprep.subr.mxu0 0.0
        %2081 = vmatpush1.msra.mxu0 0.0
        %2082 = vmatprep.subr.mxu0 0.0
        %2083 = vmatpush1.msra.mxu0 0.0
        %2084 = vmatprep.subr.mxu0 0.0
        %2085 = vmatpush1.msra.mxu0 0.0
        %2086 = vmatprep.subr.mxu0 0.0
        %2087 = vmatpush1.msra.mxu0 0.0
        %2088 = vmatprep.subr.mxu0 0.0
        %2089 = vmatpush1.msra.mxu0 0.0
        %2090 = vmatprep.subr.mxu0 0.0
        %2091 = vmatpush1.msra.mxu0 0.0
        %2092 = vmatprep.subr.mxu0 0.0
        %2093 = vmatpush1.msra.mxu0 0.0
        %2094 = vmatprep.subr.mxu0 0.0
        %2095 = vmatpush1.msra.mxu0 0.0
        %2096 = vmatprep.subr.mxu0 0.0
        %2097 = vmatpush1.msra.mxu0 0.0
        %2098 = vmatprep.mubr.f32.mxu0 0.0
        %2099 = vmatmul.mubr.f32.gmra.mrb[0].mxu0 %v2023
        %v2100 = vpop.f32.mrb[0].mxu0
        %v2101 = vadd.f32 0.0, %v2100
        %v2102 = vpop.f32.mrb[0].mxu0
        %v2103 = vadd.f32 0.0, %v2102
        %2104 = vmatprep.mubr.f32.mxu0 0.0
        %2105 = vmatmul.mubr.f32.gmra.mrb[0].mxu0 %v2026
        %v2106 = vpop.f32.mrb[0].mxu0
        %v2107 = vadd.f32 0.0, %v2106
        %v2108 = vpop.f32.mrb[0].mxu0
        %v2109 = vadd.f32 0.0, %v2108
        %2110 = vmatprep.mubr.f32.mxu0 0.0
        %2111 = vmatmul.mubr.f32.gmra.mrb[0].mxu0 %v2029
        %v2112 = vpop.f32.mrb[0].mxu0
        %v2113 = vadd.f32 0.0, %v2112
        %v2114 = vpop.f32.mrb[0].mxu0
        %v2115 = vadd.f32 0.0, %v2114
        %2116 = vmatprep.mubr.f32.mxu0 0.0
        %2117 = vmatmul.mubr.f32.gmra.mrb[0].mxu0 %v2032
        %v2118 = vpop.f32.mrb[0].mxu0
        %v2119 = vadd.f32 0.0, %v2118
        %v2120 = vpop.f32.mrb[0].mxu0
        %v2121 = vadd.f32 0.0, %v2120
        %2122 = vdwg.mxu0
        %2123 = vmatprep.subr.mxu0 %v1929
        %2124 = vmatpush1.msra.mxu0 %v1928
        %2125 = vmatprep.subr.mxu0 %v1937
        %2126 = vmatpush1.msra.mxu0 %v1936
        %2127 = vmatprep.subr.mxu0 %v1945
        %2128 = vmatpush1.msra.mxu0 %v1944
        %2129 = vmatprep.subr.mxu0 %v1953
        %2130 = vmatpush1.msra.mxu0 %v1952
        %2131 = vmatprep.subr.mxu0 %v1961
        %2132 = vmatpush1.msra.mxu0 %v1960
        %2133 = vmatprep.subr.mxu0 %v1969
        %2134 = vmatpush1.msra.mxu0 %v1968
        %2135 = vmatprep.subr.mxu0 %v1977
        %2136 = vmatpush1.msra.mxu0 %v1976
        %2137 = vmatprep.subr.mxu0 %v1985
        %2138 = vmatpush1.msra.mxu0 %v1984
        %2139 = vmatprep.subr.mxu0 %v1993
        %2140 = vmatpush1.msra.mxu0 %v1992
        %2141 = vmatprep.subr.mxu0 %v2001
        %2142 = vmatpush1.msra.mxu0 %v2000
        %2143 = vmatprep.subr.mxu0 %v2009
        %2144 = vmatpush1.msra.mxu0 %v2008
        %2145 = vmatprep.subr.mxu0 %v2017
        %2146 = vmatpush1.msra.mxu0 %v2016
        %2147 = vmatprep.subr.mxu0 0.0
        %2148 = vmatpush1.msra.mxu0 0.0
        %2149 = vmatprep.subr.mxu0 0.0
        %2150 = vmatpush1.msra.mxu0 0.0
        %2151 = vmatprep.subr.mxu0 0.0
        %2152 = vmatpush1.msra.mxu0 0.0
        %2153 = vmatprep.subr.mxu0 0.0
        %2154 = vmatpush1.msra.mxu0 0.0
        %2155 = vmatprep.subr.mxu0 0.0
        %2156 = vmatpush1.msra.mxu0 0.0
        %2157 = vmatprep.subr.mxu0 0.0
        %2158 = vmatpush1.msra.mxu0 0.0
        %2159 = vmatprep.subr.mxu0 0.0
        %2160 = vmatpush1.msra.mxu0 0.0
        %2161 = vmatprep.subr.mxu0 0.0
        %2162 = vmatpush1.msra.mxu0 0.0
        %2163 = vmatprep.subr.mxu0 0.0
        %2164 = vmatpush1.msra.mxu0 0.0
        %2165 = vmatprep.subr.mxu0 0.0
        %2166 = vmatpush1.msra.mxu0 0.0
        %2167 = vmatprep.subr.mxu0 0.0
        %2168 = vmatpush1.msra.mxu0 0.0
        %2169 = vmatprep.subr.mxu0 0.0
        %2170 = vmatpush1.msra.mxu0 0.0
        %2171 = vmatprep.subr.mxu0 0.0
        %2172 = vmatpush1.msra.mxu0 0.0
        %2173 = vmatprep.subr.mxu0 0.0
        %2174 = vmatpush1.msra.mxu0 0.0
        %2175 = vmatprep.subr.mxu0 0.0
        %2176 = vmatpush1.msra.mxu0 0.0
        %2177 = vmatprep.subr.mxu0 0.0
        %2178 = vmatpush1.msra.mxu0 0.0
        %2179 = vmatprep.subr.mxu0 0.0
        %2180 = vmatpush1.msra.mxu0 0.0
        %2181 = vmatprep.subr.mxu0 0.0
        %2182 = vmatpush1.msra.mxu0 0.0
        %2183 = vmatprep.subr.mxu0 0.0
        %2184 = vmatpush1.msra.mxu0 0.0
        %2185 = vmatprep.subr.mxu0 0.0
        %2186 = vmatpush1.msra.mxu0 0.0
        %2187 = vmatprep.mubr.f32.mxu0 0.0
        %2188 = vmatmul.mubr.f32.gmra.mrb[0].mxu0 %v2023
        %v2189 = vpop.f32.mrb[0].mxu0
        %v2190 = vadd.f32 0.0, %v2189
        %v2191 = vpop.f32.mrb[0].mxu0
        %v2192 = vadd.f32 0.0, %v2191
        %2193 = vmatprep.mubr.f32.mxu0 0.0
        %2194 = vmatmul.mubr.f32.gmra.mrb[0].mxu0 %v2026
        %v2195 = vpop.f32.mrb[0].mxu0
        %v2196 = vadd.f32 0.0, %v2195
        %v2197 = vpop.f32.mrb[0].mxu0
        %v2198 = vadd.f32 0.0, %v2197
        %2199 = vmatprep.mubr.f32.mxu0 0.0
        %2200 = vmatmul.mubr.f32.gmra.mrb[0].mxu0 %v2029
        %v2201 = vpop.f32.mrb[0].mxu0
        %v2202 = vadd.f32 0.0, %v2201
        %v2203 = vpop.f32.mrb[0].mxu0
        %v2204 = vadd.f32 0.0, %v2203
        %2205 = vmatprep.mubr.f32.mxu0 0.0
        %2206 = vmatmul.mubr.f32.gmra.mrb[0].mxu0 %v2032
        %v2207 = vpop.f32.mrb[0].mxu0
        %v2208 = vadd.f32 0.0, %v2207
        %v2209 = vpop.f32.mrb[0].mxu0
        %v2210 = vadd.f32 0.0, %v2209
        %2211 = vdwg.mxu0
        %2212 = vmatprep.subr.mxu0 %v1931
        %2213 = vmatpush1.msra.mxu0 %v1930
        %2214 = vmatprep.subr.mxu0 %v1939
        %2215 = vmatpush1.msra.mxu0 %v1938
        %2216 = vmatprep.subr.mxu0 %v1947
        %2217 = vmatpush1.msra.mxu0 %v1946
        %2218 = vmatprep.subr.mxu0 %v1955
        %2219 = vmatpush1.msra.mxu0 %v1954
        %2220 = vmatprep.subr.mxu0 %v1963
        %2221 = vmatpush1.msra.mxu0 %v1962
        %2222 = vmatprep.subr.mxu0 %v1971
        %2223 = vmatpush1.msra.mxu0 %v1970
        %2224 = vmatprep.subr.mxu0 %v1979
        %2225 = vmatpush1.msra.mxu0 %v1978
        %2226 = vmatprep.subr.mxu0 %v1987
        %2227 = vmatpush1.msra.mxu0 %v1986
        %2228 = vmatprep.subr.mxu0 %v1995
        %2229 = vmatpush1.msra.mxu0 %v1994
        %2230 = vmatprep.subr.mxu0 %v2003
        %2231 = vmatpush1.msra.mxu0 %v2002
        %2232 = vmatprep.subr.mxu0 %v2011
        %2233 = vmatpush1.msra.mxu0 %v2010
        %2234 = vmatprep.subr.mxu0 %v2019
        %2235 = vmatpush1.msra.mxu0 %v2018
        %2236 = vmatprep.subr.mxu0 0.0
        %2237 = vmatpush1.msra.mxu0 0.0
        %2238 = vmatprep.subr.mxu0 0.0
        %2239 = vmatpush1.msra.mxu0 0.0
        %2240 = vmatprep.subr.mxu0 0.0
        %2241 = vmatpush1.msra.mxu0 0.0
        %2242 = vmatprep.subr.mxu0 0.0
        %2243 = vmatpush1.msra.mxu0 0.0
        %2244 = vmatprep.subr.mxu0 0.0
        %2245 = vmatpush1.msra.mxu0 0.0
        %2246 = vmatprep.subr.mxu0 0.0
        %2247 = vmatpush1.msra.mxu0 0.0
        %2248 = vmatprep.subr.mxu0 0.0
        %2249 = vmatpush1.msra.mxu0 0.0
        %2250 = vmatprep.subr.mxu0 0.0
        %2251 = vmatpush1.msra.mxu0 0.0
        %2252 = vmatprep.subr.mxu0 0.0
        %2253 = vmatpush1.msra.mxu0 0.0
        %2254 = vmatprep.subr.mxu0 0.0
        %2255 = vmatpush1.msra.mxu0 0.0
        %2256 = vmatprep.subr.mxu0 0.0
        %2257 = vmatpush1.msra.mxu0 0.0
        %2258 = vmatprep.subr.mxu0 0.0
        %2259 = vmatpush1.msra.mxu0 0.0
        %2260 = vmatprep.subr.mxu0 0.0
        %2261 = vmatpush1.msra.mxu0 0.0
        %2262 = vmatprep.subr.mxu0 0.0
        %2263 = vmatpush1.msra.mxu0 0.0
        %2264 = vmatprep.subr.mxu0 0.0
        %2265 = vmatpush1.msra.mxu0 0.0
        %2266 = vmatprep.subr.mxu0 0.0
        %2267 = vmatpush1.msra.mxu0 0.0
        %2268 = vmatprep.subr.mxu0 0.0
        %2269 = vmatpush1.msra.mxu0 0.0
        %2270 = vmatprep.subr.mxu0 0.0
        %2271 = vmatpush1.msra.mxu0 0.0
        %2272 = vmatprep.subr.mxu0 0.0
        %2273 = vmatpush1.msra.mxu0 0.0
        %2274 = vmatprep.subr.mxu0 0.0
        %2275 = vmatpush1.msra.mxu0 0.0
        %2276 = vmatprep.mubr.f32.mxu0 0.0
        %2277 = vmatmul.mubr.f32.gmra.mrb[0].mxu0 %v2023
        %v2278 = vpop.f32.mrb[0].mxu0
        %v2279 = vadd.f32 0.0, %v2278
        %v2280 = vpop.f32.mrb[0].mxu0
        %v2281 = vadd.f32 0.0, %v2280
        %2282 = vmatprep.mubr.f32.mxu0 0.0
        %2283 = vmatmul.mubr.f32.gmra.mrb[0].mxu0 %v2026
        %v2284 = vpop.f32.mrb[0].mxu0
        %v2285 = vadd.f32 0.0, %v2284
        %v2286 = vpop.f32.mrb[0].mxu0
        %v2287 = vadd.f32 0.0, %v2286
        %2288 = vmatprep.mubr.f32.mxu0 0.0
        %2289 = vmatmul.mubr.f32.gmra.mrb[0].mxu0 %v2029
        %v2290 = vpop.f32.mrb[0].mxu0
        %v2291 = vadd.f32 0.0, %v2290
        %v2292 = vpop.f32.mrb[0].mxu0
        %v2293 = vadd.f32 0.0, %v2292
        %2294 = vmatprep.mubr.f32.mxu0 0.0
        %2295 = vmatmul.mubr.f32.gmra.mrb[0].mxu0 %v2032
        %v2296 = vpop.f32.mrb[0].mxu0
        %v2297 = vadd.f32 0.0, %v2296
        %v2298 = vpop.f32.mrb[0].mxu0
        %v2299 = vadd.f32 0.0, %v2298
        %2300 = vdwg.mxu0
        %2301 = vmatprep.subr.mxu0 %v1933
        %2302 = vmatpush1.msra.mxu0 %v1932
        %2303 = vmatprep.subr.mxu0 %v1941
        %2304 = vmatpush1.msra.mxu0 %v1940
        %2305 = vmatprep.subr.mxu0 %v1949
        %2306 = vmatpush1.msra.mxu0 %v1948
        %2307 = vmatprep.subr.mxu0 %v1957
        %2308 = vmatpush1.msra.mxu0 %v1956
        %2309 = vmatprep.subr.mxu0 %v1965
        %2310 = vmatpush1.msra.mxu0 %v1964
        %2311 = vmatprep.subr.mxu0 %v1973
        %2312 = vmatpush1.msra.mxu0 %v1972
        %2313 = vmatprep.subr.mxu0 %v1981
        %2314 = vmatpush1.msra.mxu0 %v1980
        %2315 = vmatprep.subr.mxu0 %v1989
        %2316 = vmatpush1.msra.mxu0 %v1988
        %2317 = vmatprep.subr.mxu0 %v1997
        %2318 = vmatpush1.msra.mxu0 %v1996
        %2319 = vmatprep.subr.mxu0 %v2005
        %2320 = vmatpush1.msra.mxu0 %v2004
        %2321 = vmatprep.subr.mxu0 %v2013
        %2322 = vmatpush1.msra.mxu0 %v2012
        %2323 = vmatprep.subr.mxu0 %v2021
        %2324 = vmatpush1.msra.mxu0 %v2020
        %2325 = vmatprep.subr.mxu0 0.0
        %2326 = vmatpush1.msra.mxu0 0.0
        %2327 = vmatprep.subr.mxu0 0.0
        %2328 = vmatpush1.msra.mxu0 0.0
        %2329 = vmatprep.subr.mxu0 0.0
        %2330 = vmatpush1.msra.mxu0 0.0
        %2331 = vmatprep.subr.mxu0 0.0
        %2332 = vmatpush1.msra.mxu0 0.0
        %2333 = vmatprep.subr.mxu0 0.0
        %2334 = vmatpush1.msra.mxu0 0.0
        %2335 = vmatprep.subr.mxu0 0.0
        %2336 = vmatpush1.msra.mxu0 0.0
        %2337 = vmatprep.subr.mxu0 0.0
        %2338 = vmatpush1.msra.mxu0 0.0
        %2339 = vmatprep.subr.mxu0 0.0
        %2340 = vmatpush1.msra.mxu0 0.0
        %2341 = vmatprep.subr.mxu0 0.0
        %2342 = vmatpush1.msra.mxu0 0.0
        %2343 = vmatprep.subr.mxu0 0.0
        %2344 = vmatpush1.msra.mxu0 0.0
        %2345 = vmatprep.subr.mxu0 0.0
        %2346 = vmatpush1.msra.mxu0 0.0
        %2347 = vmatprep.subr.mxu0 0.0
        %2348 = vmatpush1.msra.mxu0 0.0
        %2349 = vmatprep.subr.mxu0 0.0
        %2350 = vmatpush1.msra.mxu0 0.0
        %2351 = vmatprep.subr.mxu0 0.0
        %2352 = vmatpush1.msra.mxu0 0.0
        %2353 = vmatprep.subr.mxu0 0.0
        %2354 = vmatpush1.msra.mxu0 0.0
        %2355 = vmatprep.subr.mxu0 0.0
        %2356 = vmatpush1.msra.mxu0 0.0
        %2357 = vmatprep.subr.mxu0 0.0
        %2358 = vmatpush1.msra.mxu0 0.0
        %2359 = vmatprep.subr.mxu0 0.0
        %2360 = vmatpush1.msra.mxu0 0.0
        %2361 = vmatprep.subr.mxu0 0.0
        %2362 = vmatpush1.msra.mxu0 0.0
        %2363 = vmatprep.subr.mxu0 0.0
        %2364 = vmatpush1.msra.mxu0 0.0
        %2365 = vmatprep.mubr.f32.mxu0 0.0
        %2366 = vmatmul.mubr.f32.gmra.mrb[0].mxu0 %v2023
        %v2367 = vpop.f32.mrb[0].mxu0
        %v2368 = vadd.f32 0.0, %v2367
        %v2369 = vpop.f32.mrb[0].mxu0
        %v2370 = vadd.f32 0.0, %v2369
        %2371 = vmatprep.mubr.f32.mxu0 0.0
        %2372 = vmatmul.mubr.f32.gmra.mrb[0].mxu0 %v2026
        %v2373 = vpop.f32.mrb[0].mxu0
        %v2374 = vadd.f32 0.0, %v2373
        %v2375 = vpop.f32.mrb[0].mxu0
        %v2376 = vadd.f32 0.0, %v2375
        %2377 = vmatprep.mubr.f32.mxu0 0.0
        %2378 = vmatmul.mubr.f32.gmra.mrb[0].mxu0 %v2029
        %v2379 = vpop.f32.mrb[0].mxu0
        %v2380 = vadd.f32 0.0, %v2379
        %v2381 = vpop.f32.mrb[0].mxu0
        %v2382 = vadd.f32 0.0, %v2381
        %2383 = vmatprep.mubr.f32.mxu0 0.0
        %2384 = vmatmul.mubr.f32.gmra.mrb[0].mxu0 %v2032
        %v2385 = vpop.f32.mrb[0].mxu0
        %v2386 = vadd.f32 0.0, %v2385
        %v2387 = vpop.f32.mrb[0].mxu0
        %v2388 = vadd.f32 0.0, %v2387
        %2389 = vdwg.mxu0
        %v2390 = vadd.f32 %v1889, %v2101
        %v2391 = vadd.f32 %v1890, %v2103
        %v2392 = vadd.f32 %v1891, %v2190
        %v2393 = vadd.f32 %v1892, %v2192
        %v2394 = vadd.f32 %v1893, %v2279
        %v2395 = vadd.f32 %v1894, %v2281
        %v2396 = vadd.f32 %v1895, %v2368
        %v2397 = vadd.f32 %v1896, %v2370
        %v2398 = vadd.f32 %v1897, %v2107
        %v2399 = vadd.f32 %v1898, %v2109
        %v2400 = vadd.f32 %v1899, %v2196
        %v2401 = vadd.f32 %v1900, %v2198
        %v2402 = vadd.f32 %v1901, %v2285
        %v2403 = vadd.f32 %v1902, %v2287
        %v2404 = vadd.f32 %v1903, %v2374
        %v2405 = vadd.f32 %v1904, %v2376
        %v2406 = vadd.f32 %v1905, %v2113
        %v2407 = vadd.f32 %v1906, %v2115
        %v2408 = vadd.f32 %v1907, %v2202
        %v2409 = vadd.f32 %v1908, %v2204
        %v2410 = vadd.f32 %v1909, %v2291
        %v2411 = vadd.f32 %v1910, %v2293
        %v2412 = vadd.f32 %v1911, %v2380
        %v2413 = vadd.f32 %v1912, %v2382
        %v2414 = vadd.f32 %v1913, %v2119
        %v2415 = vadd.f32 %v1914, %v2121
        %v2416 = vadd.f32 %v1915, %v2208
        %v2417 = vadd.f32 %v1916, %v2210
        %v2418 = vadd.f32 %v1917, %v2297
        %v2419 = vadd.f32 %v1918, %v2299
        %v2420 = vadd.f32 %v1919, %v2386
        %v2421 = vadd.f32 %v1920, %v2388
        %v2422 = vld [vmem:[%s3] sm:$0xff]
        %v2424 = vlaneseq
        %v2425 = vshrl.u32 %v2424, 7
        %v2426 = vsub.s32 0, %v2425
        %v2427 = vrot.slane %v2422, %v2426
        %v2428 = vlaneseq
        %v2429 = vshrl.u32 %v2428, 7
        %v2430 = vsub.s32 1, %v2429
        %v2431 = vrot.slane %v2422, %v2430
        %v2432 = vlaneseq
        %v2433 = vshrl.u32 %v2432, 7
        %v2434 = vsub.s32 2, %v2433
        %v2435 = vrot.slane %v2422, %v2434
        %v2436 = vlaneseq
        %v2437 = vshrl.u32 %v2436, 7
        %v2438 = vsub.s32 3, %v2437
        %v2439 = vrot.slane %v2422, %v2438
        %v2440 = vlaneseq
        %v2441 = vshrl.u32 %v2440, 7
        %v2442 = vsub.s32 4, %v2441
        %v2443 = vrot.slane %v2422, %v2442
        %v2444 = vlaneseq
        %v2445 = vshrl.u32 %v2444, 7
        %v2446 = vsub.s32 5, %v2445
        %v2447 = vrot.slane %v2422, %v2446
        %v2448 = vlaneseq
        %v2449 = vshrl.u32 %v2448, 7
        %v2450 = vsub.s32 6, %v2449
        %v2451 = vrot.slane %v2422, %v2450
        %v2452 = vlaneseq
        %v2453 = vshrl.u32 %v2452, 7
        %v2454 = vsub.s32 7, %v2453
        %v2455 = vrot.slane %v2422, %v2454
        %v2464 = vadd.f32 %v2390, %v2427
        %v2465 = vadd.f32 %v2391, %v2431
        %v2466 = vadd.f32 %v2392, %v2435
        %v2467 = vadd.f32 %v2393, %v2439
        %v2468 = vadd.f32 %v2394, %v2443
        %v2469 = vadd.f32 %v2395, %v2447
        %v2470 = vadd.f32 %v2396, %v2451
        %v2471 = vadd.f32 %v2397, %v2455
        %v2472 = vadd.f32 %v2398, %v2427
        %v2473 = vadd.f32 %v2399, %v2431
        %v2474 = vadd.f32 %v2400, %v2435
        %v2475 = vadd.f32 %v2401, %v2439
        %v2476 = vadd.f32 %v2402, %v2443
        %v2477 = vadd.f32 %v2403, %v2447
        %v2478 = vadd.f32 %v2404, %v2451
        %v2479 = vadd.f32 %v2405, %v2455
        %v2480 = vadd.f32 %v2406, %v2427
        %v2481 = vadd.f32 %v2407, %v2431
        %v2482 = vadd.f32 %v2408, %v2435
        %v2483 = vadd.f32 %v2409, %v2439
        %v2484 = vadd.f32 %v2410, %v2443
        %v2485 = vadd.f32 %v2411, %v2447
        %v2486 = vadd.f32 %v2412, %v2451
        %v2487 = vadd.f32 %v2413, %v2455
        %v2488 = vadd.f32 %v2414, %v2427
        %v2489 = vadd.f32 %v2415, %v2431
        %v2490 = vadd.f32 %v2416, %v2435
        %v2491 = vadd.f32 %v2417, %v2439
        %v2492 = vadd.f32 %v2418, %v2443
        %v2493 = vadd.f32 %v2419, %v2447
        %v2494 = vadd.f32 %v2420, %v2451
        %v2495 = vadd.f32 %v2421, %v2455
        %vm2496 = vcmp.ge.f32.partialorder %v2464, 0.0
        %vm2497 = vcmp.ge.f32.partialorder %v2465, 0.0
        %vm2498 = vcmp.ge.f32.partialorder %v2466, 0.0
        %vm2499 = vcmp.ge.f32.partialorder %v2467, 0.0
        %vm2500 = vcmp.ge.f32.partialorder %v2468, 0.0
        %vm2501 = vcmp.ge.f32.partialorder %v2469, 0.0
        %vm2502 = vcmp.ge.f32.partialorder %v2470, 0.0
        %vm2503 = vcmp.ge.f32.partialorder %v2471, 0.0
        %vm2504 = vcmp.ge.f32.partialorder %v2472, 0.0
        %vm2505 = vcmp.ge.f32.partialorder %v2473, 0.0
        %vm2506 = vcmp.ge.f32.partialorder %v2474, 0.0
        %vm2507 = vcmp.ge.f32.partialorder %v2475, 0.0
        %vm2508 = vcmp.ge.f32.partialorder %v2476, 0.0
        %vm2509 = vcmp.ge.f32.partialorder %v2477, 0.0
        %vm2510 = vcmp.ge.f32.partialorder %v2478, 0.0
        %vm2511 = vcmp.ge.f32.partialorder %v2479, 0.0
        %vm2512 = vcmp.ge.f32.partialorder %v2480, 0.0
        %vm2513 = vcmp.ge.f32.partialorder %v2481, 0.0
        %vm2514 = vcmp.ge.f32.partialorder %v2482, 0.0
        %vm2515 = vcmp.ge.f32.partialorder %v2483, 0.0
        %vm2516 = vcmp.ge.f32.partialorder %v2484, 0.0
        %vm2517 = vcmp.ge.f32.partialorder %v2485, 0.0
        %vm2518 = vcmp.ge.f32.partialorder %v2486, 0.0
        %vm2519 = vcmp.ge.f32.partialorder %v2487, 0.0
        %vm2520 = vcmp.ge.f32.partialorder %v2488, 0.0
        %vm2521 = vcmp.ge.f32.partialorder %v2489, 0.0
        %vm2522 = vcmp.ge.f32.partialorder %v2490, 0.0
        %vm2523 = vcmp.ge.f32.partialorder %v2491, 0.0
        %vm2524 = vcmp.ge.f32.partialorder %v2492, 0.0
        %vm2525 = vcmp.ge.f32.partialorder %v2493, 0.0
        %vm2526 = vcmp.ge.f32.partialorder %v2494, 0.0
        %vm2527 = vcmp.ge.f32.partialorder %v2495, 0.0
        %v2528 = vstv %s481
        %v2529 = vmul.f32 %v2528, %v2464
        %v2530 = vmul.f32 %v2528, %v2465
        %v2531 = vmul.f32 %v2528, %v2466
        %v2532 = vmul.f32 %v2528, %v2467
        %v2533 = vmul.f32 %v2528, %v2468
        %v2534 = vmul.f32 %v2528, %v2469
        %v2535 = vmul.f32 %v2528, %v2470
        %v2536 = vmul.f32 %v2528, %v2471
        %v2537 = vmul.f32 %v2528, %v2472
        %v2538 = vmul.f32 %v2528, %v2473
        %v2539 = vmul.f32 %v2528, %v2474
        %v2540 = vmul.f32 %v2528, %v2475
        %v2541 = vmul.f32 %v2528, %v2476
        %v2542 = vmul.f32 %v2528, %v2477
        %v2543 = vmul.f32 %v2528, %v2478
        %v2544 = vmul.f32 %v2528, %v2479
        %v2545 = vmul.f32 %v2528, %v2480
        %v2546 = vmul.f32 %v2528, %v2481
        %v2547 = vmul.f32 %v2528, %v2482
        %v2548 = vmul.f32 %v2528, %v2483
        %v2549 = vmul.f32 %v2528, %v2484
        %v2550 = vmul.f32 %v2528, %v2485
        %v2551 = vmul.f32 %v2528, %v2486
        %v2552 = vmul.f32 %v2528, %v2487
        %v2553 = vmul.f32 %v2528, %v2488
        %v2554 = vmul.f32 %v2528, %v2489
        %v2555 = vmul.f32 %v2528, %v2490
        %v2556 = vmul.f32 %v2528, %v2491
        %v2557 = vmul.f32 %v2528, %v2492
        %v2558 = vmul.f32 %v2528, %v2493
        %v2559 = vmul.f32 %v2528, %v2494
        %v2560 = vmul.f32 %v2528, %v2495
        %v2561 = vsel %vm2496, %v2464, %v2529
        %v2562 = vsel %vm2497, %v2465, %v2530
        %v2563 = vsel %vm2498, %v2466, %v2531
        %v2564 = vsel %vm2499, %v2467, %v2532
        %v2565 = vsel %vm2500, %v2468, %v2533
        %v2566 = vsel %vm2501, %v2469, %v2534
        %v2567 = vsel %vm2502, %v2470, %v2535
        %v2568 = vsel %vm2503, %v2471, %v2536
        %v2569 = vsel %vm2504, %v2472, %v2537
        %v2570 = vsel %vm2505, %v2473, %v2538
        %v2571 = vsel %vm2506, %v2474, %v2539
        %v2572 = vsel %vm2507, %v2475, %v2540
        %v2573 = vsel %vm2508, %v2476, %v2541
        %v2574 = vsel %vm2509, %v2477, %v2542
        %v2575 = vsel %vm2510, %v2478, %v2543
        %v2576 = vsel %vm2511, %v2479, %v2544
        %v2577 = vsel %vm2512, %v2480, %v2545
        %v2578 = vsel %vm2513, %v2481, %v2546
        %v2579 = vsel %vm2514, %v2482, %v2547
        %v2580 = vsel %vm2515, %v2483, %v2548
        %v2581 = vsel %vm2516, %v2484, %v2549
        %v2582 = vsel %vm2517, %v2485, %v2550
        %v2583 = vsel %vm2518, %v2486, %v2551
        %v2584 = vsel %vm2519, %v2487, %v2552
        %v2585 = vsel %vm2520, %v2488, %v2553
        %v2586 = vsel %vm2521, %v2489, %v2554
        %v2587 = vsel %vm2522, %v2490, %v2555
        %v2588 = vsel %vm2523, %v2491, %v2556
        %v2589 = vsel %vm2524, %v2492, %v2557
        %v2590 = vsel %vm2525, %v2493, %v2558
        %v2591 = vsel %vm2526, %v2494, %v2559
        %v2592 = vsel %vm2527, %v2495, %v2560
        %v2593 = vmax.f32 %v2561, %v2565
        %v2594 = vmax.f32 %v2562, %v2566
        %v2595 = vmax.f32 %v2563, %v2567
        %v2596 = vmax.f32 %v2564, %v2568
        %v2597 = vmax.f32 %v2569, %v2573
        %v2598 = vmax.f32 %v2570, %v2574
        %v2599 = vmax.f32 %v2571, %v2575
        %v2600 = vmax.f32 %v2572, %v2576
        %v2601 = vmax.f32 %v2577, %v2581
        %v2602 = vmax.f32 %v2578, %v2582
        %v2603 = vmax.f32 %v2579, %v2583
        %v2604 = vmax.f32 %v2580, %v2584
        %v2605 = vmax.f32 %v2585, %v2589
        %v2606 = vmax.f32 %v2586, %v2590
        %v2607 = vmax.f32 %v2587, %v2591
        %v2608 = vmax.f32 %v2588, %v2592
        %2609 = vst [vmem:[#allocation2] sm:$0xff] %v2593
        %2610 = vst [vmem:[#allocation2 + $0x8] sm:$0xff] %v2594
        %2611 = vst [vmem:[#allocation2 + $0x10] sm:$0xff] %v2595
        %2612 = vst [vmem:[#allocation2 + $0x18] sm:$0xff] %v2596
        %2613 = vst [vmem:[#allocation2 + $0x20] sm:$0xff] %v2597
        %2614 = vst [vmem:[#allocation2 + $0x28] sm:$0xff] %v2598
        %2615 = vst [vmem:[#allocation2 + $0x30] sm:$0xff] %v2599
        %2616 = vst [vmem:[#allocation2 + $0x38] sm:$0xff] %v2600
        %2617 = vst [vmem:[#allocation2 + $0x40] sm:$0xff] %v2601
        %2618 = vst [vmem:[#allocation2 + $0x48] sm:$0xff] %v2602
        %2619 = vst [vmem:[#allocation2 + $0x50] sm:$0xff] %v2603
        %2620 = vst [vmem:[#allocation2 + $0x58] sm:$0xff] %v2604
        %2621 = vst [vmem:[#allocation2 + $0x60] sm:$0x1f] %v2605
        %2622 = vst [vmem:[#allocation2 + $0x68] sm:$0x1f] %v2606
        %2623 = vst [vmem:[#allocation2 + $0x70] sm:$0x1f] %v2607
        %2624 = vst [vmem:[#allocation2 + $0x78] sm:$0x1f] %v2608
        %v2625 = vld [vmem:[#allocation2] ss:$8 sm:$0xf]
        %s2626 = scalar_lea.vmem [#allocation2], 1
        %v2627 = vld [vmem:[%s2626] ss:$8 sm:$0xf]
        %v2628 = vmax.f32 %v2625, %v2627
        %v2629 = vlaneseq
        %vm2630 = vcmp.ge.s32.totalorder %v2629, 0
        %vm2631 = vcmp.lt.s32.totalorder %v2629, 512
        %vm2632 = vmand %vm2630, %vm2631
        %2633 = vst.msk [vmem:[#allocation3] ss:$8 sm:$0xf] %vm2632, %v2628
        %2634 = vst.msk [vmem:[#allocation3] ss:$8 sm:$0x0] %vm2632, %v2628
        %s2635 = scalar_lea.vmem [#allocation2], 2
        %v2636 = vld [vmem:[%s2635] ss:$8 sm:$0xf]
        %s2637 = scalar_lea.vmem [#allocation2], 3
        %v2638 = vld [vmem:[%s2637] ss:$8 sm:$0xf]
        %v2639 = vmax.f32 %v2636, %v2638
        %s2640 = scalar_lea.vmem [#allocation3], 1
        %2641 = vst.msk [vmem:[%s2640] ss:$8 sm:$0xf] %vm2632, %v2639
        %2642 = vst.msk [vmem:[%s2640] ss:$8 sm:$0x0] %vm2632, %v2639
        %s2643 = scalar_lea.vmem [#allocation2], 4
        %v2644 = vld [vmem:[%s2643] ss:$8 sm:$0xf]
        %s2645 = scalar_lea.vmem [#allocation2], 5
        %v2646 = vld [vmem:[%s2645] ss:$8 sm:$0xf]
        %v2647 = vmax.f32 %v2644, %v2646
        %s2648 = scalar_lea.vmem [#allocation3], 2
        %2649 = vst.msk [vmem:[%s2648] ss:$8 sm:$0xf] %vm2632, %v2647
        %2650 = vst.msk [vmem:[%s2648] ss:$8 sm:$0x0] %vm2632, %v2647
        %s2651 = scalar_lea.vmem [#allocation2], 6
        %v2652 = vld [vmem:[%s2651] ss:$8 sm:$0xf]
        %s2653 = scalar_lea.vmem [#allocation2], 7
        %v2654 = vld [vmem:[%s2653] ss:$8 sm:$0xf]
        %v2655 = vmax.f32 %v2652, %v2654
        %s2656 = scalar_lea.vmem [#allocation3], 3
        %2657 = vst.msk [vmem:[%s2656] ss:$8 sm:$0xf] %vm2632, %v2655
        %2658 = vst.msk [vmem:[%s2656] ss:$8 sm:$0x0] %vm2632, %v2655
        %s2659 = scalar_lea.vmem [#allocation2], 32
        %v2660 = vld [vmem:[%s2659] ss:$8 sm:$0xf]
        %s2661 = scalar_lea.vmem [#allocation2], 33
        %v2662 = vld [vmem:[%s2661] ss:$8 sm:$0xf]
        %v2663 = vmax.f32 %v2660, %v2662
        %s2664 = scalar_lea.vmem [#allocation3], 4
        %2665 = vst.msk [vmem:[%s2664] ss:$8 sm:$0xf] %vm2632, %v2663
        %2666 = vst.msk [vmem:[%s2664] ss:$8 sm:$0x0] %vm2632, %v2663
        %s2667 = scalar_lea.vmem [#allocation2], 34
        %v2668 = vld [vmem:[%s2667] ss:$8 sm:$0xf]
        %s2669 = scalar_lea.vmem [#allocation2], 35
        %v2670 = vld [vmem:[%s2669] ss:$8 sm:$0xf]
        %v2671 = vmax.f32 %v2668, %v2670
        %s2672 = scalar_lea.vmem [#allocation3], 5
        %2673 = vst.msk [vmem:[%s2672] ss:$8 sm:$0xf] %vm2632, %v2671
        %2674 = vst.msk [vmem:[%s2672] ss:$8 sm:$0x0] %vm2632, %v2671
        %s2675 = scalar_lea.vmem [#allocation2], 36
        %v2676 = vld [vmem:[%s2675] ss:$8 sm:$0xf]
        %s2677 = scalar_lea.vmem [#allocation2], 37
        %v2678 = vld [vmem:[%s2677] ss:$8 sm:$0xf]
        %v2679 = vmax.f32 %v2676, %v2678
        %s2680 = scalar_lea.vmem [#allocation3], 6
        %2681 = vst.msk [vmem:[%s2680] ss:$8 sm:$0xf] %vm2632, %v2679
        %2682 = vst.msk [vmem:[%s2680] ss:$8 sm:$0x0] %vm2632, %v2679
        %s2683 = scalar_lea.vmem [#allocation2], 38
        %v2684 = vld [vmem:[%s2683] ss:$8 sm:$0xf]
        %s2685 = scalar_lea.vmem [#allocation2], 39
        %v2686 = vld [vmem:[%s2685] ss:$8 sm:$0xf]
        %v2687 = vmax.f32 %v2684, %v2686
        %s2688 = scalar_lea.vmem [#allocation3], 7
        %2689 = vst.msk [vmem:[%s2688] ss:$8 sm:$0xf] %vm2632, %v2687
        %2690 = vst.msk [vmem:[%s2688] ss:$8 sm:$0x0] %vm2632, %v2687
        %s2691 = scalar_lea.vmem [#allocation2], 64
        %v2692 = vld [vmem:[%s2691] ss:$8 sm:$0xf]
        %s2693 = scalar_lea.vmem [#allocation2], 65
        %v2694 = vld [vmem:[%s2693] ss:$8 sm:$0xf]
        %v2695 = vmax.f32 %v2692, %v2694
        %s2696 = scalar_lea.vmem [#allocation3], 32
        %2697 = vst.msk [vmem:[%s2696] ss:$8 sm:$0xf] %vm2632, %v2695
        %2698 = vst.msk [vmem:[%s2696] ss:$8 sm:$0x0] %vm2632, %v2695
        %s2699 = scalar_lea.vmem [#allocation2], 66
        %v2700 = vld [vmem:[%s2699] ss:$8 sm:$0xf]
        %s2701 = scalar_lea.vmem [#allocation2], 67
        %v2702 = vld [vmem:[%s2701] ss:$8 sm:$0xf]
        %v2703 = vmax.f32 %v2700, %v2702
        %s2704 = scalar_lea.vmem [#allocation3], 33
        %2705 = vst.msk [vmem:[%s2704] ss:$8 sm:$0xf] %vm2632, %v2703
        %2706 = vst.msk [vmem:[%s2704] ss:$8 sm:$0x0] %vm2632, %v2703
        %s2707 = scalar_lea.vmem [#allocation2], 68
        %v2708 = vld [vmem:[%s2707] ss:$8 sm:$0xf]
        %s2709 = scalar_lea.vmem [#allocation2], 69
        %v2710 = vld [vmem:[%s2709] ss:$8 sm:$0xf]
        %v2711 = vmax.f32 %v2708, %v2710
        %s2712 = scalar_lea.vmem [#allocation3], 34
        %2713 = vst.msk [vmem:[%s2712] ss:$8 sm:$0xf] %vm2632, %v2711
        %2714 = vst.msk [vmem:[%s2712] ss:$8 sm:$0x0] %vm2632, %v2711
        %s2715 = scalar_lea.vmem [#allocation2], 70
        %v2716 = vld [vmem:[%s2715] ss:$8 sm:$0xf]
        %s2717 = scalar_lea.vmem [#allocation2], 71
        %v2718 = vld [vmem:[%s2717] ss:$8 sm:$0xf]
        %v2719 = vmax.f32 %v2716, %v2718
        %s2720 = scalar_lea.vmem [#allocation3], 35
        %2721 = vst.msk [vmem:[%s2720] ss:$8 sm:$0xf] %vm2632, %v2719
        %2722 = vst.msk [vmem:[%s2720] ss:$8 sm:$0x0] %vm2632, %v2719
        %s2723 = scalar_lea.vmem [#allocation2], 96
        %v2724 = vld [vmem:[%s2723] ss:$8 sm:$0xf]
        %s2725 = scalar_lea.vmem [#allocation2], 97
        %v2726 = vld [vmem:[%s2725] ss:$8 sm:$0xf]
        %v2727 = vmax.f32 %v2724, %v2726
        %s2728 = scalar_lea.vmem [#allocation3], 36
        %2729 = vst.msk [vmem:[%s2728] ss:$8 sm:$0xf] %vm2632, %v2727
        %2730 = vst.msk [vmem:[%s2728] ss:$8 sm:$0x0] %vm2632, %v2727
        %s2731 = scalar_lea.vmem [#allocation2], 98
        %v2732 = vld [vmem:[%s2731] ss:$8 sm:$0xf]
        %s2733 = scalar_lea.vmem [#allocation2], 99
        %v2734 = vld [vmem:[%s2733] ss:$8 sm:$0xf]
        %v2735 = vmax.f32 %v2732, %v2734
        %s2736 = scalar_lea.vmem [#allocation3], 37
        %2737 = vst.msk [vmem:[%s2736] ss:$8 sm:$0xf] %vm2632, %v2735
        %2738 = vst.msk [vmem:[%s2736] ss:$8 sm:$0x0] %vm2632, %v2735
        %v2739 = vld [vmem:[#allocation3] sm:$0xff]
        %v2740 = vld [vmem:[#allocation3 + $0x8] sm:$0xff]
        %v2741 = vld [vmem:[#allocation3 + $0x10] sm:$0xff]
        %v2742 = vld [vmem:[#allocation3 + $0x18] sm:$0xff]
        %v2743 = vld [vmem:[#allocation3 + $0x20] sm:$0x7]
        %v2744 = vld [vmem:[#allocation3 + $0x28] sm:$0x7]
        %v2745 = vld [vmem:[#allocation3 + $0x30] sm:$0x7]
        %v2746 = vld [vmem:[#allocation3 + $0x38] sm:$0x7]
        %v2747 = vld [vmem:[#allocation7] sm:$0xff]
        %v2748 = vld [vmem:[#allocation7 + $0x8] sm:$0xff]
        %v2749 = vld [vmem:[#allocation7 + $0x10] sm:$0xff]
        %v2750 = vld [vmem:[#allocation7 + $0x18] sm:$0xff]
        %v2751 = vld [vmem:[#allocation7 + $0x20] sm:$0xff]
        %v2752 = vld [vmem:[#allocation7 + $0x28] sm:$0xff]
        %v2753 = vld [vmem:[#allocation7 + $0x30] sm:$0xff]
        %v2754 = vld [vmem:[#allocation7 + $0x38] sm:$0xff]
        %v2755 = vld [vmem:[#allocation7 + $0x40] sm:$0xff]
        %v2756 = vld [vmem:[#allocation7 + $0x48] sm:$0xff]
        %v2757 = vld [vmem:[#allocation7 + $0x50] sm:$0xff]
        %v2758 = vld [vmem:[#allocation7 + $0x58] sm:$0xff]
        %v2759 = vld [vmem:[#allocation7 + $0x60] sm:$0xff]
        %v2760 = vld [vmem:[#allocation7 + $0x68] sm:$0xff]
        %v2761 = vld [vmem:[#allocation7 + $0x70] sm:$0xff]
        %v2762 = vld [vmem:[#allocation7 + $0x78] sm:$0xff]
        %v2763 = vld [vmem:[#allocation7 + $0x80] sm:$0xff]
        %v2764 = vld [vmem:[#allocation7 + $0x88] sm:$0xff]
        %v2765 = vld [vmem:[#allocation7 + $0x90] sm:$0xff]
        %v2766 = vld [vmem:[#allocation7 + $0x98] sm:$0xff]
        %v2767 = vld [vmem:[#allocation7 + $0xa0] sm:$0xff]
        %v2768 = vld [vmem:[#allocation7 + $0xa8] sm:$0xff]
        %v2769 = vld [vmem:[#allocation7 + $0xb0] sm:$0xff]
        %v2770 = vld [vmem:[#allocation7 + $0xb8] sm:$0xff]
        %v2771 = vld [vmem:[#allocation7 + $0xc0] sm:$0xff]
        %v2772 = vld [vmem:[#allocation7 + $0xc8] sm:$0xff]
        %v2773 = vld [vmem:[#allocation7 + $0xd0] sm:$0xff]
        %v2774 = vld [vmem:[#allocation7 + $0xd8] sm:$0xff]
        %v2775 = vld [vmem:[#allocation7 + $0xe0] sm:$0xff]
        %v2776 = vld [vmem:[#allocation7 + $0xe8] sm:$0xff]
        %v2777 = vld [vmem:[#allocation7 + $0xf0] sm:$0xff]
        %v2778 = vld [vmem:[#allocation7 + $0xf8] sm:$0xff]
        %v2779 = vld [vmem:[#allocation7 + $0x100] sm:$0xff]
        %v2780 = vld [vmem:[#allocation7 + $0x108] sm:$0xff]
        %v2781 = vld [vmem:[#allocation7 + $0x110] sm:$0xff]
        %v2782 = vld [vmem:[#allocation7 + $0x118] sm:$0xff]
        %v2783 = vld [vmem:[#allocation7 + $0x120] sm:$0xff]
        %v2784 = vld [vmem:[#allocation7 + $0x128] sm:$0xff]
        %v2785 = vld [vmem:[#allocation7 + $0x130] sm:$0xff]
        %v2786 = vld [vmem:[#allocation7 + $0x138] sm:$0xff]
        %v2787 = vld [vmem:[#allocation7 + $0x140] sm:$0xff]
        %v2788 = vld [vmem:[#allocation7 + $0x148] sm:$0xff]
        %v2789 = vld [vmem:[#allocation7 + $0x150] sm:$0xff]
        %v2790 = vld [vmem:[#allocation7 + $0x158] sm:$0xff]
        %v2791 = vld [vmem:[#allocation7 + $0x160] sm:$0xff]
        %v2792 = vld [vmem:[#allocation7 + $0x168] sm:$0xff]
        %v2793 = vld [vmem:[#allocation7 + $0x170] sm:$0xff]
        %v2794 = vld [vmem:[#allocation7 + $0x178] sm:$0xff]
        %v2795 = vld [vmem:[#allocation7 + $0x180] sm:$0xff]
        %v2796 = vld [vmem:[#allocation7 + $0x188] sm:$0xff]
        %v2797 = vld [vmem:[#allocation7 + $0x190] sm:$0xff]
        %v2798 = vld [vmem:[#allocation7 + $0x198] sm:$0xff]
        %v2799 = vld [vmem:[#allocation7 + $0x1a0] sm:$0xff]
        %v2800 = vld [vmem:[#allocation7 + $0x1a8] sm:$0xff]
        %v2801 = vld [vmem:[#allocation7 + $0x1b0] sm:$0xff]
        %v2802 = vld [vmem:[#allocation7 + $0x1b8] sm:$0xff]
        %v2803 = vld [vmem:[#allocation7 + $0x1c0] sm:$0xff]
        %v2804 = vld [vmem:[#allocation7 + $0x1c8] sm:$0xff]
        %v2805 = vld [vmem:[#allocation7 + $0x1d0] sm:$0xff]
        %v2806 = vld [vmem:[#allocation7 + $0x1d8] sm:$0xff]
        %v2807 = vld [vmem:[#allocation7 + $0x1e0] sm:$0xff]
        %v2808 = vld [vmem:[#allocation7 + $0x1e8] sm:$0xff]
        %v2809 = vld [vmem:[#allocation7 + $0x1f0] sm:$0xff]
        %v2810 = vld [vmem:[#allocation7 + $0x1f8] sm:$0xff]
        %v2811 = vld [vmem:[#allocation7 + $0x200] sm:$0xff]
        %v2812 = vld [vmem:[#allocation7 + $0x208] sm:$0xff]
        %v2813 = vld [vmem:[#allocation7 + $0x210] sm:$0xff]
        %v2814 = vld [vmem:[#allocation7 + $0x218] sm:$0xff]
        %v2815 = vld [vmem:[#allocation7 + $0x220] sm:$0xff]
        %v2816 = vld [vmem:[#allocation7 + $0x228] sm:$0xff]
        %v2817 = vld [vmem:[#allocation7 + $0x230] sm:$0xff]
        %v2818 = vld [vmem:[#allocation7 + $0x238] sm:$0xff]
        %v2819 = vld [vmem:[#allocation7 + $0x240] sm:$0xff]
        %v2820 = vld [vmem:[#allocation7 + $0x248] sm:$0xff]
        %v2821 = vld [vmem:[#allocation7 + $0x250] sm:$0xff]
        %v2822 = vld [vmem:[#allocation7 + $0x258] sm:$0xff]
        %v2823 = vld [vmem:[#allocation7 + $0x260] sm:$0xff]
        %v2824 = vld [vmem:[#allocation7 + $0x268] sm:$0xff]
        %v2825 = vld [vmem:[#allocation7 + $0x270] sm:$0xff]
        %v2826 = vld [vmem:[#allocation7 + $0x278] sm:$0xff]
        %v2827 = vld [vmem:[#allocation7 + $0x280] sm:$0xff]
        %v2828 = vld [vmem:[#allocation7 + $0x288] sm:$0xff]
        %v2829 = vld [vmem:[#allocation7 + $0x290] sm:$0xff]
        %v2830 = vld [vmem:[#allocation7 + $0x298] sm:$0xff]
        %v2831 = vld [vmem:[#allocation7 + $0x2a0] sm:$0xff]
        %v2832 = vld [vmem:[#allocation7 + $0x2a8] sm:$0xff]
        %v2833 = vld [vmem:[#allocation7 + $0x2b0] sm:$0xff]
        %v2834 = vld [vmem:[#allocation7 + $0x2b8] sm:$0xff]
        %v2835 = vld [vmem:[#allocation7 + $0x2c0] sm:$0xff]
        %v2836 = vld [vmem:[#allocation7 + $0x2c8] sm:$0xff]
        %v2837 = vld [vmem:[#allocation7 + $0x2d0] sm:$0xff]
        %v2838 = vld [vmem:[#allocation7 + $0x2d8] sm:$0xff]
        %v2839 = vld [vmem:[#allocation7 + $0x2e0] sm:$0xff]
        %v2840 = vld [vmem:[#allocation7 + $0x2e8] sm:$0xff]
        %v2841 = vld [vmem:[#allocation7 + $0x2f0] sm:$0xff]
        %v2842 = vld [vmem:[#allocation7 + $0x2f8] sm:$0xff]
        %v2843 = vld [vmem:[#allocation7 + $0x300] sm:$0xff]
        %v2844 = vld [vmem:[#allocation7 + $0x308] sm:$0xff]
        %v2845 = vld [vmem:[#allocation7 + $0x310] sm:$0xff]
        %v2846 = vld [vmem:[#allocation7 + $0x318] sm:$0xff]
        %v2847 = vld [vmem:[#allocation7 + $0x320] sm:$0xff]
        %v2848 = vld [vmem:[#allocation7 + $0x328] sm:$0xff]
        %v2849 = vld [vmem:[#allocation7 + $0x330] sm:$0xff]
        %v2850 = vld [vmem:[#allocation7 + $0x338] sm:$0xff]
        %v2851 = vld [vmem:[#allocation7 + $0x340] sm:$0xff]
        %v2852 = vld [vmem:[#allocation7 + $0x348] sm:$0xff]
        %v2853 = vld [vmem:[#allocation7 + $0x350] sm:$0xff]
        %v2854 = vld [vmem:[#allocation7 + $0x358] sm:$0xff]
        %v2855 = vld [vmem:[#allocation7 + $0x360] sm:$0xff]
        %v2856 = vld [vmem:[#allocation7 + $0x368] sm:$0xff]
        %v2857 = vld [vmem:[#allocation7 + $0x370] sm:$0xff]
        %v2858 = vld [vmem:[#allocation7 + $0x378] sm:$0xff]
        %v2859 = vld [vmem:[#allocation7 + $0x380] sm:$0xff]
        %v2860 = vld [vmem:[#allocation7 + $0x388] sm:$0xff]
        %v2861 = vld [vmem:[#allocation7 + $0x390] sm:$0xff]
        %v2862 = vld [vmem:[#allocation7 + $0x398] sm:$0xff]
        %v2863 = vld [vmem:[#allocation7 + $0x3a0] sm:$0xff]
        %v2864 = vld [vmem:[#allocation7 + $0x3a8] sm:$0xff]
        %v2865 = vld [vmem:[#allocation7 + $0x3b0] sm:$0xff]
        %v2866 = vld [vmem:[#allocation7 + $0x3b8] sm:$0xff]
        %v2867 = vld [vmem:[#allocation7 + $0x3c0] sm:$0xff]
        %v2868 = vld [vmem:[#allocation7 + $0x3c8] sm:$0xff]
        %v2869 = vld [vmem:[#allocation7 + $0x3d0] sm:$0xff]
        %v2870 = vld [vmem:[#allocation7 + $0x3d8] sm:$0xff]
        %v2871 = vld [vmem:[#allocation7 + $0x3e0] sm:$0xff]
        %v2872 = vld [vmem:[#allocation7 + $0x3e8] sm:$0xff]
        %v2873 = vld [vmem:[#allocation7 + $0x3f0] sm:$0xff]
        %v2874 = vld [vmem:[#allocation7 + $0x3f8] sm:$0xff]
        %v2875 = vld [vmem:[#allocation7 + $0x400] sm:$0xff]
        %v2876 = vld [vmem:[#allocation7 + $0x408] sm:$0xff]
        %v2877 = vld [vmem:[#allocation7 + $0x410] sm:$0xff]
        %v2878 = vld [vmem:[#allocation7 + $0x418] sm:$0xff]
        %v2879 = vld [vmem:[#allocation7 + $0x420] sm:$0xff]
        %v2880 = vld [vmem:[#allocation7 + $0x428] sm:$0xff]
        %v2881 = vld [vmem:[#allocation7 + $0x430] sm:$0xff]
        %v2882 = vld [vmem:[#allocation7 + $0x438] sm:$0xff]
        %v2883 = vld [vmem:[#allocation7 + $0x440] sm:$0xff]
        %v2884 = vld [vmem:[#allocation7 + $0x448] sm:$0xff]
        %v2885 = vld [vmem:[#allocation7 + $0x450] sm:$0xff]
        %v2886 = vld [vmem:[#allocation7 + $0x458] sm:$0xff]
        %v2887 = vld [vmem:[#allocation7 + $0x460] sm:$0xff]
        %v2888 = vld [vmem:[#allocation7 + $0x468] sm:$0xff]
        %v2889 = vld [vmem:[#allocation7 + $0x470] sm:$0xff]
        %v2890 = vld [vmem:[#allocation7 + $0x478] sm:$0xff]
        %v2891 = vld [vmem:[#allocation7 + $0x480] sm:$0xff]
        %v2892 = vld [vmem:[#allocation7 + $0x488] sm:$0xff]
        %v2893 = vld [vmem:[#allocation7 + $0x490] sm:$0xff]
        %v2894 = vld [vmem:[#allocation7 + $0x498] sm:$0xff]
        %v2895 = vld [vmem:[#allocation7 + $0x4a0] sm:$0xff]
        %v2896 = vld [vmem:[#allocation7 + $0x4a8] sm:$0xff]
        %v2897 = vld [vmem:[#allocation7 + $0x4b0] sm:$0xff]
        %v2898 = vld [vmem:[#allocation7 + $0x4b8] sm:$0xff]
        %v2899 = vld [vmem:[#allocation7 + $0x4c0] sm:$0xff]
        %v2900 = vld [vmem:[#allocation7 + $0x4c8] sm:$0xff]
        %v2901 = vld [vmem:[#allocation7 + $0x4d0] sm:$0xff]
        %v2902 = vld [vmem:[#allocation7 + $0x4d8] sm:$0xff]
        %v2903 = vld [vmem:[#allocation7 + $0x4e0] sm:$0xff]
        %v2904 = vld [vmem:[#allocation7 + $0x4e8] sm:$0xff]
        %v2905 = vld [vmem:[#allocation7 + $0x4f0] sm:$0xff]
        %v2906 = vld [vmem:[#allocation7 + $0x4f8] sm:$0xff]
        %v2907 = vld [vmem:[#allocation7 + $0x500] sm:$0xff]
        %v2908 = vld [vmem:[#allocation7 + $0x508] sm:$0xff]
        %v2909 = vld [vmem:[#allocation7 + $0x510] sm:$0xff]
        %v2910 = vld [vmem:[#allocation7 + $0x518] sm:$0xff]
        %v2911 = vld [vmem:[#allocation7 + $0x520] sm:$0xff]
        %v2912 = vld [vmem:[#allocation7 + $0x528] sm:$0xff]
        %v2913 = vld [vmem:[#allocation7 + $0x530] sm:$0xff]
        %v2914 = vld [vmem:[#allocation7 + $0x538] sm:$0xff]
        %v2915 = vld [vmem:[#allocation7 + $0x540] sm:$0xff]
        %v2916 = vld [vmem:[#allocation7 + $0x548] sm:$0xff]
        %v2917 = vld [vmem:[#allocation7 + $0x550] sm:$0xff]
        %v2918 = vld [vmem:[#allocation7 + $0x558] sm:$0xff]
        %v2919 = vld [vmem:[#allocation7 + $0x560] sm:$0xff]
        %v2920 = vld [vmem:[#allocation7 + $0x568] sm:$0xff]
        %v2921 = vld [vmem:[#allocation7 + $0x570] sm:$0xff]
        %v2922 = vld [vmem:[#allocation7 + $0x578] sm:$0xff]
        %v2923 = vld [vmem:[#allocation7 + $0x580] sm:$0xff]
        %v2924 = vld [vmem:[#allocation7 + $0x588] sm:$0xff]
        %v2925 = vld [vmem:[#allocation7 + $0x590] sm:$0xff]
        %v2926 = vld [vmem:[#allocation7 + $0x598] sm:$0xff]
        %v2927 = vld [vmem:[#allocation7 + $0x5a0] sm:$0xff]
        %v2928 = vld [vmem:[#allocation7 + $0x5a8] sm:$0xff]
        %v2929 = vld [vmem:[#allocation7 + $0x5b0] sm:$0xff]
        %v2930 = vld [vmem:[#allocation7 + $0x5b8] sm:$0xff]
        %v2931 = vld [vmem:[#allocation7 + $0x5c0] sm:$0xff]
        %v2932 = vld [vmem:[#allocation7 + $0x5c8] sm:$0xff]
        %v2933 = vld [vmem:[#allocation7 + $0x5d0] sm:$0xff]
        %v2934 = vld [vmem:[#allocation7 + $0x5d8] sm:$0xff]
        %v2935 = vld [vmem:[#allocation7 + $0x5e0] sm:$0xff]
        %v2936 = vld [vmem:[#allocation7 + $0x5e8] sm:$0xff]
        %v2937 = vld [vmem:[#allocation7 + $0x5f0] sm:$0xff]
        %v2938 = vld [vmem:[#allocation7 + $0x5f8] sm:$0xff]
        %v2939 = vld [vmem:[#allocation7 + $0x600] sm:$0xff]
        %v2940 = vld [vmem:[#allocation7 + $0x608] sm:$0xff]
        %v2941 = vld [vmem:[#allocation7 + $0x610] sm:$0xff]
        %v2942 = vld [vmem:[#allocation7 + $0x618] sm:$0xff]
        %v2943 = vld [vmem:[#allocation7 + $0x620] sm:$0xff]
        %v2944 = vld [vmem:[#allocation7 + $0x628] sm:$0xff]
        %v2945 = vld [vmem:[#allocation7 + $0x630] sm:$0xff]
        %v2946 = vld [vmem:[#allocation7 + $0x638] sm:$0xff]
        %v2947 = vld [vmem:[#allocation7 + $0x640] sm:$0xff]
        %v2948 = vld [vmem:[#allocation7 + $0x648] sm:$0xff]
        %v2949 = vld [vmem:[#allocation7 + $0x650] sm:$0xff]
        %v2950 = vld [vmem:[#allocation7 + $0x658] sm:$0xff]
        %v2951 = vld [vmem:[#allocation7 + $0x660] sm:$0xff]
        %v2952 = vld [vmem:[#allocation7 + $0x668] sm:$0xff]
        %v2953 = vld [vmem:[#allocation7 + $0x670] sm:$0xff]
        %v2954 = vld [vmem:[#allocation7 + $0x678] sm:$0xff]
        %v2955 = vld [vmem:[#allocation7 + $0x680] sm:$0xff]
        %v2956 = vld [vmem:[#allocation7 + $0x688] sm:$0xff]
        %v2957 = vld [vmem:[#allocation7 + $0x690] sm:$0xff]
        %v2958 = vld [vmem:[#allocation7 + $0x698] sm:$0xff]
        %v2959 = vld [vmem:[#allocation7 + $0x6a0] sm:$0xff]
        %v2960 = vld [vmem:[#allocation7 + $0x6a8] sm:$0xff]
        %v2961 = vld [vmem:[#allocation7 + $0x6b0] sm:$0xff]
        %v2962 = vld [vmem:[#allocation7 + $0x6b8] sm:$0xff]
        %v2963 = vld [vmem:[#allocation7 + $0x6c0] sm:$0xff]
        %v2964 = vld [vmem:[#allocation7 + $0x6c8] sm:$0xff]
        %v2965 = vld [vmem:[#allocation7 + $0x6d0] sm:$0xff]
        %v2966 = vld [vmem:[#allocation7 + $0x6d8] sm:$0xff]
        %v2967 = vld [vmem:[#allocation7 + $0x6e0] sm:$0xff]
        %v2968 = vld [vmem:[#allocation7 + $0x6e8] sm:$0xff]
        %v2969 = vld [vmem:[#allocation7 + $0x6f0] sm:$0xff]
        %v2970 = vld [vmem:[#allocation7 + $0x6f8] sm:$0xff]
        %v2971 = vld [vmem:[#allocation7 + $0x700] sm:$0xff]
        %v2972 = vld [vmem:[#allocation7 + $0x708] sm:$0xff]
        %v2973 = vld [vmem:[#allocation7 + $0x710] sm:$0xff]
        %v2974 = vld [vmem:[#allocation7 + $0x718] sm:$0xff]
        %v2975 = vld [vmem:[#allocation7 + $0x720] sm:$0xff]
        %v2976 = vld [vmem:[#allocation7 + $0x728] sm:$0xff]
        %v2977 = vld [vmem:[#allocation7 + $0x730] sm:$0xff]
        %v2978 = vld [vmem:[#allocation7 + $0x738] sm:$0xff]
        %v2979 = vld [vmem:[#allocation7 + $0x740] sm:$0xff]
        %v2980 = vld [vmem:[#allocation7 + $0x748] sm:$0xff]
        %v2981 = vld [vmem:[#allocation7 + $0x750] sm:$0xff]
        %v2982 = vld [vmem:[#allocation7 + $0x758] sm:$0xff]
        %v2983 = vld [vmem:[#allocation7 + $0x760] sm:$0xff]
        %v2984 = vld [vmem:[#allocation7 + $0x768] sm:$0xff]
        %v2985 = vld [vmem:[#allocation7 + $0x770] sm:$0xff]
        %v2986 = vld [vmem:[#allocation7 + $0x778] sm:$0xff]
        %v2987 = vld [vmem:[#allocation7 + $0x780] sm:$0xff]
        %v2988 = vld [vmem:[#allocation7 + $0x788] sm:$0xff]
        %v2989 = vld [vmem:[#allocation7 + $0x790] sm:$0xff]
        %v2990 = vld [vmem:[#allocation7 + $0x798] sm:$0xff]
        %v2991 = vld [vmem:[#allocation7 + $0x7a0] sm:$0xff]
        %v2992 = vld [vmem:[#allocation7 + $0x7a8] sm:$0xff]
        %v2993 = vld [vmem:[#allocation7 + $0x7b0] sm:$0xff]
        %v2994 = vld [vmem:[#allocation7 + $0x7b8] sm:$0xff]
        %v2995 = vld [vmem:[#allocation7 + $0x7c0] sm:$0xff]
        %v2996 = vld [vmem:[#allocation7 + $0x7c8] sm:$0xff]
        %v2997 = vld [vmem:[#allocation7 + $0x7d0] sm:$0xff]
        %v2998 = vld [vmem:[#allocation7 + $0x7d8] sm:$0xff]
        %v2999 = vld [vmem:[#allocation7 + $0x7e0] sm:$0xff]
        %v3000 = vld [vmem:[#allocation7 + $0x7e8] sm:$0xff]
        %v3001 = vld [vmem:[#allocation7 + $0x7f0] sm:$0xff]
        %v3002 = vld [vmem:[#allocation7 + $0x7f8] sm:$0xff]
        %v3003 = vld [vmem:[#allocation7 + $0x800] sm:$0xff]
        %v3004 = vld [vmem:[#allocation7 + $0x808] sm:$0xff]
        %v3005 = vld [vmem:[#allocation7 + $0x810] sm:$0xff]
        %v3006 = vld [vmem:[#allocation7 + $0x818] sm:$0xff]
        %v3007 = vld [vmem:[#allocation7 + $0x820] sm:$0xff]
        %v3008 = vld [vmem:[#allocation7 + $0x828] sm:$0xff]
        %v3009 = vld [vmem:[#allocation7 + $0x830] sm:$0xff]
        %v3010 = vld [vmem:[#allocation7 + $0x838] sm:$0xff]
        %v3011 = vld [vmem:[#allocation7 + $0x840] sm:$0xff]
        %v3012 = vld [vmem:[#allocation7 + $0x848] sm:$0xff]
        %v3013 = vld [vmem:[#allocation7 + $0x850] sm:$0xff]
        %v3014 = vld [vmem:[#allocation7 + $0x858] sm:$0xff]
        %v3015 = vld [vmem:[#allocation7 + $0x860] sm:$0xff]
        %v3016 = vld [vmem:[#allocation7 + $0x868] sm:$0xff]
        %v3017 = vld [vmem:[#allocation7 + $0x870] sm:$0xff]
        %v3018 = vld [vmem:[#allocation7 + $0x878] sm:$0xff]
        %v3019 = vld [vmem:[#allocation7 + $0x880] sm:$0xff]
        %v3020 = vld [vmem:[#allocation7 + $0x888] sm:$0xff]
        %v3021 = vld [vmem:[#allocation7 + $0x890] sm:$0xff]
        %v3022 = vld [vmem:[#allocation7 + $0x898] sm:$0xff]
        %v3023 = vld [vmem:[#allocation7 + $0x8a0] sm:$0xff]
        %v3024 = vld [vmem:[#allocation7 + $0x8a8] sm:$0xff]
        %v3025 = vld [vmem:[#allocation7 + $0x8b0] sm:$0xff]
        %v3026 = vld [vmem:[#allocation7 + $0x8b8] sm:$0xff]
        %v3027 = vld [vmem:[#allocation7 + $0x8c0] sm:$0xff]
        %v3028 = vld [vmem:[#allocation7 + $0x8c8] sm:$0xff]
        %v3029 = vld [vmem:[#allocation7 + $0x8d0] sm:$0xff]
        %v3030 = vld [vmem:[#allocation7 + $0x8d8] sm:$0xff]
        %v3031 = vld [vmem:[#allocation7 + $0x8e0] sm:$0xff]
        %v3032 = vld [vmem:[#allocation7 + $0x8e8] sm:$0xff]
        %v3033 = vld [vmem:[#allocation7 + $0x8f0] sm:$0xff]
        %v3034 = vld [vmem:[#allocation7 + $0x8f8] sm:$0xff]
        %v3035 = vld [vmem:[#allocation7 + $0x900] sm:$0xff]
        %v3036 = vld [vmem:[#allocation7 + $0x908] sm:$0xff]
        %v3037 = vld [vmem:[#allocation7 + $0x910] sm:$0xff]
        %v3038 = vld [vmem:[#allocation7 + $0x918] sm:$0xff]
        %v3039 = vld [vmem:[#allocation7 + $0x920] sm:$0xff]
        %v3040 = vld [vmem:[#allocation7 + $0x928] sm:$0xff]
        %v3041 = vld [vmem:[#allocation7 + $0x930] sm:$0xff]
        %v3042 = vld [vmem:[#allocation7 + $0x938] sm:$0xff]
        %v3043 = vld [vmem:[#allocation7 + $0x940] sm:$0xff]
        %v3044 = vld [vmem:[#allocation7 + $0x948] sm:$0xff]
        %v3045 = vld [vmem:[#allocation7 + $0x950] sm:$0xff]
        %v3046 = vld [vmem:[#allocation7 + $0x958] sm:$0xff]
        %v3047 = vld [vmem:[#allocation7 + $0x960] sm:$0xff]
        %v3048 = vld [vmem:[#allocation7 + $0x968] sm:$0xff]
        %v3049 = vld [vmem:[#allocation7 + $0x970] sm:$0xff]
        %v3050 = vld [vmem:[#allocation7 + $0x978] sm:$0xff]
        %v3051 = vld [vmem:[#allocation7 + $0x980] sm:$0xff]
        %v3052 = vld [vmem:[#allocation7 + $0x988] sm:$0xff]
        %v3053 = vld [vmem:[#allocation7 + $0x990] sm:$0xff]
        %v3054 = vld [vmem:[#allocation7 + $0x998] sm:$0xff]
        %v3055 = vld [vmem:[#allocation7 + $0x9a0] sm:$0xff]
        %v3056 = vld [vmem:[#allocation7 + $0x9a8] sm:$0xff]
        %v3057 = vld [vmem:[#allocation7 + $0x9b0] sm:$0xff]
        %v3058 = vld [vmem:[#allocation7 + $0x9b8] sm:$0xff]
        %v3059 = vld [vmem:[#allocation7 + $0x9c0] sm:$0xff]
        %v3060 = vld [vmem:[#allocation7 + $0x9c8] sm:$0xff]
        %v3061 = vld [vmem:[#allocation7 + $0x9d0] sm:$0xff]
        %v3062 = vld [vmem:[#allocation7 + $0x9d8] sm:$0xff]
        %v3063 = vld [vmem:[#allocation7 + $0x9e0] sm:$0xff]
        %v3064 = vld [vmem:[#allocation7 + $0x9e8] sm:$0xff]
        %v3065 = vld [vmem:[#allocation7 + $0x9f0] sm:$0xff]
        %v3066 = vld [vmem:[#allocation7 + $0x9f8] sm:$0xff]
        %v3067 = vld [vmem:[#allocation7 + $0xa00] sm:$0xff]
        %v3068 = vld [vmem:[#allocation7 + $0xa08] sm:$0xff]
        %v3069 = vld [vmem:[#allocation7 + $0xa10] sm:$0xff]
        %v3070 = vld [vmem:[#allocation7 + $0xa18] sm:$0xff]
        %v3071 = vld [vmem:[#allocation7 + $0xa20] sm:$0xff]
        %v3072 = vld [vmem:[#allocation7 + $0xa28] sm:$0xff]
        %v3073 = vld [vmem:[#allocation7 + $0xa30] sm:$0xff]
        %v3074 = vld [vmem:[#allocation7 + $0xa38] sm:$0xff]
        %v3075 = vld [vmem:[#allocation7 + $0xa40] sm:$0xff]
        %v3076 = vld [vmem:[#allocation7 + $0xa48] sm:$0xff]
        %v3077 = vld [vmem:[#allocation7 + $0xa50] sm:$0xff]
        %v3078 = vld [vmem:[#allocation7 + $0xa58] sm:$0xff]
        %v3079 = vld [vmem:[#allocation7 + $0xa60] sm:$0xff]
        %v3080 = vld [vmem:[#allocation7 + $0xa68] sm:$0xff]
        %v3081 = vld [vmem:[#allocation7 + $0xa70] sm:$0xff]
        %v3082 = vld [vmem:[#allocation7 + $0xa78] sm:$0xff]
        %v3083 = vld [vmem:[#allocation7 + $0xa80] sm:$0xff]
        %v3084 = vld [vmem:[#allocation7 + $0xa88] sm:$0xff]
        %v3085 = vld [vmem:[#allocation7 + $0xa90] sm:$0xff]
        %v3086 = vld [vmem:[#allocation7 + $0xa98] sm:$0xff]
        %v3087 = vld [vmem:[#allocation7 + $0xaa0] sm:$0xff]
        %v3088 = vld [vmem:[#allocation7 + $0xaa8] sm:$0xff]
        %v3089 = vld [vmem:[#allocation7 + $0xab0] sm:$0xff]
        %v3090 = vld [vmem:[#allocation7 + $0xab8] sm:$0xff]
        %v3091 = vld [vmem:[#allocation7 + $0xac0] sm:$0xff]
        %v3092 = vld [vmem:[#allocation7 + $0xac8] sm:$0xff]
        %v3093 = vld [vmem:[#allocation7 + $0xad0] sm:$0xff]
        %v3094 = vld [vmem:[#allocation7 + $0xad8] sm:$0xff]
        %v3095 = vld [vmem:[#allocation7 + $0xae0] sm:$0xff]
        %v3096 = vld [vmem:[#allocation7 + $0xae8] sm:$0xff]
        %v3097 = vld [vmem:[#allocation7 + $0xaf0] sm:$0xff]
        %v3098 = vld [vmem:[#allocation7 + $0xaf8] sm:$0xff]
        %v3099 = vld [vmem:[#allocation7 + $0xb00] sm:$0xff]
        %v3100 = vld [vmem:[#allocation7 + $0xb08] sm:$0xff]
        %v3101 = vld [vmem:[#allocation7 + $0xb10] sm:$0xff]
        %v3102 = vld [vmem:[#allocation7 + $0xb18] sm:$0xff]
        %v3103 = vld [vmem:[#allocation7 + $0xb20] sm:$0xff]
        %v3104 = vld [vmem:[#allocation7 + $0xb28] sm:$0xff]
        %v3105 = vld [vmem:[#allocation7 + $0xb30] sm:$0xff]
        %v3106 = vld [vmem:[#allocation7 + $0xb38] sm:$0xff]
        %v3107 = vld [vmem:[#allocation7 + $0xb40] sm:$0xff]
        %v3108 = vld [vmem:[#allocation7 + $0xb48] sm:$0xff]
        %v3109 = vld [vmem:[#allocation7 + $0xb50] sm:$0xff]
        %v3110 = vld [vmem:[#allocation7 + $0xb58] sm:$0xff]
        %v3111 = vld [vmem:[#allocation7 + $0xb60] sm:$0xff]
        %v3112 = vld [vmem:[#allocation7 + $0xb68] sm:$0xff]
        %v3113 = vld [vmem:[#allocation7 + $0xb70] sm:$0xff]
        %v3114 = vld [vmem:[#allocation7 + $0xb78] sm:$0xff]
        %v3115 = vld [vmem:[#allocation7 + $0xb80] sm:$0xff]
        %v3116 = vld [vmem:[#allocation7 + $0xb88] sm:$0xff]
        %v3117 = vld [vmem:[#allocation7 + $0xb90] sm:$0xff]
        %v3118 = vld [vmem:[#allocation7 + $0xb98] sm:$0xff]
        %v3119 = vld [vmem:[#allocation7 + $0xba0] sm:$0xff]
        %v3120 = vld [vmem:[#allocation7 + $0xba8] sm:$0xff]
        %v3121 = vld [vmem:[#allocation7 + $0xbb0] sm:$0xff]
        %v3122 = vld [vmem:[#allocation7 + $0xbb8] sm:$0xff]
        %v3123 = vld [vmem:[#allocation7 + $0xbc0] sm:$0xff]
        %v3124 = vld [vmem:[#allocation7 + $0xbc8] sm:$0xff]
        %v3125 = vld [vmem:[#allocation7 + $0xbd0] sm:$0xff]
        %v3126 = vld [vmem:[#allocation7 + $0xbd8] sm:$0xff]
        %v3127 = vld [vmem:[#allocation7 + $0xbe0] sm:$0xff]
        %v3128 = vld [vmem:[#allocation7 + $0xbe8] sm:$0xff]
        %v3129 = vld [vmem:[#allocation7 + $0xbf0] sm:$0xff]
        %v3130 = vld [vmem:[#allocation7 + $0xbf8] sm:$0xff]
        %v3131 = vld [vmem:[#allocation3] sm:$0xfe]
        %v3132 = vld [vmem:[#allocation3 + $0x8] sm:$0xfe]
        %v3133 = vld [vmem:[#allocation3 + $0x10] sm:$0xfe]
        %v3134 = vld [vmem:[#allocation3 + $0x18] sm:$0xfe]
        %v3135 = vld [vmem:[#allocation3 + $0x20] sm:$0xf]
        %v3136 = vld [vmem:[#allocation3 + $0x28] sm:$0xf]
        %v3137 = vld [vmem:[#allocation3 + $0x30] sm:$0xf]
        %v3138 = vld [vmem:[#allocation3 + $0x38] sm:$0xf]
        %s3139 = scalar_lea.vmem [#allocation7], 3072
        %v3140 = vld [vmem:[%s3139] sm:$0xff]
        %v3141 = vld [vmem:[%s3139 + $0x8] sm:$0xff]
        %v3142 = vld [vmem:[%s3139 + $0x10] sm:$0xff]
        %v3143 = vld [vmem:[%s3139 + $0x18] sm:$0xff]
        %v3144 = vld [vmem:[%s3139 + $0x20] sm:$0xff]
        %v3145 = vld [vmem:[%s3139 + $0x28] sm:$0xff]
        %v3146 = vld [vmem:[%s3139 + $0x30] sm:$0xff]
        %v3147 = vld [vmem:[%s3139 + $0x38] sm:$0xff]
        %v3148 = vld [vmem:[%s3139 + $0x40] sm:$0xff]
        %v3149 = vld [vmem:[%s3139 + $0x48] sm:$0xff]
        %v3150 = vld [vmem:[%s3139 + $0x50] sm:$0xff]
        %v3151 = vld [vmem:[%s3139 + $0x58] sm:$0xff]
        %v3152 = vld [vmem:[%s3139 + $0x60] sm:$0xff]
        %v3153 = vld [vmem:[%s3139 + $0x68] sm:$0xff]
        %v3154 = vld [vmem:[%s3139 + $0x70] sm:$0xff]
        %v3155 = vld [vmem:[%s3139 + $0x78] sm:$0xff]
        %v3156 = vld [vmem:[%s3139 + $0x80] sm:$0xff]
        %v3157 = vld [vmem:[%s3139 + $0x88] sm:$0xff]
        %v3158 = vld [vmem:[%s3139 + $0x90] sm:$0xff]
        %v3159 = vld [vmem:[%s3139 + $0x98] sm:$0xff]
        %v3160 = vld [vmem:[%s3139 + $0xa0] sm:$0xff]
        %v3161 = vld [vmem:[%s3139 + $0xa8] sm:$0xff]
        %v3162 = vld [vmem:[%s3139 + $0xb0] sm:$0xff]
        %v3163 = vld [vmem:[%s3139 + $0xb8] sm:$0xff]
        %v3164 = vld [vmem:[%s3139 + $0xc0] sm:$0xff]
        %v3165 = vld [vmem:[%s3139 + $0xc8] sm:$0xff]
        %v3166 = vld [vmem:[%s3139 + $0xd0] sm:$0xff]
        %v3167 = vld [vmem:[%s3139 + $0xd8] sm:$0xff]
        %v3168 = vld [vmem:[%s3139 + $0xe0] sm:$0xff]
        %v3169 = vld [vmem:[%s3139 + $0xe8] sm:$0xff]
        %v3170 = vld [vmem:[%s3139 + $0xf0] sm:$0xff]
        %v3171 = vld [vmem:[%s3139 + $0xf8] sm:$0xff]
        %v3172 = vld [vmem:[%s3139 + $0x100] sm:$0xff]
        %v3173 = vld [vmem:[%s3139 + $0x108] sm:$0xff]
        %v3174 = vld [vmem:[%s3139 + $0x110] sm:$0xff]
        %v3175 = vld [vmem:[%s3139 + $0x118] sm:$0xff]
        %v3176 = vld [vmem:[%s3139 + $0x120] sm:$0xff]
        %v3177 = vld [vmem:[%s3139 + $0x128] sm:$0xff]
        %v3178 = vld [vmem:[%s3139 + $0x130] sm:$0xff]
        %v3179 = vld [vmem:[%s3139 + $0x138] sm:$0xff]
        %v3180 = vld [vmem:[%s3139 + $0x140] sm:$0xff]
        %v3181 = vld [vmem:[%s3139 + $0x148] sm:$0xff]
        %v3182 = vld [vmem:[%s3139 + $0x150] sm:$0xff]
        %v3183 = vld [vmem:[%s3139 + $0x158] sm:$0xff]
        %v3184 = vld [vmem:[%s3139 + $0x160] sm:$0xff]
        %v3185 = vld [vmem:[%s3139 + $0x168] sm:$0xff]
        %v3186 = vld [vmem:[%s3139 + $0x170] sm:$0xff]
        %v3187 = vld [vmem:[%s3139 + $0x178] sm:$0xff]
        %v3188 = vld [vmem:[%s3139 + $0x180] sm:$0xff]
        %v3189 = vld [vmem:[%s3139 + $0x188] sm:$0xff]
        %v3190 = vld [vmem:[%s3139 + $0x190] sm:$0xff]
        %v3191 = vld [vmem:[%s3139 + $0x198] sm:$0xff]
        %v3192 = vld [vmem:[%s3139 + $0x1a0] sm:$0xff]
        %v3193 = vld [vmem:[%s3139 + $0x1a8] sm:$0xff]
        %v3194 = vld [vmem:[%s3139 + $0x1b0] sm:$0xff]
        %v3195 = vld [vmem:[%s3139 + $0x1b8] sm:$0xff]
        %v3196 = vld [vmem:[%s3139 + $0x1c0] sm:$0xff]
        %v3197 = vld [vmem:[%s3139 + $0x1c8] sm:$0xff]
        %v3198 = vld [vmem:[%s3139 + $0x1d0] sm:$0xff]
        %v3199 = vld [vmem:[%s3139 + $0x1d8] sm:$0xff]
        %v3200 = vld [vmem:[%s3139 + $0x1e0] sm:$0xff]
        %v3201 = vld [vmem:[%s3139 + $0x1e8] sm:$0xff]
        %v3202 = vld [vmem:[%s3139 + $0x1f0] sm:$0xff]
        %v3203 = vld [vmem:[%s3139 + $0x1f8] sm:$0xff]
        %v3204 = vld [vmem:[%s3139 + $0x200] sm:$0xff]
        %v3205 = vld [vmem:[%s3139 + $0x208] sm:$0xff]
        %v3206 = vld [vmem:[%s3139 + $0x210] sm:$0xff]
        %v3207 = vld [vmem:[%s3139 + $0x218] sm:$0xff]
        %v3208 = vld [vmem:[%s3139 + $0x220] sm:$0xff]
        %v3209 = vld [vmem:[%s3139 + $0x228] sm:$0xff]
        %v3210 = vld [vmem:[%s3139 + $0x230] sm:$0xff]
        %v3211 = vld [vmem:[%s3139 + $0x238] sm:$0xff]
        %v3212 = vld [vmem:[%s3139 + $0x240] sm:$0xff]
        %v3213 = vld [vmem:[%s3139 + $0x248] sm:$0xff]
        %v3214 = vld [vmem:[%s3139 + $0x250] sm:$0xff]
        %v3215 = vld [vmem:[%s3139 + $0x258] sm:$0xff]
        %v3216 = vld [vmem:[%s3139 + $0x260] sm:$0xff]
        %v3217 = vld [vmem:[%s3139 + $0x268] sm:$0xff]
        %v3218 = vld [vmem:[%s3139 + $0x270] sm:$0xff]
        %v3219 = vld [vmem:[%s3139 + $0x278] sm:$0xff]
        %v3220 = vld [vmem:[%s3139 + $0x280] sm:$0xff]
        %v3221 = vld [vmem:[%s3139 + $0x288] sm:$0xff]
        %v3222 = vld [vmem:[%s3139 + $0x290] sm:$0xff]
        %v3223 = vld [vmem:[%s3139 + $0x298] sm:$0xff]
        %v3224 = vld [vmem:[%s3139 + $0x2a0] sm:$0xff]
        %v3225 = vld [vmem:[%s3139 + $0x2a8] sm:$0xff]
        %v3226 = vld [vmem:[%s3139 + $0x2b0] sm:$0xff]
        %v3227 = vld [vmem:[%s3139 + $0x2b8] sm:$0xff]
        %v3228 = vld [vmem:[%s3139 + $0x2c0] sm:$0xff]
        %v3229 = vld [vmem:[%s3139 + $0x2c8] sm:$0xff]
        %v3230 = vld [vmem:[%s3139 + $0x2d0] sm:$0xff]
        %v3231 = vld [vmem:[%s3139 + $0x2d8] sm:$0xff]
        %v3232 = vld [vmem:[%s3139 + $0x2e0] sm:$0xff]
        %v3233 = vld [vmem:[%s3139 + $0x2e8] sm:$0xff]
        %v3234 = vld [vmem:[%s3139 + $0x2f0] sm:$0xff]
        %v3235 = vld [vmem:[%s3139 + $0x2f8] sm:$0xff]
        %v3236 = vld [vmem:[%s3139 + $0x300] sm:$0xff]
        %v3237 = vld [vmem:[%s3139 + $0x308] sm:$0xff]
        %v3238 = vld [vmem:[%s3139 + $0x310] sm:$0xff]
        %v3239 = vld [vmem:[%s3139 + $0x318] sm:$0xff]
        %v3240 = vld [vmem:[%s3139 + $0x320] sm:$0xff]
        %v3241 = vld [vmem:[%s3139 + $0x328] sm:$0xff]
        %v3242 = vld [vmem:[%s3139 + $0x330] sm:$0xff]
        %v3243 = vld [vmem:[%s3139 + $0x338] sm:$0xff]
        %v3244 = vld [vmem:[%s3139 + $0x340] sm:$0xff]
        %v3245 = vld [vmem:[%s3139 + $0x348] sm:$0xff]
        %v3246 = vld [vmem:[%s3139 + $0x350] sm:$0xff]
        %v3247 = vld [vmem:[%s3139 + $0x358] sm:$0xff]
        %v3248 = vld [vmem:[%s3139 + $0x360] sm:$0xff]
        %v3249 = vld [vmem:[%s3139 + $0x368] sm:$0xff]
        %v3250 = vld [vmem:[%s3139 + $0x370] sm:$0xff]
        %v3251 = vld [vmem:[%s3139 + $0x378] sm:$0xff]
        %v3252 = vld [vmem:[%s3139 + $0x380] sm:$0xff]
        %v3253 = vld [vmem:[%s3139 + $0x388] sm:$0xff]
        %v3254 = vld [vmem:[%s3139 + $0x390] sm:$0xff]
        %v3255 = vld [vmem:[%s3139 + $0x398] sm:$0xff]
        %v3256 = vld [vmem:[%s3139 + $0x3a0] sm:$0xff]
        %v3257 = vld [vmem:[%s3139 + $0x3a8] sm:$0xff]
        %v3258 = vld [vmem:[%s3139 + $0x3b0] sm:$0xff]
        %v3259 = vld [vmem:[%s3139 + $0x3b8] sm:$0xff]
        %v3260 = vld [vmem:[%s3139 + $0x3c0] sm:$0xff]
        %v3261 = vld [vmem:[%s3139 + $0x3c8] sm:$0xff]
        %v3262 = vld [vmem:[%s3139 + $0x3d0] sm:$0xff]
        %v3263 = vld [vmem:[%s3139 + $0x3d8] sm:$0xff]
        %v3264 = vld [vmem:[%s3139 + $0x3e0] sm:$0xff]
        %v3265 = vld [vmem:[%s3139 + $0x3e8] sm:$0xff]
        %v3266 = vld [vmem:[%s3139 + $0x3f0] sm:$0xff]
        %v3267 = vld [vmem:[%s3139 + $0x3f8] sm:$0xff]
        %v3268 = vld [vmem:[%s3139 + $0x400] sm:$0xff]
        %v3269 = vld [vmem:[%s3139 + $0x408] sm:$0xff]
        %v3270 = vld [vmem:[%s3139 + $0x410] sm:$0xff]
        %v3271 = vld [vmem:[%s3139 + $0x418] sm:$0xff]
        %v3272 = vld [vmem:[%s3139 + $0x420] sm:$0xff]
        %v3273 = vld [vmem:[%s3139 + $0x428] sm:$0xff]
        %v3274 = vld [vmem:[%s3139 + $0x430] sm:$0xff]
        %v3275 = vld [vmem:[%s3139 + $0x438] sm:$0xff]
        %v3276 = vld [vmem:[%s3139 + $0x440] sm:$0xff]
        %v3277 = vld [vmem:[%s3139 + $0x448] sm:$0xff]
        %v3278 = vld [vmem:[%s3139 + $0x450] sm:$0xff]
        %v3279 = vld [vmem:[%s3139 + $0x458] sm:$0xff]
        %v3280 = vld [vmem:[%s3139 + $0x460] sm:$0xff]
        %v3281 = vld [vmem:[%s3139 + $0x468] sm:$0xff]
        %v3282 = vld [vmem:[%s3139 + $0x470] sm:$0xff]
        %v3283 = vld [vmem:[%s3139 + $0x478] sm:$0xff]
        %v3284 = vld [vmem:[%s3139 + $0x480] sm:$0xff]
        %v3285 = vld [vmem:[%s3139 + $0x488] sm:$0xff]
        %v3286 = vld [vmem:[%s3139 + $0x490] sm:$0xff]
        %v3287 = vld [vmem:[%s3139 + $0x498] sm:$0xff]
        %v3288 = vld [vmem:[%s3139 + $0x4a0] sm:$0xff]
        %v3289 = vld [vmem:[%s3139 + $0x4a8] sm:$0xff]
        %v3290 = vld [vmem:[%s3139 + $0x4b0] sm:$0xff]
        %v3291 = vld [vmem:[%s3139 + $0x4b8] sm:$0xff]
        %v3292 = vld [vmem:[%s3139 + $0x4c0] sm:$0xff]
        %v3293 = vld [vmem:[%s3139 + $0x4c8] sm:$0xff]
        %v3294 = vld [vmem:[%s3139 + $0x4d0] sm:$0xff]
        %v3295 = vld [vmem:[%s3139 + $0x4d8] sm:$0xff]
        %v3296 = vld [vmem:[%s3139 + $0x4e0] sm:$0xff]
        %v3297 = vld [vmem:[%s3139 + $0x4e8] sm:$0xff]
        %v3298 = vld [vmem:[%s3139 + $0x4f0] sm:$0xff]
        %v3299 = vld [vmem:[%s3139 + $0x4f8] sm:$0xff]
        %v3300 = vld [vmem:[%s3139 + $0x500] sm:$0xff]
        %v3301 = vld [vmem:[%s3139 + $0x508] sm:$0xff]
        %v3302 = vld [vmem:[%s3139 + $0x510] sm:$0xff]
        %v3303 = vld [vmem:[%s3139 + $0x518] sm:$0xff]
        %v3304 = vld [vmem:[%s3139 + $0x520] sm:$0xff]
        %v3305 = vld [vmem:[%s3139 + $0x528] sm:$0xff]
        %v3306 = vld [vmem:[%s3139 + $0x530] sm:$0xff]
        %v3307 = vld [vmem:[%s3139 + $0x538] sm:$0xff]
        %v3308 = vld [vmem:[%s3139 + $0x540] sm:$0xff]
        %v3309 = vld [vmem:[%s3139 + $0x548] sm:$0xff]
        %v3310 = vld [vmem:[%s3139 + $0x550] sm:$0xff]
        %v3311 = vld [vmem:[%s3139 + $0x558] sm:$0xff]
        %v3312 = vld [vmem:[%s3139 + $0x560] sm:$0xff]
        %v3313 = vld [vmem:[%s3139 + $0x568] sm:$0xff]
        %v3314 = vld [vmem:[%s3139 + $0x570] sm:$0xff]
        %v3315 = vld [vmem:[%s3139 + $0x578] sm:$0xff]
        %v3316 = vld [vmem:[%s3139 + $0x580] sm:$0xff]
        %v3317 = vld [vmem:[%s3139 + $0x588] sm:$0xff]
        %v3318 = vld [vmem:[%s3139 + $0x590] sm:$0xff]
        %v3319 = vld [vmem:[%s3139 + $0x598] sm:$0xff]
        %v3320 = vld [vmem:[%s3139 + $0x5a0] sm:$0xff]
        %v3321 = vld [vmem:[%s3139 + $0x5a8] sm:$0xff]
        %v3322 = vld [vmem:[%s3139 + $0x5b0] sm:$0xff]
        %v3323 = vld [vmem:[%s3139 + $0x5b8] sm:$0xff]
        %v3324 = vld [vmem:[%s3139 + $0x5c0] sm:$0xff]
        %v3325 = vld [vmem:[%s3139 + $0x5c8] sm:$0xff]
        %v3326 = vld [vmem:[%s3139 + $0x5d0] sm:$0xff]
        %v3327 = vld [vmem:[%s3139 + $0x5d8] sm:$0xff]
        %v3328 = vld [vmem:[%s3139 + $0x5e0] sm:$0xff]
        %v3329 = vld [vmem:[%s3139 + $0x5e8] sm:$0xff]
        %v3330 = vld [vmem:[%s3139 + $0x5f0] sm:$0xff]
        %v3331 = vld [vmem:[%s3139 + $0x5f8] sm:$0xff]
        %v3332 = vld [vmem:[%s3139 + $0x600] sm:$0xff]
        %v3333 = vld [vmem:[%s3139 + $0x608] sm:$0xff]
        %v3334 = vld [vmem:[%s3139 + $0x610] sm:$0xff]
        %v3335 = vld [vmem:[%s3139 + $0x618] sm:$0xff]
        %v3336 = vld [vmem:[%s3139 + $0x620] sm:$0xff]
        %v3337 = vld [vmem:[%s3139 + $0x628] sm:$0xff]
        %v3338 = vld [vmem:[%s3139 + $0x630] sm:$0xff]
        %v3339 = vld [vmem:[%s3139 + $0x638] sm:$0xff]
        %v3340 = vld [vmem:[%s3139 + $0x640] sm:$0xff]
        %v3341 = vld [vmem:[%s3139 + $0x648] sm:$0xff]
        %v3342 = vld [vmem:[%s3139 + $0x650] sm:$0xff]
        %v3343 = vld [vmem:[%s3139 + $0x658] sm:$0xff]
        %v3344 = vld [vmem:[%s3139 + $0x660] sm:$0xff]
        %v3345 = vld [vmem:[%s3139 + $0x668] sm:$0xff]
        %v3346 = vld [vmem:[%s3139 + $0x670] sm:$0xff]
        %v3347 = vld [vmem:[%s3139 + $0x678] sm:$0xff]
        %v3348 = vld [vmem:[%s3139 + $0x680] sm:$0xff]
        %v3349 = vld [vmem:[%s3139 + $0x688] sm:$0xff]
        %v3350 = vld [vmem:[%s3139 + $0x690] sm:$0xff]
        %v3351 = vld [vmem:[%s3139 + $0x698] sm:$0xff]
        %v3352 = vld [vmem:[%s3139 + $0x6a0] sm:$0xff]
        %v3353 = vld [vmem:[%s3139 + $0x6a8] sm:$0xff]
        %v3354 = vld [vmem:[%s3139 + $0x6b0] sm:$0xff]
        %v3355 = vld [vmem:[%s3139 + $0x6b8] sm:$0xff]
        %v3356 = vld [vmem:[%s3139 + $0x6c0] sm:$0xff]
        %v3357 = vld [vmem:[%s3139 + $0x6c8] sm:$0xff]
        %v3358 = vld [vmem:[%s3139 + $0x6d0] sm:$0xff]
        %v3359 = vld [vmem:[%s3139 + $0x6d8] sm:$0xff]
        %v3360 = vld [vmem:[%s3139 + $0x6e0] sm:$0xff]
        %v3361 = vld [vmem:[%s3139 + $0x6e8] sm:$0xff]
        %v3362 = vld [vmem:[%s3139 + $0x6f0] sm:$0xff]
        %v3363 = vld [vmem:[%s3139 + $0x6f8] sm:$0xff]
        %v3364 = vld [vmem:[%s3139 + $0x700] sm:$0xff]
        %v3365 = vld [vmem:[%s3139 + $0x708] sm:$0xff]
        %v3366 = vld [vmem:[%s3139 + $0x710] sm:$0xff]
        %v3367 = vld [vmem:[%s3139 + $0x718] sm:$0xff]
        %v3368 = vld [vmem:[%s3139 + $0x720] sm:$0xff]
        %v3369 = vld [vmem:[%s3139 + $0x728] sm:$0xff]
        %v3370 = vld [vmem:[%s3139 + $0x730] sm:$0xff]
        %v3371 = vld [vmem:[%s3139 + $0x738] sm:$0xff]
        %v3372 = vld [vmem:[%s3139 + $0x740] sm:$0xff]
        %v3373 = vld [vmem:[%s3139 + $0x748] sm:$0xff]
        %v3374 = vld [vmem:[%s3139 + $0x750] sm:$0xff]
        %v3375 = vld [vmem:[%s3139 + $0x758] sm:$0xff]
        %v3376 = vld [vmem:[%s3139 + $0x760] sm:$0xff]
        %v3377 = vld [vmem:[%s3139 + $0x768] sm:$0xff]
        %v3378 = vld [vmem:[%s3139 + $0x770] sm:$0xff]
        %v3379 = vld [vmem:[%s3139 + $0x778] sm:$0xff]
        %v3380 = vld [vmem:[%s3139 + $0x780] sm:$0xff]
        %v3381 = vld [vmem:[%s3139 + $0x788] sm:$0xff]
        %v3382 = vld [vmem:[%s3139 + $0x790] sm:$0xff]
        %v3383 = vld [vmem:[%s3139 + $0x798] sm:$0xff]
        %v3384 = vld [vmem:[%s3139 + $0x7a0] sm:$0xff]
        %v3385 = vld [vmem:[%s3139 + $0x7a8] sm:$0xff]
        %v3386 = vld [vmem:[%s3139 + $0x7b0] sm:$0xff]
        %v3387 = vld [vmem:[%s3139 + $0x7b8] sm:$0xff]
        %v3388 = vld [vmem:[%s3139 + $0x7c0] sm:$0xff]
        %v3389 = vld [vmem:[%s3139 + $0x7c8] sm:$0xff]
        %v3390 = vld [vmem:[%s3139 + $0x7d0] sm:$0xff]
        %v3391 = vld [vmem:[%s3139 + $0x7d8] sm:$0xff]
        %v3392 = vld [vmem:[%s3139 + $0x7e0] sm:$0xff]
        %v3393 = vld [vmem:[%s3139 + $0x7e8] sm:$0xff]
        %v3394 = vld [vmem:[%s3139 + $0x7f0] sm:$0xff]
        %v3395 = vld [vmem:[%s3139 + $0x7f8] sm:$0xff]
        %v3396 = vld [vmem:[%s3139 + $0x800] sm:$0xff]
        %v3397 = vld [vmem:[%s3139 + $0x808] sm:$0xff]
        %v3398 = vld [vmem:[%s3139 + $0x810] sm:$0xff]
        %v3399 = vld [vmem:[%s3139 + $0x818] sm:$0xff]
        %v3400 = vld [vmem:[%s3139 + $0x820] sm:$0xff]
        %v3401 = vld [vmem:[%s3139 + $0x828] sm:$0xff]
        %v3402 = vld [vmem:[%s3139 + $0x830] sm:$0xff]
        %v3403 = vld [vmem:[%s3139 + $0x838] sm:$0xff]
        %v3404 = vld [vmem:[%s3139 + $0x840] sm:$0xff]
        %v3405 = vld [vmem:[%s3139 + $0x848] sm:$0xff]
        %v3406 = vld [vmem:[%s3139 + $0x850] sm:$0xff]
        %v3407 = vld [vmem:[%s3139 + $0x858] sm:$0xff]
        %v3408 = vld [vmem:[%s3139 + $0x860] sm:$0xff]
        %v3409 = vld [vmem:[%s3139 + $0x868] sm:$0xff]
        %v3410 = vld [vmem:[%s3139 + $0x870] sm:$0xff]
        %v3411 = vld [vmem:[%s3139 + $0x878] sm:$0xff]
        %v3412 = vld [vmem:[%s3139 + $0x880] sm:$0xff]
        %v3413 = vld [vmem:[%s3139 + $0x888] sm:$0xff]
        %v3414 = vld [vmem:[%s3139 + $0x890] sm:$0xff]
        %v3415 = vld [vmem:[%s3139 + $0x898] sm:$0xff]
        %v3416 = vld [vmem:[%s3139 + $0x8a0] sm:$0xff]
        %v3417 = vld [vmem:[%s3139 + $0x8a8] sm:$0xff]
        %v3418 = vld [vmem:[%s3139 + $0x8b0] sm:$0xff]
        %v3419 = vld [vmem:[%s3139 + $0x8b8] sm:$0xff]
        %v3420 = vld [vmem:[%s3139 + $0x8c0] sm:$0xff]
        %v3421 = vld [vmem:[%s3139 + $0x8c8] sm:$0xff]
        %v3422 = vld [vmem:[%s3139 + $0x8d0] sm:$0xff]
        %v3423 = vld [vmem:[%s3139 + $0x8d8] sm:$0xff]
        %v3424 = vld [vmem:[%s3139 + $0x8e0] sm:$0xff]
        %v3425 = vld [vmem:[%s3139 + $0x8e8] sm:$0xff]
        %v3426 = vld [vmem:[%s3139 + $0x8f0] sm:$0xff]
        %v3427 = vld [vmem:[%s3139 + $0x8f8] sm:$0xff]
        %v3428 = vld [vmem:[%s3139 + $0x900] sm:$0xff]
        %v3429 = vld [vmem:[%s3139 + $0x908] sm:$0xff]
        %v3430 = vld [vmem:[%s3139 + $0x910] sm:$0xff]
        %v3431 = vld [vmem:[%s3139 + $0x918] sm:$0xff]
        %v3432 = vld [vmem:[%s3139 + $0x920] sm:$0xff]
        %v3433 = vld [vmem:[%s3139 + $0x928] sm:$0xff]
        %v3434 = vld [vmem:[%s3139 + $0x930] sm:$0xff]
        %v3435 = vld [vmem:[%s3139 + $0x938] sm:$0xff]
        %v3436 = vld [vmem:[%s3139 + $0x940] sm:$0xff]
        %v3437 = vld [vmem:[%s3139 + $0x948] sm:$0xff]
        %v3438 = vld [vmem:[%s3139 + $0x950] sm:$0xff]
        %v3439 = vld [vmem:[%s3139 + $0x958] sm:$0xff]
        %v3440 = vld [vmem:[%s3139 + $0x960] sm:$0xff]
        %v3441 = vld [vmem:[%s3139 + $0x968] sm:$0xff]
        %v3442 = vld [vmem:[%s3139 + $0x970] sm:$0xff]
        %v3443 = vld [vmem:[%s3139 + $0x978] sm:$0xff]
        %v3444 = vld [vmem:[%s3139 + $0x980] sm:$0xff]
        %v3445 = vld [vmem:[%s3139 + $0x988] sm:$0xff]
        %v3446 = vld [vmem:[%s3139 + $0x990] sm:$0xff]
        %v3447 = vld [vmem:[%s3139 + $0x998] sm:$0xff]
        %v3448 = vld [vmem:[%s3139 + $0x9a0] sm:$0xff]
        %v3449 = vld [vmem:[%s3139 + $0x9a8] sm:$0xff]
        %v3450 = vld [vmem:[%s3139 + $0x9b0] sm:$0xff]
        %v3451 = vld [vmem:[%s3139 + $0x9b8] sm:$0xff]
        %v3452 = vld [vmem:[%s3139 + $0x9c0] sm:$0xff]
        %v3453 = vld [vmem:[%s3139 + $0x9c8] sm:$0xff]
        %v3454 = vld [vmem:[%s3139 + $0x9d0] sm:$0xff]
        %v3455 = vld [vmem:[%s3139 + $0x9d8] sm:$0xff]
        %v3456 = vld [vmem:[%s3139 + $0x9e0] sm:$0xff]
        %v3457 = vld [vmem:[%s3139 + $0x9e8] sm:$0xff]
        %v3458 = vld [vmem:[%s3139 + $0x9f0] sm:$0xff]
        %v3459 = vld [vmem:[%s3139 + $0x9f8] sm:$0xff]
        %v3460 = vld [vmem:[%s3139 + $0xa00] sm:$0xff]
        %v3461 = vld [vmem:[%s3139 + $0xa08] sm:$0xff]
        %v3462 = vld [vmem:[%s3139 + $0xa10] sm:$0xff]
        %v3463 = vld [vmem:[%s3139 + $0xa18] sm:$0xff]
        %v3464 = vld [vmem:[%s3139 + $0xa20] sm:$0xff]
        %v3465 = vld [vmem:[%s3139 + $0xa28] sm:$0xff]
        %v3466 = vld [vmem:[%s3139 + $0xa30] sm:$0xff]
        %v3467 = vld [vmem:[%s3139 + $0xa38] sm:$0xff]
        %v3468 = vld [vmem:[%s3139 + $0xa40] sm:$0xff]
        %v3469 = vld [vmem:[%s3139 + $0xa48] sm:$0xff]
        %v3470 = vld [vmem:[%s3139 + $0xa50] sm:$0xff]
        %v3471 = vld [vmem:[%s3139 + $0xa58] sm:$0xff]
        %v3472 = vld [vmem:[%s3139 + $0xa60] sm:$0xff]
        %v3473 = vld [vmem:[%s3139 + $0xa68] sm:$0xff]
        %v3474 = vld [vmem:[%s3139 + $0xa70] sm:$0xff]
        %v3475 = vld [vmem:[%s3139 + $0xa78] sm:$0xff]
        %v3476 = vld [vmem:[%s3139 + $0xa80] sm:$0xff]
        %v3477 = vld [vmem:[%s3139 + $0xa88] sm:$0xff]
        %v3478 = vld [vmem:[%s3139 + $0xa90] sm:$0xff]
        %v3479 = vld [vmem:[%s3139 + $0xa98] sm:$0xff]
        %v3480 = vld [vmem:[%s3139 + $0xaa0] sm:$0xff]
        %v3481 = vld [vmem:[%s3139 + $0xaa8] sm:$0xff]
        %v3482 = vld [vmem:[%s3139 + $0xab0] sm:$0xff]
        %v3483 = vld [vmem:[%s3139 + $0xab8] sm:$0xff]
        %v3484 = vld [vmem:[%s3139 + $0xac0] sm:$0xff]
        %v3485 = vld [vmem:[%s3139 + $0xac8] sm:$0xff]
        %v3486 = vld [vmem:[%s3139 + $0xad0] sm:$0xff]
        %v3487 = vld [vmem:[%s3139 + $0xad8] sm:$0xff]
        %v3488 = vld [vmem:[%s3139 + $0xae0] sm:$0xff]
        %v3489 = vld [vmem:[%s3139 + $0xae8] sm:$0xff]
        %v3490 = vld [vmem:[%s3139 + $0xaf0] sm:$0xff]
        %v3491 = vld [vmem:[%s3139 + $0xaf8] sm:$0xff]
        %v3492 = vld [vmem:[%s3139 + $0xb00] sm:$0xff]
        %v3493 = vld [vmem:[%s3139 + $0xb08] sm:$0xff]
        %v3494 = vld [vmem:[%s3139 + $0xb10] sm:$0xff]
        %v3495 = vld [vmem:[%s3139 + $0xb18] sm:$0xff]
        %v3496 = vld [vmem:[%s3139 + $0xb20] sm:$0xff]
        %v3497 = vld [vmem:[%s3139 + $0xb28] sm:$0xff]
        %v3498 = vld [vmem:[%s3139 + $0xb30] sm:$0xff]
        %v3499 = vld [vmem:[%s3139 + $0xb38] sm:$0xff]
        %v3500 = vld [vmem:[%s3139 + $0xb40] sm:$0xff]
        %v3501 = vld [vmem:[%s3139 + $0xb48] sm:$0xff]
        %v3502 = vld [vmem:[%s3139 + $0xb50] sm:$0xff]
        %v3503 = vld [vmem:[%s3139 + $0xb58] sm:$0xff]
        %v3504 = vld [vmem:[%s3139 + $0xb60] sm:$0xff]
        %v3505 = vld [vmem:[%s3139 + $0xb68] sm:$0xff]
        %v3506 = vld [vmem:[%s3139 + $0xb70] sm:$0xff]
        %v3507 = vld [vmem:[%s3139 + $0xb78] sm:$0xff]
        %v3508 = vld [vmem:[%s3139 + $0xb80] sm:$0xff]
        %v3509 = vld [vmem:[%s3139 + $0xb88] sm:$0xff]
        %v3510 = vld [vmem:[%s3139 + $0xb90] sm:$0xff]
        %v3511 = vld [vmem:[%s3139 + $0xb98] sm:$0xff]
        %v3512 = vld [vmem:[%s3139 + $0xba0] sm:$0xff]
        %v3513 = vld [vmem:[%s3139 + $0xba8] sm:$0xff]
        %v3514 = vld [vmem:[%s3139 + $0xbb0] sm:$0xff]
        %v3515 = vld [vmem:[%s3139 + $0xbb8] sm:$0xff]
        %v3516 = vld [vmem:[%s3139 + $0xbc0] sm:$0xff]
        %v3517 = vld [vmem:[%s3139 + $0xbc8] sm:$0xff]
        %v3518 = vld [vmem:[%s3139 + $0xbd0] sm:$0xff]
        %v3519 = vld [vmem:[%s3139 + $0xbd8] sm:$0xff]
        %v3520 = vld [vmem:[%s3139 + $0xbe0] sm:$0xff]
        %v3521 = vld [vmem:[%s3139 + $0xbe8] sm:$0xff]
        %v3522 = vld [vmem:[%s3139 + $0xbf0] sm:$0xff]
        %v3523 = vld [vmem:[%s3139 + $0xbf8] sm:$0xff]
        %vm3532 = vcmask 1046528
        %v3533 = vrot.slane %v3131, 1
        %v3534 = vrot.slane %v3135, 1
        %v3535 = vsel %vm3532, %v3533, %v3534
        %v3536 = vrot.slane %v3132, 1
        %v3537 = vrot.slane %v3136, 1
        %v3538 = vsel %vm3532, %v3536, %v3537
        %v3539 = vrot.slane %v3133, 1
        %v3540 = vrot.slane %v3137, 1
        %v3541 = vsel %vm3532, %v3539, %v3540
        %v3542 = vrot.slane %v3134, 1
        %v3543 = vrot.slane %v3138, 1
        %v3544 = vsel %vm3532, %v3542, %v3543
        %3553 = vmatprep.subr.mxu0 %v3141
        %3554 = vmatpush1.msra.mxu0 %v3140
        %3555 = vmatprep.subr.mxu0 %v3147
        %3556 = vmatpush1.msra.mxu0 %v3146
        %3557 = vmatprep.subr.mxu0 %v3153
        %3558 = vmatpush1.msra.mxu0 %v3152
        %3559 = vmatprep.subr.mxu0 %v3159
        %3560 = vmatpush1.msra.mxu0 %v3158
        %3561 = vmatprep.subr.mxu0 %v3165
        %3562 = vmatpush1.msra.mxu0 %v3164
        %3563 = vmatprep.subr.mxu0 %v3171
        %3564 = vmatpush1.msra.mxu0 %v3170
        %3565 = vmatprep.subr.mxu0 %v3177
        %3566 = vmatpush1.msra.mxu0 %v3176
        %3567 = vmatprep.subr.mxu0 %v3183
        %3568 = vmatpush1.msra.mxu0 %v3182
        %3569 = vmatprep.subr.mxu0 %v3189
        %3570 = vmatpush1.msra.mxu0 %v3188
        %3571 = vmatprep.subr.mxu0 %v3195
        %3572 = vmatpush1.msra.mxu0 %v3194
        %3573 = vmatprep.subr.mxu0 %v3201
        %3574 = vmatpush1.msra.mxu0 %v3200
        %3575 = vmatprep.subr.mxu0 %v3207
        %3576 = vmatpush1.msra.mxu0 %v3206
        %3577 = vmatprep.subr.mxu0 %v3213
        %3578 = vmatpush1.msra.mxu0 %v3212
        %3579 = vmatprep.subr.mxu0 %v3219
        %3580 = vmatpush1.msra.mxu0 %v3218
        %3581 = vmatprep.subr.mxu0 %v3225
        %3582 = vmatpush1.msra.mxu0 %v3224
        %3583 = vmatprep.subr.mxu0 %v3231
        %3584 = vmatpush1.msra.mxu0 %v3230
        %3585 = vmatprep.subr.mxu0 %v3237
        %3586 = vmatpush1.msra.mxu0 %v3236
        %3587 = vmatprep.subr.mxu0 %v3243
        %3588 = vmatpush1.msra.mxu0 %v3242
        %3589 = vmatprep.subr.mxu0 %v3249
        %3590 = vmatpush1.msra.mxu0 %v3248
        %3591 = vmatprep.subr.mxu0 %v3255
        %3592 = vmatpush1.msra.mxu0 %v3254
        %3593 = vmatprep.subr.mxu0 %v3261
        %3594 = vmatpush1.msra.mxu0 %v3260
        %3595 = vmatprep.subr.mxu0 %v3267
        %3596 = vmatpush1.msra.mxu0 %v3266
        %3597 = vmatprep.subr.mxu0 %v3273
        %3598 = vmatpush1.msra.mxu0 %v3272
        %3599 = vmatprep.subr.mxu0 %v3279
        %3600 = vmatpush1.msra.mxu0 %v3278
        %3601 = vmatprep.subr.mxu0 %v3285
        %3602 = vmatpush1.msra.mxu0 %v3284
        %3603 = vmatprep.subr.mxu0 %v3291
        %3604 = vmatpush1.msra.mxu0 %v3290
        %3605 = vmatprep.subr.mxu0 %v3297
        %3606 = vmatpush1.msra.mxu0 %v3296
        %3607 = vmatprep.subr.mxu0 %v3303
        %3608 = vmatpush1.msra.mxu0 %v3302
        %3609 = vmatprep.subr.mxu0 %v3309
        %3610 = vmatpush1.msra.mxu0 %v3308
        %3611 = vmatprep.subr.mxu0 %v3315
        %3612 = vmatpush1.msra.mxu0 %v3314
        %3613 = vmatprep.subr.mxu0 %v3321
        %3614 = vmatpush1.msra.mxu0 %v3320
        %3615 = vmatprep.subr.mxu0 %v3327
        %3616 = vmatpush1.msra.mxu0 %v3326
        %3617 = vmatprep.mubr.f32.mxu0 %v3538
        %3618 = vmatmul.mubr.f32.gmra.mrb[0].mxu0 %v3535
        %v3619 = vpop.f32.mrb[0].mxu0
        %v3620 = vadd.f32 0.0, %v3619
        %v3621 = vpop.f32.mrb[0].mxu0
        %v3622 = vadd.f32 0.0, %v3621
        %3623 = vmatprep.mubr.f32.mxu0 %v3537
        %3624 = vmatmul.mubr.f32.gmra.mrb[0].mxu0 %v3534
        %v3625 = vpop.f32.mrb[0].mxu0
        %v3626 = vadd.f32 0.0, %v3625
        %v3627 = vpop.f32.mrb[0].mxu0
        %v3628 = vadd.f32 0.0, %v3627
        %3629 = vdwg.mxu0
        %3630 = vmatprep.subr.mxu0 %v3333
        %3631 = vmatpush1.msra.mxu0 %v3332
        %3632 = vmatprep.subr.mxu0 %v3339
        %3633 = vmatpush1.msra.mxu0 %v3338
        %3634 = vmatprep.subr.mxu0 %v3345
        %3635 = vmatpush1.msra.mxu0 %v3344
        %3636 = vmatprep.subr.mxu0 %v3351
        %3637 = vmatpush1.msra.mxu0 %v3350
        %3638 = vmatprep.subr.mxu0 %v3357
        %3639 = vmatpush1.msra.mxu0 %v3356
        %3640 = vmatprep.subr.mxu0 %v3363
        %3641 = vmatpush1.msra.mxu0 %v3362
        %3642 = vmatprep.subr.mxu0 %v3369
        %3643 = vmatpush1.msra.mxu0 %v3368
        %3644 = vmatprep.subr.mxu0 %v3375
        %3645 = vmatpush1.msra.mxu0 %v3374
        %3646 = vmatprep.subr.mxu0 %v3381
        %3647 = vmatpush1.msra.mxu0 %v3380
        %3648 = vmatprep.subr.mxu0 %v3387
        %3649 = vmatpush1.msra.mxu0 %v3386
        %3650 = vmatprep.subr.mxu0 %v3393
        %3651 = vmatpush1.msra.mxu0 %v3392
        %3652 = vmatprep.subr.mxu0 %v3399
        %3653 = vmatpush1.msra.mxu0 %v3398
        %3654 = vmatprep.subr.mxu0 %v3405
        %3655 = vmatpush1.msra.mxu0 %v3404
        %3656 = vmatprep.subr.mxu0 %v3411
        %3657 = vmatpush1.msra.mxu0 %v3410
        %3658 = vmatprep.subr.mxu0 %v3417
        %3659 = vmatpush1.msra.mxu0 %v3416
        %3660 = vmatprep.subr.mxu0 %v3423
        %3661 = vmatpush1.msra.mxu0 %v3422
        %3662 = vmatprep.subr.mxu0 %v3429
        %3663 = vmatpush1.msra.mxu0 %v3428
        %3664 = vmatprep.subr.mxu0 %v3435
        %3665 = vmatpush1.msra.mxu0 %v3434
        %3666 = vmatprep.subr.mxu0 %v3441
        %3667 = vmatpush1.msra.mxu0 %v3440
        %3668 = vmatprep.subr.mxu0 %v3447
        %3669 = vmatpush1.msra.mxu0 %v3446
        %3670 = vmatprep.subr.mxu0 %v3453
        %3671 = vmatpush1.msra.mxu0 %v3452
        %3672 = vmatprep.subr.mxu0 %v3459
        %3673 = vmatpush1.msra.mxu0 %v3458
        %3674 = vmatprep.subr.mxu0 %v3465
        %3675 = vmatpush1.msra.mxu0 %v3464
        %3676 = vmatprep.subr.mxu0 %v3471
        %3677 = vmatpush1.msra.mxu0 %v3470
        %3678 = vmatprep.subr.mxu0 %v3477
        %3679 = vmatpush1.msra.mxu0 %v3476
        %3680 = vmatprep.subr.mxu0 %v3483
        %3681 = vmatpush1.msra.mxu0 %v3482
        %3682 = vmatprep.subr.mxu0 %v3489
        %3683 = vmatpush1.msra.mxu0 %v3488
        %3684 = vmatprep.subr.mxu0 %v3495
        %3685 = vmatpush1.msra.mxu0 %v3494
        %3686 = vmatprep.subr.mxu0 %v3501
        %3687 = vmatpush1.msra.mxu0 %v3500
        %3688 = vmatprep.subr.mxu0 %v3507
        %3689 = vmatpush1.msra.mxu0 %v3506
        %3690 = vmatprep.subr.mxu0 %v3513
        %3691 = vmatpush1.msra.mxu0 %v3512
        %3692 = vmatprep.subr.mxu0 %v3519
        %3693 = vmatpush1.msra.mxu0 %v3518
        %3694 = vmatprep.mubr.f32.mxu0 %v3544
        %3695 = vmatmul.mubr.f32.gmra.mrb[0].mxu0 %v3541
        %v3696 = vpop.f32.mrb[0].mxu0
        %v3697 = vadd.f32 %v3620, %v3696
        %v3698 = vpop.f32.mrb[0].mxu0
        %v3699 = vadd.f32 %v3622, %v3698
        %3700 = vmatprep.mubr.f32.mxu0 %v3543
        %3701 = vmatmul.mubr.f32.gmra.mrb[0].mxu0 %v3540
        %v3702 = vpop.f32.mrb[0].mxu0
        %v3703 = vadd.f32 %v3626, %v3702
        %v3704 = vpop.f32.mrb[0].mxu0
        %v3705 = vadd.f32 %v3628, %v3704
        %3706 = vdwg.mxu0
        %3707 = vmatprep.subr.mxu0 %v3143
        %3708 = vmatpush1.msra.mxu0 %v3142
        %3709 = vmatprep.subr.mxu0 %v3149
        %3710 = vmatpush1.msra.mxu0 %v3148
        %3711 = vmatprep.subr.mxu0 %v3155
        %3712 = vmatpush1.msra.mxu0 %v3154
        %3713 = vmatprep.subr.mxu0 %v3161
        %3714 = vmatpush1.msra.mxu0 %v3160
        %3715 = vmatprep.subr.mxu0 %v3167
        %3716 = vmatpush1.msra.mxu0 %v3166
        %3717 = vmatprep.subr.mxu0 %v3173
        %3718 = vmatpush1.msra.mxu0 %v3172
        %3719 = vmatprep.subr.mxu0 %v3179
        %3720 = vmatpush1.msra.mxu0 %v3178
        %3721 = vmatprep.subr.mxu0 %v3185
        %3722 = vmatpush1.msra.mxu0 %v3184
        %3723 = vmatprep.subr.mxu0 %v3191
        %3724 = vmatpush1.msra.mxu0 %v3190
        %3725 = vmatprep.subr.mxu0 %v3197
        %3726 = vmatpush1.msra.mxu0 %v3196
        %3727 = vmatprep.subr.mxu0 %v3203
        %3728 = vmatpush1.msra.mxu0 %v3202
        %3729 = vmatprep.subr.mxu0 %v3209
        %3730 = vmatpush1.msra.mxu0 %v3208
        %3731 = vmatprep.subr.mxu0 %v3215
        %3732 = vmatpush1.msra.mxu0 %v3214
        %3733 = vmatprep.subr.mxu0 %v3221
        %3734 = vmatpush1.msra.mxu0 %v3220
        %3735 = vmatprep.subr.mxu0 %v3227
        %3736 = vmatpush1.msra.mxu0 %v3226
        %3737 = vmatprep.subr.mxu0 %v3233
        %3738 = vmatpush1.msra.mxu0 %v3232
        %3739 = vmatprep.subr.mxu0 %v3239
        %3740 = vmatpush1.msra.mxu0 %v3238
        %3741 = vmatprep.subr.mxu0 %v3245
        %3742 = vmatpush1.msra.mxu0 %v3244
        %3743 = vmatprep.subr.mxu0 %v3251
        %3744 = vmatpush1.msra.mxu0 %v3250
        %3745 = vmatprep.subr.mxu0 %v3257
        %3746 = vmatpush1.msra.mxu0 %v3256
        %3747 = vmatprep.subr.mxu0 %v3263
        %3748 = vmatpush1.msra.mxu0 %v3262
        %3749 = vmatprep.subr.mxu0 %v3269
        %3750 = vmatpush1.msra.mxu0 %v3268
        %3751 = vmatprep.subr.mxu0 %v3275
        %3752 = vmatpush1.msra.mxu0 %v3274
        %3753 = vmatprep.subr.mxu0 %v3281
        %3754 = vmatpush1.msra.mxu0 %v3280
        %3755 = vmatprep.subr.mxu0 %v3287
        %3756 = vmatpush1.msra.mxu0 %v3286
        %3757 = vmatprep.subr.mxu0 %v3293
        %3758 = vmatpush1.msra.mxu0 %v3292
        %3759 = vmatprep.subr.mxu0 %v3299
        %3760 = vmatpush1.msra.mxu0 %v3298
        %3761 = vmatprep.subr.mxu0 %v3305
        %3762 = vmatpush1.msra.mxu0 %v3304
        %3763 = vmatprep.subr.mxu0 %v3311
        %3764 = vmatpush1.msra.mxu0 %v3310
        %3765 = vmatprep.subr.mxu0 %v3317
        %3766 = vmatpush1.msra.mxu0 %v3316
        %3767 = vmatprep.subr.mxu0 %v3323
        %3768 = vmatpush1.msra.mxu0 %v3322
        %3769 = vmatprep.subr.mxu0 %v3329
        %3770 = vmatpush1.msra.mxu0 %v3328
        %3771 = vmatprep.mubr.f32.mxu0 %v3538
        %3772 = vmatmul.mubr.f32.gmra.mrb[0].mxu0 %v3535
        %v3773 = vpop.f32.mrb[0].mxu0
        %v3774 = vadd.f32 0.0, %v3773
        %v3775 = vpop.f32.mrb[0].mxu0
        %v3776 = vadd.f32 0.0, %v3775
        %3777 = vmatprep.mubr.f32.mxu0 %v3537
        %3778 = vmatmul.mubr.f32.gmra.mrb[0].mxu0 %v3534
        %v3779 = vpop.f32.mrb[0].mxu0
        %v3780 = vadd.f32 0.0, %v3779
        %v3781 = vpop.f32.mrb[0].mxu0
        %v3782 = vadd.f32 0.0, %v3781
        %3783 = vdwg.mxu0
        %3784 = vmatprep.subr.mxu0 %v3335
        %3785 = vmatpush1.msra.mxu0 %v3334
        %3786 = vmatprep.subr.mxu0 %v3341
        %3787 = vmatpush1.msra.mxu0 %v3340
        %3788 = vmatprep.subr.mxu0 %v3347
        %3789 = vmatpush1.msra.mxu0 %v3346
        %3790 = vmatprep.subr.mxu0 %v3353
        %3791 = vmatpush1.msra.mxu0 %v3352
        %3792 = vmatprep.subr.mxu0 %v3359
        %3793 = vmatpush1.msra.mxu0 %v3358
        %3794 = vmatprep.subr.mxu0 %v3365
        %3795 = vmatpush1.msra.mxu0 %v3364
        %3796 = vmatprep.subr.mxu0 %v3371
        %3797 = vmatpush1.msra.mxu0 %v3370
        %3798 = vmatprep.subr.mxu0 %v3377
        %3799 = vmatpush1.msra.mxu0 %v3376
        %3800 = vmatprep.subr.mxu0 %v3383
        %3801 = vmatpush1.msra.mxu0 %v3382
        %3802 = vmatprep.subr.mxu0 %v3389
        %3803 = vmatpush1.msra.mxu0 %v3388
        %3804 = vmatprep.subr.mxu0 %v3395
        %3805 = vmatpush1.msra.mxu0 %v3394
        %3806 = vmatprep.subr.mxu0 %v3401
        %3807 = vmatpush1.msra.mxu0 %v3400
        %3808 = vmatprep.subr.mxu0 %v3407
        %3809 = vmatpush1.msra.mxu0 %v3406
        %3810 = vmatprep.subr.mxu0 %v3413
        %3811 = vmatpush1.msra.mxu0 %v3412
        %3812 = vmatprep.subr.mxu0 %v3419
        %3813 = vmatpush1.msra.mxu0 %v3418
        %3814 = vmatprep.subr.mxu0 %v3425
        %3815 = vmatpush1.msra.mxu0 %v3424
        %3816 = vmatprep.subr.mxu0 %v3431
        %3817 = vmatpush1.msra.mxu0 %v3430
        %3818 = vmatprep.subr.mxu0 %v3437
        %3819 = vmatpush1.msra.mxu0 %v3436
        %3820 = vmatprep.subr.mxu0 %v3443
        %3821 = vmatpush1.msra.mxu0 %v3442
        %3822 = vmatprep.subr.mxu0 %v3449
        %3823 = vmatpush1.msra.mxu0 %v3448
        %3824 = vmatprep.subr.mxu0 %v3455
        %3825 = vmatpush1.msra.mxu0 %v3454
        %3826 = vmatprep.subr.mxu0 %v3461
        %3827 = vmatpush1.msra.mxu0 %v3460
        %3828 = vmatprep.subr.mxu0 %v3467
        %3829 = vmatpush1.msra.mxu0 %v3466
        %3830 = vmatprep.subr.mxu0 %v3473
        %3831 = vmatpush1.msra.mxu0 %v3472
        %3832 = vmatprep.subr.mxu0 %v3479
        %3833 = vmatpush1.msra.mxu0 %v3478
        %3834 = vmatprep.subr.mxu0 %v3485
        %3835 = vmatpush1.msra.mxu0 %v3484
        %3836 = vmatprep.subr.mxu0 %v3491
        %3837 = vmatpush1.msra.mxu0 %v3490
        %3838 = vmatprep.subr.mxu0 %v3497
        %3839 = vmatpush1.msra.mxu0 %v3496
        %3840 = vmatprep.subr.mxu0 %v3503
        %3841 = vmatpush1.msra.mxu0 %v3502
        %3842 = vmatprep.subr.mxu0 %v3509
        %3843 = vmatpush1.msra.mxu0 %v3508
        %3844 = vmatprep.subr.mxu0 %v3515
        %3845 = vmatpush1.msra.mxu0 %v3514
        %3846 = vmatprep.subr.mxu0 %v3521
        %3847 = vmatpush1.msra.mxu0 %v3520
        %3848 = vmatprep.mubr.f32.mxu0 %v3544
        %3849 = vmatmul.mubr.f32.gmra.mrb[0].mxu0 %v3541
        %v3850 = vpop.f32.mrb[0].mxu0
        %v3851 = vadd.f32 %v3774, %v3850
        %v3852 = vpop.f32.mrb[0].mxu0
        %v3853 = vadd.f32 %v3776, %v3852
        %3854 = vmatprep.mubr.f32.mxu0 %v3543
        %3855 = vmatmul.mubr.f32.gmra.mrb[0].mxu0 %v3540
        %v3856 = vpop.f32.mrb[0].mxu0
        %v3857 = vadd.f32 %v3780, %v3856
        %v3858 = vpop.f32.mrb[0].mxu0
        %v3859 = vadd.f32 %v3782, %v3858
        %3860 = vdwg.mxu0
        %3861 = vmatprep.subr.mxu0 %v3145
        %3862 = vmatpush1.msra.mxu0 %v3144
        %3863 = vmatprep.subr.mxu0 %v3151
        %3864 = vmatpush1.msra.mxu0 %v3150
        %3865 = vmatprep.subr.mxu0 %v3157
        %3866 = vmatpush1.msra.mxu0 %v3156
        %3867 = vmatprep.subr.mxu0 %v3163
        %3868 = vmatpush1.msra.mxu0 %v3162
        %3869 = vmatprep.subr.mxu0 %v3169
        %3870 = vmatpush1.msra.mxu0 %v3168
        %3871 = vmatprep.subr.mxu0 %v3175
        %3872 = vmatpush1.msra.mxu0 %v3174
        %3873 = vmatprep.subr.mxu0 %v3181
        %3874 = vmatpush1.msra.mxu0 %v3180
        %3875 = vmatprep.subr.mxu0 %v3187
        %3876 = vmatpush1.msra.mxu0 %v3186
        %3877 = vmatprep.subr.mxu0 %v3193
        %3878 = vmatpush1.msra.mxu0 %v3192
        %3879 = vmatprep.subr.mxu0 %v3199
        %3880 = vmatpush1.msra.mxu0 %v3198
        %3881 = vmatprep.subr.mxu0 %v3205
        %3882 = vmatpush1.msra.mxu0 %v3204
        %3883 = vmatprep.subr.mxu0 %v3211
        %3884 = vmatpush1.msra.mxu0 %v3210
        %3885 = vmatprep.subr.mxu0 %v3217
        %3886 = vmatpush1.msra.mxu0 %v3216
        %3887 = vmatprep.subr.mxu0 %v3223
        %3888 = vmatpush1.msra.mxu0 %v3222
        %3889 = vmatprep.subr.mxu0 %v3229
        %3890 = vmatpush1.msra.mxu0 %v3228
        %3891 = vmatprep.subr.mxu0 %v3235
        %3892 = vmatpush1.msra.mxu0 %v3234
        %3893 = vmatprep.subr.mxu0 %v3241
        %3894 = vmatpush1.msra.mxu0 %v3240
        %3895 = vmatprep.subr.mxu0 %v3247
        %3896 = vmatpush1.msra.mxu0 %v3246
        %3897 = vmatprep.subr.mxu0 %v3253
        %3898 = vmatpush1.msra.mxu0 %v3252
        %3899 = vmatprep.subr.mxu0 %v3259
        %3900 = vmatpush1.msra.mxu0 %v3258
        %3901 = vmatprep.subr.mxu0 %v3265
        %3902 = vmatpush1.msra.mxu0 %v3264
        %3903 = vmatprep.subr.mxu0 %v3271
        %3904 = vmatpush1.msra.mxu0 %v3270
        %3905 = vmatprep.subr.mxu0 %v3277
        %3906 = vmatpush1.msra.mxu0 %v3276
        %3907 = vmatprep.subr.mxu0 %v3283
        %3908 = vmatpush1.msra.mxu0 %v3282
        %3909 = vmatprep.subr.mxu0 %v3289
        %3910 = vmatpush1.msra.mxu0 %v3288
        %3911 = vmatprep.subr.mxu0 %v3295
        %3912 = vmatpush1.msra.mxu0 %v3294
        %3913 = vmatprep.subr.mxu0 %v3301
        %3914 = vmatpush1.msra.mxu0 %v3300
        %3915 = vmatprep.subr.mxu0 %v3307
        %3916 = vmatpush1.msra.mxu0 %v3306
        %3917 = vmatprep.subr.mxu0 %v3313
        %3918 = vmatpush1.msra.mxu0 %v3312
        %3919 = vmatprep.subr.mxu0 %v3319
        %3920 = vmatpush1.msra.mxu0 %v3318
        %3921 = vmatprep.subr.mxu0 %v3325
        %3922 = vmatpush1.msra.mxu0 %v3324
        %3923 = vmatprep.subr.mxu0 %v3331
        %3924 = vmatpush1.msra.mxu0 %v3330
        %3925 = vmatprep.mubr.f32.mxu0 %v3538
        %3926 = vmatmul.mubr.f32.gmra.mrb[0].mxu0 %v3535
        %v3927 = vpop.f32.mrb[0].mxu0
        %v3928 = vadd.f32 0.0, %v3927
        %v3929 = vpop.f32.mrb[0].mxu0
        %v3930 = vadd.f32 0.0, %v3929
        %3931 = vmatprep.mubr.f32.mxu0 %v3537
        %3932 = vmatmul.mubr.f32.gmra.mrb[0].mxu0 %v3534
        %v3933 = vpop.f32.mrb[0].mxu0
        %v3934 = vadd.f32 0.0, %v3933
        %v3935 = vpop.f32.mrb[0].mxu0
        %v3936 = vadd.f32 0.0, %v3935
        %3937 = vdwg.mxu0
        %3938 = vmatprep.subr.mxu0 %v3337
        %3939 = vmatpush1.msra.mxu0 %v3336
        %3940 = vmatprep.subr.mxu0 %v3343
        %3941 = vmatpush1.msra.mxu0 %v3342
        %3942 = vmatprep.subr.mxu0 %v3349
        %3943 = vmatpush1.msra.mxu0 %v3348
        %3944 = vmatprep.subr.mxu0 %v3355
        %3945 = vmatpush1.msra.mxu0 %v3354
        %3946 = vmatprep.subr.mxu0 %v3361
        %3947 = vmatpush1.msra.mxu0 %v3360
        %3948 = vmatprep.subr.mxu0 %v3367
        %3949 = vmatpush1.msra.mxu0 %v3366
        %3950 = vmatprep.subr.mxu0 %v3373
        %3951 = vmatpush1.msra.mxu0 %v3372
        %3952 = vmatprep.subr.mxu0 %v3379
        %3953 = vmatpush1.msra.mxu0 %v3378
        %3954 = vmatprep.subr.mxu0 %v3385
        %3955 = vmatpush1.msra.mxu0 %v3384
        %3956 = vmatprep.subr.mxu0 %v3391
        %3957 = vmatpush1.msra.mxu0 %v3390
        %3958 = vmatprep.subr.mxu0 %v3397
        %3959 = vmatpush1.msra.mxu0 %v3396
        %3960 = vmatprep.subr.mxu0 %v3403
        %3961 = vmatpush1.msra.mxu0 %v3402
        %3962 = vmatprep.subr.mxu0 %v3409
        %3963 = vmatpush1.msra.mxu0 %v3408
        %3964 = vmatprep.subr.mxu0 %v3415
        %3965 = vmatpush1.msra.mxu0 %v3414
        %3966 = vmatprep.subr.mxu0 %v3421
        %3967 = vmatpush1.msra.mxu0 %v3420
        %3968 = vmatprep.subr.mxu0 %v3427
        %3969 = vmatpush1.msra.mxu0 %v3426
        %3970 = vmatprep.subr.mxu0 %v3433
        %3971 = vmatpush1.msra.mxu0 %v3432
        %3972 = vmatprep.subr.mxu0 %v3439
        %3973 = vmatpush1.msra.mxu0 %v3438
        %3974 = vmatprep.subr.mxu0 %v3445
        %3975 = vmatpush1.msra.mxu0 %v3444
        %3976 = vmatprep.subr.mxu0 %v3451
        %3977 = vmatpush1.msra.mxu0 %v3450
        %3978 = vmatprep.subr.mxu0 %v3457
        %3979 = vmatpush1.msra.mxu0 %v3456
        %3980 = vmatprep.subr.mxu0 %v3463
        %3981 = vmatpush1.msra.mxu0 %v3462
        %3982 = vmatprep.subr.mxu0 %v3469
        %3983 = vmatpush1.msra.mxu0 %v3468
        %3984 = vmatprep.subr.mxu0 %v3475
        %3985 = vmatpush1.msra.mxu0 %v3474
        %3986 = vmatprep.subr.mxu0 %v3481
        %3987 = vmatpush1.msra.mxu0 %v3480
        %3988 = vmatprep.subr.mxu0 %v3487
        %3989 = vmatpush1.msra.mxu0 %v3486
        %3990 = vmatprep.subr.mxu0 %v3493
        %3991 = vmatpush1.msra.mxu0 %v3492
        %3992 = vmatprep.subr.mxu0 %v3499
        %3993 = vmatpush1.msra.mxu0 %v3498
        %3994 = vmatprep.subr.mxu0 %v3505
        %3995 = vmatpush1.msra.mxu0 %v3504
        %3996 = vmatprep.subr.mxu0 %v3511
        %3997 = vmatpush1.msra.mxu0 %v3510
        %3998 = vmatprep.subr.mxu0 %v3517
        %3999 = vmatpush1.msra.mxu0 %v3516
        %4000 = vmatprep.subr.mxu0 %v3523
        %4001 = vmatpush1.msra.mxu0 %v3522
        %4002 = vmatprep.mubr.f32.mxu0 %v3544
        %4003 = vmatmul.mubr.f32.gmra.mrb[0].mxu0 %v3541
        %v4004 = vpop.f32.mrb[0].mxu0
        %v4005 = vadd.f32 %v3928, %v4004
        %v4006 = vpop.f32.mrb[0].mxu0
        %v4007 = vadd.f32 %v3930, %v4006
        %4008 = vmatprep.mubr.f32.mxu0 %v3543
        %4009 = vmatmul.mubr.f32.gmra.mrb[0].mxu0 %v3540
        %v4010 = vpop.f32.mrb[0].mxu0
        %v4011 = vadd.f32 %v3934, %v4010
        %v4012 = vpop.f32.mrb[0].mxu0
        %v4013 = vadd.f32 %v3936, %v4012
        %4014 = vdwg.mxu0
        %4015 = vmatprep.subr.mxu0 %v2748
        %4016 = vmatpush1.msra.mxu0 %v2747
        %4017 = vmatprep.subr.mxu0 %v2754
        %4018 = vmatpush1.msra.mxu0 %v2753
        %4019 = vmatprep.subr.mxu0 %v2760
        %4020 = vmatpush1.msra.mxu0 %v2759
        %4021 = vmatprep.subr.mxu0 %v2766
        %4022 = vmatpush1.msra.mxu0 %v2765
        %4023 = vmatprep.subr.mxu0 %v2772
        %4024 = vmatpush1.msra.mxu0 %v2771
        %4025 = vmatprep.subr.mxu0 %v2778
        %4026 = vmatpush1.msra.mxu0 %v2777
        %4027 = vmatprep.subr.mxu0 %v2784
        %4028 = vmatpush1.msra.mxu0 %v2783
        %4029 = vmatprep.subr.mxu0 %v2790
        %4030 = vmatpush1.msra.mxu0 %v2789
        %4031 = vmatprep.subr.mxu0 %v2796
        %4032 = vmatpush1.msra.mxu0 %v2795
        %4033 = vmatprep.subr.mxu0 %v2802
        %4034 = vmatpush1.msra.mxu0 %v2801
        %4035 = vmatprep.subr.mxu0 %v2808
        %4036 = vmatpush1.msra.mxu0 %v2807
        %4037 = vmatprep.subr.mxu0 %v2814
        %4038 = vmatpush1.msra.mxu0 %v2813
        %4039 = vmatprep.subr.mxu0 %v2820
        %4040 = vmatpush1.msra.mxu0 %v2819
        %4041 = vmatprep.subr.mxu0 %v2826
        %4042 = vmatpush1.msra.mxu0 %v2825
        %4043 = vmatprep.subr.mxu0 %v2832
        %4044 = vmatpush1.msra.mxu0 %v2831
        %4045 = vmatprep.subr.mxu0 %v2838
        %4046 = vmatpush1.msra.mxu0 %v2837
        %4047 = vmatprep.subr.mxu0 %v2844
        %4048 = vmatpush1.msra.mxu0 %v2843
        %4049 = vmatprep.subr.mxu0 %v2850
        %4050 = vmatpush1.msra.mxu0 %v2849
        %4051 = vmatprep.subr.mxu0 %v2856
        %4052 = vmatpush1.msra.mxu0 %v2855
        %4053 = vmatprep.subr.mxu0 %v2862
        %4054 = vmatpush1.msra.mxu0 %v2861
        %4055 = vmatprep.subr.mxu0 %v2868
        %4056 = vmatpush1.msra.mxu0 %v2867
        %4057 = vmatprep.subr.mxu0 %v2874
        %4058 = vmatpush1.msra.mxu0 %v2873
        %4059 = vmatprep.subr.mxu0 %v2880
        %4060 = vmatpush1.msra.mxu0 %v2879
        %4061 = vmatprep.subr.mxu0 %v2886
        %4062 = vmatpush1.msra.mxu0 %v2885
        %4063 = vmatprep.subr.mxu0 %v2892
        %4064 = vmatpush1.msra.mxu0 %v2891
        %4065 = vmatprep.subr.mxu0 %v2898
        %4066 = vmatpush1.msra.mxu0 %v2897
        %4067 = vmatprep.subr.mxu0 %v2904
        %4068 = vmatpush1.msra.mxu0 %v2903
        %4069 = vmatprep.subr.mxu0 %v2910
        %4070 = vmatpush1.msra.mxu0 %v2909
        %4071 = vmatprep.subr.mxu0 %v2916
        %4072 = vmatpush1.msra.mxu0 %v2915
        %4073 = vmatprep.subr.mxu0 %v2922
        %4074 = vmatpush1.msra.mxu0 %v2921
        %4075 = vmatprep.subr.mxu0 %v2928
        %4076 = vmatpush1.msra.mxu0 %v2927
        %4077 = vmatprep.subr.mxu0 %v2934
        %4078 = vmatpush1.msra.mxu0 %v2933
        %4079 = vmatprep.mubr.f32.mxu0 %v2740
        %4080 = vmatmul.mubr.f32.gmra.mrb[0].mxu0 %v2739
        %v4081 = vpop.f32.mrb[0].mxu0
        %v4082 = vadd.f32 %v3697, %v4081
        %v4083 = vpop.f32.mrb[0].mxu0
        %v4084 = vadd.f32 %v3699, %v4083
        %4085 = vmatprep.mubr.f32.mxu0 %v2744
        %4086 = vmatmul.mubr.f32.gmra.mrb[0].mxu0 %v2743
        %v4087 = vpop.f32.mrb[0].mxu0
        %v4088 = vadd.f32 %v3703, %v4087
        %v4089 = vpop.f32.mrb[0].mxu0
        %v4090 = vadd.f32 %v3705, %v4089
        %4091 = vdwg.mxu0
        %4092 = vmatprep.subr.mxu0 %v2940
        %4093 = vmatpush1.msra.mxu0 %v2939
        %4094 = vmatprep.subr.mxu0 %v2946
        %4095 = vmatpush1.msra.mxu0 %v2945
        %4096 = vmatprep.subr.mxu0 %v2952
        %4097 = vmatpush1.msra.mxu0 %v2951
        %4098 = vmatprep.subr.mxu0 %v2958
        %4099 = vmatpush1.msra.mxu0 %v2957
        %4100 = vmatprep.subr.mxu0 %v2964
        %4101 = vmatpush1.msra.mxu0 %v2963
        %4102 = vmatprep.subr.mxu0 %v2970
        %4103 = vmatpush1.msra.mxu0 %v2969
        %4104 = vmatprep.subr.mxu0 %v2976
        %4105 = vmatpush1.msra.mxu0 %v2975
        %4106 = vmatprep.subr.mxu0 %v2982
        %4107 = vmatpush1.msra.mxu0 %v2981
        %4108 = vmatprep.subr.mxu0 %v2988
        %4109 = vmatpush1.msra.mxu0 %v2987
        %4110 = vmatprep.subr.mxu0 %v2994
        %4111 = vmatpush1.msra.mxu0 %v2993
        %4112 = vmatprep.subr.mxu0 %v3000
        %4113 = vmatpush1.msra.mxu0 %v2999
        %4114 = vmatprep.subr.mxu0 %v3006
        %4115 = vmatpush1.msra.mxu0 %v3005
        %4116 = vmatprep.subr.mxu0 %v3012
        %4117 = vmatpush1.msra.mxu0 %v3011
        %4118 = vmatprep.subr.mxu0 %v3018
        %4119 = vmatpush1.msra.mxu0 %v3017
        %4120 = vmatprep.subr.mxu0 %v3024
        %4121 = vmatpush1.msra.mxu0 %v3023
        %4122 = vmatprep.subr.mxu0 %v3030
        %4123 = vmatpush1.msra.mxu0 %v3029
        %4124 = vmatprep.subr.mxu0 %v3036
        %4125 = vmatpush1.msra.mxu0 %v3035
        %4126 = vmatprep.subr.mxu0 %v3042
        %4127 = vmatpush1.msra.mxu0 %v3041
        %4128 = vmatprep.subr.mxu0 %v3048
        %4129 = vmatpush1.msra.mxu0 %v3047
        %4130 = vmatprep.subr.mxu0 %v3054
        %4131 = vmatpush1.msra.mxu0 %v3053
        %4132 = vmatprep.subr.mxu0 %v3060
        %4133 = vmatpush1.msra.mxu0 %v3059
        %4134 = vmatprep.subr.mxu0 %v3066
        %4135 = vmatpush1.msra.mxu0 %v3065
        %4136 = vmatprep.subr.mxu0 %v3072
        %4137 = vmatpush1.msra.mxu0 %v3071
        %4138 = vmatprep.subr.mxu0 %v3078
        %4139 = vmatpush1.msra.mxu0 %v3077
        %4140 = vmatprep.subr.mxu0 %v3084
        %4141 = vmatpush1.msra.mxu0 %v3083
        %4142 = vmatprep.subr.mxu0 %v3090
        %4143 = vmatpush1.msra.mxu0 %v3089
        %4144 = vmatprep.subr.mxu0 %v3096
        %4145 = vmatpush1.msra.mxu0 %v3095
        %4146 = vmatprep.subr.mxu0 %v3102
        %4147 = vmatpush1.msra.mxu0 %v3101
        %4148 = vmatprep.subr.mxu0 %v3108
        %4149 = vmatpush1.msra.mxu0 %v3107
        %4150 = vmatprep.subr.mxu0 %v3114
        %4151 = vmatpush1.msra.mxu0 %v3113
        %4152 = vmatprep.subr.mxu0 %v3120
        %4153 = vmatpush1.msra.mxu0 %v3119
        %4154 = vmatprep.subr.mxu0 %v3126
        %4155 = vmatpush1.msra.mxu0 %v3125
        %4156 = vmatprep.mubr.f32.mxu0 %v2742
        %4157 = vmatmul.mubr.f32.gmra.mrb[0].mxu0 %v2741
        %v4158 = vpop.f32.mrb[0].mxu0
        %v4159 = vadd.f32 %v4082, %v4158
        %v4160 = vpop.f32.mrb[0].mxu0
        %v4161 = vadd.f32 %v4084, %v4160
        %4162 = vmatprep.mubr.f32.mxu0 %v2746
        %4163 = vmatmul.mubr.f32.gmra.mrb[0].mxu0 %v2745
        %v4164 = vpop.f32.mrb[0].mxu0
        %v4165 = vadd.f32 %v4088, %v4164
        %v4166 = vpop.f32.mrb[0].mxu0
        %v4167 = vadd.f32 %v4090, %v4166
        %4168 = vdwg.mxu0
        %4169 = vmatprep.subr.mxu0 %v2750
        %4170 = vmatpush1.msra.mxu0 %v2749
        %4171 = vmatprep.subr.mxu0 %v2756
        %4172 = vmatpush1.msra.mxu0 %v2755
        %4173 = vmatprep.subr.mxu0 %v2762
        %4174 = vmatpush1.msra.mxu0 %v2761
        %4175 = vmatprep.subr.mxu0 %v2768
        %4176 = vmatpush1.msra.mxu0 %v2767
        %4177 = vmatprep.subr.mxu0 %v2774
        %4178 = vmatpush1.msra.mxu0 %v2773
        %4179 = vmatprep.subr.mxu0 %v2780
        %4180 = vmatpush1.msra.mxu0 %v2779
        %4181 = vmatprep.subr.mxu0 %v2786
        %4182 = vmatpush1.msra.mxu0 %v2785
        %4183 = vmatprep.subr.mxu0 %v2792
        %4184 = vmatpush1.msra.mxu0 %v2791
        %4185 = vmatprep.subr.mxu0 %v2798
        %4186 = vmatpush1.msra.mxu0 %v2797
        %4187 = vmatprep.subr.mxu0 %v2804
        %4188 = vmatpush1.msra.mxu0 %v2803
        %4189 = vmatprep.subr.mxu0 %v2810
        %4190 = vmatpush1.msra.mxu0 %v2809
        %4191 = vmatprep.subr.mxu0 %v2816
        %4192 = vmatpush1.msra.mxu0 %v2815
        %4193 = vmatprep.subr.mxu0 %v2822
        %4194 = vmatpush1.msra.mxu0 %v2821
        %4195 = vmatprep.subr.mxu0 %v2828
        %4196 = vmatpush1.msra.mxu0 %v2827
        %4197 = vmatprep.subr.mxu0 %v2834
        %4198 = vmatpush1.msra.mxu0 %v2833
        %4199 = vmatprep.subr.mxu0 %v2840
        %4200 = vmatpush1.msra.mxu0 %v2839
        %4201 = vmatprep.subr.mxu0 %v2846
        %4202 = vmatpush1.msra.mxu0 %v2845
        %4203 = vmatprep.subr.mxu0 %v2852
        %4204 = vmatpush1.msra.mxu0 %v2851
        %4205 = vmatprep.subr.mxu0 %v2858
        %4206 = vmatpush1.msra.mxu0 %v2857
        %4207 = vmatprep.subr.mxu0 %v2864
        %4208 = vmatpush1.msra.mxu0 %v2863
        %4209 = vmatprep.subr.mxu0 %v2870
        %4210 = vmatpush1.msra.mxu0 %v2869
        %4211 = vmatprep.subr.mxu0 %v2876
        %4212 = vmatpush1.msra.mxu0 %v2875
        %4213 = vmatprep.subr.mxu0 %v2882
        %4214 = vmatpush1.msra.mxu0 %v2881
        %4215 = vmatprep.subr.mxu0 %v2888
        %4216 = vmatpush1.msra.mxu0 %v2887
        %4217 = vmatprep.subr.mxu0 %v2894
        %4218 = vmatpush1.msra.mxu0 %v2893
        %4219 = vmatprep.subr.mxu0 %v2900
        %4220 = vmatpush1.msra.mxu0 %v2899
        %4221 = vmatprep.subr.mxu0 %v2906
        %4222 = vmatpush1.msra.mxu0 %v2905
        %4223 = vmatprep.subr.mxu0 %v2912
        %4224 = vmatpush1.msra.mxu0 %v2911
        %4225 = vmatprep.subr.mxu0 %v2918
        %4226 = vmatpush1.msra.mxu0 %v2917
        %4227 = vmatprep.subr.mxu0 %v2924
        %4228 = vmatpush1.msra.mxu0 %v2923
        %4229 = vmatprep.subr.mxu0 %v2930
        %4230 = vmatpush1.msra.mxu0 %v2929
        %4231 = vmatprep.subr.mxu0 %v2936
        %4232 = vmatpush1.msra.mxu0 %v2935
        %4233 = vmatprep.mubr.f32.mxu0 %v2740
        %4234 = vmatmul.mubr.f32.gmra.mrb[0].mxu0 %v2739
        %v4235 = vpop.f32.mrb[0].mxu0
        %v4236 = vadd.f32 %v3851, %v4235
        %v4237 = vpop.f32.mrb[0].mxu0
        %v4238 = vadd.f32 %v3853, %v4237
        %4239 = vmatprep.mubr.f32.mxu0 %v2744
        %4240 = vmatmul.mubr.f32.gmra.mrb[0].mxu0 %v2743
        %v4241 = vpop.f32.mrb[0].mxu0
        %v4242 = vadd.f32 %v3857, %v4241
        %v4243 = vpop.f32.mrb[0].mxu0
        %v4244 = vadd.f32 %v3859, %v4243
        %4245 = vdwg.mxu0
        %4246 = vmatprep.subr.mxu0 %v2942
        %4247 = vmatpush1.msra.mxu0 %v2941
        %4248 = vmatprep.subr.mxu0 %v2948
        %4249 = vmatpush1.msra.mxu0 %v2947
        %4250 = vmatprep.subr.mxu0 %v2954
        %4251 = vmatpush1.msra.mxu0 %v2953
        %4252 = vmatprep.subr.mxu0 %v2960
        %4253 = vmatpush1.msra.mxu0 %v2959
        %4254 = vmatprep.subr.mxu0 %v2966
        %4255 = vmatpush1.msra.mxu0 %v2965
        %4256 = vmatprep.subr.mxu0 %v2972
        %4257 = vmatpush1.msra.mxu0 %v2971
        %4258 = vmatprep.subr.mxu0 %v2978
        %4259 = vmatpush1.msra.mxu0 %v2977
        %4260 = vmatprep.subr.mxu0 %v2984
        %4261 = vmatpush1.msra.mxu0 %v2983
        %4262 = vmatprep.subr.mxu0 %v2990
        %4263 = vmatpush1.msra.mxu0 %v2989
        %4264 = vmatprep.subr.mxu0 %v2996
        %4265 = vmatpush1.msra.mxu0 %v2995
        %4266 = vmatprep.subr.mxu0 %v3002
        %4267 = vmatpush1.msra.mxu0 %v3001
        %4268 = vmatprep.subr.mxu0 %v3008
        %4269 = vmatpush1.msra.mxu0 %v3007
        %4270 = vmatprep.subr.mxu0 %v3014
        %4271 = vmatpush1.msra.mxu0 %v3013
        %4272 = vmatprep.subr.mxu0 %v3020
        %4273 = vmatpush1.msra.mxu0 %v3019
        %4274 = vmatprep.subr.mxu0 %v3026
        %4275 = vmatpush1.msra.mxu0 %v3025
        %4276 = vmatprep.subr.mxu0 %v3032
        %4277 = vmatpush1.msra.mxu0 %v3031
        %4278 = vmatprep.subr.mxu0 %v3038
        %4279 = vmatpush1.msra.mxu0 %v3037
        %4280 = vmatprep.subr.mxu0 %v3044
        %4281 = vmatpush1.msra.mxu0 %v3043
        %4282 = vmatprep.subr.mxu0 %v3050
        %4283 = vmatpush1.msra.mxu0 %v3049
        %4284 = vmatprep.subr.mxu0 %v3056
        %4285 = vmatpush1.msra.mxu0 %v3055
        %4286 = vmatprep.subr.mxu0 %v3062
        %4287 = vmatpush1.msra.mxu0 %v3061
        %4288 = vmatprep.subr.mxu0 %v3068
        %4289 = vmatpush1.msra.mxu0 %v3067
        %4290 = vmatprep.subr.mxu0 %v3074
        %4291 = vmatpush1.msra.mxu0 %v3073
        %4292 = vmatprep.subr.mxu0 %v3080
        %4293 = vmatpush1.msra.mxu0 %v3079
        %4294 = vmatprep.subr.mxu0 %v3086
        %4295 = vmatpush1.msra.mxu0 %v3085
        %4296 = vmatprep.subr.mxu0 %v3092
        %4297 = vmatpush1.msra.mxu0 %v3091
        %4298 = vmatprep.subr.mxu0 %v3098
        %4299 = vmatpush1.msra.mxu0 %v3097
        %4300 = vmatprep.subr.mxu0 %v3104
        %4301 = vmatpush1.msra.mxu0 %v3103
        %4302 = vmatprep.subr.mxu0 %v3110
        %4303 = vmatpush1.msra.mxu0 %v3109
        %4304 = vmatprep.subr.mxu0 %v3116
        %4305 = vmatpush1.msra.mxu0 %v3115
        %4306 = vmatprep.subr.mxu0 %v3122
        %4307 = vmatpush1.msra.mxu0 %v3121
        %4308 = vmatprep.subr.mxu0 %v3128
        %4309 = vmatpush1.msra.mxu0 %v3127
        %4310 = vmatprep.mubr.f32.mxu0 %v2742
        %4311 = vmatmul.mubr.f32.gmra.mrb[0].mxu0 %v2741
        %v4312 = vpop.f32.mrb[0].mxu0
        %v4313 = vadd.f32 %v4236, %v4312
        %v4314 = vpop.f32.mrb[0].mxu0
        %v4315 = vadd.f32 %v4238, %v4314
        %4316 = vmatprep.mubr.f32.mxu0 %v2746
        %4317 = vmatmul.mubr.f32.gmra.mrb[0].mxu0 %v2745
        %v4318 = vpop.f32.mrb[0].mxu0
        %v4319 = vadd.f32 %v4242, %v4318
        %v4320 = vpop.f32.mrb[0].mxu0
        %v4321 = vadd.f32 %v4244, %v4320
        %4322 = vdwg.mxu0
        %4323 = vmatprep.subr.mxu0 %v2752
        %4324 = vmatpush1.msra.mxu0 %v2751
        %4325 = vmatprep.subr.mxu0 %v2758
        %4326 = vmatpush1.msra.mxu0 %v2757
        %4327 = vmatprep.subr.mxu0 %v2764
        %4328 = vmatpush1.msra.mxu0 %v2763
        %4329 = vmatprep.subr.mxu0 %v2770
        %4330 = vmatpush1.msra.mxu0 %v2769
        %4331 = vmatprep.subr.mxu0 %v2776
        %4332 = vmatpush1.msra.mxu0 %v2775
        %4333 = vmatprep.subr.mxu0 %v2782
        %4334 = vmatpush1.msra.mxu0 %v2781
        %4335 = vmatprep.subr.mxu0 %v2788
        %4336 = vmatpush1.msra.mxu0 %v2787
        %4337 = vmatprep.subr.mxu0 %v2794
        %4338 = vmatpush1.msra.mxu0 %v2793
        %4339 = vmatprep.subr.mxu0 %v2800
        %4340 = vmatpush1.msra.mxu0 %v2799
        %4341 = vmatprep.subr.mxu0 %v2806
        %4342 = vmatpush1.msra.mxu0 %v2805
        %4343 = vmatprep.subr.mxu0 %v2812
        %4344 = vmatpush1.msra.mxu0 %v2811
        %4345 = vmatprep.subr.mxu0 %v2818
        %4346 = vmatpush1.msra.mxu0 %v2817
        %4347 = vmatprep.subr.mxu0 %v2824
        %4348 = vmatpush1.msra.mxu0 %v2823
        %4349 = vmatprep.subr.mxu0 %v2830
        %4350 = vmatpush1.msra.mxu0 %v2829
        %4351 = vmatprep.subr.mxu0 %v2836
        %4352 = vmatpush1.msra.mxu0 %v2835
        %4353 = vmatprep.subr.mxu0 %v2842
        %4354 = vmatpush1.msra.mxu0 %v2841
        %4355 = vmatprep.subr.mxu0 %v2848
        %4356 = vmatpush1.msra.mxu0 %v2847
        %4357 = vmatprep.subr.mxu0 %v2854
        %4358 = vmatpush1.msra.mxu0 %v2853
        %4359 = vmatprep.subr.mxu0 %v2860
        %4360 = vmatpush1.msra.mxu0 %v2859
        %4361 = vmatprep.subr.mxu0 %v2866
        %4362 = vmatpush1.msra.mxu0 %v2865
        %4363 = vmatprep.subr.mxu0 %v2872
        %4364 = vmatpush1.msra.mxu0 %v2871
        %4365 = vmatprep.subr.mxu0 %v2878
        %4366 = vmatpush1.msra.mxu0 %v2877
        %4367 = vmatprep.subr.mxu0 %v2884
        %4368 = vmatpush1.msra.mxu0 %v2883
        %4369 = vmatprep.subr.mxu0 %v2890
        %4370 = vmatpush1.msra.mxu0 %v2889
        %4371 = vmatprep.subr.mxu0 %v2896
        %4372 = vmatpush1.msra.mxu0 %v2895
        %4373 = vmatprep.subr.mxu0 %v2902
        %4374 = vmatpush1.msra.mxu0 %v2901
        %4375 = vmatprep.subr.mxu0 %v2908
        %4376 = vmatpush1.msra.mxu0 %v2907
        %4377 = vmatprep.subr.mxu0 %v2914
        %4378 = vmatpush1.msra.mxu0 %v2913
        %4379 = vmatprep.subr.mxu0 %v2920
        %4380 = vmatpush1.msra.mxu0 %v2919
        %4381 = vmatprep.subr.mxu0 %v2926
        %4382 = vmatpush1.msra.mxu0 %v2925
        %4383 = vmatprep.subr.mxu0 %v2932
        %4384 = vmatpush1.msra.mxu0 %v2931
        %4385 = vmatprep.subr.mxu0 %v2938
        %4386 = vmatpush1.msra.mxu0 %v2937
        %4387 = vmatprep.mubr.f32.mxu0 %v2740
        %4388 = vmatmul.mubr.f32.gmra.mrb[0].mxu0 %v2739
        %v4389 = vpop.f32.mrb[0].mxu0
        %v4390 = vadd.f32 %v4005, %v4389
        %v4391 = vpop.f32.mrb[0].mxu0
        %v4392 = vadd.f32 %v4007, %v4391
        %4393 = vmatprep.mubr.f32.mxu0 %v2744
        %4394 = vmatmul.mubr.f32.gmra.mrb[0].mxu0 %v2743
        %v4395 = vpop.f32.mrb[0].mxu0
        %v4396 = vadd.f32 %v4011, %v4395
        %v4397 = vpop.f32.mrb[0].mxu0
        %v4398 = vadd.f32 %v4013, %v4397
        %4399 = vdwg.mxu0
        %4400 = vmatprep.subr.mxu0 %v2944
        %4401 = vmatpush1.msra.mxu0 %v2943
        %4402 = vmatprep.subr.mxu0 %v2950
        %4403 = vmatpush1.msra.mxu0 %v2949
        %4404 = vmatprep.subr.mxu0 %v2956
        %4405 = vmatpush1.msra.mxu0 %v2955
        %4406 = vmatprep.subr.mxu0 %v2962
        %4407 = vmatpush1.msra.mxu0 %v2961
        %4408 = vmatprep.subr.mxu0 %v2968
        %4409 = vmatpush1.msra.mxu0 %v2967
        %4410 = vmatprep.subr.mxu0 %v2974
        %4411 = vmatpush1.msra.mxu0 %v2973
        %4412 = vmatprep.subr.mxu0 %v2980
        %4413 = vmatpush1.msra.mxu0 %v2979
        %4414 = vmatprep.subr.mxu0 %v2986
        %4415 = vmatpush1.msra.mxu0 %v2985
        %4416 = vmatprep.subr.mxu0 %v2992
        %4417 = vmatpush1.msra.mxu0 %v2991
        %4418 = vmatprep.subr.mxu0 %v2998
        %4419 = vmatpush1.msra.mxu0 %v2997
        %4420 = vmatprep.subr.mxu0 %v3004
        %4421 = vmatpush1.msra.mxu0 %v3003
        %4422 = vmatprep.subr.mxu0 %v3010
        %4423 = vmatpush1.msra.mxu0 %v3009
        %4424 = vmatprep.subr.mxu0 %v3016
        %4425 = vmatpush1.msra.mxu0 %v3015
        %4426 = vmatprep.subr.mxu0 %v3022
        %4427 = vmatpush1.msra.mxu0 %v3021
        %4428 = vmatprep.subr.mxu0 %v3028
        %4429 = vmatpush1.msra.mxu0 %v3027
        %4430 = vmatprep.subr.mxu0 %v3034
        %4431 = vmatpush1.msra.mxu0 %v3033
        %4432 = vmatprep.subr.mxu0 %v3040
        %4433 = vmatpush1.msra.mxu0 %v3039
        %4434 = vmatprep.subr.mxu0 %v3046
        %4435 = vmatpush1.msra.mxu0 %v3045
        %4436 = vmatprep.subr.mxu0 %v3052
        %4437 = vmatpush1.msra.mxu0 %v3051
        %4438 = vmatprep.subr.mxu0 %v3058
        %4439 = vmatpush1.msra.mxu0 %v3057
        %4440 = vmatprep.subr.mxu0 %v3064
        %4441 = vmatpush1.msra.mxu0 %v3063
        %4442 = vmatprep.subr.mxu0 %v3070
        %4443 = vmatpush1.msra.mxu0 %v3069
        %4444 = vmatprep.subr.mxu0 %v3076
        %4445 = vmatpush1.msra.mxu0 %v3075
        %4446 = vmatprep.subr.mxu0 %v3082
        %4447 = vmatpush1.msra.mxu0 %v3081
        %4448 = vmatprep.subr.mxu0 %v3088
        %4449 = vmatpush1.msra.mxu0 %v3087
        %4450 = vmatprep.subr.mxu0 %v3094
        %4451 = vmatpush1.msra.mxu0 %v3093
        %4452 = vmatprep.subr.mxu0 %v3100
        %4453 = vmatpush1.msra.mxu0 %v3099
        %4454 = vmatprep.subr.mxu0 %v3106
        %4455 = vmatpush1.msra.mxu0 %v3105
        %4456 = vmatprep.subr.mxu0 %v3112
        %4457 = vmatpush1.msra.mxu0 %v3111
        %4458 = vmatprep.subr.mxu0 %v3118
        %4459 = vmatpush1.msra.mxu0 %v3117
        %4460 = vmatprep.subr.mxu0 %v3124
        %4461 = vmatpush1.msra.mxu0 %v3123
        %4462 = vmatprep.subr.mxu0 %v3130
        %4463 = vmatpush1.msra.mxu0 %v3129
        %4464 = vmatprep.mubr.f32.mxu0 %v2742
        %4465 = vmatmul.mubr.f32.gmra.mrb[0].mxu0 %v2741
        %v4466 = vpop.f32.mrb[0].mxu0
        %v4467 = vadd.f32 %v4390, %v4466
        %v4468 = vpop.f32.mrb[0].mxu0
        %v4469 = vadd.f32 %v4392, %v4468
        %4470 = vmatprep.mubr.f32.mxu0 %v2746
        %4471 = vmatmul.mubr.f32.gmra.mrb[0].mxu0 %v2745
        %v4472 = vpop.f32.mrb[0].mxu0
        %v4473 = vadd.f32 %v4396, %v4472
        %v4474 = vpop.f32.mrb[0].mxu0
        %v4475 = vadd.f32 %v4398, %v4474
        %4476 = vdwg.mxu0
        %v4477 = vld [vmem:[#allocation3] sm:$0xfc]
        %v4478 = vld [vmem:[#allocation3 + $0x8] sm:$0xfc]
        %v4479 = vld [vmem:[#allocation3 + $0x10] sm:$0xfc]
        %v4480 = vld [vmem:[#allocation3 + $0x18] sm:$0xfc]
        %v4481 = vld [vmem:[#allocation3 + $0x20] sm:$0x1f]
        %v4482 = vld [vmem:[#allocation3 + $0x28] sm:$0x1f]
        %v4483 = vld [vmem:[#allocation3 + $0x30] sm:$0x1f]
        %v4484 = vld [vmem:[#allocation3 + $0x38] sm:$0x1f]
        %s4485 = scalar_lea.vmem [#allocation7], 6144
        %v4486 = vld [vmem:[%s4485] sm:$0xff]
        %v4487 = vld [vmem:[%s4485 + $0x8] sm:$0xff]
        %v4488 = vld [vmem:[%s4485 + $0x10] sm:$0xff]
        %v4489 = vld [vmem:[%s4485 + $0x18] sm:$0xff]
        %v4490 = vld [vmem:[%s4485 + $0x20] sm:$0xff]
        %v4491 = vld [vmem:[%s4485 + $0x28] sm:$0xff]
        %v4492 = vld [vmem:[%s4485 + $0x30] sm:$0xff]
        %v4493 = vld [vmem:[%s4485 + $0x38] sm:$0xff]
        %v4494 = vld [vmem:[%s4485 + $0x40] sm:$0xff]
        %v4495 = vld [vmem:[%s4485 + $0x48] sm:$0xff]
        %v4496 = vld [vmem:[%s4485 + $0x50] sm:$0xff]
        %v4497 = vld [vmem:[%s4485 + $0x58] sm:$0xff]
        %v4498 = vld [vmem:[%s4485 + $0x60] sm:$0xff]
        %v4499 = vld [vmem:[%s4485 + $0x68] sm:$0xff]
        %v4500 = vld [vmem:[%s4485 + $0x70] sm:$0xff]
        %v4501 = vld [vmem:[%s4485 + $0x78] sm:$0xff]
        %v4502 = vld [vmem:[%s4485 + $0x80] sm:$0xff]
        %v4503 = vld [vmem:[%s4485 + $0x88] sm:$0xff]
        %v4504 = vld [vmem:[%s4485 + $0x90] sm:$0xff]
        %v4505 = vld [vmem:[%s4485 + $0x98] sm:$0xff]
        %v4506 = vld [vmem:[%s4485 + $0xa0] sm:$0xff]
        %v4507 = vld [vmem:[%s4485 + $0xa8] sm:$0xff]
        %v4508 = vld [vmem:[%s4485 + $0xb0] sm:$0xff]
        %v4509 = vld [vmem:[%s4485 + $0xb8] sm:$0xff]
        %v4510 = vld [vmem:[%s4485 + $0xc0] sm:$0xff]
        %v4511 = vld [vmem:[%s4485 + $0xc8] sm:$0xff]
        %v4512 = vld [vmem:[%s4485 + $0xd0] sm:$0xff]
        %v4513 = vld [vmem:[%s4485 + $0xd8] sm:$0xff]
        %v4514 = vld [vmem:[%s4485 + $0xe0] sm:$0xff]
        %v4515 = vld [vmem:[%s4485 + $0xe8] sm:$0xff]
        %v4516 = vld [vmem:[%s4485 + $0xf0] sm:$0xff]
        %v4517 = vld [vmem:[%s4485 + $0xf8] sm:$0xff]
        %v4518 = vld [vmem:[%s4485 + $0x100] sm:$0xff]
        %v4519 = vld [vmem:[%s4485 + $0x108] sm:$0xff]
        %v4520 = vld [vmem:[%s4485 + $0x110] sm:$0xff]
        %v4521 = vld [vmem:[%s4485 + $0x118] sm:$0xff]
        %v4522 = vld [vmem:[%s4485 + $0x120] sm:$0xff]
        %v4523 = vld [vmem:[%s4485 + $0x128] sm:$0xff]
        %v4524 = vld [vmem:[%s4485 + $0x130] sm:$0xff]
        %v4525 = vld [vmem:[%s4485 + $0x138] sm:$0xff]
        %v4526 = vld [vmem:[%s4485 + $0x140] sm:$0xff]
        %v4527 = vld [vmem:[%s4485 + $0x148] sm:$0xff]
        %v4528 = vld [vmem:[%s4485 + $0x150] sm:$0xff]
        %v4529 = vld [vmem:[%s4485 + $0x158] sm:$0xff]
        %v4530 = vld [vmem:[%s4485 + $0x160] sm:$0xff]
        %v4531 = vld [vmem:[%s4485 + $0x168] sm:$0xff]
        %v4532 = vld [vmem:[%s4485 + $0x170] sm:$0xff]
        %v4533 = vld [vmem:[%s4485 + $0x178] sm:$0xff]
        %v4534 = vld [vmem:[%s4485 + $0x180] sm:$0xff]
        %v4535 = vld [vmem:[%s4485 + $0x188] sm:$0xff]
        %v4536 = vld [vmem:[%s4485 + $0x190] sm:$0xff]
        %v4537 = vld [vmem:[%s4485 + $0x198] sm:$0xff]
        %v4538 = vld [vmem:[%s4485 + $0x1a0] sm:$0xff]
        %v4539 = vld [vmem:[%s4485 + $0x1a8] sm:$0xff]
        %v4540 = vld [vmem:[%s4485 + $0x1b0] sm:$0xff]
        %v4541 = vld [vmem:[%s4485 + $0x1b8] sm:$0xff]
        %v4542 = vld [vmem:[%s4485 + $0x1c0] sm:$0xff]
        %v4543 = vld [vmem:[%s4485 + $0x1c8] sm:$0xff]
        %v4544 = vld [vmem:[%s4485 + $0x1d0] sm:$0xff]
        %v4545 = vld [vmem:[%s4485 + $0x1d8] sm:$0xff]
        %v4546 = vld [vmem:[%s4485 + $0x1e0] sm:$0xff]
        %v4547 = vld [vmem:[%s4485 + $0x1e8] sm:$0xff]
        %v4548 = vld [vmem:[%s4485 + $0x1f0] sm:$0xff]
        %v4549 = vld [vmem:[%s4485 + $0x1f8] sm:$0xff]
        %v4550 = vld [vmem:[%s4485 + $0x200] sm:$0xff]
        %v4551 = vld [vmem:[%s4485 + $0x208] sm:$0xff]
        %v4552 = vld [vmem:[%s4485 + $0x210] sm:$0xff]
        %v4553 = vld [vmem:[%s4485 + $0x218] sm:$0xff]
        %v4554 = vld [vmem:[%s4485 + $0x220] sm:$0xff]
        %v4555 = vld [vmem:[%s4485 + $0x228] sm:$0xff]
        %v4556 = vld [vmem:[%s4485 + $0x230] sm:$0xff]
        %v4557 = vld [vmem:[%s4485 + $0x238] sm:$0xff]
        %v4558 = vld [vmem:[%s4485 + $0x240] sm:$0xff]
        %v4559 = vld [vmem:[%s4485 + $0x248] sm:$0xff]
        %v4560 = vld [vmem:[%s4485 + $0x250] sm:$0xff]
        %v4561 = vld [vmem:[%s4485 + $0x258] sm:$0xff]
        %v4562 = vld [vmem:[%s4485 + $0x260] sm:$0xff]
        %v4563 = vld [vmem:[%s4485 + $0x268] sm:$0xff]
        %v4564 = vld [vmem:[%s4485 + $0x270] sm:$0xff]
        %v4565 = vld [vmem:[%s4485 + $0x278] sm:$0xff]
        %v4566 = vld [vmem:[%s4485 + $0x280] sm:$0xff]
        %v4567 = vld [vmem:[%s4485 + $0x288] sm:$0xff]
        %v4568 = vld [vmem:[%s4485 + $0x290] sm:$0xff]
        %v4569 = vld [vmem:[%s4485 + $0x298] sm:$0xff]
        %v4570 = vld [vmem:[%s4485 + $0x2a0] sm:$0xff]
        %v4571 = vld [vmem:[%s4485 + $0x2a8] sm:$0xff]
        %v4572 = vld [vmem:[%s4485 + $0x2b0] sm:$0xff]
        %v4573 = vld [vmem:[%s4485 + $0x2b8] sm:$0xff]
        %v4574 = vld [vmem:[%s4485 + $0x2c0] sm:$0xff]
        %v4575 = vld [vmem:[%s4485 + $0x2c8] sm:$0xff]
        %v4576 = vld [vmem:[%s4485 + $0x2d0] sm:$0xff]
        %v4577 = vld [vmem:[%s4485 + $0x2d8] sm:$0xff]
        %v4578 = vld [vmem:[%s4485 + $0x2e0] sm:$0xff]
        %v4579 = vld [vmem:[%s4485 + $0x2e8] sm:$0xff]
        %v4580 = vld [vmem:[%s4485 + $0x2f0] sm:$0xff]
        %v4581 = vld [vmem:[%s4485 + $0x2f8] sm:$0xff]
        %v4582 = vld [vmem:[%s4485 + $0x300] sm:$0xff]
        %v4583 = vld [vmem:[%s4485 + $0x308] sm:$0xff]
        %v4584 = vld [vmem:[%s4485 + $0x310] sm:$0xff]
        %v4585 = vld [vmem:[%s4485 + $0x318] sm:$0xff]
        %v4586 = vld [vmem:[%s4485 + $0x320] sm:$0xff]
        %v4587 = vld [vmem:[%s4485 + $0x328] sm:$0xff]
        %v4588 = vld [vmem:[%s4485 + $0x330] sm:$0xff]
        %v4589 = vld [vmem:[%s4485 + $0x338] sm:$0xff]
        %v4590 = vld [vmem:[%s4485 + $0x340] sm:$0xff]
        %v4591 = vld [vmem:[%s4485 + $0x348] sm:$0xff]
        %v4592 = vld [vmem:[%s4485 + $0x350] sm:$0xff]
        %v4593 = vld [vmem:[%s4485 + $0x358] sm:$0xff]
        %v4594 = vld [vmem:[%s4485 + $0x360] sm:$0xff]
        %v4595 = vld [vmem:[%s4485 + $0x368] sm:$0xff]
        %v4596 = vld [vmem:[%s4485 + $0x370] sm:$0xff]
        %v4597 = vld [vmem:[%s4485 + $0x378] sm:$0xff]
        %v4598 = vld [vmem:[%s4485 + $0x380] sm:$0xff]
        %v4599 = vld [vmem:[%s4485 + $0x388] sm:$0xff]
        %v4600 = vld [vmem:[%s4485 + $0x390] sm:$0xff]
        %v4601 = vld [vmem:[%s4485 + $0x398] sm:$0xff]
        %v4602 = vld [vmem:[%s4485 + $0x3a0] sm:$0xff]
        %v4603 = vld [vmem:[%s4485 + $0x3a8] sm:$0xff]
        %v4604 = vld [vmem:[%s4485 + $0x3b0] sm:$0xff]
        %v4605 = vld [vmem:[%s4485 + $0x3b8] sm:$0xff]
        %v4606 = vld [vmem:[%s4485 + $0x3c0] sm:$0xff]
        %v4607 = vld [vmem:[%s4485 + $0x3c8] sm:$0xff]
        %v4608 = vld [vmem:[%s4485 + $0x3d0] sm:$0xff]
        %v4609 = vld [vmem:[%s4485 + $0x3d8] sm:$0xff]
        %v4610 = vld [vmem:[%s4485 + $0x3e0] sm:$0xff]
        %v4611 = vld [vmem:[%s4485 + $0x3e8] sm:$0xff]
        %v4612 = vld [vmem:[%s4485 + $0x3f0] sm:$0xff]
        %v4613 = vld [vmem:[%s4485 + $0x3f8] sm:$0xff]
        %v4614 = vld [vmem:[%s4485 + $0x400] sm:$0xff]
        %v4615 = vld [vmem:[%s4485 + $0x408] sm:$0xff]
        %v4616 = vld [vmem:[%s4485 + $0x410] sm:$0xff]
        %v4617 = vld [vmem:[%s4485 + $0x418] sm:$0xff]
        %v4618 = vld [vmem:[%s4485 + $0x420] sm:$0xff]
        %v4619 = vld [vmem:[%s4485 + $0x428] sm:$0xff]
        %v4620 = vld [vmem:[%s4485 + $0x430] sm:$0xff]
        %v4621 = vld [vmem:[%s4485 + $0x438] sm:$0xff]
        %v4622 = vld [vmem:[%s4485 + $0x440] sm:$0xff]
        %v4623 = vld [vmem:[%s4485 + $0x448] sm:$0xff]
        %v4624 = vld [vmem:[%s4485 + $0x450] sm:$0xff]
        %v4625 = vld [vmem:[%s4485 + $0x458] sm:$0xff]
        %v4626 = vld [vmem:[%s4485 + $0x460] sm:$0xff]
        %v4627 = vld [vmem:[%s4485 + $0x468] sm:$0xff]
        %v4628 = vld [vmem:[%s4485 + $0x470] sm:$0xff]
        %v4629 = vld [vmem:[%s4485 + $0x478] sm:$0xff]
        %v4630 = vld [vmem:[%s4485 + $0x480] sm:$0xff]
        %v4631 = vld [vmem:[%s4485 + $0x488] sm:$0xff]
        %v4632 = vld [vmem:[%s4485 + $0x490] sm:$0xff]
        %v4633 = vld [vmem:[%s4485 + $0x498] sm:$0xff]
        %v4634 = vld [vmem:[%s4485 + $0x4a0] sm:$0xff]
        %v4635 = vld [vmem:[%s4485 + $0x4a8] sm:$0xff]
        %v4636 = vld [vmem:[%s4485 + $0x4b0] sm:$0xff]
        %v4637 = vld [vmem:[%s4485 + $0x4b8] sm:$0xff]
        %v4638 = vld [vmem:[%s4485 + $0x4c0] sm:$0xff]
        %v4639 = vld [vmem:[%s4485 + $0x4c8] sm:$0xff]
        %v4640 = vld [vmem:[%s4485 + $0x4d0] sm:$0xff]
        %v4641 = vld [vmem:[%s4485 + $0x4d8] sm:$0xff]
        %v4642 = vld [vmem:[%s4485 + $0x4e0] sm:$0xff]
        %v4643 = vld [vmem:[%s4485 + $0x4e8] sm:$0xff]
        %v4644 = vld [vmem:[%s4485 + $0x4f0] sm:$0xff]
        %v4645 = vld [vmem:[%s4485 + $0x4f8] sm:$0xff]
        %v4646 = vld [vmem:[%s4485 + $0x500] sm:$0xff]
        %v4647 = vld [vmem:[%s4485 + $0x508] sm:$0xff]
        %v4648 = vld [vmem:[%s4485 + $0x510] sm:$0xff]
        %v4649 = vld [vmem:[%s4485 + $0x518] sm:$0xff]
        %v4650 = vld [vmem:[%s4485 + $0x520] sm:$0xff]
        %v4651 = vld [vmem:[%s4485 + $0x528] sm:$0xff]
        %v4652 = vld [vmem:[%s4485 + $0x530] sm:$0xff]
        %v4653 = vld [vmem:[%s4485 + $0x538] sm:$0xff]
        %v4654 = vld [vmem:[%s4485 + $0x540] sm:$0xff]
        %v4655 = vld [vmem:[%s4485 + $0x548] sm:$0xff]
        %v4656 = vld [vmem:[%s4485 + $0x550] sm:$0xff]
        %v4657 = vld [vmem:[%s4485 + $0x558] sm:$0xff]
        %v4658 = vld [vmem:[%s4485 + $0x560] sm:$0xff]
        %v4659 = vld [vmem:[%s4485 + $0x568] sm:$0xff]
        %v4660 = vld [vmem:[%s4485 + $0x570] sm:$0xff]
        %v4661 = vld [vmem:[%s4485 + $0x578] sm:$0xff]
        %v4662 = vld [vmem:[%s4485 + $0x580] sm:$0xff]
        %v4663 = vld [vmem:[%s4485 + $0x588] sm:$0xff]
        %v4664 = vld [vmem:[%s4485 + $0x590] sm:$0xff]
        %v4665 = vld [vmem:[%s4485 + $0x598] sm:$0xff]
        %v4666 = vld [vmem:[%s4485 + $0x5a0] sm:$0xff]
        %v4667 = vld [vmem:[%s4485 + $0x5a8] sm:$0xff]
        %v4668 = vld [vmem:[%s4485 + $0x5b0] sm:$0xff]
        %v4669 = vld [vmem:[%s4485 + $0x5b8] sm:$0xff]
        %v4670 = vld [vmem:[%s4485 + $0x5c0] sm:$0xff]
        %v4671 = vld [vmem:[%s4485 + $0x5c8] sm:$0xff]
        %v4672 = vld [vmem:[%s4485 + $0x5d0] sm:$0xff]
        %v4673 = vld [vmem:[%s4485 + $0x5d8] sm:$0xff]
        %v4674 = vld [vmem:[%s4485 + $0x5e0] sm:$0xff]
        %v4675 = vld [vmem:[%s4485 + $0x5e8] sm:$0xff]
        %v4676 = vld [vmem:[%s4485 + $0x5f0] sm:$0xff]
        %v4677 = vld [vmem:[%s4485 + $0x5f8] sm:$0xff]
        %v4678 = vld [vmem:[%s4485 + $0x600] sm:$0xff]
        %v4679 = vld [vmem:[%s4485 + $0x608] sm:$0xff]
        %v4680 = vld [vmem:[%s4485 + $0x610] sm:$0xff]
        %v4681 = vld [vmem:[%s4485 + $0x618] sm:$0xff]
        %v4682 = vld [vmem:[%s4485 + $0x620] sm:$0xff]
        %v4683 = vld [vmem:[%s4485 + $0x628] sm:$0xff]
        %v4684 = vld [vmem:[%s4485 + $0x630] sm:$0xff]
        %v4685 = vld [vmem:[%s4485 + $0x638] sm:$0xff]
        %v4686 = vld [vmem:[%s4485 + $0x640] sm:$0xff]
        %v4687 = vld [vmem:[%s4485 + $0x648] sm:$0xff]
        %v4688 = vld [vmem:[%s4485 + $0x650] sm:$0xff]
        %v4689 = vld [vmem:[%s4485 + $0x658] sm:$0xff]
        %v4690 = vld [vmem:[%s4485 + $0x660] sm:$0xff]
        %v4691 = vld [vmem:[%s4485 + $0x668] sm:$0xff]
        %v4692 = vld [vmem:[%s4485 + $0x670] sm:$0xff]
        %v4693 = vld [vmem:[%s4485 + $0x678] sm:$0xff]
        %v4694 = vld [vmem:[%s4485 + $0x680] sm:$0xff]
        %v4695 = vld [vmem:[%s4485 + $0x688] sm:$0xff]
        %v4696 = vld [vmem:[%s4485 + $0x690] sm:$0xff]
        %v4697 = vld [vmem:[%s4485 + $0x698] sm:$0xff]
        %v4698 = vld [vmem:[%s4485 + $0x6a0] sm:$0xff]
        %v4699 = vld [vmem:[%s4485 + $0x6a8] sm:$0xff]
        %v4700 = vld [vmem:[%s4485 + $0x6b0] sm:$0xff]
        %v4701 = vld [vmem:[%s4485 + $0x6b8] sm:$0xff]
        %v4702 = vld [vmem:[%s4485 + $0x6c0] sm:$0xff]
        %v4703 = vld [vmem:[%s4485 + $0x6c8] sm:$0xff]
        %v4704 = vld [vmem:[%s4485 + $0x6d0] sm:$0xff]
        %v4705 = vld [vmem:[%s4485 + $0x6d8] sm:$0xff]
        %v4706 = vld [vmem:[%s4485 + $0x6e0] sm:$0xff]
        %v4707 = vld [vmem:[%s4485 + $0x6e8] sm:$0xff]
        %v4708 = vld [vmem:[%s4485 + $0x6f0] sm:$0xff]
        %v4709 = vld [vmem:[%s4485 + $0x6f8] sm:$0xff]
        %v4710 = vld [vmem:[%s4485 + $0x700] sm:$0xff]
        %v4711 = vld [vmem:[%s4485 + $0x708] sm:$0xff]
        %v4712 = vld [vmem:[%s4485 + $0x710] sm:$0xff]
        %v4713 = vld [vmem:[%s4485 + $0x718] sm:$0xff]
        %v4714 = vld [vmem:[%s4485 + $0x720] sm:$0xff]
        %v4715 = vld [vmem:[%s4485 + $0x728] sm:$0xff]
        %v4716 = vld [vmem:[%s4485 + $0x730] sm:$0xff]
        %v4717 = vld [vmem:[%s4485 + $0x738] sm:$0xff]
        %v4718 = vld [vmem:[%s4485 + $0x740] sm:$0xff]
        %v4719 = vld [vmem:[%s4485 + $0x748] sm:$0xff]
        %v4720 = vld [vmem:[%s4485 + $0x750] sm:$0xff]
        %v4721 = vld [vmem:[%s4485 + $0x758] sm:$0xff]
        %v4722 = vld [vmem:[%s4485 + $0x760] sm:$0xff]
        %v4723 = vld [vmem:[%s4485 + $0x768] sm:$0xff]
        %v4724 = vld [vmem:[%s4485 + $0x770] sm:$0xff]
        %v4725 = vld [vmem:[%s4485 + $0x778] sm:$0xff]
        %v4726 = vld [vmem:[%s4485 + $0x780] sm:$0xff]
        %v4727 = vld [vmem:[%s4485 + $0x788] sm:$0xff]
        %v4728 = vld [vmem:[%s4485 + $0x790] sm:$0xff]
        %v4729 = vld [vmem:[%s4485 + $0x798] sm:$0xff]
        %v4730 = vld [vmem:[%s4485 + $0x7a0] sm:$0xff]
        %v4731 = vld [vmem:[%s4485 + $0x7a8] sm:$0xff]
        %v4732 = vld [vmem:[%s4485 + $0x7b0] sm:$0xff]
        %v4733 = vld [vmem:[%s4485 + $0x7b8] sm:$0xff]
        %v4734 = vld [vmem:[%s4485 + $0x7c0] sm:$0xff]
        %v4735 = vld [vmem:[%s4485 + $0x7c8] sm:$0xff]
        %v4736 = vld [vmem:[%s4485 + $0x7d0] sm:$0xff]
        %v4737 = vld [vmem:[%s4485 + $0x7d8] sm:$0xff]
        %v4738 = vld [vmem:[%s4485 + $0x7e0] sm:$0xff]
        %v4739 = vld [vmem:[%s4485 + $0x7e8] sm:$0xff]
        %v4740 = vld [vmem:[%s4485 + $0x7f0] sm:$0xff]
        %v4741 = vld [vmem:[%s4485 + $0x7f8] sm:$0xff]
        %v4742 = vld [vmem:[%s4485 + $0x800] sm:$0xff]
        %v4743 = vld [vmem:[%s4485 + $0x808] sm:$0xff]
        %v4744 = vld [vmem:[%s4485 + $0x810] sm:$0xff]
        %v4745 = vld [vmem:[%s4485 + $0x818] sm:$0xff]
        %v4746 = vld [vmem:[%s4485 + $0x820] sm:$0xff]
        %v4747 = vld [vmem:[%s4485 + $0x828] sm:$0xff]
        %v4748 = vld [vmem:[%s4485 + $0x830] sm:$0xff]
        %v4749 = vld [vmem:[%s4485 + $0x838] sm:$0xff]
        %v4750 = vld [vmem:[%s4485 + $0x840] sm:$0xff]
        %v4751 = vld [vmem:[%s4485 + $0x848] sm:$0xff]
        %v4752 = vld [vmem:[%s4485 + $0x850] sm:$0xff]
        %v4753 = vld [vmem:[%s4485 + $0x858] sm:$0xff]
        %v4754 = vld [vmem:[%s4485 + $0x860] sm:$0xff]
        %v4755 = vld [vmem:[%s4485 + $0x868] sm:$0xff]
        %v4756 = vld [vmem:[%s4485 + $0x870] sm:$0xff]
        %v4757 = vld [vmem:[%s4485 + $0x878] sm:$0xff]
        %v4758 = vld [vmem:[%s4485 + $0x880] sm:$0xff]
        %v4759 = vld [vmem:[%s4485 + $0x888] sm:$0xff]
        %v4760 = vld [vmem:[%s4485 + $0x890] sm:$0xff]
        %v4761 = vld [vmem:[%s4485 + $0x898] sm:$0xff]
        %v4762 = vld [vmem:[%s4485 + $0x8a0] sm:$0xff]
        %v4763 = vld [vmem:[%s4485 + $0x8a8] sm:$0xff]
        %v4764 = vld [vmem:[%s4485 + $0x8b0] sm:$0xff]
        %v4765 = vld [vmem:[%s4485 + $0x8b8] sm:$0xff]
        %v4766 = vld [vmem:[%s4485 + $0x8c0] sm:$0xff]
        %v4767 = vld [vmem:[%s4485 + $0x8c8] sm:$0xff]
        %v4768 = vld [vmem:[%s4485 + $0x8d0] sm:$0xff]
        %v4769 = vld [vmem:[%s4485 + $0x8d8] sm:$0xff]
        %v4770 = vld [vmem:[%s4485 + $0x8e0] sm:$0xff]
        %v4771 = vld [vmem:[%s4485 + $0x8e8] sm:$0xff]
        %v4772 = vld [vmem:[%s4485 + $0x8f0] sm:$0xff]
        %v4773 = vld [vmem:[%s4485 + $0x8f8] sm:$0xff]
        %v4774 = vld [vmem:[%s4485 + $0x900] sm:$0xff]
        %v4775 = vld [vmem:[%s4485 + $0x908] sm:$0xff]
        %v4776 = vld [vmem:[%s4485 + $0x910] sm:$0xff]
        %v4777 = vld [vmem:[%s4485 + $0x918] sm:$0xff]
        %v4778 = vld [vmem:[%s4485 + $0x920] sm:$0xff]
        %v4779 = vld [vmem:[%s4485 + $0x928] sm:$0xff]
        %v4780 = vld [vmem:[%s4485 + $0x930] sm:$0xff]
        %v4781 = vld [vmem:[%s4485 + $0x938] sm:$0xff]
        %v4782 = vld [vmem:[%s4485 + $0x940] sm:$0xff]
        %v4783 = vld [vmem:[%s4485 + $0x948] sm:$0xff]
        %v4784 = vld [vmem:[%s4485 + $0x950] sm:$0xff]
        %v4785 = vld [vmem:[%s4485 + $0x958] sm:$0xff]
        %v4786 = vld [vmem:[%s4485 + $0x960] sm:$0xff]
        %v4787 = vld [vmem:[%s4485 + $0x968] sm:$0xff]
        %v4788 = vld [vmem:[%s4485 + $0x970] sm:$0xff]
        %v4789 = vld [vmem:[%s4485 + $0x978] sm:$0xff]
        %v4790 = vld [vmem:[%s4485 + $0x980] sm:$0xff]
        %v4791 = vld [vmem:[%s4485 + $0x988] sm:$0xff]
        %v4792 = vld [vmem:[%s4485 + $0x990] sm:$0xff]
        %v4793 = vld [vmem:[%s4485 + $0x998] sm:$0xff]
        %v4794 = vld [vmem:[%s4485 + $0x9a0] sm:$0xff]
        %v4795 = vld [vmem:[%s4485 + $0x9a8] sm:$0xff]
        %v4796 = vld [vmem:[%s4485 + $0x9b0] sm:$0xff]
        %v4797 = vld [vmem:[%s4485 + $0x9b8] sm:$0xff]
        %v4798 = vld [vmem:[%s4485 + $0x9c0] sm:$0xff]
        %v4799 = vld [vmem:[%s4485 + $0x9c8] sm:$0xff]
        %v4800 = vld [vmem:[%s4485 + $0x9d0] sm:$0xff]
        %v4801 = vld [vmem:[%s4485 + $0x9d8] sm:$0xff]
        %v4802 = vld [vmem:[%s4485 + $0x9e0] sm:$0xff]
        %v4803 = vld [vmem:[%s4485 + $0x9e8] sm:$0xff]
        %v4804 = vld [vmem:[%s4485 + $0x9f0] sm:$0xff]
        %v4805 = vld [vmem:[%s4485 + $0x9f8] sm:$0xff]
        %v4806 = vld [vmem:[%s4485 + $0xa00] sm:$0xff]
        %v4807 = vld [vmem:[%s4485 + $0xa08] sm:$0xff]
        %v4808 = vld [vmem:[%s4485 + $0xa10] sm:$0xff]
        %v4809 = vld [vmem:[%s4485 + $0xa18] sm:$0xff]
        %v4810 = vld [vmem:[%s4485 + $0xa20] sm:$0xff]
        %v4811 = vld [vmem:[%s4485 + $0xa28] sm:$0xff]
        %v4812 = vld [vmem:[%s4485 + $0xa30] sm:$0xff]
        %v4813 = vld [vmem:[%s4485 + $0xa38] sm:$0xff]
        %v4814 = vld [vmem:[%s4485 + $0xa40] sm:$0xff]
        %v4815 = vld [vmem:[%s4485 + $0xa48] sm:$0xff]
        %v4816 = vld [vmem:[%s4485 + $0xa50] sm:$0xff]
        %v4817 = vld [vmem:[%s4485 + $0xa58] sm:$0xff]
        %v4818 = vld [vmem:[%s4485 + $0xa60] sm:$0xff]
        %v4819 = vld [vmem:[%s4485 + $0xa68] sm:$0xff]
        %v4820 = vld [vmem:[%s4485 + $0xa70] sm:$0xff]
        %v4821 = vld [vmem:[%s4485 + $0xa78] sm:$0xff]
        %v4822 = vld [vmem:[%s4485 + $0xa80] sm:$0xff]
        %v4823 = vld [vmem:[%s4485 + $0xa88] sm:$0xff]
        %v4824 = vld [vmem:[%s4485 + $0xa90] sm:$0xff]
        %v4825 = vld [vmem:[%s4485 + $0xa98] sm:$0xff]
        %v4826 = vld [vmem:[%s4485 + $0xaa0] sm:$0xff]
        %v4827 = vld [vmem:[%s4485 + $0xaa8] sm:$0xff]
        %v4828 = vld [vmem:[%s4485 + $0xab0] sm:$0xff]
        %v4829 = vld [vmem:[%s4485 + $0xab8] sm:$0xff]
        %v4830 = vld [vmem:[%s4485 + $0xac0] sm:$0xff]
        %v4831 = vld [vmem:[%s4485 + $0xac8] sm:$0xff]
        %v4832 = vld [vmem:[%s4485 + $0xad0] sm:$0xff]
        %v4833 = vld [vmem:[%s4485 + $0xad8] sm:$0xff]
        %v4834 = vld [vmem:[%s4485 + $0xae0] sm:$0xff]
        %v4835 = vld [vmem:[%s4485 + $0xae8] sm:$0xff]
        %v4836 = vld [vmem:[%s4485 + $0xaf0] sm:$0xff]
        %v4837 = vld [vmem:[%s4485 + $0xaf8] sm:$0xff]
        %v4838 = vld [vmem:[%s4485 + $0xb00] sm:$0xff]
        %v4839 = vld [vmem:[%s4485 + $0xb08] sm:$0xff]
        %v4840 = vld [vmem:[%s4485 + $0xb10] sm:$0xff]
        %v4841 = vld [vmem:[%s4485 + $0xb18] sm:$0xff]
        %v4842 = vld [vmem:[%s4485 + $0xb20] sm:$0xff]
        %v4843 = vld [vmem:[%s4485 + $0xb28] sm:$0xff]
        %v4844 = vld [vmem:[%s4485 + $0xb30] sm:$0xff]
        %v4845 = vld [vmem:[%s4485 + $0xb38] sm:$0xff]
        %v4846 = vld [vmem:[%s4485 + $0xb40] sm:$0xff]
        %v4847 = vld [vmem:[%s4485 + $0xb48] sm:$0xff]
        %v4848 = vld [vmem:[%s4485 + $0xb50] sm:$0xff]
        %v4849 = vld [vmem:[%s4485 + $0xb58] sm:$0xff]
        %v4850 = vld [vmem:[%s4485 + $0xb60] sm:$0xff]
        %v4851 = vld [vmem:[%s4485 + $0xb68] sm:$0xff]
        %v4852 = vld [vmem:[%s4485 + $0xb70] sm:$0xff]
        %v4853 = vld [vmem:[%s4485 + $0xb78] sm:$0xff]
        %v4854 = vld [vmem:[%s4485 + $0xb80] sm:$0xff]
        %v4855 = vld [vmem:[%s4485 + $0xb88] sm:$0xff]
        %v4856 = vld [vmem:[%s4485 + $0xb90] sm:$0xff]
        %v4857 = vld [vmem:[%s4485 + $0xb98] sm:$0xff]
        %v4858 = vld [vmem:[%s4485 + $0xba0] sm:$0xff]
        %v4859 = vld [vmem:[%s4485 + $0xba8] sm:$0xff]
        %v4860 = vld [vmem:[%s4485 + $0xbb0] sm:$0xff]
        %v4861 = vld [vmem:[%s4485 + $0xbb8] sm:$0xff]
        %v4862 = vld [vmem:[%s4485 + $0xbc0] sm:$0xff]
        %v4863 = vld [vmem:[%s4485 + $0xbc8] sm:$0xff]
        %v4864 = vld [vmem:[%s4485 + $0xbd0] sm:$0xff]
        %v4865 = vld [vmem:[%s4485 + $0xbd8] sm:$0xff]
        %v4866 = vld [vmem:[%s4485 + $0xbe0] sm:$0xff]
        %v4867 = vld [vmem:[%s4485 + $0xbe8] sm:$0xff]
        %v4868 = vld [vmem:[%s4485 + $0xbf0] sm:$0xff]
        %v4869 = vld [vmem:[%s4485 + $0xbf8] sm:$0xff]
        %vm4878 = vcmask 1045504
        %v4879 = vrot.slane %v4477, 2
        %v4880 = vrot.slane %v4481, 2
        %v4881 = vsel %vm4878, %v4879, %v4880
        %v4882 = vrot.slane %v4478, 2
        %v4883 = vrot.slane %v4482, 2
        %v4884 = vsel %vm4878, %v4882, %v4883
        %v4885 = vrot.slane %v4479, 2
        %v4886 = vrot.slane %v4483, 2
        %v4887 = vsel %vm4878, %v4885, %v4886
        %v4888 = vrot.slane %v4480, 2
        %v4889 = vrot.slane %v4484, 2
        %v4890 = vsel %vm4878, %v4888, %v4889
        %4899 = vmatprep.subr.mxu0 %v4487
        %4900 = vmatpush1.msra.mxu0 %v4486
        %4901 = vmatprep.subr.mxu0 %v4493
        %4902 = vmatpush1.msra.mxu0 %v4492
        %4903 = vmatprep.subr.mxu0 %v4499
        %4904 = vmatpush1.msra.mxu0 %v4498
        %4905 = vmatprep.subr.mxu0 %v4505
        %4906 = vmatpush1.msra.mxu0 %v4504
        %4907 = vmatprep.subr.mxu0 %v4511
        %4908 = vmatpush1.msra.mxu0 %v4510
        %4909 = vmatprep.subr.mxu0 %v4517
        %4910 = vmatpush1.msra.mxu0 %v4516
        %4911 = vmatprep.subr.mxu0 %v4523
        %4912 = vmatpush1.msra.mxu0 %v4522
        %4913 = vmatprep.subr.mxu0 %v4529
        %4914 = vmatpush1.msra.mxu0 %v4528
        %4915 = vmatprep.subr.mxu0 %v4535
        %4916 = vmatpush1.msra.mxu0 %v4534
        %4917 = vmatprep.subr.mxu0 %v4541
        %4918 = vmatpush1.msra.mxu0 %v4540
        %4919 = vmatprep.subr.mxu0 %v4547
        %4920 = vmatpush1.msra.mxu0 %v4546
        %4921 = vmatprep.subr.mxu0 %v4553
        %4922 = vmatpush1.msra.mxu0 %v4552
        %4923 = vmatprep.subr.mxu0 %v4559
        %4924 = vmatpush1.msra.mxu0 %v4558
        %4925 = vmatprep.subr.mxu0 %v4565
        %4926 = vmatpush1.msra.mxu0 %v4564
        %4927 = vmatprep.subr.mxu0 %v4571
        %4928 = vmatpush1.msra.mxu0 %v4570
        %4929 = vmatprep.subr.mxu0 %v4577
        %4930 = vmatpush1.msra.mxu0 %v4576
        %4931 = vmatprep.subr.mxu0 %v4583
        %4932 = vmatpush1.msra.mxu0 %v4582
        %4933 = vmatprep.subr.mxu0 %v4589
        %4934 = vmatpush1.msra.mxu0 %v4588
        %4935 = vmatprep.subr.mxu0 %v4595
        %4936 = vmatpush1.msra.mxu0 %v4594
        %4937 = vmatprep.subr.mxu0 %v4601
        %4938 = vmatpush1.msra.mxu0 %v4600
        %4939 = vmatprep.subr.mxu0 %v4607
        %4940 = vmatpush1.msra.mxu0 %v4606
        %4941 = vmatprep.subr.mxu0 %v4613
        %4942 = vmatpush1.msra.mxu0 %v4612
        %4943 = vmatprep.subr.mxu0 %v4619
        %4944 = vmatpush1.msra.mxu0 %v4618
        %4945 = vmatprep.subr.mxu0 %v4625
        %4946 = vmatpush1.msra.mxu0 %v4624
        %4947 = vmatprep.subr.mxu0 %v4631
        %4948 = vmatpush1.msra.mxu0 %v4630
        %4949 = vmatprep.subr.mxu0 %v4637
        %4950 = vmatpush1.msra.mxu0 %v4636
        %4951 = vmatprep.subr.mxu0 %v4643
        %4952 = vmatpush1.msra.mxu0 %v4642
        %4953 = vmatprep.subr.mxu0 %v4649
        %4954 = vmatpush1.msra.mxu0 %v4648
        %4955 = vmatprep.subr.mxu0 %v4655
        %4956 = vmatpush1.msra.mxu0 %v4654
        %4957 = vmatprep.subr.mxu0 %v4661
        %4958 = vmatpush1.msra.mxu0 %v4660
        %4959 = vmatprep.subr.mxu0 %v4667
        %4960 = vmatpush1.msra.mxu0 %v4666
        %4961 = vmatprep.subr.mxu0 %v4673
        %4962 = vmatpush1.msra.mxu0 %v4672
        %4963 = vmatprep.mubr.f32.mxu0 %v4884
        %4964 = vmatmul.mubr.f32.gmra.mrb[0].mxu0 %v4881
        %v4965 = vpop.f32.mrb[0].mxu0
        %v4966 = vadd.f32 0.0, %v4965
        %v4967 = vpop.f32.mrb[0].mxu0
        %v4968 = vadd.f32 0.0, %v4967
        %4969 = vmatprep.mubr.f32.mxu0 %v4883
        %4970 = vmatmul.mubr.f32.gmra.mrb[0].mxu0 %v4880
        %v4971 = vpop.f32.mrb[0].mxu0
        %v4972 = vadd.f32 0.0, %v4971
        %v4973 = vpop.f32.mrb[0].mxu0
        %v4974 = vadd.f32 0.0, %v4973
        %4975 = vdwg.mxu0
        %4976 = vmatprep.subr.mxu0 %v4679
        %4977 = vmatpush1.msra.mxu0 %v4678
        %4978 = vmatprep.subr.mxu0 %v4685
        %4979 = vmatpush1.msra.mxu0 %v4684
        %4980 = vmatprep.subr.mxu0 %v4691
        %4981 = vmatpush1.msra.mxu0 %v4690
        %4982 = vmatprep.subr.mxu0 %v4697
        %4983 = vmatpush1.msra.mxu0 %v4696
        %4984 = vmatprep.subr.mxu0 %v4703
        %4985 = vmatpush1.msra.mxu0 %v4702
        %4986 = vmatprep.subr.mxu0 %v4709
        %4987 = vmatpush1.msra.mxu0 %v4708
        %4988 = vmatprep.subr.mxu0 %v4715
        %4989 = vmatpush1.msra.mxu0 %v4714
        %4990 = vmatprep.subr.mxu0 %v4721
        %4991 = vmatpush1.msra.mxu0 %v4720
        %4992 = vmatprep.subr.mxu0 %v4727
        %4993 = vmatpush1.msra.mxu0 %v4726
        %4994 = vmatprep.subr.mxu0 %v4733
        %4995 = vmatpush1.msra.mxu0 %v4732
        %4996 = vmatprep.subr.mxu0 %v4739
        %4997 = vmatpush1.msra.mxu0 %v4738
        %4998 = vmatprep.subr.mxu0 %v4745
        %4999 = vmatpush1.msra.mxu0 %v4744
        %5000 = vmatprep.subr.mxu0 %v4751
        %5001 = vmatpush1.msra.mxu0 %v4750
        %5002 = vmatprep.subr.mxu0 %v4757
        %5003 = vmatpush1.msra.mxu0 %v4756
        %5004 = vmatprep.subr.mxu0 %v4763
        %5005 = vmatpush1.msra.mxu0 %v4762
        %5006 = vmatprep.subr.mxu0 %v4769
        %5007 = vmatpush1.msra.mxu0 %v4768
        %5008 = vmatprep.subr.mxu0 %v4775
        %5009 = vmatpush1.msra.mxu0 %v4774
        %5010 = vmatprep.subr.mxu0 %v4781
        %5011 = vmatpush1.msra.mxu0 %v4780
        %5012 = vmatprep.subr.mxu0 %v4787
        %5013 = vmatpush1.msra.mxu0 %v4786
        %5014 = vmatprep.subr.mxu0 %v4793
        %5015 = vmatpush1.msra.mxu0 %v4792
        %5016 = vmatprep.subr.mxu0 %v4799
        %5017 = vmatpush1.msra.mxu0 %v4798
        %5018 = vmatprep.subr.mxu0 %v4805
        %5019 = vmatpush1.msra.mxu0 %v4804
        %5020 = vmatprep.subr.mxu0 %v4811
        %5021 = vmatpush1.msra.mxu0 %v4810
        %5022 = vmatprep.subr.mxu0 %v4817
        %5023 = vmatpush1.msra.mxu0 %v4816
        %5024 = vmatprep.subr.mxu0 %v4823
        %5025 = vmatpush1.msra.mxu0 %v4822
        %5026 = vmatprep.subr.mxu0 %v4829
        %5027 = vmatpush1.msra.mxu0 %v4828
        %5028 = vmatprep.subr.mxu0 %v4835
        %5029 = vmatpush1.msra.mxu0 %v4834
        %5030 = vmatprep.subr.mxu0 %v4841
        %5031 = vmatpush1.msra.mxu0 %v4840
        %5032 = vmatprep.subr.mxu0 %v4847
        %5033 = vmatpush1.msra.mxu0 %v4846
        %5034 = vmatprep.subr.mxu0 %v4853
        %5035 = vmatpush1.msra.mxu0 %v4852
        %5036 = vmatprep.subr.mxu0 %v4859
        %5037 = vmatpush1.msra.mxu0 %v4858
        %5038 = vmatprep.subr.mxu0 %v4865
        %5039 = vmatpush1.msra.mxu0 %v4864
        %5040 = vmatprep.mubr.f32.mxu0 %v4890
        %5041 = vmatmul.mubr.f32.gmra.mrb[0].mxu0 %v4887
        %v5042 = vpop.f32.mrb[0].mxu0
        %v5043 = vadd.f32 %v4966, %v5042
        %v5044 = vpop.f32.mrb[0].mxu0
        %v5045 = vadd.f32 %v4968, %v5044
        %5046 = vmatprep.mubr.f32.mxu0 %v4889
        %5047 = vmatmul.mubr.f32.gmra.mrb[0].mxu0 %v4886
        %v5048 = vpop.f32.mrb[0].mxu0
        %v5049 = vadd.f32 %v4972, %v5048
        %v5050 = vpop.f32.mrb[0].mxu0
        %v5051 = vadd.f32 %v4974, %v5050
        %5052 = vdwg.mxu0
        %5053 = vmatprep.subr.mxu0 %v4489
        %5054 = vmatpush1.msra.mxu0 %v4488
        %5055 = vmatprep.subr.mxu0 %v4495
        %5056 = vmatpush1.msra.mxu0 %v4494
        %5057 = vmatprep.subr.mxu0 %v4501
        %5058 = vmatpush1.msra.mxu0 %v4500
        %5059 = vmatprep.subr.mxu0 %v4507
        %5060 = vmatpush1.msra.mxu0 %v4506
        %5061 = vmatprep.subr.mxu0 %v4513
        %5062 = vmatpush1.msra.mxu0 %v4512
        %5063 = vmatprep.subr.mxu0 %v4519
        %5064 = vmatpush1.msra.mxu0 %v4518
        %5065 = vmatprep.subr.mxu0 %v4525
        %5066 = vmatpush1.msra.mxu0 %v4524
        %5067 = vmatprep.subr.mxu0 %v4531
        %5068 = vmatpush1.msra.mxu0 %v4530
        %5069 = vmatprep.subr.mxu0 %v4537
        %5070 = vmatpush1.msra.mxu0 %v4536
        %5071 = vmatprep.subr.mxu0 %v4543
        %5072 = vmatpush1.msra.mxu0 %v4542
        %5073 = vmatprep.subr.mxu0 %v4549
        %5074 = vmatpush1.msra.mxu0 %v4548
        %5075 = vmatprep.subr.mxu0 %v4555
        %5076 = vmatpush1.msra.mxu0 %v4554
        %5077 = vmatprep.subr.mxu0 %v4561
        %5078 = vmatpush1.msra.mxu0 %v4560
        %5079 = vmatprep.subr.mxu0 %v4567
        %5080 = vmatpush1.msra.mxu0 %v4566
        %5081 = vmatprep.subr.mxu0 %v4573
        %5082 = vmatpush1.msra.mxu0 %v4572
        %5083 = vmatprep.subr.mxu0 %v4579
        %5084 = vmatpush1.msra.mxu0 %v4578
        %5085 = vmatprep.subr.mxu0 %v4585
        %5086 = vmatpush1.msra.mxu0 %v4584
        %5087 = vmatprep.subr.mxu0 %v4591
        %5088 = vmatpush1.msra.mxu0 %v4590
        %5089 = vmatprep.subr.mxu0 %v4597
        %5090 = vmatpush1.msra.mxu0 %v4596
        %5091 = vmatprep.subr.mxu0 %v4603
        %5092 = vmatpush1.msra.mxu0 %v4602
        %5093 = vmatprep.subr.mxu0 %v4609
        %5094 = vmatpush1.msra.mxu0 %v4608
        %5095 = vmatprep.subr.mxu0 %v4615
        %5096 = vmatpush1.msra.mxu0 %v4614
        %5097 = vmatprep.subr.mxu0 %v4621
        %5098 = vmatpush1.msra.mxu0 %v4620
        %5099 = vmatprep.subr.mxu0 %v4627
        %5100 = vmatpush1.msra.mxu0 %v4626
        %5101 = vmatprep.subr.mxu0 %v4633
        %5102 = vmatpush1.msra.mxu0 %v4632
        %5103 = vmatprep.subr.mxu0 %v4639
        %5104 = vmatpush1.msra.mxu0 %v4638
        %5105 = vmatprep.subr.mxu0 %v4645
        %5106 = vmatpush1.msra.mxu0 %v4644
        %5107 = vmatprep.subr.mxu0 %v4651
        %5108 = vmatpush1.msra.mxu0 %v4650
        %5109 = vmatprep.subr.mxu0 %v4657
        %5110 = vmatpush1.msra.mxu0 %v4656
        %5111 = vmatprep.subr.mxu0 %v4663
        %5112 = vmatpush1.msra.mxu0 %v4662
        %5113 = vmatprep.subr.mxu0 %v4669
        %5114 = vmatpush1.msra.mxu0 %v4668
        %5115 = vmatprep.subr.mxu0 %v4675
        %5116 = vmatpush1.msra.mxu0 %v4674
        %5117 = vmatprep.mubr.f32.mxu0 %v4884
        %5118 = vmatmul.mubr.f32.gmra.mrb[0].mxu0 %v4881
        %v5119 = vpop.f32.mrb[0].mxu0
        %v5120 = vadd.f32 0.0, %v5119
        %v5121 = vpop.f32.mrb[0].mxu0
        %v5122 = vadd.f32 0.0, %v5121
        %5123 = vmatprep.mubr.f32.mxu0 %v4883
        %5124 = vmatmul.mubr.f32.gmra.mrb[0].mxu0 %v4880
        %v5125 = vpop.f32.mrb[0].mxu0
        %v5126 = vadd.f32 0.0, %v5125
        %v5127 = vpop.f32.mrb[0].mxu0
        %v5128 = vadd.f32 0.0, %v5127
        %5129 = vdwg.mxu0
        %5130 = vmatprep.subr.mxu0 %v4681
        %5131 = vmatpush1.msra.mxu0 %v4680
        %5132 = vmatprep.subr.mxu0 %v4687
        %5133 = vmatpush1.msra.mxu0 %v4686
        %5134 = vmatprep.subr.mxu0 %v4693
        %5135 = vmatpush1.msra.mxu0 %v4692
        %5136 = vmatprep.subr.mxu0 %v4699
        %5137 = vmatpush1.msra.mxu0 %v4698
        %5138 = vmatprep.subr.mxu0 %v4705
        %5139 = vmatpush1.msra.mxu0 %v4704
        %5140 = vmatprep.subr.mxu0 %v4711
        %5141 = vmatpush1.msra.mxu0 %v4710
        %5142 = vmatprep.subr.mxu0 %v4717
        %5143 = vmatpush1.msra.mxu0 %v4716
        %5144 = vmatprep.subr.mxu0 %v4723
        %5145 = vmatpush1.msra.mxu0 %v4722
        %5146 = vmatprep.subr.mxu0 %v4729
        %5147 = vmatpush1.msra.mxu0 %v4728
        %5148 = vmatprep.subr.mxu0 %v4735
        %5149 = vmatpush1.msra.mxu0 %v4734
        %5150 = vmatprep.subr.mxu0 %v4741
        %5151 = vmatpush1.msra.mxu0 %v4740
        %5152 = vmatprep.subr.mxu0 %v4747
        %5153 = vmatpush1.msra.mxu0 %v4746
        %5154 = vmatprep.subr.mxu0 %v4753
        %5155 = vmatpush1.msra.mxu0 %v4752
        %5156 = vmatprep.subr.mxu0 %v4759
        %5157 = vmatpush1.msra.mxu0 %v4758
        %5158 = vmatprep.subr.mxu0 %v4765
        %5159 = vmatpush1.msra.mxu0 %v4764
        %5160 = vmatprep.subr.mxu0 %v4771
        %5161 = vmatpush1.msra.mxu0 %v4770
        %5162 = vmatprep.subr.mxu0 %v4777
        %5163 = vmatpush1.msra.mxu0 %v4776
        %5164 = vmatprep.subr.mxu0 %v4783
        %5165 = vmatpush1.msra.mxu0 %v4782
        %5166 = vmatprep.subr.mxu0 %v4789
        %5167 = vmatpush1.msra.mxu0 %v4788
        %5168 = vmatprep.subr.mxu0 %v4795
        %5169 = vmatpush1.msra.mxu0 %v4794
        %5170 = vmatprep.subr.mxu0 %v4801
        %5171 = vmatpush1.msra.mxu0 %v4800
        %5172 = vmatprep.subr.mxu0 %v4807
        %5173 = vmatpush1.msra.mxu0 %v4806
        %5174 = vmatprep.subr.mxu0 %v4813
        %5175 = vmatpush1.msra.mxu0 %v4812
        %5176 = vmatprep.subr.mxu0 %v4819
        %5177 = vmatpush1.msra.mxu0 %v4818
        %5178 = vmatprep.subr.mxu0 %v4825
        %5179 = vmatpush1.msra.mxu0 %v4824
        %5180 = vmatprep.subr.mxu0 %v4831
        %5181 = vmatpush1.msra.mxu0 %v4830
        %5182 = vmatprep.subr.mxu0 %v4837
        %5183 = vmatpush1.msra.mxu0 %v4836
        %5184 = vmatprep.subr.mxu0 %v4843
        %5185 = vmatpush1.msra.mxu0 %v4842
        %5186 = vmatprep.subr.mxu0 %v4849
        %5187 = vmatpush1.msra.mxu0 %v4848
        %5188 = vmatprep.subr.mxu0 %v4855
        %5189 = vmatpush1.msra.mxu0 %v4854
        %5190 = vmatprep.subr.mxu0 %v4861
        %5191 = vmatpush1.msra.mxu0 %v4860
        %5192 = vmatprep.subr.mxu0 %v4867
        %5193 = vmatpush1.msra.mxu0 %v4866
        %5194 = vmatprep.mubr.f32.mxu0 %v4890
        %5195 = vmatmul.mubr.f32.gmra.mrb[0].mxu0 %v4887
        %v5196 = vpop.f32.mrb[0].mxu0
        %v5197 = vadd.f32 %v5120, %v5196
        %v5198 = vpop.f32.mrb[0].mxu0
        %v5199 = vadd.f32 %v5122, %v5198
        %5200 = vmatprep.mubr.f32.mxu0 %v4889
        %5201 = vmatmul.mubr.f32.gmra.mrb[0].mxu0 %v4886
        %v5202 = vpop.f32.mrb[0].mxu0
        %v5203 = vadd.f32 %v5126, %v5202
        %v5204 = vpop.f32.mrb[0].mxu0
        %v5205 = vadd.f32 %v5128, %v5204
        %5206 = vdwg.mxu0
        %5207 = vmatprep.subr.mxu0 %v4491
        %5208 = vmatpush1.msra.mxu0 %v4490
        %5209 = vmatprep.subr.mxu0 %v4497
        %5210 = vmatpush1.msra.mxu0 %v4496
        %5211 = vmatprep.subr.mxu0 %v4503
        %5212 = vmatpush1.msra.mxu0 %v4502
        %5213 = vmatprep.subr.mxu0 %v4509
        %5214 = vmatpush1.msra.mxu0 %v4508
        %5215 = vmatprep.subr.mxu0 %v4515
        %5216 = vmatpush1.msra.mxu0 %v4514
        %5217 = vmatprep.subr.mxu0 %v4521
        %5218 = vmatpush1.msra.mxu0 %v4520
        %5219 = vmatprep.subr.mxu0 %v4527
        %5220 = vmatpush1.msra.mxu0 %v4526
        %5221 = vmatprep.subr.mxu0 %v4533
        %5222 = vmatpush1.msra.mxu0 %v4532
        %5223 = vmatprep.subr.mxu0 %v4539
        %5224 = vmatpush1.msra.mxu0 %v4538
        %5225 = vmatprep.subr.mxu0 %v4545
        %5226 = vmatpush1.msra.mxu0 %v4544
        %5227 = vmatprep.subr.mxu0 %v4551
        %5228 = vmatpush1.msra.mxu0 %v4550
        %5229 = vmatprep.subr.mxu0 %v4557
        %5230 = vmatpush1.msra.mxu0 %v4556
        %5231 = vmatprep.subr.mxu0 %v4563
        %5232 = vmatpush1.msra.mxu0 %v4562
        %5233 = vmatprep.subr.mxu0 %v4569
        %5234 = vmatpush1.msra.mxu0 %v4568
        %5235 = vmatprep.subr.mxu0 %v4575
        %5236 = vmatpush1.msra.mxu0 %v4574
        %5237 = vmatprep.subr.mxu0 %v4581
        %5238 = vmatpush1.msra.mxu0 %v4580
        %5239 = vmatprep.subr.mxu0 %v4587
        %5240 = vmatpush1.msra.mxu0 %v4586
        %5241 = vmatprep.subr.mxu0 %v4593
        %5242 = vmatpush1.msra.mxu0 %v4592
        %5243 = vmatprep.subr.mxu0 %v4599
        %5244 = vmatpush1.msra.mxu0 %v4598
        %5245 = vmatprep.subr.mxu0 %v4605
        %5246 = vmatpush1.msra.mxu0 %v4604
        %5247 = vmatprep.subr.mxu0 %v4611
        %5248 = vmatpush1.msra.mxu0 %v4610
        %5249 = vmatprep.subr.mxu0 %v4617
        %5250 = vmatpush1.msra.mxu0 %v4616
        %5251 = vmatprep.subr.mxu0 %v4623
        %5252 = vmatpush1.msra.mxu0 %v4622
        %5253 = vmatprep.subr.mxu0 %v4629
        %5254 = vmatpush1.msra.mxu0 %v4628
        %5255 = vmatprep.subr.mxu0 %v4635
        %5256 = vmatpush1.msra.mxu0 %v4634
        %5257 = vmatprep.subr.mxu0 %v4641
        %5258 = vmatpush1.msra.mxu0 %v4640
        %5259 = vmatprep.subr.mxu0 %v4647
        %5260 = vmatpush1.msra.mxu0 %v4646
        %5261 = vmatprep.subr.mxu0 %v4653
        %5262 = vmatpush1.msra.mxu0 %v4652
        %5263 = vmatprep.subr.mxu0 %v4659
        %5264 = vmatpush1.msra.mxu0 %v4658
        %5265 = vmatprep.subr.mxu0 %v4665
        %5266 = vmatpush1.msra.mxu0 %v4664
        %5267 = vmatprep.subr.mxu0 %v4671
        %5268 = vmatpush1.msra.mxu0 %v4670
        %5269 = vmatprep.subr.mxu0 %v4677
        %5270 = vmatpush1.msra.mxu0 %v4676
        %5271 = vmatprep.mubr.f32.mxu0 %v4884
        %5272 = vmatmul.mubr.f32.gmra.mrb[0].mxu0 %v4881
        %v5273 = vpop.f32.mrb[0].mxu0
        %v5274 = vadd.f32 0.0, %v5273
        %v5275 = vpop.f32.mrb[0].mxu0
        %v5276 = vadd.f32 0.0, %v5275
        %5277 = vmatprep.mubr.f32.mxu0 %v4883
        %5278 = vmatmul.mubr.f32.gmra.mrb[0].mxu0 %v4880
        %v5279 = vpop.f32.mrb[0].mxu0
        %v5280 = vadd.f32 0.0, %v5279
        %v5281 = vpop.f32.mrb[0].mxu0
        %v5282 = vadd.f32 0.0, %v5281
        %5283 = vdwg.mxu0
        %5284 = vmatprep.subr.mxu0 %v4683
        %5285 = vmatpush1.msra.mxu0 %v4682
        %5286 = vmatprep.subr.mxu0 %v4689
        %5287 = vmatpush1.msra.mxu0 %v4688
        %5288 = vmatprep.subr.mxu0 %v4695
        %5289 = vmatpush1.msra.mxu0 %v4694
        %5290 = vmatprep.subr.mxu0 %v4701
        %5291 = vmatpush1.msra.mxu0 %v4700
        %5292 = vmatprep.subr.mxu0 %v4707
        %5293 = vmatpush1.msra.mxu0 %v4706
        %5294 = vmatprep.subr.mxu0 %v4713
        %5295 = vmatpush1.msra.mxu0 %v4712
        %5296 = vmatprep.subr.mxu0 %v4719
        %5297 = vmatpush1.msra.mxu0 %v4718
        %5298 = vmatprep.subr.mxu0 %v4725
        %5299 = vmatpush1.msra.mxu0 %v4724
        %5300 = vmatprep.subr.mxu0 %v4731
        %5301 = vmatpush1.msra.mxu0 %v4730
        %5302 = vmatprep.subr.mxu0 %v4737
        %5303 = vmatpush1.msra.mxu0 %v4736
        %5304 = vmatprep.subr.mxu0 %v4743
        %5305 = vmatpush1.msra.mxu0 %v4742
        %5306 = vmatprep.subr.mxu0 %v4749
        %5307 = vmatpush1.msra.mxu0 %v4748
        %5308 = vmatprep.subr.mxu0 %v4755
        %5309 = vmatpush1.msra.mxu0 %v4754
        %5310 = vmatprep.subr.mxu0 %v4761
        %5311 = vmatpush1.msra.mxu0 %v4760
        %5312 = vmatprep.subr.mxu0 %v4767
        %5313 = vmatpush1.msra.mxu0 %v4766
        %5314 = vmatprep.subr.mxu0 %v4773
        %5315 = vmatpush1.msra.mxu0 %v4772
        %5316 = vmatprep.subr.mxu0 %v4779
        %5317 = vmatpush1.msra.mxu0 %v4778
        %5318 = vmatprep.subr.mxu0 %v4785
        %5319 = vmatpush1.msra.mxu0 %v4784
        %5320 = vmatprep.subr.mxu0 %v4791
        %5321 = vmatpush1.msra.mxu0 %v4790
        %5322 = vmatprep.subr.mxu0 %v4797
        %5323 = vmatpush1.msra.mxu0 %v4796
        %5324 = vmatprep.subr.mxu0 %v4803
        %5325 = vmatpush1.msra.mxu0 %v4802
        %5326 = vmatprep.subr.mxu0 %v4809
        %5327 = vmatpush1.msra.mxu0 %v4808
        %5328 = vmatprep.subr.mxu0 %v4815
        %5329 = vmatpush1.msra.mxu0 %v4814
        %5330 = vmatprep.subr.mxu0 %v4821
        %5331 = vmatpush1.msra.mxu0 %v4820
        %5332 = vmatprep.subr.mxu0 %v4827
        %5333 = vmatpush1.msra.mxu0 %v4826
        %5334 = vmatprep.subr.mxu0 %v4833
        %5335 = vmatpush1.msra.mxu0 %v4832
        %5336 = vmatprep.subr.mxu0 %v4839
        %5337 = vmatpush1.msra.mxu0 %v4838
        %5338 = vmatprep.subr.mxu0 %v4845
        %5339 = vmatpush1.msra.mxu0 %v4844
        %5340 = vmatprep.subr.mxu0 %v4851
        %5341 = vmatpush1.msra.mxu0 %v4850
        %5342 = vmatprep.subr.mxu0 %v4857
        %5343 = vmatpush1.msra.mxu0 %v4856
        %5344 = vmatprep.subr.mxu0 %v4863
        %5345 = vmatpush1.msra.mxu0 %v4862
        %5346 = vmatprep.subr.mxu0 %v4869
        %5347 = vmatpush1.msra.mxu0 %v4868
        %5348 = vmatprep.mubr.f32.mxu0 %v4890
        %5349 = vmatmul.mubr.f32.gmra.mrb[0].mxu0 %v4887
        %v5350 = vpop.f32.mrb[0].mxu0
        %v5351 = vadd.f32 %v5274, %v5350
        %v5352 = vpop.f32.mrb[0].mxu0
        %v5353 = vadd.f32 %v5276, %v5352
        %5354 = vmatprep.mubr.f32.mxu0 %v4889
        %5355 = vmatmul.mubr.f32.gmra.mrb[0].mxu0 %v4886
        %v5356 = vpop.f32.mrb[0].mxu0
        %v5357 = vadd.f32 %v5280, %v5356
        %v5358 = vpop.f32.mrb[0].mxu0
        %v5359 = vadd.f32 %v5282, %v5358
        %5360 = vdwg.mxu0
        %v5361 = vadd.f32 %v4159, %v5043
        %v5362 = vadd.f32 %v4161, %v5045
        %v5363 = vadd.f32 %v4313, %v5197
        %v5364 = vadd.f32 %v4315, %v5199
        %v5365 = vadd.f32 %v4467, %v5351
        %v5366 = vadd.f32 %v4469, %v5353
        %v5367 = vadd.f32 %v4165, %v5049
        %v5368 = vadd.f32 %v4167, %v5051
        %v5369 = vadd.f32 %v4319, %v5203
        %v5370 = vadd.f32 %v4321, %v5205
        %v5371 = vadd.f32 %v4473, %v5357
        %v5372 = vadd.f32 %v4475, %v5359
        %v5373 = vld [vmem:[#allocation3] sm:$0xf8]
        %v5374 = vld [vmem:[#allocation3 + $0x8] sm:$0xf8]
        %v5375 = vld [vmem:[#allocation3 + $0x10] sm:$0xf8]
        %v5376 = vld [vmem:[#allocation3 + $0x18] sm:$0xf8]
        %v5377 = vld [vmem:[#allocation3 + $0x20] sm:$0x3f]
        %v5378 = vld [vmem:[#allocation3 + $0x28] sm:$0x3f]
        %v5379 = vld [vmem:[#allocation3 + $0x30] sm:$0x3f]
        %v5380 = vld [vmem:[#allocation3 + $0x38] sm:$0x3f]
        %s5381 = scalar_lea.vmem [#allocation7], 9216
        %v5382 = vld [vmem:[%s5381] sm:$0xff]
        %v5383 = vld [vmem:[%s5381 + $0x8] sm:$0xff]
        %v5384 = vld [vmem:[%s5381 + $0x10] sm:$0xff]
        %v5385 = vld [vmem:[%s5381 + $0x18] sm:$0xff]
        %v5386 = vld [vmem:[%s5381 + $0x20] sm:$0xff]
        %v5387 = vld [vmem:[%s5381 + $0x28] sm:$0xff]
        %v5388 = vld [vmem:[%s5381 + $0x30] sm:$0xff]
        %v5389 = vld [vmem:[%s5381 + $0x38] sm:$0xff]
        %v5390 = vld [vmem:[%s5381 + $0x40] sm:$0xff]
        %v5391 = vld [vmem:[%s5381 + $0x48] sm:$0xff]
        %v5392 = vld [vmem:[%s5381 + $0x50] sm:$0xff]
        %v5393 = vld [vmem:[%s5381 + $0x58] sm:$0xff]
        %v5394 = vld [vmem:[%s5381 + $0x60] sm:$0xff]
        %v5395 = vld [vmem:[%s5381 + $0x68] sm:$0xff]
        %v5396 = vld [vmem:[%s5381 + $0x70] sm:$0xff]
        %v5397 = vld [vmem:[%s5381 + $0x78] sm:$0xff]
        %v5398 = vld [vmem:[%s5381 + $0x80] sm:$0xff]
        %v5399 = vld [vmem:[%s5381 + $0x88] sm:$0xff]
        %v5400 = vld [vmem:[%s5381 + $0x90] sm:$0xff]
        %v5401 = vld [vmem:[%s5381 + $0x98] sm:$0xff]
        %v5402 = vld [vmem:[%s5381 + $0xa0] sm:$0xff]
        %v5403 = vld [vmem:[%s5381 + $0xa8] sm:$0xff]
        %v5404 = vld [vmem:[%s5381 + $0xb0] sm:$0xff]
        %v5405 = vld [vmem:[%s5381 + $0xb8] sm:$0xff]
        %v5406 = vld [vmem:[%s5381 + $0xc0] sm:$0xff]
        %v5407 = vld [vmem:[%s5381 + $0xc8] sm:$0xff]
        %v5408 = vld [vmem:[%s5381 + $0xd0] sm:$0xff]
        %v5409 = vld [vmem:[%s5381 + $0xd8] sm:$0xff]
        %v5410 = vld [vmem:[%s5381 + $0xe0] sm:$0xff]
        %v5411 = vld [vmem:[%s5381 + $0xe8] sm:$0xff]
        %v5412 = vld [vmem:[%s5381 + $0xf0] sm:$0xff]
        %v5413 = vld [vmem:[%s5381 + $0xf8] sm:$0xff]
        %v5414 = vld [vmem:[%s5381 + $0x100] sm:$0xff]
        %v5415 = vld [vmem:[%s5381 + $0x108] sm:$0xff]
        %v5416 = vld [vmem:[%s5381 + $0x110] sm:$0xff]
        %v5417 = vld [vmem:[%s5381 + $0x118] sm:$0xff]
        %v5418 = vld [vmem:[%s5381 + $0x120] sm:$0xff]
        %v5419 = vld [vmem:[%s5381 + $0x128] sm:$0xff]
        %v5420 = vld [vmem:[%s5381 + $0x130] sm:$0xff]
        %v5421 = vld [vmem:[%s5381 + $0x138] sm:$0xff]
        %v5422 = vld [vmem:[%s5381 + $0x140] sm:$0xff]
        %v5423 = vld [vmem:[%s5381 + $0x148] sm:$0xff]
        %v5424 = vld [vmem:[%s5381 + $0x150] sm:$0xff]
        %v5425 = vld [vmem:[%s5381 + $0x158] sm:$0xff]
        %v5426 = vld [vmem:[%s5381 + $0x160] sm:$0xff]
        %v5427 = vld [vmem:[%s5381 + $0x168] sm:$0xff]
        %v5428 = vld [vmem:[%s5381 + $0x170] sm:$0xff]
        %v5429 = vld [vmem:[%s5381 + $0x178] sm:$0xff]
        %v5430 = vld [vmem:[%s5381 + $0x180] sm:$0xff]
        %v5431 = vld [vmem:[%s5381 + $0x188] sm:$0xff]
        %v5432 = vld [vmem:[%s5381 + $0x190] sm:$0xff]
        %v5433 = vld [vmem:[%s5381 + $0x198] sm:$0xff]
        %v5434 = vld [vmem:[%s5381 + $0x1a0] sm:$0xff]
        %v5435 = vld [vmem:[%s5381 + $0x1a8] sm:$0xff]
        %v5436 = vld [vmem:[%s5381 + $0x1b0] sm:$0xff]
        %v5437 = vld [vmem:[%s5381 + $0x1b8] sm:$0xff]
        %v5438 = vld [vmem:[%s5381 + $0x1c0] sm:$0xff]
        %v5439 = vld [vmem:[%s5381 + $0x1c8] sm:$0xff]
        %v5440 = vld [vmem:[%s5381 + $0x1d0] sm:$0xff]
        %v5441 = vld [vmem:[%s5381 + $0x1d8] sm:$0xff]
        %v5442 = vld [vmem:[%s5381 + $0x1e0] sm:$0xff]
        %v5443 = vld [vmem:[%s5381 + $0x1e8] sm:$0xff]
        %v5444 = vld [vmem:[%s5381 + $0x1f0] sm:$0xff]
        %v5445 = vld [vmem:[%s5381 + $0x1f8] sm:$0xff]
        %v5446 = vld [vmem:[%s5381 + $0x200] sm:$0xff]
        %v5447 = vld [vmem:[%s5381 + $0x208] sm:$0xff]
        %v5448 = vld [vmem:[%s5381 + $0x210] sm:$0xff]
        %v5449 = vld [vmem:[%s5381 + $0x218] sm:$0xff]
        %v5450 = vld [vmem:[%s5381 + $0x220] sm:$0xff]
        %v5451 = vld [vmem:[%s5381 + $0x228] sm:$0xff]
        %v5452 = vld [vmem:[%s5381 + $0x230] sm:$0xff]
        %v5453 = vld [vmem:[%s5381 + $0x238] sm:$0xff]
        %v5454 = vld [vmem:[%s5381 + $0x240] sm:$0xff]
        %v5455 = vld [vmem:[%s5381 + $0x248] sm:$0xff]
        %v5456 = vld [vmem:[%s5381 + $0x250] sm:$0xff]
        %v5457 = vld [vmem:[%s5381 + $0x258] sm:$0xff]
        %v5458 = vld [vmem:[%s5381 + $0x260] sm:$0xff]
        %v5459 = vld [vmem:[%s5381 + $0x268] sm:$0xff]
        %v5460 = vld [vmem:[%s5381 + $0x270] sm:$0xff]
        %v5461 = vld [vmem:[%s5381 + $0x278] sm:$0xff]
        %v5462 = vld [vmem:[%s5381 + $0x280] sm:$0xff]
        %v5463 = vld [vmem:[%s5381 + $0x288] sm:$0xff]
        %v5464 = vld [vmem:[%s5381 + $0x290] sm:$0xff]
        %v5465 = vld [vmem:[%s5381 + $0x298] sm:$0xff]
        %v5466 = vld [vmem:[%s5381 + $0x2a0] sm:$0xff]
        %v5467 = vld [vmem:[%s5381 + $0x2a8] sm:$0xff]
        %v5468 = vld [vmem:[%s5381 + $0x2b0] sm:$0xff]
        %v5469 = vld [vmem:[%s5381 + $0x2b8] sm:$0xff]
        %v5470 = vld [vmem:[%s5381 + $0x2c0] sm:$0xff]
        %v5471 = vld [vmem:[%s5381 + $0x2c8] sm:$0xff]
        %v5472 = vld [vmem:[%s5381 + $0x2d0] sm:$0xff]
        %v5473 = vld [vmem:[%s5381 + $0x2d8] sm:$0xff]
        %v5474 = vld [vmem:[%s5381 + $0x2e0] sm:$0xff]
        %v5475 = vld [vmem:[%s5381 + $0x2e8] sm:$0xff]
        %v5476 = vld [vmem:[%s5381 + $0x2f0] sm:$0xff]
        %v5477 = vld [vmem:[%s5381 + $0x2f8] sm:$0xff]
        %v5478 = vld [vmem:[%s5381 + $0x300] sm:$0xff]
        %v5479 = vld [vmem:[%s5381 + $0x308] sm:$0xff]
        %v5480 = vld [vmem:[%s5381 + $0x310] sm:$0xff]
        %v5481 = vld [vmem:[%s5381 + $0x318] sm:$0xff]
        %v5482 = vld [vmem:[%s5381 + $0x320] sm:$0xff]
        %v5483 = vld [vmem:[%s5381 + $0x328] sm:$0xff]
        %v5484 = vld [vmem:[%s5381 + $0x330] sm:$0xff]
        %v5485 = vld [vmem:[%s5381 + $0x338] sm:$0xff]
        %v5486 = vld [vmem:[%s5381 + $0x340] sm:$0xff]
        %v5487 = vld [vmem:[%s5381 + $0x348] sm:$0xff]
        %v5488 = vld [vmem:[%s5381 + $0x350] sm:$0xff]
        %v5489 = vld [vmem:[%s5381 + $0x358] sm:$0xff]
        %v5490 = vld [vmem:[%s5381 + $0x360] sm:$0xff]
        %v5491 = vld [vmem:[%s5381 + $0x368] sm:$0xff]
        %v5492 = vld [vmem:[%s5381 + $0x370] sm:$0xff]
        %v5493 = vld [vmem:[%s5381 + $0x378] sm:$0xff]
        %v5494 = vld [vmem:[%s5381 + $0x380] sm:$0xff]
        %v5495 = vld [vmem:[%s5381 + $0x388] sm:$0xff]
        %v5496 = vld [vmem:[%s5381 + $0x390] sm:$0xff]
        %v5497 = vld [vmem:[%s5381 + $0x398] sm:$0xff]
        %v5498 = vld [vmem:[%s5381 + $0x3a0] sm:$0xff]
        %v5499 = vld [vmem:[%s5381 + $0x3a8] sm:$0xff]
        %v5500 = vld [vmem:[%s5381 + $0x3b0] sm:$0xff]
        %v5501 = vld [vmem:[%s5381 + $0x3b8] sm:$0xff]
        %v5502 = vld [vmem:[%s5381 + $0x3c0] sm:$0xff]
        %v5503 = vld [vmem:[%s5381 + $0x3c8] sm:$0xff]
        %v5504 = vld [vmem:[%s5381 + $0x3d0] sm:$0xff]
        %v5505 = vld [vmem:[%s5381 + $0x3d8] sm:$0xff]
        %v5506 = vld [vmem:[%s5381 + $0x3e0] sm:$0xff]
        %v5507 = vld [vmem:[%s5381 + $0x3e8] sm:$0xff]
        %v5508 = vld [vmem:[%s5381 + $0x3f0] sm:$0xff]
        %v5509 = vld [vmem:[%s5381 + $0x3f8] sm:$0xff]
        %v5510 = vld [vmem:[%s5381 + $0x400] sm:$0xff]
        %v5511 = vld [vmem:[%s5381 + $0x408] sm:$0xff]
        %v5512 = vld [vmem:[%s5381 + $0x410] sm:$0xff]
        %v5513 = vld [vmem:[%s5381 + $0x418] sm:$0xff]
        %v5514 = vld [vmem:[%s5381 + $0x420] sm:$0xff]
        %v5515 = vld [vmem:[%s5381 + $0x428] sm:$0xff]
        %v5516 = vld [vmem:[%s5381 + $0x430] sm:$0xff]
        %v5517 = vld [vmem:[%s5381 + $0x438] sm:$0xff]
        %v5518 = vld [vmem:[%s5381 + $0x440] sm:$0xff]
        %v5519 = vld [vmem:[%s5381 + $0x448] sm:$0xff]
        %v5520 = vld [vmem:[%s5381 + $0x450] sm:$0xff]
        %v5521 = vld [vmem:[%s5381 + $0x458] sm:$0xff]
        %v5522 = vld [vmem:[%s5381 + $0x460] sm:$0xff]
        %v5523 = vld [vmem:[%s5381 + $0x468] sm:$0xff]
        %v5524 = vld [vmem:[%s5381 + $0x470] sm:$0xff]
        %v5525 = vld [vmem:[%s5381 + $0x478] sm:$0xff]
        %v5526 = vld [vmem:[%s5381 + $0x480] sm:$0xff]
        %v5527 = vld [vmem:[%s5381 + $0x488] sm:$0xff]
        %v5528 = vld [vmem:[%s5381 + $0x490] sm:$0xff]
        %v5529 = vld [vmem:[%s5381 + $0x498] sm:$0xff]
        %v5530 = vld [vmem:[%s5381 + $0x4a0] sm:$0xff]
        %v5531 = vld [vmem:[%s5381 + $0x4a8] sm:$0xff]
        %v5532 = vld [vmem:[%s5381 + $0x4b0] sm:$0xff]
        %v5533 = vld [vmem:[%s5381 + $0x4b8] sm:$0xff]
        %v5534 = vld [vmem:[%s5381 + $0x4c0] sm:$0xff]
        %v5535 = vld [vmem:[%s5381 + $0x4c8] sm:$0xff]
        %v5536 = vld [vmem:[%s5381 + $0x4d0] sm:$0xff]
        %v5537 = vld [vmem:[%s5381 + $0x4d8] sm:$0xff]
        %v5538 = vld [vmem:[%s5381 + $0x4e0] sm:$0xff]
        %v5539 = vld [vmem:[%s5381 + $0x4e8] sm:$0xff]
        %v5540 = vld [vmem:[%s5381 + $0x4f0] sm:$0xff]
        %v5541 = vld [vmem:[%s5381 + $0x4f8] sm:$0xff]
        %v5542 = vld [vmem:[%s5381 + $0x500] sm:$0xff]
        %v5543 = vld [vmem:[%s5381 + $0x508] sm:$0xff]
        %v5544 = vld [vmem:[%s5381 + $0x510] sm:$0xff]
        %v5545 = vld [vmem:[%s5381 + $0x518] sm:$0xff]
        %v5546 = vld [vmem:[%s5381 + $0x520] sm:$0xff]
        %v5547 = vld [vmem:[%s5381 + $0x528] sm:$0xff]
        %v5548 = vld [vmem:[%s5381 + $0x530] sm:$0xff]
        %v5549 = vld [vmem:[%s5381 + $0x538] sm:$0xff]
        %v5550 = vld [vmem:[%s5381 + $0x540] sm:$0xff]
        %v5551 = vld [vmem:[%s5381 + $0x548] sm:$0xff]
        %v5552 = vld [vmem:[%s5381 + $0x550] sm:$0xff]
        %v5553 = vld [vmem:[%s5381 + $0x558] sm:$0xff]
        %v5554 = vld [vmem:[%s5381 + $0x560] sm:$0xff]
        %v5555 = vld [vmem:[%s5381 + $0x568] sm:$0xff]
        %v5556 = vld [vmem:[%s5381 + $0x570] sm:$0xff]
        %v5557 = vld [vmem:[%s5381 + $0x578] sm:$0xff]
        %v5558 = vld [vmem:[%s5381 + $0x580] sm:$0xff]
        %v5559 = vld [vmem:[%s5381 + $0x588] sm:$0xff]
        %v5560 = vld [vmem:[%s5381 + $0x590] sm:$0xff]
        %v5561 = vld [vmem:[%s5381 + $0x598] sm:$0xff]
        %v5562 = vld [vmem:[%s5381 + $0x5a0] sm:$0xff]
        %v5563 = vld [vmem:[%s5381 + $0x5a8] sm:$0xff]
        %v5564 = vld [vmem:[%s5381 + $0x5b0] sm:$0xff]
        %v5565 = vld [vmem:[%s5381 + $0x5b8] sm:$0xff]
        %v5566 = vld [vmem:[%s5381 + $0x5c0] sm:$0xff]
        %v5567 = vld [vmem:[%s5381 + $0x5c8] sm:$0xff]
        %v5568 = vld [vmem:[%s5381 + $0x5d0] sm:$0xff]
        %v5569 = vld [vmem:[%s5381 + $0x5d8] sm:$0xff]
        %v5570 = vld [vmem:[%s5381 + $0x5e0] sm:$0xff]
        %v5571 = vld [vmem:[%s5381 + $0x5e8] sm:$0xff]
        %v5572 = vld [vmem:[%s5381 + $0x5f0] sm:$0xff]
        %v5573 = vld [vmem:[%s5381 + $0x5f8] sm:$0xff]
        %v5574 = vld [vmem:[%s5381 + $0x600] sm:$0xff]
        %v5575 = vld [vmem:[%s5381 + $0x608] sm:$0xff]
        %v5576 = vld [vmem:[%s5381 + $0x610] sm:$0xff]
        %v5577 = vld [vmem:[%s5381 + $0x618] sm:$0xff]
        %v5578 = vld [vmem:[%s5381 + $0x620] sm:$0xff]
        %v5579 = vld [vmem:[%s5381 + $0x628] sm:$0xff]
        %v5580 = vld [vmem:[%s5381 + $0x630] sm:$0xff]
        %v5581 = vld [vmem:[%s5381 + $0x638] sm:$0xff]
        %v5582 = vld [vmem:[%s5381 + $0x640] sm:$0xff]
        %v5583 = vld [vmem:[%s5381 + $0x648] sm:$0xff]
        %v5584 = vld [vmem:[%s5381 + $0x650] sm:$0xff]
        %v5585 = vld [vmem:[%s5381 + $0x658] sm:$0xff]
        %v5586 = vld [vmem:[%s5381 + $0x660] sm:$0xff]
        %v5587 = vld [vmem:[%s5381 + $0x668] sm:$0xff]
        %v5588 = vld [vmem:[%s5381 + $0x670] sm:$0xff]
        %v5589 = vld [vmem:[%s5381 + $0x678] sm:$0xff]
        %v5590 = vld [vmem:[%s5381 + $0x680] sm:$0xff]
        %v5591 = vld [vmem:[%s5381 + $0x688] sm:$0xff]
        %v5592 = vld [vmem:[%s5381 + $0x690] sm:$0xff]
        %v5593 = vld [vmem:[%s5381 + $0x698] sm:$0xff]
        %v5594 = vld [vmem:[%s5381 + $0x6a0] sm:$0xff]
        %v5595 = vld [vmem:[%s5381 + $0x6a8] sm:$0xff]
        %v5596 = vld [vmem:[%s5381 + $0x6b0] sm:$0xff]
        %v5597 = vld [vmem:[%s5381 + $0x6b8] sm:$0xff]
        %v5598 = vld [vmem:[%s5381 + $0x6c0] sm:$0xff]
        %v5599 = vld [vmem:[%s5381 + $0x6c8] sm:$0xff]
        %v5600 = vld [vmem:[%s5381 + $0x6d0] sm:$0xff]
        %v5601 = vld [vmem:[%s5381 + $0x6d8] sm:$0xff]
        %v5602 = vld [vmem:[%s5381 + $0x6e0] sm:$0xff]
        %v5603 = vld [vmem:[%s5381 + $0x6e8] sm:$0xff]
        %v5604 = vld [vmem:[%s5381 + $0x6f0] sm:$0xff]
        %v5605 = vld [vmem:[%s5381 + $0x6f8] sm:$0xff]
        %v5606 = vld [vmem:[%s5381 + $0x700] sm:$0xff]
        %v5607 = vld [vmem:[%s5381 + $0x708] sm:$0xff]
        %v5608 = vld [vmem:[%s5381 + $0x710] sm:$0xff]
        %v5609 = vld [vmem:[%s5381 + $0x718] sm:$0xff]
        %v5610 = vld [vmem:[%s5381 + $0x720] sm:$0xff]
        %v5611 = vld [vmem:[%s5381 + $0x728] sm:$0xff]
        %v5612 = vld [vmem:[%s5381 + $0x730] sm:$0xff]
        %v5613 = vld [vmem:[%s5381 + $0x738] sm:$0xff]
        %v5614 = vld [vmem:[%s5381 + $0x740] sm:$0xff]
        %v5615 = vld [vmem:[%s5381 + $0x748] sm:$0xff]
        %v5616 = vld [vmem:[%s5381 + $0x750] sm:$0xff]
        %v5617 = vld [vmem:[%s5381 + $0x758] sm:$0xff]
        %v5618 = vld [vmem:[%s5381 + $0x760] sm:$0xff]
        %v5619 = vld [vmem:[%s5381 + $0x768] sm:$0xff]
        %v5620 = vld [vmem:[%s5381 + $0x770] sm:$0xff]
        %v5621 = vld [vmem:[%s5381 + $0x778] sm:$0xff]
        %v5622 = vld [vmem:[%s5381 + $0x780] sm:$0xff]
        %v5623 = vld [vmem:[%s5381 + $0x788] sm:$0xff]
        %v5624 = vld [vmem:[%s5381 + $0x790] sm:$0xff]
        %v5625 = vld [vmem:[%s5381 + $0x798] sm:$0xff]
        %v5626 = vld [vmem:[%s5381 + $0x7a0] sm:$0xff]
        %v5627 = vld [vmem:[%s5381 + $0x7a8] sm:$0xff]
        %v5628 = vld [vmem:[%s5381 + $0x7b0] sm:$0xff]
        %v5629 = vld [vmem:[%s5381 + $0x7b8] sm:$0xff]
        %v5630 = vld [vmem:[%s5381 + $0x7c0] sm:$0xff]
        %v5631 = vld [vmem:[%s5381 + $0x7c8] sm:$0xff]
        %v5632 = vld [vmem:[%s5381 + $0x7d0] sm:$0xff]
        %v5633 = vld [vmem:[%s5381 + $0x7d8] sm:$0xff]
        %v5634 = vld [vmem:[%s5381 + $0x7e0] sm:$0xff]
        %v5635 = vld [vmem:[%s5381 + $0x7e8] sm:$0xff]
        %v5636 = vld [vmem:[%s5381 + $0x7f0] sm:$0xff]
        %v5637 = vld [vmem:[%s5381 + $0x7f8] sm:$0xff]
        %v5638 = vld [vmem:[%s5381 + $0x800] sm:$0xff]
        %v5639 = vld [vmem:[%s5381 + $0x808] sm:$0xff]
        %v5640 = vld [vmem:[%s5381 + $0x810] sm:$0xff]
        %v5641 = vld [vmem:[%s5381 + $0x818] sm:$0xff]
        %v5642 = vld [vmem:[%s5381 + $0x820] sm:$0xff]
        %v5643 = vld [vmem:[%s5381 + $0x828] sm:$0xff]
        %v5644 = vld [vmem:[%s5381 + $0x830] sm:$0xff]
        %v5645 = vld [vmem:[%s5381 + $0x838] sm:$0xff]
        %v5646 = vld [vmem:[%s5381 + $0x840] sm:$0xff]
        %v5647 = vld [vmem:[%s5381 + $0x848] sm:$0xff]
        %v5648 = vld [vmem:[%s5381 + $0x850] sm:$0xff]
        %v5649 = vld [vmem:[%s5381 + $0x858] sm:$0xff]
        %v5650 = vld [vmem:[%s5381 + $0x860] sm:$0xff]
        %v5651 = vld [vmem:[%s5381 + $0x868] sm:$0xff]
        %v5652 = vld [vmem:[%s5381 + $0x870] sm:$0xff]
        %v5653 = vld [vmem:[%s5381 + $0x878] sm:$0xff]
        %v5654 = vld [vmem:[%s5381 + $0x880] sm:$0xff]
        %v5655 = vld [vmem:[%s5381 + $0x888] sm:$0xff]
        %v5656 = vld [vmem:[%s5381 + $0x890] sm:$0xff]
        %v5657 = vld [vmem:[%s5381 + $0x898] sm:$0xff]
        %v5658 = vld [vmem:[%s5381 + $0x8a0] sm:$0xff]
        %v5659 = vld [vmem:[%s5381 + $0x8a8] sm:$0xff]
        %v5660 = vld [vmem:[%s5381 + $0x8b0] sm:$0xff]
        %v5661 = vld [vmem:[%s5381 + $0x8b8] sm:$0xff]
        %v5662 = vld [vmem:[%s5381 + $0x8c0] sm:$0xff]
        %v5663 = vld [vmem:[%s5381 + $0x8c8] sm:$0xff]
        %v5664 = vld [vmem:[%s5381 + $0x8d0] sm:$0xff]
        %v5665 = vld [vmem:[%s5381 + $0x8d8] sm:$0xff]
        %v5666 = vld [vmem:[%s5381 + $0x8e0] sm:$0xff]
        %v5667 = vld [vmem:[%s5381 + $0x8e8] sm:$0xff]
        %v5668 = vld [vmem:[%s5381 + $0x8f0] sm:$0xff]
        %v5669 = vld [vmem:[%s5381 + $0x8f8] sm:$0xff]
        %v5670 = vld [vmem:[%s5381 + $0x900] sm:$0xff]
        %v5671 = vld [vmem:[%s5381 + $0x908] sm:$0xff]
        %v5672 = vld [vmem:[%s5381 + $0x910] sm:$0xff]
        %v5673 = vld [vmem:[%s5381 + $0x918] sm:$0xff]
        %v5674 = vld [vmem:[%s5381 + $0x920] sm:$0xff]
        %v5675 = vld [vmem:[%s5381 + $0x928] sm:$0xff]
        %v5676 = vld [vmem:[%s5381 + $0x930] sm:$0xff]
        %v5677 = vld [vmem:[%s5381 + $0x938] sm:$0xff]
        %v5678 = vld [vmem:[%s5381 + $0x940] sm:$0xff]
        %v5679 = vld [vmem:[%s5381 + $0x948] sm:$0xff]
        %v5680 = vld [vmem:[%s5381 + $0x950] sm:$0xff]
        %v5681 = vld [vmem:[%s5381 + $0x958] sm:$0xff]
        %v5682 = vld [vmem:[%s5381 + $0x960] sm:$0xff]
        %v5683 = vld [vmem:[%s5381 + $0x968] sm:$0xff]
        %v5684 = vld [vmem:[%s5381 + $0x970] sm:$0xff]
        %v5685 = vld [vmem:[%s5381 + $0x978] sm:$0xff]
        %v5686 = vld [vmem:[%s5381 + $0x980] sm:$0xff]
        %v5687 = vld [vmem:[%s5381 + $0x988] sm:$0xff]
        %v5688 = vld [vmem:[%s5381 + $0x990] sm:$0xff]
        %v5689 = vld [vmem:[%s5381 + $0x998] sm:$0xff]
        %v5690 = vld [vmem:[%s5381 + $0x9a0] sm:$0xff]
        %v5691 = vld [vmem:[%s5381 + $0x9a8] sm:$0xff]
        %v5692 = vld [vmem:[%s5381 + $0x9b0] sm:$0xff]
        %v5693 = vld [vmem:[%s5381 + $0x9b8] sm:$0xff]
        %v5694 = vld [vmem:[%s5381 + $0x9c0] sm:$0xff]
        %v5695 = vld [vmem:[%s5381 + $0x9c8] sm:$0xff]
        %v5696 = vld [vmem:[%s5381 + $0x9d0] sm:$0xff]
        %v5697 = vld [vmem:[%s5381 + $0x9d8] sm:$0xff]
        %v5698 = vld [vmem:[%s5381 + $0x9e0] sm:$0xff]
        %v5699 = vld [vmem:[%s5381 + $0x9e8] sm:$0xff]
        %v5700 = vld [vmem:[%s5381 + $0x9f0] sm:$0xff]
        %v5701 = vld [vmem:[%s5381 + $0x9f8] sm:$0xff]
        %v5702 = vld [vmem:[%s5381 + $0xa00] sm:$0xff]
        %v5703 = vld [vmem:[%s5381 + $0xa08] sm:$0xff]
        %v5704 = vld [vmem:[%s5381 + $0xa10] sm:$0xff]
        %v5705 = vld [vmem:[%s5381 + $0xa18] sm:$0xff]
        %v5706 = vld [vmem:[%s5381 + $0xa20] sm:$0xff]
        %v5707 = vld [vmem:[%s5381 + $0xa28] sm:$0xff]
        %v5708 = vld [vmem:[%s5381 + $0xa30] sm:$0xff]
        %v5709 = vld [vmem:[%s5381 + $0xa38] sm:$0xff]
        %v5710 = vld [vmem:[%s5381 + $0xa40] sm:$0xff]
        %v5711 = vld [vmem:[%s5381 + $0xa48] sm:$0xff]
        %v5712 = vld [vmem:[%s5381 + $0xa50] sm:$0xff]
        %v5713 = vld [vmem:[%s5381 + $0xa58] sm:$0xff]
        %v5714 = vld [vmem:[%s5381 + $0xa60] sm:$0xff]
        %v5715 = vld [vmem:[%s5381 + $0xa68] sm:$0xff]
        %v5716 = vld [vmem:[%s5381 + $0xa70] sm:$0xff]
        %v5717 = vld [vmem:[%s5381 + $0xa78] sm:$0xff]
        %v5718 = vld [vmem:[%s5381 + $0xa80] sm:$0xff]
        %v5719 = vld [vmem:[%s5381 + $0xa88] sm:$0xff]
        %v5720 = vld [vmem:[%s5381 + $0xa90] sm:$0xff]
        %v5721 = vld [vmem:[%s5381 + $0xa98] sm:$0xff]
        %v5722 = vld [vmem:[%s5381 + $0xaa0] sm:$0xff]
        %v5723 = vld [vmem:[%s5381 + $0xaa8] sm:$0xff]
        %v5724 = vld [vmem:[%s5381 + $0xab0] sm:$0xff]
        %v5725 = vld [vmem:[%s5381 + $0xab8] sm:$0xff]
        %v5726 = vld [vmem:[%s5381 + $0xac0] sm:$0xff]
        %v5727 = vld [vmem:[%s5381 + $0xac8] sm:$0xff]
        %v5728 = vld [vmem:[%s5381 + $0xad0] sm:$0xff]
        %v5729 = vld [vmem:[%s5381 + $0xad8] sm:$0xff]
        %v5730 = vld [vmem:[%s5381 + $0xae0] sm:$0xff]
        %v5731 = vld [vmem:[%s5381 + $0xae8] sm:$0xff]
        %v5732 = vld [vmem:[%s5381 + $0xaf0] sm:$0xff]
        %v5733 = vld [vmem:[%s5381 + $0xaf8] sm:$0xff]
        %v5734 = vld [vmem:[%s5381 + $0xb00] sm:$0xff]
        %v5735 = vld [vmem:[%s5381 + $0xb08] sm:$0xff]
        %v5736 = vld [vmem:[%s5381 + $0xb10] sm:$0xff]
        %v5737 = vld [vmem:[%s5381 + $0xb18] sm:$0xff]
        %v5738 = vld [vmem:[%s5381 + $0xb20] sm:$0xff]
        %v5739 = vld [vmem:[%s5381 + $0xb28] sm:$0xff]
        %v5740 = vld [vmem:[%s5381 + $0xb30] sm:$0xff]
        %v5741 = vld [vmem:[%s5381 + $0xb38] sm:$0xff]
        %v5742 = vld [vmem:[%s5381 + $0xb40] sm:$0xff]
        %v5743 = vld [vmem:[%s5381 + $0xb48] sm:$0xff]
        %v5744 = vld [vmem:[%s5381 + $0xb50] sm:$0xff]
        %v5745 = vld [vmem:[%s5381 + $0xb58] sm:$0xff]
        %v5746 = vld [vmem:[%s5381 + $0xb60] sm:$0xff]
        %v5747 = vld [vmem:[%s5381 + $0xb68] sm:$0xff]
        %v5748 = vld [vmem:[%s5381 + $0xb70] sm:$0xff]
        %v5749 = vld [vmem:[%s5381 + $0xb78] sm:$0xff]
        %v5750 = vld [vmem:[%s5381 + $0xb80] sm:$0xff]
        %v5751 = vld [vmem:[%s5381 + $0xb88] sm:$0xff]
        %v5752 = vld [vmem:[%s5381 + $0xb90] sm:$0xff]
        %v5753 = vld [vmem:[%s5381 + $0xb98] sm:$0xff]
        %v5754 = vld [vmem:[%s5381 + $0xba0] sm:$0xff]
        %v5755 = vld [vmem:[%s5381 + $0xba8] sm:$0xff]
        %v5756 = vld [vmem:[%s5381 + $0xbb0] sm:$0xff]
        %v5757 = vld [vmem:[%s5381 + $0xbb8] sm:$0xff]
        %v5758 = vld [vmem:[%s5381 + $0xbc0] sm:$0xff]
        %v5759 = vld [vmem:[%s5381 + $0xbc8] sm:$0xff]
        %v5760 = vld [vmem:[%s5381 + $0xbd0] sm:$0xff]
        %v5761 = vld [vmem:[%s5381 + $0xbd8] sm:$0xff]
        %v5762 = vld [vmem:[%s5381 + $0xbe0] sm:$0xff]
        %v5763 = vld [vmem:[%s5381 + $0xbe8] sm:$0xff]
        %v5764 = vld [vmem:[%s5381 + $0xbf0] sm:$0xff]
        %v5765 = vld [vmem:[%s5381 + $0xbf8] sm:$0xff]
        %vm5774 = vcmask 1044480
        %v5775 = vrot.slane %v5373, 3
        %v5776 = vrot.slane %v5377, 3
        %v5777 = vsel %vm5774, %v5775, %v5776
        %v5778 = vrot.slane %v5374, 3
        %v5779 = vrot.slane %v5378, 3
        %v5780 = vsel %vm5774, %v5778, %v5779
        %v5781 = vrot.slane %v5375, 3
        %v5782 = vrot.slane %v5379, 3
        %v5783 = vsel %vm5774, %v5781, %v5782
        %v5784 = vrot.slane %v5376, 3
        %v5785 = vrot.slane %v5380, 3
        %v5786 = vsel %vm5774, %v5784, %v5785
        %5795 = vmatprep.subr.mxu0 %v5383
        %5796 = vmatpush1.msra.mxu0 %v5382
        %5797 = vmatprep.subr.mxu0 %v5389
        %5798 = vmatpush1.msra.mxu0 %v5388
        %5799 = vmatprep.subr.mxu0 %v5395
        %5800 = vmatpush1.msra.mxu0 %v5394
        %5801 = vmatprep.subr.mxu0 %v5401
        %5802 = vmatpush1.msra.mxu0 %v5400
        %5803 = vmatprep.subr.mxu0 %v5407
        %5804 = vmatpush1.msra.mxu0 %v5406
        %5805 = vmatprep.subr.mxu0 %v5413
        %5806 = vmatpush1.msra.mxu0 %v5412
        %5807 = vmatprep.subr.mxu0 %v5419
        %5808 = vmatpush1.msra.mxu0 %v5418
        %5809 = vmatprep.subr.mxu0 %v5425
        %5810 = vmatpush1.msra.mxu0 %v5424
        %5811 = vmatprep.subr.mxu0 %v5431
        %5812 = vmatpush1.msra.mxu0 %v5430
        %5813 = vmatprep.subr.mxu0 %v5437
        %5814 = vmatpush1.msra.mxu0 %v5436
        %5815 = vmatprep.subr.mxu0 %v5443
        %5816 = vmatpush1.msra.mxu0 %v5442
        %5817 = vmatprep.subr.mxu0 %v5449
        %5818 = vmatpush1.msra.mxu0 %v5448
        %5819 = vmatprep.subr.mxu0 %v5455
        %5820 = vmatpush1.msra.mxu0 %v5454
        %5821 = vmatprep.subr.mxu0 %v5461
        %5822 = vmatpush1.msra.mxu0 %v5460
        %5823 = vmatprep.subr.mxu0 %v5467
        %5824 = vmatpush1.msra.mxu0 %v5466
        %5825 = vmatprep.subr.mxu0 %v5473
        %5826 = vmatpush1.msra.mxu0 %v5472
        %5827 = vmatprep.subr.mxu0 %v5479
        %5828 = vmatpush1.msra.mxu0 %v5478
        %5829 = vmatprep.subr.mxu0 %v5485
        %5830 = vmatpush1.msra.mxu0 %v5484
        %5831 = vmatprep.subr.mxu0 %v5491
        %5832 = vmatpush1.msra.mxu0 %v5490
        %5833 = vmatprep.subr.mxu0 %v5497
        %5834 = vmatpush1.msra.mxu0 %v5496
        %5835 = vmatprep.subr.mxu0 %v5503
        %5836 = vmatpush1.msra.mxu0 %v5502
        %5837 = vmatprep.subr.mxu0 %v5509
        %5838 = vmatpush1.msra.mxu0 %v5508
        %5839 = vmatprep.subr.mxu0 %v5515
        %5840 = vmatpush1.msra.mxu0 %v5514
        %5841 = vmatprep.subr.mxu0 %v5521
        %5842 = vmatpush1.msra.mxu0 %v5520
        %5843 = vmatprep.subr.mxu0 %v5527
        %5844 = vmatpush1.msra.mxu0 %v5526
        %5845 = vmatprep.subr.mxu0 %v5533
        %5846 = vmatpush1.msra.mxu0 %v5532
        %5847 = vmatprep.subr.mxu0 %v5539
        %5848 = vmatpush1.msra.mxu0 %v5538
        %5849 = vmatprep.subr.mxu0 %v5545
        %5850 = vmatpush1.msra.mxu0 %v5544
        %5851 = vmatprep.subr.mxu0 %v5551
        %5852 = vmatpush1.msra.mxu0 %v5550
        %5853 = vmatprep.subr.mxu0 %v5557
        %5854 = vmatpush1.msra.mxu0 %v5556
        %5855 = vmatprep.subr.mxu0 %v5563
        %5856 = vmatpush1.msra.mxu0 %v5562
        %5857 = vmatprep.subr.mxu0 %v5569
        %5858 = vmatpush1.msra.mxu0 %v5568
        %5859 = vmatprep.mubr.f32.mxu0 %v5780
        %5860 = vmatmul.mubr.f32.gmra.mrb[0].mxu0 %v5777
        %v5861 = vpop.f32.mrb[0].mxu0
        %v5862 = vadd.f32 0.0, %v5861
        %v5863 = vpop.f32.mrb[0].mxu0
        %v5864 = vadd.f32 0.0, %v5863
        %5865 = vmatprep.mubr.f32.mxu0 %v5779
        %5866 = vmatmul.mubr.f32.gmra.mrb[0].mxu0 %v5776
        %v5867 = vpop.f32.mrb[0].mxu0
        %v5868 = vadd.f32 0.0, %v5867
        %v5869 = vpop.f32.mrb[0].mxu0
        %v5870 = vadd.f32 0.0, %v5869
        %5871 = vdwg.mxu0
        %5872 = vmatprep.subr.mxu0 %v5575
        %5873 = vmatpush1.msra.mxu0 %v5574
        %5874 = vmatprep.subr.mxu0 %v5581
        %5875 = vmatpush1.msra.mxu0 %v5580
        %5876 = vmatprep.subr.mxu0 %v5587
        %5877 = vmatpush1.msra.mxu0 %v5586
        %5878 = vmatprep.subr.mxu0 %v5593
        %5879 = vmatpush1.msra.mxu0 %v5592
        %5880 = vmatprep.subr.mxu0 %v5599
        %5881 = vmatpush1.msra.mxu0 %v5598
        %5882 = vmatprep.subr.mxu0 %v5605
        %5883 = vmatpush1.msra.mxu0 %v5604
        %5884 = vmatprep.subr.mxu0 %v5611
        %5885 = vmatpush1.msra.mxu0 %v5610
        %5886 = vmatprep.subr.mxu0 %v5617
        %5887 = vmatpush1.msra.mxu0 %v5616
        %5888 = vmatprep.subr.mxu0 %v5623
        %5889 = vmatpush1.msra.mxu0 %v5622
        %5890 = vmatprep.subr.mxu0 %v5629
        %5891 = vmatpush1.msra.mxu0 %v5628
        %5892 = vmatprep.subr.mxu0 %v5635
        %5893 = vmatpush1.msra.mxu0 %v5634
        %5894 = vmatprep.subr.mxu0 %v5641
        %5895 = vmatpush1.msra.mxu0 %v5640
        %5896 = vmatprep.subr.mxu0 %v5647
        %5897 = vmatpush1.msra.mxu0 %v5646
        %5898 = vmatprep.subr.mxu0 %v5653
        %5899 = vmatpush1.msra.mxu0 %v5652
        %5900 = vmatprep.subr.mxu0 %v5659
        %5901 = vmatpush1.msra.mxu0 %v5658
        %5902 = vmatprep.subr.mxu0 %v5665
        %5903 = vmatpush1.msra.mxu0 %v5664
        %5904 = vmatprep.subr.mxu0 %v5671
        %5905 = vmatpush1.msra.mxu0 %v5670
        %5906 = vmatprep.subr.mxu0 %v5677
        %5907 = vmatpush1.msra.mxu0 %v5676
        %5908 = vmatprep.subr.mxu0 %v5683
        %5909 = vmatpush1.msra.mxu0 %v5682
        %5910 = vmatprep.subr.mxu0 %v5689
        %5911 = vmatpush1.msra.mxu0 %v5688
        %5912 = vmatprep.subr.mxu0 %v5695
        %5913 = vmatpush1.msra.mxu0 %v5694
        %5914 = vmatprep.subr.mxu0 %v5701
        %5915 = vmatpush1.msra.mxu0 %v5700
        %5916 = vmatprep.subr.mxu0 %v5707
        %5917 = vmatpush1.msra.mxu0 %v5706
        %5918 = vmatprep.subr.mxu0 %v5713
        %5919 = vmatpush1.msra.mxu0 %v5712
        %5920 = vmatprep.subr.mxu0 %v5719
        %5921 = vmatpush1.msra.mxu0 %v5718
        %5922 = vmatprep.subr.mxu0 %v5725
        %5923 = vmatpush1.msra.mxu0 %v5724
        %5924 = vmatprep.subr.mxu0 %v5731
        %5925 = vmatpush1.msra.mxu0 %v5730
        %5926 = vmatprep.subr.mxu0 %v5737
        %5927 = vmatpush1.msra.mxu0 %v5736
        %5928 = vmatprep.subr.mxu0 %v5743
        %5929 = vmatpush1.msra.mxu0 %v5742
        %5930 = vmatprep.subr.mxu0 %v5749
        %5931 = vmatpush1.msra.mxu0 %v5748
        %5932 = vmatprep.subr.mxu0 %v5755
        %5933 = vmatpush1.msra.mxu0 %v5754
        %5934 = vmatprep.subr.mxu0 %v5761
        %5935 = vmatpush1.msra.mxu0 %v5760
        %5936 = vmatprep.mubr.f32.mxu0 %v5786
        %5937 = vmatmul.mubr.f32.gmra.mrb[0].mxu0 %v5783
        %v5938 = vpop.f32.mrb[0].mxu0
        %v5939 = vadd.f32 %v5862, %v5938
        %v5940 = vpop.f32.mrb[0].mxu0
        %v5941 = vadd.f32 %v5864, %v5940
        %5942 = vmatprep.mubr.f32.mxu0 %v5785
        %5943 = vmatmul.mubr.f32.gmra.mrb[0].mxu0 %v5782
        %v5944 = vpop.f32.mrb[0].mxu0
        %v5945 = vadd.f32 %v5868, %v5944
        %v5946 = vpop.f32.mrb[0].mxu0
        %v5947 = vadd.f32 %v5870, %v5946
        %5948 = vdwg.mxu0
        %5949 = vmatprep.subr.mxu0 %v5385
        %5950 = vmatpush1.msra.mxu0 %v5384
        %5951 = vmatprep.subr.mxu0 %v5391
        %5952 = vmatpush1.msra.mxu0 %v5390
        %5953 = vmatprep.subr.mxu0 %v5397
        %5954 = vmatpush1.msra.mxu0 %v5396
        %5955 = vmatprep.subr.mxu0 %v5403
        %5956 = vmatpush1.msra.mxu0 %v5402
        %5957 = vmatprep.subr.mxu0 %v5409
        %5958 = vmatpush1.msra.mxu0 %v5408
        %5959 = vmatprep.subr.mxu0 %v5415
        %5960 = vmatpush1.msra.mxu0 %v5414
        %5961 = vmatprep.subr.mxu0 %v5421
        %5962 = vmatpush1.msra.mxu0 %v5420
        %5963 = vmatprep.subr.mxu0 %v5427
        %5964 = vmatpush1.msra.mxu0 %v5426
        %5965 = vmatprep.subr.mxu0 %v5433
        %5966 = vmatpush1.msra.mxu0 %v5432
        %5967 = vmatprep.subr.mxu0 %v5439
        %5968 = vmatpush1.msra.mxu0 %v5438
        %5969 = vmatprep.subr.mxu0 %v5445
        %5970 = vmatpush1.msra.mxu0 %v5444
        %5971 = vmatprep.subr.mxu0 %v5451
        %5972 = vmatpush1.msra.mxu0 %v5450
        %5973 = vmatprep.subr.mxu0 %v5457
        %5974 = vmatpush1.msra.mxu0 %v5456
        %5975 = vmatprep.subr.mxu0 %v5463
        %5976 = vmatpush1.msra.mxu0 %v5462
        %5977 = vmatprep.subr.mxu0 %v5469
        %5978 = vmatpush1.msra.mxu0 %v5468
        %5979 = vmatprep.subr.mxu0 %v5475
        %5980 = vmatpush1.msra.mxu0 %v5474
        %5981 = vmatprep.subr.mxu0 %v5481
        %5982 = vmatpush1.msra.mxu0 %v5480
        %5983 = vmatprep.subr.mxu0 %v5487
        %5984 = vmatpush1.msra.mxu0 %v5486
        %5985 = vmatprep.subr.mxu0 %v5493
        %5986 = vmatpush1.msra.mxu0 %v5492
        %5987 = vmatprep.subr.mxu0 %v5499
        %5988 = vmatpush1.msra.mxu0 %v5498
        %5989 = vmatprep.subr.mxu0 %v5505
        %5990 = vmatpush1.msra.mxu0 %v5504
        %5991 = vmatprep.subr.mxu0 %v5511
        %5992 = vmatpush1.msra.mxu0 %v5510
        %5993 = vmatprep.subr.mxu0 %v5517
        %5994 = vmatpush1.msra.mxu0 %v5516
        %5995 = vmatprep.subr.mxu0 %v5523
        %5996 = vmatpush1.msra.mxu0 %v5522
        %5997 = vmatprep.subr.mxu0 %v5529
        %5998 = vmatpush1.msra.mxu0 %v5528
        %5999 = vmatprep.subr.mxu0 %v5535
        %6000 = vmatpush1.msra.mxu0 %v5534
        %6001 = vmatprep.subr.mxu0 %v5541
        %6002 = vmatpush1.msra.mxu0 %v5540
        %6003 = vmatprep.subr.mxu0 %v5547
        %6004 = vmatpush1.msra.mxu0 %v5546
        %6005 = vmatprep.subr.mxu0 %v5553
        %6006 = vmatpush1.msra.mxu0 %v5552
        %6007 = vmatprep.subr.mxu0 %v5559
        %6008 = vmatpush1.msra.mxu0 %v5558
        %6009 = vmatprep.subr.mxu0 %v5565
        %6010 = vmatpush1.msra.mxu0 %v5564
        %6011 = vmatprep.subr.mxu0 %v5571
        %6012 = vmatpush1.msra.mxu0 %v5570
        %6013 = vmatprep.mubr.f32.mxu0 %v5780
        %6014 = vmatmul.mubr.f32.gmra.mrb[0].mxu0 %v5777
        %v6015 = vpop.f32.mrb[0].mxu0
        %v6016 = vadd.f32 0.0, %v6015
        %v6017 = vpop.f32.mrb[0].mxu0
        %v6018 = vadd.f32 0.0, %v6017
        %6019 = vmatprep.mubr.f32.mxu0 %v5779
        %6020 = vmatmul.mubr.f32.gmra.mrb[0].mxu0 %v5776
        %v6021 = vpop.f32.mrb[0].mxu0
        %v6022 = vadd.f32 0.0, %v6021
        %v6023 = vpop.f32.mrb[0].mxu0
        %v6024 = vadd.f32 0.0, %v6023
        %6025 = vdwg.mxu0
        %6026 = vmatprep.subr.mxu0 %v5577
        %6027 = vmatpush1.msra.mxu0 %v5576
        %6028 = vmatprep.subr.mxu0 %v5583
        %6029 = vmatpush1.msra.mxu0 %v5582
        %6030 = vmatprep.subr.mxu0 %v5589
        %6031 = vmatpush1.msra.mxu0 %v5588
        %6032 = vmatprep.subr.mxu0 %v5595
        %6033 = vmatpush1.msra.mxu0 %v5594
        %6034 = vmatprep.subr.mxu0 %v5601
        %6035 = vmatpush1.msra.mxu0 %v5600
        %6036 = vmatprep.subr.mxu0 %v5607
        %6037 = vmatpush1.msra.mxu0 %v5606
        %6038 = vmatprep.subr.mxu0 %v5613
        %6039 = vmatpush1.msra.mxu0 %v5612
        %6040 = vmatprep.subr.mxu0 %v5619
        %6041 = vmatpush1.msra.mxu0 %v5618
        %6042 = vmatprep.subr.mxu0 %v5625
        %6043 = vmatpush1.msra.mxu0 %v5624
        %6044 = vmatprep.subr.mxu0 %v5631
        %6045 = vmatpush1.msra.mxu0 %v5630
        %6046 = vmatprep.subr.mxu0 %v5637
        %6047 = vmatpush1.msra.mxu0 %v5636
        %6048 = vmatprep.subr.mxu0 %v5643
        %6049 = vmatpush1.msra.mxu0 %v5642
        %6050 = vmatprep.subr.mxu0 %v5649
        %6051 = vmatpush1.msra.mxu0 %v5648
        %6052 = vmatprep.subr.mxu0 %v5655
        %6053 = vmatpush1.msra.mxu0 %v5654
        %6054 = vmatprep.subr.mxu0 %v5661
        %6055 = vmatpush1.msra.mxu0 %v5660
        %6056 = vmatprep.subr.mxu0 %v5667
        %6057 = vmatpush1.msra.mxu0 %v5666
        %6058 = vmatprep.subr.mxu0 %v5673
        %6059 = vmatpush1.msra.mxu0 %v5672
        %6060 = vmatprep.subr.mxu0 %v5679
        %6061 = vmatpush1.msra.mxu0 %v5678
        %6062 = vmatprep.subr.mxu0 %v5685
        %6063 = vmatpush1.msra.mxu0 %v5684
        %6064 = vmatprep.subr.mxu0 %v5691
        %6065 = vmatpush1.msra.mxu0 %v5690
        %6066 = vmatprep.subr.mxu0 %v5697
        %6067 = vmatpush1.msra.mxu0 %v5696
        %6068 = vmatprep.subr.mxu0 %v5703
        %6069 = vmatpush1.msra.mxu0 %v5702
        %6070 = vmatprep.subr.mxu0 %v5709
        %6071 = vmatpush1.msra.mxu0 %v5708
        %6072 = vmatprep.subr.mxu0 %v5715
        %6073 = vmatpush1.msra.mxu0 %v5714
        %6074 = vmatprep.subr.mxu0 %v5721
        %6075 = vmatpush1.msra.mxu0 %v5720
        %6076 = vmatprep.subr.mxu0 %v5727
        %6077 = vmatpush1.msra.mxu0 %v5726
        %6078 = vmatprep.subr.mxu0 %v5733
        %6079 = vmatpush1.msra.mxu0 %v5732
        %6080 = vmatprep.subr.mxu0 %v5739
        %6081 = vmatpush1.msra.mxu0 %v5738
        %6082 = vmatprep.subr.mxu0 %v5745
        %6083 = vmatpush1.msra.mxu0 %v5744
        %6084 = vmatprep.subr.mxu0 %v5751
        %6085 = vmatpush1.msra.mxu0 %v5750
        %6086 = vmatprep.subr.mxu0 %v5757
        %6087 = vmatpush1.msra.mxu0 %v5756
        %6088 = vmatprep.subr.mxu0 %v5763
        %6089 = vmatpush1.msra.mxu0 %v5762
        %6090 = vmatprep.mubr.f32.mxu0 %v5786
        %6091 = vmatmul.mubr.f32.gmra.mrb[0].mxu0 %v5783
        %v6092 = vpop.f32.mrb[0].mxu0
        %v6093 = vadd.f32 %v6016, %v6092
        %v6094 = vpop.f32.mrb[0].mxu0
        %v6095 = vadd.f32 %v6018, %v6094
        %6096 = vmatprep.mubr.f32.mxu0 %v5785
        %6097 = vmatmul.mubr.f32.gmra.mrb[0].mxu0 %v5782
        %v6098 = vpop.f32.mrb[0].mxu0
        %v6099 = vadd.f32 %v6022, %v6098
        %v6100 = vpop.f32.mrb[0].mxu0
        %v6101 = vadd.f32 %v6024, %v6100
        %6102 = vdwg.mxu0
        %6103 = vmatprep.subr.mxu0 %v5387
        %6104 = vmatpush1.msra.mxu0 %v5386
        %6105 = vmatprep.subr.mxu0 %v5393
        %6106 = vmatpush1.msra.mxu0 %v5392
        %6107 = vmatprep.subr.mxu0 %v5399
        %6108 = vmatpush1.msra.mxu0 %v5398
        %6109 = vmatprep.subr.mxu0 %v5405
        %6110 = vmatpush1.msra.mxu0 %v5404
        %6111 = vmatprep.subr.mxu0 %v5411
        %6112 = vmatpush1.msra.mxu0 %v5410
        %6113 = vmatprep.subr.mxu0 %v5417
        %6114 = vmatpush1.msra.mxu0 %v5416
        %6115 = vmatprep.subr.mxu0 %v5423
        %6116 = vmatpush1.msra.mxu0 %v5422
        %6117 = vmatprep.subr.mxu0 %v5429
        %6118 = vmatpush1.msra.mxu0 %v5428
        %6119 = vmatprep.subr.mxu0 %v5435
        %6120 = vmatpush1.msra.mxu0 %v5434
        %6121 = vmatprep.subr.mxu0 %v5441
        %6122 = vmatpush1.msra.mxu0 %v5440
        %6123 = vmatprep.subr.mxu0 %v5447
        %6124 = vmatpush1.msra.mxu0 %v5446
        %6125 = vmatprep.subr.mxu0 %v5453
        %6126 = vmatpush1.msra.mxu0 %v5452
        %6127 = vmatprep.subr.mxu0 %v5459
        %6128 = vmatpush1.msra.mxu0 %v5458
        %6129 = vmatprep.subr.mxu0 %v5465
        %6130 = vmatpush1.msra.mxu0 %v5464
        %6131 = vmatprep.subr.mxu0 %v5471
        %6132 = vmatpush1.msra.mxu0 %v5470
        %6133 = vmatprep.subr.mxu0 %v5477
        %6134 = vmatpush1.msra.mxu0 %v5476
        %6135 = vmatprep.subr.mxu0 %v5483
        %6136 = vmatpush1.msra.mxu0 %v5482
        %6137 = vmatprep.subr.mxu0 %v5489
        %6138 = vmatpush1.msra.mxu0 %v5488
        %6139 = vmatprep.subr.mxu0 %v5495
        %6140 = vmatpush1.msra.mxu0 %v5494
        %6141 = vmatprep.subr.mxu0 %v5501
        %6142 = vmatpush1.msra.mxu0 %v5500
        %6143 = vmatprep.subr.mxu0 %v5507
        %6144 = vmatpush1.msra.mxu0 %v5506
        %6145 = vmatprep.subr.mxu0 %v5513
        %6146 = vmatpush1.msra.mxu0 %v5512
        %6147 = vmatprep.subr.mxu0 %v5519
        %6148 = vmatpush1.msra.mxu0 %v5518
        %6149 = vmatprep.subr.mxu0 %v5525
        %6150 = vmatpush1.msra.mxu0 %v5524
        %6151 = vmatprep.subr.mxu0 %v5531
        %6152 = vmatpush1.msra.mxu0 %v5530
        %6153 = vmatprep.subr.mxu0 %v5537
        %6154 = vmatpush1.msra.mxu0 %v5536
        %6155 = vmatprep.subr.mxu0 %v5543
        %6156 = vmatpush1.msra.mxu0 %v5542
        %6157 = vmatprep.subr.mxu0 %v5549
        %6158 = vmatpush1.msra.mxu0 %v5548
        %6159 = vmatprep.subr.mxu0 %v5555
        %6160 = vmatpush1.msra.mxu0 %v5554
        %6161 = vmatprep.subr.mxu0 %v5561
        %6162 = vmatpush1.msra.mxu0 %v5560
        %6163 = vmatprep.subr.mxu0 %v5567
        %6164 = vmatpush1.msra.mxu0 %v5566
        %6165 = vmatprep.subr.mxu0 %v5573
        %6166 = vmatpush1.msra.mxu0 %v5572
        %6167 = vmatprep.mubr.f32.mxu0 %v5780
        %6168 = vmatmul.mubr.f32.gmra.mrb[0].mxu0 %v5777
        %v6169 = vpop.f32.mrb[0].mxu0
        %v6170 = vadd.f32 0.0, %v6169
        %v6171 = vpop.f32.mrb[0].mxu0
        %v6172 = vadd.f32 0.0, %v6171
        %6173 = vmatprep.mubr.f32.mxu0 %v5779
        %6174 = vmatmul.mubr.f32.gmra.mrb[0].mxu0 %v5776
        %v6175 = vpop.f32.mrb[0].mxu0
        %v6176 = vadd.f32 0.0, %v6175
        %v6177 = vpop.f32.mrb[0].mxu0
        %v6178 = vadd.f32 0.0, %v6177
        %6179 = vdwg.mxu0
        %6180 = vmatprep.subr.mxu0 %v5579
        %6181 = vmatpush1.msra.mxu0 %v5578
        %6182 = vmatprep.subr.mxu0 %v5585
        %6183 = vmatpush1.msra.mxu0 %v5584
        %6184 = vmatprep.subr.mxu0 %v5591
        %6185 = vmatpush1.msra.mxu0 %v5590
        %6186 = vmatprep.subr.mxu0 %v5597
        %6187 = vmatpush1.msra.mxu0 %v5596
        %6188 = vmatprep.subr.mxu0 %v5603
        %6189 = vmatpush1.msra.mxu0 %v5602
        %6190 = vmatprep.subr.mxu0 %v5609
        %6191 = vmatpush1.msra.mxu0 %v5608
        %6192 = vmatprep.subr.mxu0 %v5615
        %6193 = vmatpush1.msra.mxu0 %v5614
        %6194 = vmatprep.subr.mxu0 %v5621
        %6195 = vmatpush1.msra.mxu0 %v5620
        %6196 = vmatprep.subr.mxu0 %v5627
        %6197 = vmatpush1.msra.mxu0 %v5626
        %6198 = vmatprep.subr.mxu0 %v5633
        %6199 = vmatpush1.msra.mxu0 %v5632
        %6200 = vmatprep.subr.mxu0 %v5639
        %6201 = vmatpush1.msra.mxu0 %v5638
        %6202 = vmatprep.subr.mxu0 %v5645
        %6203 = vmatpush1.msra.mxu0 %v5644
        %6204 = vmatprep.subr.mxu0 %v5651
        %6205 = vmatpush1.msra.mxu0 %v5650
        %6206 = vmatprep.subr.mxu0 %v5657
        %6207 = vmatpush1.msra.mxu0 %v5656
        %6208 = vmatprep.subr.mxu0 %v5663
        %6209 = vmatpush1.msra.mxu0 %v5662
        %6210 = vmatprep.subr.mxu0 %v5669
        %6211 = vmatpush1.msra.mxu0 %v5668
        %6212 = vmatprep.subr.mxu0 %v5675
        %6213 = vmatpush1.msra.mxu0 %v5674
        %6214 = vmatprep.subr.mxu0 %v5681
        %6215 = vmatpush1.msra.mxu0 %v5680
        %6216 = vmatprep.subr.mxu0 %v5687
        %6217 = vmatpush1.msra.mxu0 %v5686
        %6218 = vmatprep.subr.mxu0 %v5693
        %6219 = vmatpush1.msra.mxu0 %v5692
        %6220 = vmatprep.subr.mxu0 %v5699
        %6221 = vmatpush1.msra.mxu0 %v5698
        %6222 = vmatprep.subr.mxu0 %v5705
        %6223 = vmatpush1.msra.mxu0 %v5704
        %6224 = vmatprep.subr.mxu0 %v5711
        %6225 = vmatpush1.msra.mxu0 %v5710
        %6226 = vmatprep.subr.mxu0 %v5717
        %6227 = vmatpush1.msra.mxu0 %v5716
        %6228 = vmatprep.subr.mxu0 %v5723
        %6229 = vmatpush1.msra.mxu0 %v5722
        %6230 = vmatprep.subr.mxu0 %v5729
        %6231 = vmatpush1.msra.mxu0 %v5728
        %6232 = vmatprep.subr.mxu0 %v5735
        %6233 = vmatpush1.msra.mxu0 %v5734
        %6234 = vmatprep.subr.mxu0 %v5741
        %6235 = vmatpush1.msra.mxu0 %v5740
        %6236 = vmatprep.subr.mxu0 %v5747
        %6237 = vmatpush1.msra.mxu0 %v5746
        %6238 = vmatprep.subr.mxu0 %v5753
        %6239 = vmatpush1.msra.mxu0 %v5752
        %6240 = vmatprep.subr.mxu0 %v5759
        %6241 = vmatpush1.msra.mxu0 %v5758
        %6242 = vmatprep.subr.mxu0 %v5765
        %6243 = vmatpush1.msra.mxu0 %v5764
        %6244 = vmatprep.mubr.f32.mxu0 %v5786
        %6245 = vmatmul.mubr.f32.gmra.mrb[0].mxu0 %v5783
        %v6246 = vpop.f32.mrb[0].mxu0
        %v6247 = vadd.f32 %v6170, %v6246
        %v6248 = vpop.f32.mrb[0].mxu0
        %v6249 = vadd.f32 %v6172, %v6248
        %6250 = vmatprep.mubr.f32.mxu0 %v5785
        %6251 = vmatmul.mubr.f32.gmra.mrb[0].mxu0 %v5782
        %v6252 = vpop.f32.mrb[0].mxu0
        %v6253 = vadd.f32 %v6176, %v6252
        %v6254 = vpop.f32.mrb[0].mxu0
        %v6255 = vadd.f32 %v6178, %v6254
        %6256 = vdwg.mxu0
        %v6257 = vadd.f32 %v5361, %v5939
        %v6258 = vadd.f32 %v5362, %v5941
        %v6259 = vadd.f32 %v5363, %v6093
        %v6260 = vadd.f32 %v5364, %v6095
        %v6261 = vadd.f32 %v5365, %v6247
        %v6262 = vadd.f32 %v5366, %v6249
        %v6263 = vadd.f32 %v5367, %v5945
        %v6264 = vadd.f32 %v5368, %v5947
        %v6265 = vadd.f32 %v5369, %v6099
        %v6266 = vadd.f32 %v5370, %v6101
        %v6267 = vadd.f32 %v5371, %v6253
        %v6268 = vadd.f32 %v5372, %v6255
        %v6269 = vld [vmem:[%s5] sm:$0x3f]
        %v6271 = vlaneseq
        %v6272 = vshrl.u32 %v6271, 7
        %v6273 = vsub.s32 0, %v6272
        %v6274 = vrot.slane %v6269, %v6273
        %v6275 = vlaneseq
        %v6276 = vshrl.u32 %v6275, 7
        %v6277 = vsub.s32 1, %v6276
        %v6278 = vrot.slane %v6269, %v6277
        %v6279 = vlaneseq
        %v6280 = vshrl.u32 %v6279, 7
        %v6281 = vsub.s32 2, %v6280
        %v6282 = vrot.slane %v6269, %v6281
        %v6283 = vlaneseq
        %v6284 = vshrl.u32 %v6283, 7
        %v6285 = vsub.s32 3, %v6284
        %v6286 = vrot.slane %v6269, %v6285
        %v6287 = vlaneseq
        %v6288 = vshrl.u32 %v6287, 7
        %v6289 = vsub.s32 4, %v6288
        %v6290 = vrot.slane %v6269, %v6289
        %v6291 = vlaneseq
        %v6292 = vshrl.u32 %v6291, 7
        %v6293 = vsub.s32 5, %v6292
        %v6294 = vrot.slane %v6269, %v6293
        %v6301 = vadd.f32 %v6257, %v6274
        %v6302 = vadd.f32 %v6258, %v6278
        %v6303 = vadd.f32 %v6259, %v6282
        %v6304 = vadd.f32 %v6260, %v6286
        %v6305 = vadd.f32 %v6261, %v6290
        %v6306 = vadd.f32 %v6262, %v6294
        %v6307 = vadd.f32 %v6263, %v6274
        %v6308 = vadd.f32 %v6264, %v6278
        %v6309 = vadd.f32 %v6265, %v6282
        %v6310 = vadd.f32 %v6266, %v6286
        %v6311 = vadd.f32 %v6267, %v6290
        %v6312 = vadd.f32 %v6268, %v6294
        %vm6313 = vcmp.ge.f32.partialorder %v6301, 0.0
        %vm6314 = vcmp.ge.f32.partialorder %v6302, 0.0
        %vm6315 = vcmp.ge.f32.partialorder %v6303, 0.0
        %vm6316 = vcmp.ge.f32.partialorder %v6304, 0.0
        %vm6317 = vcmp.ge.f32.partialorder %v6305, 0.0
        %vm6318 = vcmp.ge.f32.partialorder %v6306, 0.0
        %vm6319 = vcmp.ge.f32.partialorder %v6307, 0.0
        %vm6320 = vcmp.ge.f32.partialorder %v6308, 0.0
        %vm6321 = vcmp.ge.f32.partialorder %v6309, 0.0
        %vm6322 = vcmp.ge.f32.partialorder %v6310, 0.0
        %vm6323 = vcmp.ge.f32.partialorder %v6311, 0.0
        %vm6324 = vcmp.ge.f32.partialorder %v6312, 0.0
        %v6325 = vmul.f32 %v2528, %v6301
        %v6326 = vmul.f32 %v2528, %v6302
        %v6327 = vmul.f32 %v2528, %v6303
        %v6328 = vmul.f32 %v2528, %v6304
        %v6329 = vmul.f32 %v2528, %v6305
        %v6330 = vmul.f32 %v2528, %v6306
        %v6331 = vmul.f32 %v2528, %v6307
        %v6332 = vmul.f32 %v2528, %v6308
        %v6333 = vmul.f32 %v2528, %v6309
        %v6334 = vmul.f32 %v2528, %v6310
        %v6335 = vmul.f32 %v2528, %v6311
        %v6336 = vmul.f32 %v2528, %v6312
        %v6337 = vsel %vm6313, %v6301, %v6325
        %v6338 = vsel %vm6314, %v6302, %v6326
        %v6339 = vsel %vm6315, %v6303, %v6327
        %v6340 = vsel %vm6316, %v6304, %v6328
        %v6341 = vsel %vm6317, %v6305, %v6329
        %v6342 = vsel %vm6318, %v6306, %v6330
        %v6343 = vsel %vm6319, %v6307, %v6331
        %v6344 = vsel %vm6320, %v6308, %v6332
        %v6345 = vsel %vm6321, %v6309, %v6333
        %v6346 = vsel %vm6322, %v6310, %v6334
        %v6347 = vsel %vm6323, %v6311, %v6335
        %v6348 = vsel %vm6324, %v6312, %v6336
        %v6349 = vmax.f32 %v6337, %v6340
        %v6350 = vmax.f32 %v6338, %v6341
        %v6351 = vmax.f32 %v6339, %v6342
        %v6352 = vmax.f32 %v6343, %v6346
        %v6353 = vmax.f32 %v6344, %v6347
        %v6354 = vmax.f32 %v6345, %v6348
        %6355 = vst [vmem:[#allocation4] sm:$0xff] %v6349
        %6356 = vst [vmem:[#allocation4 + $0x8] sm:$0xff] %v6350
        %6357 = vst [vmem:[#allocation4 + $0x10] sm:$0xff] %v6351
        %6358 = vst [vmem:[#allocation4 + $0x18] sm:$0x7] %v6352
        %6359 = vst [vmem:[#allocation4 + $0x20] sm:$0x7] %v6353
        %6360 = vst [vmem:[#allocation4 + $0x28] sm:$0x7] %v6354
        %v6361 = vld [vmem:[#allocation4] ss:$8 sm:$0x7]
        %s6362 = scalar_lea.vmem [#allocation4], 1
        %v6363 = vld [vmem:[%s6362] ss:$8 sm:$0x7]
        %v6364 = vmax.f32 %v6361, %v6363
        %vm6365 = vcmp.lt.s32.totalorder %v2629, 384
        %vm6366 = vmand %vm2630, %vm6365
        %6367 = vst.msk [vmem:[#allocation5] ss:$8 sm:$0x7] %vm6366, %v6364
        %6368 = vst.msk [vmem:[#allocation5] ss:$8 sm:$0x0] %vm6366, %v6364
        %s6369 = scalar_lea.vmem [#allocation4], 2
        %v6370 = vld [vmem:[%s6369] ss:$8 sm:$0x7]
        %s6371 = scalar_lea.vmem [#allocation4], 3
        %v6372 = vld [vmem:[%s6371] ss:$8 sm:$0x7]
        %v6373 = vmax.f32 %v6370, %v6372
        %s6374 = scalar_lea.vmem [#allocation5], 1
        %6375 = vst.msk [vmem:[%s6374] ss:$8 sm:$0x7] %vm6366, %v6373
        %6376 = vst.msk [vmem:[%s6374] ss:$8 sm:$0x0] %vm6366, %v6373
        %s6377 = scalar_lea.vmem [#allocation4], 4
        %v6378 = vld [vmem:[%s6377] ss:$8 sm:$0x7]
        %s6379 = scalar_lea.vmem [#allocation4], 5
        %v6380 = vld [vmem:[%s6379] ss:$8 sm:$0x7]
        %v6381 = vmax.f32 %v6378, %v6380
        %s6382 = scalar_lea.vmem [#allocation5], 2
        %6383 = vst.msk [vmem:[%s6382] ss:$8 sm:$0x7] %vm6366, %v6381
        %6384 = vst.msk [vmem:[%s6382] ss:$8 sm:$0x0] %vm6366, %v6381
        %s6385 = scalar_lea.vmem [#allocation4], 6
        %v6386 = vld [vmem:[%s6385] ss:$8 sm:$0x7]
        %s6387 = scalar_lea.vmem [#allocation4], 7
        %v6388 = vld [vmem:[%s6387] ss:$8 sm:$0x7]
        %v6389 = vmax.f32 %v6386, %v6388
        %s6390 = scalar_lea.vmem [#allocation5], 3
        %6391 = vst.msk [vmem:[%s6390] ss:$8 sm:$0x7] %vm6366, %v6389
        %6392 = vst.msk [vmem:[%s6390] ss:$8 sm:$0x0] %vm6366, %v6389
        %s6393 = scalar_lea.vmem [#allocation4], 24
        %v6394 = vld [vmem:[%s6393] ss:$8 sm:$0x7]
        %s6395 = scalar_lea.vmem [#allocation4], 25
        %v6396 = vld [vmem:[%s6395] ss:$8 sm:$0x7]
        %v6397 = vmax.f32 %v6394, %v6396
        %s6398 = scalar_lea.vmem [#allocation5], 4
        %6399 = vst.msk [vmem:[%s6398] ss:$8 sm:$0x7] %vm6366, %v6397
        %6400 = vst.msk [vmem:[%s6398] ss:$8 sm:$0x0] %vm6366, %v6397
        %v6401 = vld [vmem:[#allocation5] ss:$8 sm:$0x7]
        %v6402 = vld [vmem:[%s6] sm:$0xff]
        %v6403 = vld [vmem:[%s6 + $0x8] sm:$0xff]
        %v6404 = vld [vmem:[%s6 + $0x10] sm:$0xff]
        %v6405 = vld [vmem:[%s6 + $0x18] sm:$0xff]
        %v6406 = vld [vmem:[%s6 + $0x20] sm:$0xff]
        %v6407 = vld [vmem:[%s6 + $0x28] sm:$0xff]
        %v6408 = vld [vmem:[%s6 + $0x30] sm:$0xff]
        %v6409 = vld [vmem:[%s6 + $0x38] sm:$0xff]
        %v6410 = vld [vmem:[%s6 + $0x40] sm:$0xff]
        %v6411 = vld [vmem:[%s6 + $0x48] sm:$0xff]
        %v6412 = vld [vmem:[%s6 + $0x50] sm:$0xff]
        %v6413 = vld [vmem:[%s6 + $0x58] sm:$0xff]
        %v6414 = vld [vmem:[%s6 + $0x60] sm:$0xff]
        %v6415 = vld [vmem:[%s6 + $0x68] sm:$0xff]
        %v6416 = vld [vmem:[%s6 + $0x70] sm:$0xff]
        %v6417 = vld [vmem:[%s6 + $0x78] sm:$0xff]
        %v6418 = vld [vmem:[%s6 + $0x80] sm:$0xff]
        %v6419 = vld [vmem:[%s6 + $0x88] sm:$0xff]
        %v6420 = vld [vmem:[%s6 + $0x90] sm:$0xff]
        %v6421 = vld [vmem:[%s6 + $0x98] sm:$0xff]
        %v6422 = vld [vmem:[%s6 + $0xa0] sm:$0xff]
        %v6423 = vld [vmem:[%s6 + $0xa8] sm:$0xff]
        %v6424 = vld [vmem:[%s6 + $0xb0] sm:$0xff]
        %v6425 = vld [vmem:[%s6 + $0xb8] sm:$0xff]
        %v6426 = vld [vmem:[%s6 + $0xc0] sm:$0xff]
        %v6427 = vld [vmem:[%s6 + $0xc8] sm:$0xff]
        %v6428 = vld [vmem:[%s6 + $0xd0] sm:$0xff]
        %v6429 = vld [vmem:[%s6 + $0xd8] sm:$0xff]
        %v6430 = vld [vmem:[%s6 + $0xe0] sm:$0xff]
        %v6431 = vld [vmem:[%s6 + $0xe8] sm:$0xff]
        %v6432 = vld [vmem:[%s6 + $0xf0] sm:$0xff]
        %v6433 = vld [vmem:[%s6 + $0xf8] sm:$0xff]
        %v6434 = vld [vmem:[%s6 + $0x100] sm:$0xff]
        %v6435 = vld [vmem:[%s6 + $0x108] sm:$0xff]
        %v6436 = vld [vmem:[%s6 + $0x110] sm:$0xff]
        %v6437 = vld [vmem:[%s6 + $0x118] sm:$0xff]
        %v6438 = vld [vmem:[%s6 + $0x120] sm:$0xff]
        %v6439 = vld [vmem:[%s6 + $0x128] sm:$0xff]
        %v6440 = vld [vmem:[%s6 + $0x130] sm:$0xff]
        %v6441 = vld [vmem:[%s6 + $0x138] sm:$0xff]
        %v6442 = vld [vmem:[%s6 + $0x140] sm:$0xff]
        %v6443 = vld [vmem:[%s6 + $0x148] sm:$0xff]
        %v6444 = vld [vmem:[%s6 + $0x150] sm:$0xff]
        %v6445 = vld [vmem:[%s6 + $0x158] sm:$0xff]
        %v6446 = vld [vmem:[%s6 + $0x160] sm:$0xff]
        %v6447 = vld [vmem:[%s6 + $0x168] sm:$0xff]
        %v6448 = vld [vmem:[%s6 + $0x170] sm:$0xff]
        %v6449 = vld [vmem:[%s6 + $0x178] sm:$0xff]
        %v6450 = vld [vmem:[%s6 + $0x180] sm:$0xff]
        %v6451 = vld [vmem:[%s6 + $0x188] sm:$0xff]
        %v6452 = vld [vmem:[%s6 + $0x190] sm:$0xff]
        %v6453 = vld [vmem:[%s6 + $0x198] sm:$0xff]
        %v6454 = vld [vmem:[%s6 + $0x1a0] sm:$0xff]
        %v6455 = vld [vmem:[%s6 + $0x1a8] sm:$0xff]
        %v6456 = vld [vmem:[%s6 + $0x1b0] sm:$0xff]
        %v6457 = vld [vmem:[%s6 + $0x1b8] sm:$0xff]
        %v6458 = vld [vmem:[%s6 + $0x1c0] sm:$0xff]
        %v6459 = vld [vmem:[%s6 + $0x1c8] sm:$0xff]
        %v6460 = vld [vmem:[%s6 + $0x1d0] sm:$0xff]
        %v6461 = vld [vmem:[%s6 + $0x1d8] sm:$0xff]
        %v6462 = vld [vmem:[%s6 + $0x1e0] sm:$0xff]
        %v6463 = vld [vmem:[%s6 + $0x1e8] sm:$0xff]
        %v6464 = vld [vmem:[%s6 + $0x1f0] sm:$0xff]
        %v6465 = vld [vmem:[%s6 + $0x1f8] sm:$0xff]
        %v6466 = vld [vmem:[%s6 + $0x200] sm:$0xff]
        %v6467 = vld [vmem:[%s6 + $0x208] sm:$0xff]
        %v6468 = vld [vmem:[%s6 + $0x210] sm:$0xff]
        %v6469 = vld [vmem:[%s6 + $0x218] sm:$0xff]
        %v6470 = vld [vmem:[%s6 + $0x220] sm:$0xff]
        %v6471 = vld [vmem:[%s6 + $0x228] sm:$0xff]
        %v6472 = vld [vmem:[%s6 + $0x230] sm:$0xff]
        %v6473 = vld [vmem:[%s6 + $0x238] sm:$0xff]
        %v6474 = vld [vmem:[%s6 + $0x240] sm:$0xff]
        %v6475 = vld [vmem:[%s6 + $0x248] sm:$0xff]
        %v6476 = vld [vmem:[%s6 + $0x250] sm:$0xff]
        %v6477 = vld [vmem:[%s6 + $0x258] sm:$0xff]
        %v6478 = vld [vmem:[%s6 + $0x260] sm:$0xff]
        %v6479 = vld [vmem:[%s6 + $0x268] sm:$0xff]
        %v6480 = vld [vmem:[%s6 + $0x270] sm:$0xff]
        %v6481 = vld [vmem:[%s6 + $0x278] sm:$0xff]
        %v6482 = vld [vmem:[%s6 + $0x280] sm:$0xff]
        %v6483 = vld [vmem:[%s6 + $0x288] sm:$0xff]
        %v6484 = vld [vmem:[%s6 + $0x290] sm:$0xff]
        %v6485 = vld [vmem:[%s6 + $0x298] sm:$0xff]
        %v6486 = vld [vmem:[%s6 + $0x2a0] sm:$0xff]
        %v6487 = vld [vmem:[%s6 + $0x2a8] sm:$0xff]
        %v6488 = vld [vmem:[%s6 + $0x2b0] sm:$0xff]
        %v6489 = vld [vmem:[%s6 + $0x2b8] sm:$0xff]
        %v6490 = vld [vmem:[%s6 + $0x2c0] sm:$0xff]
        %v6491 = vld [vmem:[%s6 + $0x2c8] sm:$0xff]
        %v6492 = vld [vmem:[%s6 + $0x2d0] sm:$0xff]
        %v6493 = vld [vmem:[%s6 + $0x2d8] sm:$0xff]
        %v6494 = vld [vmem:[%s6 + $0x2e0] sm:$0xff]
        %v6495 = vld [vmem:[%s6 + $0x2e8] sm:$0xff]
        %v6496 = vld [vmem:[%s6 + $0x2f0] sm:$0xff]
        %v6497 = vld [vmem:[%s6 + $0x2f8] sm:$0xff]
        %v6498 = vld [vmem:[%s6374] ss:$8 sm:$0x7]
        %s6499 = scalar_lea.vmem %s6, 768
        %v6500 = vld [vmem:[%s6499] sm:$0xff]
        %v6501 = vld [vmem:[%s6499 + $0x8] sm:$0xff]
        %v6502 = vld [vmem:[%s6499 + $0x10] sm:$0xff]
        %v6503 = vld [vmem:[%s6499 + $0x18] sm:$0xff]
        %v6504 = vld [vmem:[%s6499 + $0x20] sm:$0xff]
        %v6505 = vld [vmem:[%s6499 + $0x28] sm:$0xff]
        %v6506 = vld [vmem:[%s6499 + $0x30] sm:$0xff]
        %v6507 = vld [vmem:[%s6499 + $0x38] sm:$0xff]
        %v6508 = vld [vmem:[%s6499 + $0x40] sm:$0xff]
        %v6509 = vld [vmem:[%s6499 + $0x48] sm:$0xff]
        %v6510 = vld [vmem:[%s6499 + $0x50] sm:$0xff]
        %v6511 = vld [vmem:[%s6499 + $0x58] sm:$0xff]
        %v6512 = vld [vmem:[%s6499 + $0x60] sm:$0xff]
        %v6513 = vld [vmem:[%s6499 + $0x68] sm:$0xff]
        %v6514 = vld [vmem:[%s6499 + $0x70] sm:$0xff]
        %v6515 = vld [vmem:[%s6499 + $0x78] sm:$0xff]
        %v6516 = vld [vmem:[%s6499 + $0x80] sm:$0xff]
        %v6517 = vld [vmem:[%s6499 + $0x88] sm:$0xff]
        %v6518 = vld [vmem:[%s6499 + $0x90] sm:$0xff]
        %v6519 = vld [vmem:[%s6499 + $0x98] sm:$0xff]
        %v6520 = vld [vmem:[%s6499 + $0xa0] sm:$0xff]
        %v6521 = vld [vmem:[%s6499 + $0xa8] sm:$0xff]
        %v6522 = vld [vmem:[%s6499 + $0xb0] sm:$0xff]
        %v6523 = vld [vmem:[%s6499 + $0xb8] sm:$0xff]
        %v6524 = vld [vmem:[%s6499 + $0xc0] sm:$0xff]
        %v6525 = vld [vmem:[%s6499 + $0xc8] sm:$0xff]
        %v6526 = vld [vmem:[%s6499 + $0xd0] sm:$0xff]
        %v6527 = vld [vmem:[%s6499 + $0xd8] sm:$0xff]
        %v6528 = vld [vmem:[%s6499 + $0xe0] sm:$0xff]
        %v6529 = vld [vmem:[%s6499 + $0xe8] sm:$0xff]
        %v6530 = vld [vmem:[%s6499 + $0xf0] sm:$0xff]
        %v6531 = vld [vmem:[%s6499 + $0xf8] sm:$0xff]
        %v6532 = vld [vmem:[%s6499 + $0x100] sm:$0xff]
        %v6533 = vld [vmem:[%s6499 + $0x108] sm:$0xff]
        %v6534 = vld [vmem:[%s6499 + $0x110] sm:$0xff]
        %v6535 = vld [vmem:[%s6499 + $0x118] sm:$0xff]
        %v6536 = vld [vmem:[%s6499 + $0x120] sm:$0xff]
        %v6537 = vld [vmem:[%s6499 + $0x128] sm:$0xff]
        %v6538 = vld [vmem:[%s6499 + $0x130] sm:$0xff]
        %v6539 = vld [vmem:[%s6499 + $0x138] sm:$0xff]
        %v6540 = vld [vmem:[%s6499 + $0x140] sm:$0xff]
        %v6541 = vld [vmem:[%s6499 + $0x148] sm:$0xff]
        %v6542 = vld [vmem:[%s6499 + $0x150] sm:$0xff]
        %v6543 = vld [vmem:[%s6499 + $0x158] sm:$0xff]
        %v6544 = vld [vmem:[%s6499 + $0x160] sm:$0xff]
        %v6545 = vld [vmem:[%s6499 + $0x168] sm:$0xff]
        %v6546 = vld [vmem:[%s6499 + $0x170] sm:$0xff]
        %v6547 = vld [vmem:[%s6499 + $0x178] sm:$0xff]
        %v6548 = vld [vmem:[%s6499 + $0x180] sm:$0xff]
        %v6549 = vld [vmem:[%s6499 + $0x188] sm:$0xff]
        %v6550 = vld [vmem:[%s6499 + $0x190] sm:$0xff]
        %v6551 = vld [vmem:[%s6499 + $0x198] sm:$0xff]
        %v6552 = vld [vmem:[%s6499 + $0x1a0] sm:$0xff]
        %v6553 = vld [vmem:[%s6499 + $0x1a8] sm:$0xff]
        %v6554 = vld [vmem:[%s6499 + $0x1b0] sm:$0xff]
        %v6555 = vld [vmem:[%s6499 + $0x1b8] sm:$0xff]
        %v6556 = vld [vmem:[%s6499 + $0x1c0] sm:$0xff]
        %v6557 = vld [vmem:[%s6499 + $0x1c8] sm:$0xff]
        %v6558 = vld [vmem:[%s6499 + $0x1d0] sm:$0xff]
        %v6559 = vld [vmem:[%s6499 + $0x1d8] sm:$0xff]
        %v6560 = vld [vmem:[%s6499 + $0x1e0] sm:$0xff]
        %v6561 = vld [vmem:[%s6499 + $0x1e8] sm:$0xff]
        %v6562 = vld [vmem:[%s6499 + $0x1f0] sm:$0xff]
        %v6563 = vld [vmem:[%s6499 + $0x1f8] sm:$0xff]
        %v6564 = vld [vmem:[%s6499 + $0x200] sm:$0xff]
        %v6565 = vld [vmem:[%s6499 + $0x208] sm:$0xff]
        %v6566 = vld [vmem:[%s6499 + $0x210] sm:$0xff]
        %v6567 = vld [vmem:[%s6499 + $0x218] sm:$0xff]
        %v6568 = vld [vmem:[%s6499 + $0x220] sm:$0xff]
        %v6569 = vld [vmem:[%s6499 + $0x228] sm:$0xff]
        %v6570 = vld [vmem:[%s6499 + $0x230] sm:$0xff]
        %v6571 = vld [vmem:[%s6499 + $0x238] sm:$0xff]
        %v6572 = vld [vmem:[%s6499 + $0x240] sm:$0xff]
        %v6573 = vld [vmem:[%s6499 + $0x248] sm:$0xff]
        %v6574 = vld [vmem:[%s6499 + $0x250] sm:$0xff]
        %v6575 = vld [vmem:[%s6499 + $0x258] sm:$0xff]
        %v6576 = vld [vmem:[%s6499 + $0x260] sm:$0xff]
        %v6577 = vld [vmem:[%s6499 + $0x268] sm:$0xff]
        %v6578 = vld [vmem:[%s6499 + $0x270] sm:$0xff]
        %v6579 = vld [vmem:[%s6499 + $0x278] sm:$0xff]
        %v6580 = vld [vmem:[%s6499 + $0x280] sm:$0xff]
        %v6581 = vld [vmem:[%s6499 + $0x288] sm:$0xff]
        %v6582 = vld [vmem:[%s6499 + $0x290] sm:$0xff]
        %v6583 = vld [vmem:[%s6499 + $0x298] sm:$0xff]
        %v6584 = vld [vmem:[%s6499 + $0x2a0] sm:$0xff]
        %v6585 = vld [vmem:[%s6499 + $0x2a8] sm:$0xff]
        %v6586 = vld [vmem:[%s6499 + $0x2b0] sm:$0xff]
        %v6587 = vld [vmem:[%s6499 + $0x2b8] sm:$0xff]
        %v6588 = vld [vmem:[%s6499 + $0x2c0] sm:$0xff]
        %v6589 = vld [vmem:[%s6499 + $0x2c8] sm:$0xff]
        %v6590 = vld [vmem:[%s6499 + $0x2d0] sm:$0xff]
        %v6591 = vld [vmem:[%s6499 + $0x2d8] sm:$0xff]
        %v6592 = vld [vmem:[%s6499 + $0x2e0] sm:$0xff]
        %v6593 = vld [vmem:[%s6499 + $0x2e8] sm:$0xff]
        %v6594 = vld [vmem:[%s6499 + $0x2f0] sm:$0xff]
        %v6595 = vld [vmem:[%s6499 + $0x2f8] sm:$0xff]
        %v6597 = vlaneseq
        %v6598 = vshrl.u32 %v6597, 7
        %v6599 = vsub.s32 0, %v6598
        %v6600 = vrot.slane %v6498, %v6599
        %v6601 = vlaneseq
        %v6602 = vshrl.u32 %v6601, 7
        %v6603 = vsub.s32 1, %v6602
        %v6604 = vrot.slane %v6498, %v6603
        %v6605 = vlaneseq
        %v6606 = vshrl.u32 %v6605, 7
        %v6607 = vsub.s32 2, %v6606
        %v6608 = vrot.slane %v6498, %v6607
        %6612 = vmatprep.subr.mxu0 %v6501
        %6613 = vmatpush1.msra.mxu0 %v6500
        %6614 = vmatprep.subr.mxu0 %v6503
        %6615 = vmatpush1.msra.mxu0 %v6502
        %6616 = vmatprep.subr.mxu0 %v6505
        %6617 = vmatpush1.msra.mxu0 %v6504
        %6618 = vmatprep.subr.mxu0 %v6507
        %6619 = vmatpush1.msra.mxu0 %v6506
        %6620 = vmatprep.subr.mxu0 %v6509
        %6621 = vmatpush1.msra.mxu0 %v6508
        %6622 = vmatprep.subr.mxu0 %v6511
        %6623 = vmatpush1.msra.mxu0 %v6510
        %6624 = vmatprep.subr.mxu0 %v6513
        %6625 = vmatpush1.msra.mxu0 %v6512
        %6626 = vmatprep.subr.mxu0 %v6515
        %6627 = vmatpush1.msra.mxu0 %v6514
        %6628 = vmatprep.subr.mxu0 %v6517
        %6629 = vmatpush1.msra.mxu0 %v6516
        %6630 = vmatprep.subr.mxu0 %v6519
        %6631 = vmatpush1.msra.mxu0 %v6518
        %6632 = vmatprep.subr.mxu0 %v6521
        %6633 = vmatpush1.msra.mxu0 %v6520
        %6634 = vmatprep.subr.mxu0 %v6523
        %6635 = vmatpush1.msra.mxu0 %v6522
        %6636 = vmatprep.subr.mxu0 %v6525
        %6637 = vmatpush1.msra.mxu0 %v6524
        %6638 = vmatprep.subr.mxu0 %v6527
        %6639 = vmatpush1.msra.mxu0 %v6526
        %6640 = vmatprep.subr.mxu0 %v6529
        %6641 = vmatpush1.msra.mxu0 %v6528
        %6642 = vmatprep.subr.mxu0 %v6531
        %6643 = vmatpush1.msra.mxu0 %v6530
        %6644 = vmatprep.subr.mxu0 %v6533
        %6645 = vmatpush1.msra.mxu0 %v6532
        %6646 = vmatprep.subr.mxu0 %v6535
        %6647 = vmatpush1.msra.mxu0 %v6534
        %6648 = vmatprep.subr.mxu0 %v6537
        %6649 = vmatpush1.msra.mxu0 %v6536
        %6650 = vmatprep.subr.mxu0 %v6539
        %6651 = vmatpush1.msra.mxu0 %v6538
        %6652 = vmatprep.subr.mxu0 %v6541
        %6653 = vmatpush1.msra.mxu0 %v6540
        %6654 = vmatprep.subr.mxu0 %v6543
        %6655 = vmatpush1.msra.mxu0 %v6542
        %6656 = vmatprep.subr.mxu0 %v6545
        %6657 = vmatpush1.msra.mxu0 %v6544
        %6658 = vmatprep.subr.mxu0 %v6547
        %6659 = vmatpush1.msra.mxu0 %v6546
        %6660 = vmatprep.subr.mxu0 %v6549
        %6661 = vmatpush1.msra.mxu0 %v6548
        %6662 = vmatprep.subr.mxu0 %v6551
        %6663 = vmatpush1.msra.mxu0 %v6550
        %6664 = vmatprep.subr.mxu0 %v6553
        %6665 = vmatpush1.msra.mxu0 %v6552
        %6666 = vmatprep.subr.mxu0 %v6555
        %6667 = vmatpush1.msra.mxu0 %v6554
        %6668 = vmatprep.subr.mxu0 %v6557
        %6669 = vmatpush1.msra.mxu0 %v6556
        %6670 = vmatprep.subr.mxu0 %v6559
        %6671 = vmatpush1.msra.mxu0 %v6558
        %6672 = vmatprep.subr.mxu0 %v6561
        %6673 = vmatpush1.msra.mxu0 %v6560
        %6674 = vmatprep.subr.mxu0 %v6563
        %6675 = vmatpush1.msra.mxu0 %v6562
        %6676 = vmatprep.mubr.f32.mxu0 %v6604
        %6677 = vmatmul.mubr.f32.gmra.mrb[0].mxu0 %v6600
        %v6678 = vpop.f32.mrb[0].mxu0
        %v6679 = vadd.f32 0.0, %v6678
        %v6680 = vpop.f32.mrb[0].mxu0
        %v6681 = vadd.f32 0.0, %v6680
        %6682 = vdwg.mxu0
        %6683 = vmatprep.subr.mxu0 %v6565
        %6684 = vmatpush1.msra.mxu0 %v6564
        %6685 = vmatprep.subr.mxu0 %v6567
        %6686 = vmatpush1.msra.mxu0 %v6566
        %6687 = vmatprep.subr.mxu0 %v6569
        %6688 = vmatpush1.msra.mxu0 %v6568
        %6689 = vmatprep.subr.mxu0 %v6571
        %6690 = vmatpush1.msra.mxu0 %v6570
        %6691 = vmatprep.subr.mxu0 %v6573
        %6692 = vmatpush1.msra.mxu0 %v6572
        %6693 = vmatprep.subr.mxu0 %v6575
        %6694 = vmatpush1.msra.mxu0 %v6574
        %6695 = vmatprep.subr.mxu0 %v6577
        %6696 = vmatpush1.msra.mxu0 %v6576
        %6697 = vmatprep.subr.mxu0 %v6579
        %6698 = vmatpush1.msra.mxu0 %v6578
        %6699 = vmatprep.subr.mxu0 %v6581
        %6700 = vmatpush1.msra.mxu0 %v6580
        %6701 = vmatprep.subr.mxu0 %v6583
        %6702 = vmatpush1.msra.mxu0 %v6582
        %6703 = vmatprep.subr.mxu0 %v6585
        %6704 = vmatpush1.msra.mxu0 %v6584
        %6705 = vmatprep.subr.mxu0 %v6587
        %6706 = vmatpush1.msra.mxu0 %v6586
        %6707 = vmatprep.subr.mxu0 %v6589
        %6708 = vmatpush1.msra.mxu0 %v6588
        %6709 = vmatprep.subr.mxu0 %v6591
        %6710 = vmatpush1.msra.mxu0 %v6590
        %6711 = vmatprep.subr.mxu0 %v6593
        %6712 = vmatpush1.msra.mxu0 %v6592
        %6713 = vmatprep.subr.mxu0 %v6595
        %6714 = vmatpush1.msra.mxu0 %v6594
        %6715 = vmatprep.subr.mxu0 0.0
        %6716 = vmatpush1.msra.mxu0 0.0
        %6717 = vmatprep.subr.mxu0 0.0
        %6718 = vmatpush1.msra.mxu0 0.0
        %6719 = vmatprep.subr.mxu0 0.0
        %6720 = vmatpush1.msra.mxu0 0.0
        %6721 = vmatprep.subr.mxu0 0.0
        %6722 = vmatpush1.msra.mxu0 0.0
        %6723 = vmatprep.subr.mxu0 0.0
        %6724 = vmatpush1.msra.mxu0 0.0
        %6725 = vmatprep.subr.mxu0 0.0
        %6726 = vmatpush1.msra.mxu0 0.0
        %6727 = vmatprep.subr.mxu0 0.0
        %6728 = vmatpush1.msra.mxu0 0.0
        %6729 = vmatprep.subr.mxu0 0.0
        %6730 = vmatpush1.msra.mxu0 0.0
        %6731 = vmatprep.subr.mxu0 0.0
        %6732 = vmatpush1.msra.mxu0 0.0
        %6733 = vmatprep.subr.mxu0 0.0
        %6734 = vmatpush1.msra.mxu0 0.0
        %6735 = vmatprep.subr.mxu0 0.0
        %6736 = vmatpush1.msra.mxu0 0.0
        %6737 = vmatprep.subr.mxu0 0.0
        %6738 = vmatpush1.msra.mxu0 0.0
        %6739 = vmatprep.subr.mxu0 0.0
        %6740 = vmatpush1.msra.mxu0 0.0
        %6741 = vmatprep.subr.mxu0 0.0
        %6742 = vmatpush1.msra.mxu0 0.0
        %6743 = vmatprep.subr.mxu0 0.0
        %6744 = vmatpush1.msra.mxu0 0.0
        %6745 = vmatprep.subr.mxu0 0.0
        %6746 = vmatpush1.msra.mxu0 0.0
        %6747 = vmatprep.mubr.f32.mxu0 0.0
        %6748 = vmatmul.mubr.f32.gmra.mrb[0].mxu0 %v6608
        %v6749 = vpop.f32.mrb[0].mxu0
        %v6750 = vadd.f32 %v6679, %v6749
        %v6751 = vpop.f32.mrb[0].mxu0
        %v6752 = vadd.f32 %v6681, %v6751
        %6753 = vdwg.mxu0
        %v6755 = vlaneseq
        %v6756 = vshrl.u32 %v6755, 7
        %v6757 = vsub.s32 0, %v6756
        %v6758 = vrot.slane %v6401, %v6757
        %v6759 = vlaneseq
        %v6760 = vshrl.u32 %v6759, 7
        %v6761 = vsub.s32 1, %v6760
        %v6762 = vrot.slane %v6401, %v6761
        %v6763 = vlaneseq
        %v6764 = vshrl.u32 %v6763, 7
        %v6765 = vsub.s32 2, %v6764
        %v6766 = vrot.slane %v6401, %v6765
        %6770 = vmatprep.subr.mxu0 %v6403
        %6771 = vmatpush1.msra.mxu0 %v6402
        %6772 = vmatprep.subr.mxu0 %v6405
        %6773 = vmatpush1.msra.mxu0 %v6404
        %6774 = vmatprep.subr.mxu0 %v6407
        %6775 = vmatpush1.msra.mxu0 %v6406
        %6776 = vmatprep.subr.mxu0 %v6409
        %6777 = vmatpush1.msra.mxu0 %v6408
        %6778 = vmatprep.subr.mxu0 %v6411
        %6779 = vmatpush1.msra.mxu0 %v6410
        %6780 = vmatprep.subr.mxu0 %v6413
        %6781 = vmatpush1.msra.mxu0 %v6412
        %6782 = vmatprep.subr.mxu0 %v6415
        %6783 = vmatpush1.msra.mxu0 %v6414
        %6784 = vmatprep.subr.mxu0 %v6417
        %6785 = vmatpush1.msra.mxu0 %v6416
        %6786 = vmatprep.subr.mxu0 %v6419
        %6787 = vmatpush1.msra.mxu0 %v6418
        %6788 = vmatprep.subr.mxu0 %v6421
        %6789 = vmatpush1.msra.mxu0 %v6420
        %6790 = vmatprep.subr.mxu0 %v6423
        %6791 = vmatpush1.msra.mxu0 %v6422
        %6792 = vmatprep.subr.mxu0 %v6425
        %6793 = vmatpush1.msra.mxu0 %v6424
        %6794 = vmatprep.subr.mxu0 %v6427
        %6795 = vmatpush1.msra.mxu0 %v6426
        %6796 = vmatprep.subr.mxu0 %v6429
        %6797 = vmatpush1.msra.mxu0 %v6428
        %6798 = vmatprep.subr.mxu0 %v6431
        %6799 = vmatpush1.msra.mxu0 %v6430
        %6800 = vmatprep.subr.mxu0 %v6433
        %6801 = vmatpush1.msra.mxu0 %v6432
        %6802 = vmatprep.subr.mxu0 %v6435
        %6803 = vmatpush1.msra.mxu0 %v6434
        %6804 = vmatprep.subr.mxu0 %v6437
        %6805 = vmatpush1.msra.mxu0 %v6436
        %6806 = vmatprep.subr.mxu0 %v6439
        %6807 = vmatpush1.msra.mxu0 %v6438
        %6808 = vmatprep.subr.mxu0 %v6441
        %6809 = vmatpush1.msra.mxu0 %v6440
        %6810 = vmatprep.subr.mxu0 %v6443
        %6811 = vmatpush1.msra.mxu0 %v6442
        %6812 = vmatprep.subr.mxu0 %v6445
        %6813 = vmatpush1.msra.mxu0 %v6444
        %6814 = vmatprep.subr.mxu0 %v6447
        %6815 = vmatpush1.msra.mxu0 %v6446
        %6816 = vmatprep.subr.mxu0 %v6449
        %6817 = vmatpush1.msra.mxu0 %v6448
        %6818 = vmatprep.subr.mxu0 %v6451
        %6819 = vmatpush1.msra.mxu0 %v6450
        %6820 = vmatprep.subr.mxu0 %v6453
        %6821 = vmatpush1.msra.mxu0 %v6452
        %6822 = vmatprep.subr.mxu0 %v6455
        %6823 = vmatpush1.msra.mxu0 %v6454
        %6824 = vmatprep.subr.mxu0 %v6457
        %6825 = vmatpush1.msra.mxu0 %v6456
        %6826 = vmatprep.subr.mxu0 %v6459
        %6827 = vmatpush1.msra.mxu0 %v6458
        %6828 = vmatprep.subr.mxu0 %v6461
        %6829 = vmatpush1.msra.mxu0 %v6460
        %6830 = vmatprep.subr.mxu0 %v6463
        %6831 = vmatpush1.msra.mxu0 %v6462
        %6832 = vmatprep.subr.mxu0 %v6465
        %6833 = vmatpush1.msra.mxu0 %v6464
        %6834 = vmatprep.mubr.f32.mxu0 %v6762
        %6835 = vmatmul.mubr.f32.gmra.mrb[0].mxu0 %v6758
        %v6836 = vpop.f32.mrb[0].mxu0
        %v6837 = vadd.f32 %v6750, %v6836
        %v6838 = vpop.f32.mrb[0].mxu0
        %v6839 = vadd.f32 %v6752, %v6838
        %6840 = vdwg.mxu0
        %6841 = vmatprep.subr.mxu0 %v6467
        %6842 = vmatpush1.msra.mxu0 %v6466
        %6843 = vmatprep.subr.mxu0 %v6469
        %6844 = vmatpush1.msra.mxu0 %v6468
        %6845 = vmatprep.subr.mxu0 %v6471
        %6846 = vmatpush1.msra.mxu0 %v6470
        %6847 = vmatprep.subr.mxu0 %v6473
        %6848 = vmatpush1.msra.mxu0 %v6472
        %6849 = vmatprep.subr.mxu0 %v6475
        %6850 = vmatpush1.msra.mxu0 %v6474
        %6851 = vmatprep.subr.mxu0 %v6477
        %6852 = vmatpush1.msra.mxu0 %v6476
        %6853 = vmatprep.subr.mxu0 %v6479
        %6854 = vmatpush1.msra.mxu0 %v6478
        %6855 = vmatprep.subr.mxu0 %v6481
        %6856 = vmatpush1.msra.mxu0 %v6480
        %6857 = vmatprep.subr.mxu0 %v6483
        %6858 = vmatpush1.msra.mxu0 %v6482
        %6859 = vmatprep.subr.mxu0 %v6485
        %6860 = vmatpush1.msra.mxu0 %v6484
        %6861 = vmatprep.subr.mxu0 %v6487
        %6862 = vmatpush1.msra.mxu0 %v6486
        %6863 = vmatprep.subr.mxu0 %v6489
        %6864 = vmatpush1.msra.mxu0 %v6488
        %6865 = vmatprep.subr.mxu0 %v6491
        %6866 = vmatpush1.msra.mxu0 %v6490
        %6867 = vmatprep.subr.mxu0 %v6493
        %6868 = vmatpush1.msra.mxu0 %v6492
        %6869 = vmatprep.subr.mxu0 %v6495
        %6870 = vmatpush1.msra.mxu0 %v6494
        %6871 = vmatprep.subr.mxu0 %v6497
        %6872 = vmatpush1.msra.mxu0 %v6496
        %6873 = vmatprep.subr.mxu0 0.0
        %6874 = vmatpush1.msra.mxu0 0.0
        %6875 = vmatprep.subr.mxu0 0.0
        %6876 = vmatpush1.msra.mxu0 0.0
        %6877 = vmatprep.subr.mxu0 0.0
        %6878 = vmatpush1.msra.mxu0 0.0
        %6879 = vmatprep.subr.mxu0 0.0
        %6880 = vmatpush1.msra.mxu0 0.0
        %6881 = vmatprep.subr.mxu0 0.0
        %6882 = vmatpush1.msra.mxu0 0.0
        %6883 = vmatprep.subr.mxu0 0.0
        %6884 = vmatpush1.msra.mxu0 0.0
        %6885 = vmatprep.subr.mxu0 0.0
        %6886 = vmatpush1.msra.mxu0 0.0
        %6887 = vmatprep.subr.mxu0 0.0
        %6888 = vmatpush1.msra.mxu0 0.0
        %6889 = vmatprep.subr.mxu0 0.0
        %6890 = vmatpush1.msra.mxu0 0.0
        %6891 = vmatprep.subr.mxu0 0.0
        %6892 = vmatpush1.msra.mxu0 0.0
        %6893 = vmatprep.subr.mxu0 0.0
        %6894 = vmatpush1.msra.mxu0 0.0
        %6895 = vmatprep.subr.mxu0 0.0
        %6896 = vmatpush1.msra.mxu0 0.0
        %6897 = vmatprep.subr.mxu0 0.0
        %6898 = vmatpush1.msra.mxu0 0.0
        %6899 = vmatprep.subr.mxu0 0.0
        %6900 = vmatpush1.msra.mxu0 0.0
        %6901 = vmatprep.subr.mxu0 0.0
        %6902 = vmatpush1.msra.mxu0 0.0
        %6903 = vmatprep.subr.mxu0 0.0
        %6904 = vmatpush1.msra.mxu0 0.0
        %6905 = vmatprep.mubr.f32.mxu0 0.0
        %6906 = vmatmul.mubr.f32.gmra.mrb[0].mxu0 %v6766
        %v6907 = vpop.f32.mrb[0].mxu0
        %v6908 = vadd.f32 %v6837, %v6907
        %v6909 = vpop.f32.mrb[0].mxu0
        %v6910 = vadd.f32 %v6839, %v6909
        %6911 = vdwg.mxu0
        %v6912 = vld [vmem:[%s6382] ss:$8 sm:$0x7]
        %s6913 = scalar_lea.vmem %s6, 1536
        %v6914 = vld [vmem:[%s6913] sm:$0xff]
        %v6915 = vld [vmem:[%s6913 + $0x8] sm:$0xff]
        %v6916 = vld [vmem:[%s6913 + $0x10] sm:$0xff]
        %v6917 = vld [vmem:[%s6913 + $0x18] sm:$0xff]
        %v6918 = vld [vmem:[%s6913 + $0x20] sm:$0xff]
        %v6919 = vld [vmem:[%s6913 + $0x28] sm:$0xff]
        %v6920 = vld [vmem:[%s6913 + $0x30] sm:$0xff]
        %v6921 = vld [vmem:[%s6913 + $0x38] sm:$0xff]
        %v6922 = vld [vmem:[%s6913 + $0x40] sm:$0xff]
        %v6923 = vld [vmem:[%s6913 + $0x48] sm:$0xff]
        %v6924 = vld [vmem:[%s6913 + $0x50] sm:$0xff]
        %v6925 = vld [vmem:[%s6913 + $0x58] sm:$0xff]
        %v6926 = vld [vmem:[%s6913 + $0x60] sm:$0xff]
        %v6927 = vld [vmem:[%s6913 + $0x68] sm:$0xff]
        %v6928 = vld [vmem:[%s6913 + $0x70] sm:$0xff]
        %v6929 = vld [vmem:[%s6913 + $0x78] sm:$0xff]
        %v6930 = vld [vmem:[%s6913 + $0x80] sm:$0xff]
        %v6931 = vld [vmem:[%s6913 + $0x88] sm:$0xff]
        %v6932 = vld [vmem:[%s6913 + $0x90] sm:$0xff]
        %v6933 = vld [vmem:[%s6913 + $0x98] sm:$0xff]
        %v6934 = vld [vmem:[%s6913 + $0xa0] sm:$0xff]
        %v6935 = vld [vmem:[%s6913 + $0xa8] sm:$0xff]
        %v6936 = vld [vmem:[%s6913 + $0xb0] sm:$0xff]
        %v6937 = vld [vmem:[%s6913 + $0xb8] sm:$0xff]
        %v6938 = vld [vmem:[%s6913 + $0xc0] sm:$0xff]
        %v6939 = vld [vmem:[%s6913 + $0xc8] sm:$0xff]
        %v6940 = vld [vmem:[%s6913 + $0xd0] sm:$0xff]
        %v6941 = vld [vmem:[%s6913 + $0xd8] sm:$0xff]
        %v6942 = vld [vmem:[%s6913 + $0xe0] sm:$0xff]
        %v6943 = vld [vmem:[%s6913 + $0xe8] sm:$0xff]
        %v6944 = vld [vmem:[%s6913 + $0xf0] sm:$0xff]
        %v6945 = vld [vmem:[%s6913 + $0xf8] sm:$0xff]
        %v6946 = vld [vmem:[%s6913 + $0x100] sm:$0xff]
        %v6947 = vld [vmem:[%s6913 + $0x108] sm:$0xff]
        %v6948 = vld [vmem:[%s6913 + $0x110] sm:$0xff]
        %v6949 = vld [vmem:[%s6913 + $0x118] sm:$0xff]
        %v6950 = vld [vmem:[%s6913 + $0x120] sm:$0xff]
        %v6951 = vld [vmem:[%s6913 + $0x128] sm:$0xff]
        %v6952 = vld [vmem:[%s6913 + $0x130] sm:$0xff]
        %v6953 = vld [vmem:[%s6913 + $0x138] sm:$0xff]
        %v6954 = vld [vmem:[%s6913 + $0x140] sm:$0xff]
        %v6955 = vld [vmem:[%s6913 + $0x148] sm:$0xff]
        %v6956 = vld [vmem:[%s6913 + $0x150] sm:$0xff]
        %v6957 = vld [vmem:[%s6913 + $0x158] sm:$0xff]
        %v6958 = vld [vmem:[%s6913 + $0x160] sm:$0xff]
        %v6959 = vld [vmem:[%s6913 + $0x168] sm:$0xff]
        %v6960 = vld [vmem:[%s6913 + $0x170] sm:$0xff]
        %v6961 = vld [vmem:[%s6913 + $0x178] sm:$0xff]
        %v6962 = vld [vmem:[%s6913 + $0x180] sm:$0xff]
        %v6963 = vld [vmem:[%s6913 + $0x188] sm:$0xff]
        %v6964 = vld [vmem:[%s6913 + $0x190] sm:$0xff]
        %v6965 = vld [vmem:[%s6913 + $0x198] sm:$0xff]
        %v6966 = vld [vmem:[%s6913 + $0x1a0] sm:$0xff]
        %v6967 = vld [vmem:[%s6913 + $0x1a8] sm:$0xff]
        %v6968 = vld [vmem:[%s6913 + $0x1b0] sm:$0xff]
        %v6969 = vld [vmem:[%s6913 + $0x1b8] sm:$0xff]
        %v6970 = vld [vmem:[%s6913 + $0x1c0] sm:$0xff]
        %v6971 = vld [vmem:[%s6913 + $0x1c8] sm:$0xff]
        %v6972 = vld [vmem:[%s6913 + $0x1d0] sm:$0xff]
        %v6973 = vld [vmem:[%s6913 + $0x1d8] sm:$0xff]
        %v6974 = vld [vmem:[%s6913 + $0x1e0] sm:$0xff]
        %v6975 = vld [vmem:[%s6913 + $0x1e8] sm:$0xff]
        %v6976 = vld [vmem:[%s6913 + $0x1f0] sm:$0xff]
        %v6977 = vld [vmem:[%s6913 + $0x1f8] sm:$0xff]
        %v6978 = vld [vmem:[%s6913 + $0x200] sm:$0xff]
        %v6979 = vld [vmem:[%s6913 + $0x208] sm:$0xff]
        %v6980 = vld [vmem:[%s6913 + $0x210] sm:$0xff]
        %v6981 = vld [vmem:[%s6913 + $0x218] sm:$0xff]
        %v6982 = vld [vmem:[%s6913 + $0x220] sm:$0xff]
        %v6983 = vld [vmem:[%s6913 + $0x228] sm:$0xff]
        %v6984 = vld [vmem:[%s6913 + $0x230] sm:$0xff]
        %v6985 = vld [vmem:[%s6913 + $0x238] sm:$0xff]
        %v6986 = vld [vmem:[%s6913 + $0x240] sm:$0xff]
        %v6987 = vld [vmem:[%s6913 + $0x248] sm:$0xff]
        %v6988 = vld [vmem:[%s6913 + $0x250] sm:$0xff]
        %v6989 = vld [vmem:[%s6913 + $0x258] sm:$0xff]
        %v6990 = vld [vmem:[%s6913 + $0x260] sm:$0xff]
        %v6991 = vld [vmem:[%s6913 + $0x268] sm:$0xff]
        %v6992 = vld [vmem:[%s6913 + $0x270] sm:$0xff]
        %v6993 = vld [vmem:[%s6913 + $0x278] sm:$0xff]
        %v6994 = vld [vmem:[%s6913 + $0x280] sm:$0xff]
        %v6995 = vld [vmem:[%s6913 + $0x288] sm:$0xff]
        %v6996 = vld [vmem:[%s6913 + $0x290] sm:$0xff]
        %v6997 = vld [vmem:[%s6913 + $0x298] sm:$0xff]
        %v6998 = vld [vmem:[%s6913 + $0x2a0] sm:$0xff]
        %v6999 = vld [vmem:[%s6913 + $0x2a8] sm:$0xff]
        %v7000 = vld [vmem:[%s6913 + $0x2b0] sm:$0xff]
        %v7001 = vld [vmem:[%s6913 + $0x2b8] sm:$0xff]
        %v7002 = vld [vmem:[%s6913 + $0x2c0] sm:$0xff]
        %v7003 = vld [vmem:[%s6913 + $0x2c8] sm:$0xff]
        %v7004 = vld [vmem:[%s6913 + $0x2d0] sm:$0xff]
        %v7005 = vld [vmem:[%s6913 + $0x2d8] sm:$0xff]
        %v7006 = vld [vmem:[%s6913 + $0x2e0] sm:$0xff]
        %v7007 = vld [vmem:[%s6913 + $0x2e8] sm:$0xff]
        %v7008 = vld [vmem:[%s6913 + $0x2f0] sm:$0xff]
        %v7009 = vld [vmem:[%s6913 + $0x2f8] sm:$0xff]
        %v7011 = vlaneseq
        %v7012 = vshrl.u32 %v7011, 7
        %v7013 = vsub.s32 0, %v7012
        %v7014 = vrot.slane %v6912, %v7013
        %v7015 = vlaneseq
        %v7016 = vshrl.u32 %v7015, 7
        %v7017 = vsub.s32 1, %v7016
        %v7018 = vrot.slane %v6912, %v7017
        %v7019 = vlaneseq
        %v7020 = vshrl.u32 %v7019, 7
        %v7021 = vsub.s32 2, %v7020
        %v7022 = vrot.slane %v6912, %v7021
        %7026 = vmatprep.subr.mxu0 %v6915
        %7027 = vmatpush1.msra.mxu0 %v6914
        %7028 = vmatprep.subr.mxu0 %v6917
        %7029 = vmatpush1.msra.mxu0 %v6916
        %7030 = vmatprep.subr.mxu0 %v6919
        %7031 = vmatpush1.msra.mxu0 %v6918
        %7032 = vmatprep.subr.mxu0 %v6921
        %7033 = vmatpush1.msra.mxu0 %v6920
        %7034 = vmatprep.subr.mxu0 %v6923
        %7035 = vmatpush1.msra.mxu0 %v6922
        %7036 = vmatprep.subr.mxu0 %v6925
        %7037 = vmatpush1.msra.mxu0 %v6924
        %7038 = vmatprep.subr.mxu0 %v6927
        %7039 = vmatpush1.msra.mxu0 %v6926
        %7040 = vmatprep.subr.mxu0 %v6929
        %7041 = vmatpush1.msra.mxu0 %v6928
        %7042 = vmatprep.subr.mxu0 %v6931
        %7043 = vmatpush1.msra.mxu0 %v6930
        %7044 = vmatprep.subr.mxu0 %v6933
        %7045 = vmatpush1.msra.mxu0 %v6932
        %7046 = vmatprep.subr.mxu0 %v6935
        %7047 = vmatpush1.msra.mxu0 %v6934
        %7048 = vmatprep.subr.mxu0 %v6937
        %7049 = vmatpush1.msra.mxu0 %v6936
        %7050 = vmatprep.subr.mxu0 %v6939
        %7051 = vmatpush1.msra.mxu0 %v6938
        %7052 = vmatprep.subr.mxu0 %v6941
        %7053 = vmatpush1.msra.mxu0 %v6940
        %7054 = vmatprep.subr.mxu0 %v6943
        %7055 = vmatpush1.msra.mxu0 %v6942
        %7056 = vmatprep.subr.mxu0 %v6945
        %7057 = vmatpush1.msra.mxu0 %v6944
        %7058 = vmatprep.subr.mxu0 %v6947
        %7059 = vmatpush1.msra.mxu0 %v6946
        %7060 = vmatprep.subr.mxu0 %v6949
        %7061 = vmatpush1.msra.mxu0 %v6948
        %7062 = vmatprep.subr.mxu0 %v6951
        %7063 = vmatpush1.msra.mxu0 %v6950
        %7064 = vmatprep.subr.mxu0 %v6953
        %7065 = vmatpush1.msra.mxu0 %v6952
        %7066 = vmatprep.subr.mxu0 %v6955
        %7067 = vmatpush1.msra.mxu0 %v6954
        %7068 = vmatprep.subr.mxu0 %v6957
        %7069 = vmatpush1.msra.mxu0 %v6956
        %7070 = vmatprep.subr.mxu0 %v6959
        %7071 = vmatpush1.msra.mxu0 %v6958
        %7072 = vmatprep.subr.mxu0 %v6961
        %7073 = vmatpush1.msra.mxu0 %v6960
        %7074 = vmatprep.subr.mxu0 %v6963
        %7075 = vmatpush1.msra.mxu0 %v6962
        %7076 = vmatprep.subr.mxu0 %v6965
        %7077 = vmatpush1.msra.mxu0 %v6964
        %7078 = vmatprep.subr.mxu0 %v6967
        %7079 = vmatpush1.msra.mxu0 %v6966
        %7080 = vmatprep.subr.mxu0 %v6969
        %7081 = vmatpush1.msra.mxu0 %v6968
        %7082 = vmatprep.subr.mxu0 %v6971
        %7083 = vmatpush1.msra.mxu0 %v6970
        %7084 = vmatprep.subr.mxu0 %v6973
        %7085 = vmatpush1.msra.mxu0 %v6972
        %7086 = vmatprep.subr.mxu0 %v6975
        %7087 = vmatpush1.msra.mxu0 %v6974
        %7088 = vmatprep.subr.mxu0 %v6977
        %7089 = vmatpush1.msra.mxu0 %v6976
        %7090 = vmatprep.mubr.f32.mxu0 %v7018
        %7091 = vmatmul.mubr.f32.gmra.mrb[0].mxu0 %v7014
        %v7092 = vpop.f32.mrb[0].mxu0
        %v7093 = vadd.f32 0.0, %v7092
        %v7094 = vpop.f32.mrb[0].mxu0
        %v7095 = vadd.f32 0.0, %v7094
        %7096 = vdwg.mxu0
        %7097 = vmatprep.subr.mxu0 %v6979
        %7098 = vmatpush1.msra.mxu0 %v6978
        %7099 = vmatprep.subr.mxu0 %v6981
        %7100 = vmatpush1.msra.mxu0 %v6980
        %7101 = vmatprep.subr.mxu0 %v6983
        %7102 = vmatpush1.msra.mxu0 %v6982
        %7103 = vmatprep.subr.mxu0 %v6985
        %7104 = vmatpush1.msra.mxu0 %v6984
        %7105 = vmatprep.subr.mxu0 %v6987
        %7106 = vmatpush1.msra.mxu0 %v6986
        %7107 = vmatprep.subr.mxu0 %v6989
        %7108 = vmatpush1.msra.mxu0 %v6988
        %7109 = vmatprep.subr.mxu0 %v6991
        %7110 = vmatpush1.msra.mxu0 %v6990
        %7111 = vmatprep.subr.mxu0 %v6993
        %7112 = vmatpush1.msra.mxu0 %v6992
        %7113 = vmatprep.subr.mxu0 %v6995
        %7114 = vmatpush1.msra.mxu0 %v6994
        %7115 = vmatprep.subr.mxu0 %v6997
        %7116 = vmatpush1.msra.mxu0 %v6996
        %7117 = vmatprep.subr.mxu0 %v6999
        %7118 = vmatpush1.msra.mxu0 %v6998
        %7119 = vmatprep.subr.mxu0 %v7001
        %7120 = vmatpush1.msra.mxu0 %v7000
        %7121 = vmatprep.subr.mxu0 %v7003
        %7122 = vmatpush1.msra.mxu0 %v7002
        %7123 = vmatprep.subr.mxu0 %v7005
        %7124 = vmatpush1.msra.mxu0 %v7004
        %7125 = vmatprep.subr.mxu0 %v7007
        %7126 = vmatpush1.msra.mxu0 %v7006
        %7127 = vmatprep.subr.mxu0 %v7009
        %7128 = vmatpush1.msra.mxu0 %v7008
        %7129 = vmatprep.subr.mxu0 0.0
        %7130 = vmatpush1.msra.mxu0 0.0
        %7131 = vmatprep.subr.mxu0 0.0
        %7132 = vmatpush1.msra.mxu0 0.0
        %7133 = vmatprep.subr.mxu0 0.0
        %7134 = vmatpush1.msra.mxu0 0.0
        %7135 = vmatprep.subr.mxu0 0.0
        %7136 = vmatpush1.msra.mxu0 0.0
        %7137 = vmatprep.subr.mxu0 0.0
        %7138 = vmatpush1.msra.mxu0 0.0
        %7139 = vmatprep.subr.mxu0 0.0
        %7140 = vmatpush1.msra.mxu0 0.0
        %7141 = vmatprep.subr.mxu0 0.0
        %7142 = vmatpush1.msra.mxu0 0.0
        %7143 = vmatprep.subr.mxu0 0.0
        %7144 = vmatpush1.msra.mxu0 0.0
        %7145 = vmatprep.subr.mxu0 0.0
        %7146 = vmatpush1.msra.mxu0 0.0
        %7147 = vmatprep.subr.mxu0 0.0
        %7148 = vmatpush1.msra.mxu0 0.0
        %7149 = vmatprep.subr.mxu0 0.0
        %7150 = vmatpush1.msra.mxu0 0.0
        %7151 = vmatprep.subr.mxu0 0.0
        %7152 = vmatpush1.msra.mxu0 0.0
        %7153 = vmatprep.subr.mxu0 0.0
        %7154 = vmatpush1.msra.mxu0 0.0
        %7155 = vmatprep.subr.mxu0 0.0
        %7156 = vmatpush1.msra.mxu0 0.0
        %7157 = vmatprep.subr.mxu0 0.0
        %7158 = vmatpush1.msra.mxu0 0.0
        %7159 = vmatprep.subr.mxu0 0.0
        %7160 = vmatpush1.msra.mxu0 0.0
        %7161 = vmatprep.mubr.f32.mxu0 0.0
        %7162 = vmatmul.mubr.f32.gmra.mrb[0].mxu0 %v7022
        %v7163 = vpop.f32.mrb[0].mxu0
        %v7164 = vadd.f32 %v7093, %v7163
        %v7165 = vpop.f32.mrb[0].mxu0
        %v7166 = vadd.f32 %v7095, %v7165
        %7167 = vdwg.mxu0
        %v7168 = vadd.f32 %v6908, %v7164
        %v7169 = vadd.f32 %v6910, %v7166
        %v7170 = vld [vmem:[%s6390] ss:$8 sm:$0x7]
        %s7171 = scalar_lea.vmem %s6, 2304
        %v7172 = vld [vmem:[%s7171] sm:$0xff]
        %v7173 = vld [vmem:[%s7171 + $0x8] sm:$0xff]
        %v7174 = vld [vmem:[%s7171 + $0x10] sm:$0xff]
        %v7175 = vld [vmem:[%s7171 + $0x18] sm:$0xff]
        %v7176 = vld [vmem:[%s7171 + $0x20] sm:$0xff]
        %v7177 = vld [vmem:[%s7171 + $0x28] sm:$0xff]
        %v7178 = vld [vmem:[%s7171 + $0x30] sm:$0xff]
        %v7179 = vld [vmem:[%s7171 + $0x38] sm:$0xff]
        %v7180 = vld [vmem:[%s7171 + $0x40] sm:$0xff]
        %v7181 = vld [vmem:[%s7171 + $0x48] sm:$0xff]
        %v7182 = vld [vmem:[%s7171 + $0x50] sm:$0xff]
        %v7183 = vld [vmem:[%s7171 + $0x58] sm:$0xff]
        %v7184 = vld [vmem:[%s7171 + $0x60] sm:$0xff]
        %v7185 = vld [vmem:[%s7171 + $0x68] sm:$0xff]
        %v7186 = vld [vmem:[%s7171 + $0x70] sm:$0xff]
        %v7187 = vld [vmem:[%s7171 + $0x78] sm:$0xff]
        %v7188 = vld [vmem:[%s7171 + $0x80] sm:$0xff]
        %v7189 = vld [vmem:[%s7171 + $0x88] sm:$0xff]
        %v7190 = vld [vmem:[%s7171 + $0x90] sm:$0xff]
        %v7191 = vld [vmem:[%s7171 + $0x98] sm:$0xff]
        %v7192 = vld [vmem:[%s7171 + $0xa0] sm:$0xff]
        %v7193 = vld [vmem:[%s7171 + $0xa8] sm:$0xff]
        %v7194 = vld [vmem:[%s7171 + $0xb0] sm:$0xff]
        %v7195 = vld [vmem:[%s7171 + $0xb8] sm:$0xff]
        %v7196 = vld [vmem:[%s7171 + $0xc0] sm:$0xff]
        %v7197 = vld [vmem:[%s7171 + $0xc8] sm:$0xff]
        %v7198 = vld [vmem:[%s7171 + $0xd0] sm:$0xff]
        %v7199 = vld [vmem:[%s7171 + $0xd8] sm:$0xff]
        %v7200 = vld [vmem:[%s7171 + $0xe0] sm:$0xff]
        %v7201 = vld [vmem:[%s7171 + $0xe8] sm:$0xff]
        %v7202 = vld [vmem:[%s7171 + $0xf0] sm:$0xff]
        %v7203 = vld [vmem:[%s7171 + $0xf8] sm:$0xff]
        %v7204 = vld [vmem:[%s7171 + $0x100] sm:$0xff]
        %v7205 = vld [vmem:[%s7171 + $0x108] sm:$0xff]
        %v7206 = vld [vmem:[%s7171 + $0x110] sm:$0xff]
        %v7207 = vld [vmem:[%s7171 + $0x118] sm:$0xff]
        %v7208 = vld [vmem:[%s7171 + $0x120] sm:$0xff]
        %v7209 = vld [vmem:[%s7171 + $0x128] sm:$0xff]
        %v7210 = vld [vmem:[%s7171 + $0x130] sm:$0xff]
        %v7211 = vld [vmem:[%s7171 + $0x138] sm:$0xff]
        %v7212 = vld [vmem:[%s7171 + $0x140] sm:$0xff]
        %v7213 = vld [vmem:[%s7171 + $0x148] sm:$0xff]
        %v7214 = vld [vmem:[%s7171 + $0x150] sm:$0xff]
        %v7215 = vld [vmem:[%s7171 + $0x158] sm:$0xff]
        %v7216 = vld [vmem:[%s7171 + $0x160] sm:$0xff]
        %v7217 = vld [vmem:[%s7171 + $0x168] sm:$0xff]
        %v7218 = vld [vmem:[%s7171 + $0x170] sm:$0xff]
        %v7219 = vld [vmem:[%s7171 + $0x178] sm:$0xff]
        %v7220 = vld [vmem:[%s7171 + $0x180] sm:$0xff]
        %v7221 = vld [vmem:[%s7171 + $0x188] sm:$0xff]
        %v7222 = vld [vmem:[%s7171 + $0x190] sm:$0xff]
        %v7223 = vld [vmem:[%s7171 + $0x198] sm:$0xff]
        %v7224 = vld [vmem:[%s7171 + $0x1a0] sm:$0xff]
        %v7225 = vld [vmem:[%s7171 + $0x1a8] sm:$0xff]
        %v7226 = vld [vmem:[%s7171 + $0x1b0] sm:$0xff]
        %v7227 = vld [vmem:[%s7171 + $0x1b8] sm:$0xff]
        %v7228 = vld [vmem:[%s7171 + $0x1c0] sm:$0xff]
        %v7229 = vld [vmem:[%s7171 + $0x1c8] sm:$0xff]
        %v7230 = vld [vmem:[%s7171 + $0x1d0] sm:$0xff]
        %v7231 = vld [vmem:[%s7171 + $0x1d8] sm:$0xff]
        %v7232 = vld [vmem:[%s7171 + $0x1e0] sm:$0xff]
        %v7233 = vld [vmem:[%s7171 + $0x1e8] sm:$0xff]
        %v7234 = vld [vmem:[%s7171 + $0x1f0] sm:$0xff]
        %v7235 = vld [vmem:[%s7171 + $0x1f8] sm:$0xff]
        %v7236 = vld [vmem:[%s7171 + $0x200] sm:$0xff]
        %v7237 = vld [vmem:[%s7171 + $0x208] sm:$0xff]
        %v7238 = vld [vmem:[%s7171 + $0x210] sm:$0xff]
        %v7239 = vld [vmem:[%s7171 + $0x218] sm:$0xff]
        %v7240 = vld [vmem:[%s7171 + $0x220] sm:$0xff]
        %v7241 = vld [vmem:[%s7171 + $0x228] sm:$0xff]
        %v7242 = vld [vmem:[%s7171 + $0x230] sm:$0xff]
        %v7243 = vld [vmem:[%s7171 + $0x238] sm:$0xff]
        %v7244 = vld [vmem:[%s7171 + $0x240] sm:$0xff]
        %v7245 = vld [vmem:[%s7171 + $0x248] sm:$0xff]
        %v7246 = vld [vmem:[%s7171 + $0x250] sm:$0xff]
        %v7247 = vld [vmem:[%s7171 + $0x258] sm:$0xff]
        %v7248 = vld [vmem:[%s7171 + $0x260] sm:$0xff]
        %v7249 = vld [vmem:[%s7171 + $0x268] sm:$0xff]
        %v7250 = vld [vmem:[%s7171 + $0x270] sm:$0xff]
        %v7251 = vld [vmem:[%s7171 + $0x278] sm:$0xff]
        %v7252 = vld [vmem:[%s7171 + $0x280] sm:$0xff]
        %v7253 = vld [vmem:[%s7171 + $0x288] sm:$0xff]
        %v7254 = vld [vmem:[%s7171 + $0x290] sm:$0xff]
        %v7255 = vld [vmem:[%s7171 + $0x298] sm:$0xff]
        %v7256 = vld [vmem:[%s7171 + $0x2a0] sm:$0xff]
        %v7257 = vld [vmem:[%s7171 + $0x2a8] sm:$0xff]
        %v7258 = vld [vmem:[%s7171 + $0x2b0] sm:$0xff]
        %v7259 = vld [vmem:[%s7171 + $0x2b8] sm:$0xff]
        %v7260 = vld [vmem:[%s7171 + $0x2c0] sm:$0xff]
        %v7261 = vld [vmem:[%s7171 + $0x2c8] sm:$0xff]
        %v7262 = vld [vmem:[%s7171 + $0x2d0] sm:$0xff]
        %v7263 = vld [vmem:[%s7171 + $0x2d8] sm:$0xff]
        %v7264 = vld [vmem:[%s7171 + $0x2e0] sm:$0xff]
        %v7265 = vld [vmem:[%s7171 + $0x2e8] sm:$0xff]
        %v7266 = vld [vmem:[%s7171 + $0x2f0] sm:$0xff]
        %v7267 = vld [vmem:[%s7171 + $0x2f8] sm:$0xff]
        %v7269 = vlaneseq
        %v7270 = vshrl.u32 %v7269, 7
        %v7271 = vsub.s32 0, %v7270
        %v7272 = vrot.slane %v7170, %v7271
        %v7273 = vlaneseq
        %v7274 = vshrl.u32 %v7273, 7
        %v7275 = vsub.s32 1, %v7274
        %v7276 = vrot.slane %v7170, %v7275
        %v7277 = vlaneseq
        %v7278 = vshrl.u32 %v7277, 7
        %v7279 = vsub.s32 2, %v7278
        %v7280 = vrot.slane %v7170, %v7279
        %7284 = vmatprep.subr.mxu0 %v7173
        %7285 = vmatpush1.msra.mxu0 %v7172
        %7286 = vmatprep.subr.mxu0 %v7175
        %7287 = vmatpush1.msra.mxu0 %v7174
        %7288 = vmatprep.subr.mxu0 %v7177
        %7289 = vmatpush1.msra.mxu0 %v7176
        %7290 = vmatprep.subr.mxu0 %v7179
        %7291 = vmatpush1.msra.mxu0 %v7178
        %7292 = vmatprep.subr.mxu0 %v7181
        %7293 = vmatpush1.msra.mxu0 %v7180
        %7294 = vmatprep.subr.mxu0 %v7183
        %7295 = vmatpush1.msra.mxu0 %v7182
        %7296 = vmatprep.subr.mxu0 %v7185
        %7297 = vmatpush1.msra.mxu0 %v7184
        %7298 = vmatprep.subr.mxu0 %v7187
        %7299 = vmatpush1.msra.mxu0 %v7186
        %7300 = vmatprep.subr.mxu0 %v7189
        %7301 = vmatpush1.msra.mxu0 %v7188
        %7302 = vmatprep.subr.mxu0 %v7191
        %7303 = vmatpush1.msra.mxu0 %v7190
        %7304 = vmatprep.subr.mxu0 %v7193
        %7305 = vmatpush1.msra.mxu0 %v7192
        %7306 = vmatprep.subr.mxu0 %v7195
        %7307 = vmatpush1.msra.mxu0 %v7194
        %7308 = vmatprep.subr.mxu0 %v7197
        %7309 = vmatpush1.msra.mxu0 %v7196
        %7310 = vmatprep.subr.mxu0 %v7199
        %7311 = vmatpush1.msra.mxu0 %v7198
        %7312 = vmatprep.subr.mxu0 %v7201
        %7313 = vmatpush1.msra.mxu0 %v7200
        %7314 = vmatprep.subr.mxu0 %v7203
        %7315 = vmatpush1.msra.mxu0 %v7202
        %7316 = vmatprep.subr.mxu0 %v7205
        %7317 = vmatpush1.msra.mxu0 %v7204
        %7318 = vmatprep.subr.mxu0 %v7207
        %7319 = vmatpush1.msra.mxu0 %v7206
        %7320 = vmatprep.subr.mxu0 %v7209
        %7321 = vmatpush1.msra.mxu0 %v7208
        %7322 = vmatprep.subr.mxu0 %v7211
        %7323 = vmatpush1.msra.mxu0 %v7210
        %7324 = vmatprep.subr.mxu0 %v7213
        %7325 = vmatpush1.msra.mxu0 %v7212
        %7326 = vmatprep.subr.mxu0 %v7215
        %7327 = vmatpush1.msra.mxu0 %v7214
        %7328 = vmatprep.subr.mxu0 %v7217
        %7329 = vmatpush1.msra.mxu0 %v7216
        %7330 = vmatprep.subr.mxu0 %v7219
        %7331 = vmatpush1.msra.mxu0 %v7218
        %7332 = vmatprep.subr.mxu0 %v7221
        %7333 = vmatpush1.msra.mxu0 %v7220
        %7334 = vmatprep.subr.mxu0 %v7223
        %7335 = vmatpush1.msra.mxu0 %v7222
        %7336 = vmatprep.subr.mxu0 %v7225
        %7337 = vmatpush1.msra.mxu0 %v7224
        %7338 = vmatprep.subr.mxu0 %v7227
        %7339 = vmatpush1.msra.mxu0 %v7226
        %7340 = vmatprep.subr.mxu0 %v7229
        %7341 = vmatpush1.msra.mxu0 %v7228
        %7342 = vmatprep.subr.mxu0 %v7231
        %7343 = vmatpush1.msra.mxu0 %v7230
        %7344 = vmatprep.subr.mxu0 %v7233
        %7345 = vmatpush1.msra.mxu0 %v7232
        %7346 = vmatprep.subr.mxu0 %v7235
        %7347 = vmatpush1.msra.mxu0 %v7234
        %7348 = vmatprep.mubr.f32.mxu0 %v7276
        %7349 = vmatmul.mubr.f32.gmra.mrb[0].mxu0 %v7272
        %v7350 = vpop.f32.mrb[0].mxu0
        %v7351 = vadd.f32 0.0, %v7350
        %v7352 = vpop.f32.mrb[0].mxu0
        %v7353 = vadd.f32 0.0, %v7352
        %7354 = vdwg.mxu0
        %7355 = vmatprep.subr.mxu0 %v7237
        %7356 = vmatpush1.msra.mxu0 %v7236
        %7357 = vmatprep.subr.mxu0 %v7239
        %7358 = vmatpush1.msra.mxu0 %v7238
        %7359 = vmatprep.subr.mxu0 %v7241
        %7360 = vmatpush1.msra.mxu0 %v7240
        %7361 = vmatprep.subr.mxu0 %v7243
        %7362 = vmatpush1.msra.mxu0 %v7242
        %7363 = vmatprep.subr.mxu0 %v7245
        %7364 = vmatpush1.msra.mxu0 %v7244
        %7365 = vmatprep.subr.mxu0 %v7247
        %7366 = vmatpush1.msra.mxu0 %v7246
        %7367 = vmatprep.subr.mxu0 %v7249
        %7368 = vmatpush1.msra.mxu0 %v7248
        %7369 = vmatprep.subr.mxu0 %v7251
        %7370 = vmatpush1.msra.mxu0 %v7250
        %7371 = vmatprep.subr.mxu0 %v7253
        %7372 = vmatpush1.msra.mxu0 %v7252
        %7373 = vmatprep.subr.mxu0 %v7255
        %7374 = vmatpush1.msra.mxu0 %v7254
        %7375 = vmatprep.subr.mxu0 %v7257
        %7376 = vmatpush1.msra.mxu0 %v7256
        %7377 = vmatprep.subr.mxu0 %v7259
        %7378 = vmatpush1.msra.mxu0 %v7258
        %7379 = vmatprep.subr.mxu0 %v7261
        %7380 = vmatpush1.msra.mxu0 %v7260
        %7381 = vmatprep.subr.mxu0 %v7263
        %7382 = vmatpush1.msra.mxu0 %v7262
        %7383 = vmatprep.subr.mxu0 %v7265
        %7384 = vmatpush1.msra.mxu0 %v7264
        %7385 = vmatprep.subr.mxu0 %v7267
        %7386 = vmatpush1.msra.mxu0 %v7266
        %7387 = vmatprep.subr.mxu0 0.0
        %7388 = vmatpush1.msra.mxu0 0.0
        %7389 = vmatprep.subr.mxu0 0.0
        %7390 = vmatpush1.msra.mxu0 0.0
        %7391 = vmatprep.subr.mxu0 0.0
        %7392 = vmatpush1.msra.mxu0 0.0
        %7393 = vmatprep.subr.mxu0 0.0
        %7394 = vmatpush1.msra.mxu0 0.0
        %7395 = vmatprep.subr.mxu0 0.0
        %7396 = vmatpush1.msra.mxu0 0.0
        %7397 = vmatprep.subr.mxu0 0.0
        %7398 = vmatpush1.msra.mxu0 0.0
        %7399 = vmatprep.subr.mxu0 0.0
        %7400 = vmatpush1.msra.mxu0 0.0
        %7401 = vmatprep.subr.mxu0 0.0
        %7402 = vmatpush1.msra.mxu0 0.0
        %7403 = vmatprep.subr.mxu0 0.0
        %7404 = vmatpush1.msra.mxu0 0.0
        %7405 = vmatprep.subr.mxu0 0.0
        %7406 = vmatpush1.msra.mxu0 0.0
        %7407 = vmatprep.subr.mxu0 0.0
        %7408 = vmatpush1.msra.mxu0 0.0
        %7409 = vmatprep.subr.mxu0 0.0
        %7410 = vmatpush1.msra.mxu0 0.0
        %7411 = vmatprep.subr.mxu0 0.0
        %7412 = vmatpush1.msra.mxu0 0.0
        %7413 = vmatprep.subr.mxu0 0.0
        %7414 = vmatpush1.msra.mxu0 0.0
        %7415 = vmatprep.subr.mxu0 0.0
        %7416 = vmatpush1.msra.mxu0 0.0
        %7417 = vmatprep.subr.mxu0 0.0
        %7418 = vmatpush1.msra.mxu0 0.0
        %7419 = vmatprep.mubr.f32.mxu0 0.0
        %7420 = vmatmul.mubr.f32.gmra.mrb[0].mxu0 %v7280
        %v7421 = vpop.f32.mrb[0].mxu0
        %v7422 = vadd.f32 %v7351, %v7421
        %v7423 = vpop.f32.mrb[0].mxu0
        %v7424 = vadd.f32 %v7353, %v7423
        %7425 = vdwg.mxu0
        %v7426 = vadd.f32 %v7168, %v7422
        %v7427 = vadd.f32 %v7169, %v7424
        %v7428 = vld [vmem:[%s6398] ss:$8 sm:$0x7]
        %s7429 = scalar_lea.vmem %s6, 3072
        %v7430 = vld [vmem:[%s7429] sm:$0xff]
        %v7431 = vld [vmem:[%s7429 + $0x8] sm:$0xff]
        %v7432 = vld [vmem:[%s7429 + $0x10] sm:$0xff]
        %v7433 = vld [vmem:[%s7429 + $0x18] sm:$0xff]
        %v7434 = vld [vmem:[%s7429 + $0x20] sm:$0xff]
        %v7435 = vld [vmem:[%s7429 + $0x28] sm:$0xff]
        %v7436 = vld [vmem:[%s7429 + $0x30] sm:$0xff]
        %v7437 = vld [vmem:[%s7429 + $0x38] sm:$0xff]
        %v7438 = vld [vmem:[%s7429 + $0x40] sm:$0xff]
        %v7439 = vld [vmem:[%s7429 + $0x48] sm:$0xff]
        %v7440 = vld [vmem:[%s7429 + $0x50] sm:$0xff]
        %v7441 = vld [vmem:[%s7429 + $0x58] sm:$0xff]
        %v7442 = vld [vmem:[%s7429 + $0x60] sm:$0xff]
        %v7443 = vld [vmem:[%s7429 + $0x68] sm:$0xff]
        %v7444 = vld [vmem:[%s7429 + $0x70] sm:$0xff]
        %v7445 = vld [vmem:[%s7429 + $0x78] sm:$0xff]
        %v7446 = vld [vmem:[%s7429 + $0x80] sm:$0xff]
        %v7447 = vld [vmem:[%s7429 + $0x88] sm:$0xff]
        %v7448 = vld [vmem:[%s7429 + $0x90] sm:$0xff]
        %v7449 = vld [vmem:[%s7429 + $0x98] sm:$0xff]
        %v7450 = vld [vmem:[%s7429 + $0xa0] sm:$0xff]
        %v7451 = vld [vmem:[%s7429 + $0xa8] sm:$0xff]
        %v7452 = vld [vmem:[%s7429 + $0xb0] sm:$0xff]
        %v7453 = vld [vmem:[%s7429 + $0xb8] sm:$0xff]
        %v7454 = vld [vmem:[%s7429 + $0xc0] sm:$0xff]
        %v7455 = vld [vmem:[%s7429 + $0xc8] sm:$0xff]
        %v7456 = vld [vmem:[%s7429 + $0xd0] sm:$0xff]
        %v7457 = vld [vmem:[%s7429 + $0xd8] sm:$0xff]
        %v7458 = vld [vmem:[%s7429 + $0xe0] sm:$0xff]
        %v7459 = vld [vmem:[%s7429 + $0xe8] sm:$0xff]
        %v7460 = vld [vmem:[%s7429 + $0xf0] sm:$0xff]
        %v7461 = vld [vmem:[%s7429 + $0xf8] sm:$0xff]
        %v7462 = vld [vmem:[%s7429 + $0x100] sm:$0xff]
        %v7463 = vld [vmem:[%s7429 + $0x108] sm:$0xff]
        %v7464 = vld [vmem:[%s7429 + $0x110] sm:$0xff]
        %v7465 = vld [vmem:[%s7429 + $0x118] sm:$0xff]
        %v7466 = vld [vmem:[%s7429 + $0x120] sm:$0xff]
        %v7467 = vld [vmem:[%s7429 + $0x128] sm:$0xff]
        %v7468 = vld [vmem:[%s7429 + $0x130] sm:$0xff]
        %v7469 = vld [vmem:[%s7429 + $0x138] sm:$0xff]
        %v7470 = vld [vmem:[%s7429 + $0x140] sm:$0xff]
        %v7471 = vld [vmem:[%s7429 + $0x148] sm:$0xff]
        %v7472 = vld [vmem:[%s7429 + $0x150] sm:$0xff]
        %v7473 = vld [vmem:[%s7429 + $0x158] sm:$0xff]
        %v7474 = vld [vmem:[%s7429 + $0x160] sm:$0xff]
        %v7475 = vld [vmem:[%s7429 + $0x168] sm:$0xff]
        %v7476 = vld [vmem:[%s7429 + $0x170] sm:$0xff]
        %v7477 = vld [vmem:[%s7429 + $0x178] sm:$0xff]
        %v7478 = vld [vmem:[%s7429 + $0x180] sm:$0xff]
        %v7479 = vld [vmem:[%s7429 + $0x188] sm:$0xff]
        %v7480 = vld [vmem:[%s7429 + $0x190] sm:$0xff]
        %v7481 = vld [vmem:[%s7429 + $0x198] sm:$0xff]
        %v7482 = vld [vmem:[%s7429 + $0x1a0] sm:$0xff]
        %v7483 = vld [vmem:[%s7429 + $0x1a8] sm:$0xff]
        %v7484 = vld [vmem:[%s7429 + $0x1b0] sm:$0xff]
        %v7485 = vld [vmem:[%s7429 + $0x1b8] sm:$0xff]
        %v7486 = vld [vmem:[%s7429 + $0x1c0] sm:$0xff]
        %v7487 = vld [vmem:[%s7429 + $0x1c8] sm:$0xff]
        %v7488 = vld [vmem:[%s7429 + $0x1d0] sm:$0xff]
        %v7489 = vld [vmem:[%s7429 + $0x1d8] sm:$0xff]
        %v7490 = vld [vmem:[%s7429 + $0x1e0] sm:$0xff]
        %v7491 = vld [vmem:[%s7429 + $0x1e8] sm:$0xff]
        %v7492 = vld [vmem:[%s7429 + $0x1f0] sm:$0xff]
        %v7493 = vld [vmem:[%s7429 + $0x1f8] sm:$0xff]
        %v7494 = vld [vmem:[%s7429 + $0x200] sm:$0xff]
        %v7495 = vld [vmem:[%s7429 + $0x208] sm:$0xff]
        %v7496 = vld [vmem:[%s7429 + $0x210] sm:$0xff]
        %v7497 = vld [vmem:[%s7429 + $0x218] sm:$0xff]
        %v7498 = vld [vmem:[%s7429 + $0x220] sm:$0xff]
        %v7499 = vld [vmem:[%s7429 + $0x228] sm:$0xff]
        %v7500 = vld [vmem:[%s7429 + $0x230] sm:$0xff]
        %v7501 = vld [vmem:[%s7429 + $0x238] sm:$0xff]
        %v7502 = vld [vmem:[%s7429 + $0x240] sm:$0xff]
        %v7503 = vld [vmem:[%s7429 + $0x248] sm:$0xff]
        %v7504 = vld [vmem:[%s7429 + $0x250] sm:$0xff]
        %v7505 = vld [vmem:[%s7429 + $0x258] sm:$0xff]
        %v7506 = vld [vmem:[%s7429 + $0x260] sm:$0xff]
        %v7507 = vld [vmem:[%s7429 + $0x268] sm:$0xff]
        %v7508 = vld [vmem:[%s7429 + $0x270] sm:$0xff]
        %v7509 = vld [vmem:[%s7429 + $0x278] sm:$0xff]
        %v7510 = vld [vmem:[%s7429 + $0x280] sm:$0xff]
        %v7511 = vld [vmem:[%s7429 + $0x288] sm:$0xff]
        %v7512 = vld [vmem:[%s7429 + $0x290] sm:$0xff]
        %v7513 = vld [vmem:[%s7429 + $0x298] sm:$0xff]
        %v7514 = vld [vmem:[%s7429 + $0x2a0] sm:$0xff]
        %v7515 = vld [vmem:[%s7429 + $0x2a8] sm:$0xff]
        %v7516 = vld [vmem:[%s7429 + $0x2b0] sm:$0xff]
        %v7517 = vld [vmem:[%s7429 + $0x2b8] sm:$0xff]
        %v7518 = vld [vmem:[%s7429 + $0x2c0] sm:$0xff]
        %v7519 = vld [vmem:[%s7429 + $0x2c8] sm:$0xff]
        %v7520 = vld [vmem:[%s7429 + $0x2d0] sm:$0xff]
        %v7521 = vld [vmem:[%s7429 + $0x2d8] sm:$0xff]
        %v7522 = vld [vmem:[%s7429 + $0x2e0] sm:$0xff]
        %v7523 = vld [vmem:[%s7429 + $0x2e8] sm:$0xff]
        %v7524 = vld [vmem:[%s7429 + $0x2f0] sm:$0xff]
        %v7525 = vld [vmem:[%s7429 + $0x2f8] sm:$0xff]
        %v7527 = vlaneseq
        %v7528 = vshrl.u32 %v7527, 7
        %v7529 = vsub.s32 0, %v7528
        %v7530 = vrot.slane %v7428, %v7529
        %v7531 = vlaneseq
        %v7532 = vshrl.u32 %v7531, 7
        %v7533 = vsub.s32 1, %v7532
        %v7534 = vrot.slane %v7428, %v7533
        %v7535 = vlaneseq
        %v7536 = vshrl.u32 %v7535, 7
        %v7537 = vsub.s32 2, %v7536
        %v7538 = vrot.slane %v7428, %v7537
        %7542 = vmatprep.subr.mxu0 %v7431
        %7543 = vmatpush1.msra.mxu0 %v7430
        %7544 = vmatprep.subr.mxu0 %v7433
        %7545 = vmatpush1.msra.mxu0 %v7432
        %7546 = vmatprep.subr.mxu0 %v7435
        %7547 = vmatpush1.msra.mxu0 %v7434
        %7548 = vmatprep.subr.mxu0 %v7437
        %7549 = vmatpush1.msra.mxu0 %v7436
        %7550 = vmatprep.subr.mxu0 %v7439
        %7551 = vmatpush1.msra.mxu0 %v7438
        %7552 = vmatprep.subr.mxu0 %v7441
        %7553 = vmatpush1.msra.mxu0 %v7440
        %7554 = vmatprep.subr.mxu0 %v7443
        %7555 = vmatpush1.msra.mxu0 %v7442
        %7556 = vmatprep.subr.mxu0 %v7445
        %7557 = vmatpush1.msra.mxu0 %v7444
        %7558 = vmatprep.subr.mxu0 %v7447
        %7559 = vmatpush1.msra.mxu0 %v7446
        %7560 = vmatprep.subr.mxu0 %v7449
        %7561 = vmatpush1.msra.mxu0 %v7448
        %7562 = vmatprep.subr.mxu0 %v7451
        %7563 = vmatpush1.msra.mxu0 %v7450
        %7564 = vmatprep.subr.mxu0 %v7453
        %7565 = vmatpush1.msra.mxu0 %v7452
        %7566 = vmatprep.subr.mxu0 %v7455
        %7567 = vmatpush1.msra.mxu0 %v7454
        %7568 = vmatprep.subr.mxu0 %v7457
        %7569 = vmatpush1.msra.mxu0 %v7456
        %7570 = vmatprep.subr.mxu0 %v7459
        %7571 = vmatpush1.msra.mxu0 %v7458
        %7572 = vmatprep.subr.mxu0 %v7461
        %7573 = vmatpush1.msra.mxu0 %v7460
        %7574 = vmatprep.subr.mxu0 %v7463
        %7575 = vmatpush1.msra.mxu0 %v7462
        %7576 = vmatprep.subr.mxu0 %v7465
        %7577 = vmatpush1.msra.mxu0 %v7464
        %7578 = vmatprep.subr.mxu0 %v7467
        %7579 = vmatpush1.msra.mxu0 %v7466
        %7580 = vmatprep.subr.mxu0 %v7469
        %7581 = vmatpush1.msra.mxu0 %v7468
        %7582 = vmatprep.subr.mxu0 %v7471
        %7583 = vmatpush1.msra.mxu0 %v7470
        %7584 = vmatprep.subr.mxu0 %v7473
        %7585 = vmatpush1.msra.mxu0 %v7472
        %7586 = vmatprep.subr.mxu0 %v7475
        %7587 = vmatpush1.msra.mxu0 %v7474
        %7588 = vmatprep.subr.mxu0 %v7477
        %7589 = vmatpush1.msra.mxu0 %v7476
        %7590 = vmatprep.subr.mxu0 %v7479
        %7591 = vmatpush1.msra.mxu0 %v7478
        %7592 = vmatprep.subr.mxu0 %v7481
        %7593 = vmatpush1.msra.mxu0 %v7480
        %7594 = vmatprep.subr.mxu0 %v7483
        %7595 = vmatpush1.msra.mxu0 %v7482
        %7596 = vmatprep.subr.mxu0 %v7485
        %7597 = vmatpush1.msra.mxu0 %v7484
        %7598 = vmatprep.subr.mxu0 %v7487
        %7599 = vmatpush1.msra.mxu0 %v7486
        %7600 = vmatprep.subr.mxu0 %v7489
        %7601 = vmatpush1.msra.mxu0 %v7488
        %7602 = vmatprep.subr.mxu0 %v7491
        %7603 = vmatpush1.msra.mxu0 %v7490
        %7604 = vmatprep.subr.mxu0 %v7493
        %7605 = vmatpush1.msra.mxu0 %v7492
        %7606 = vmatprep.mubr.f32.mxu0 %v7534
        %7607 = vmatmul.mubr.f32.gmra.mrb[0].mxu0 %v7530
        %v7608 = vpop.f32.mrb[0].mxu0
        %v7609 = vadd.f32 0.0, %v7608
        %v7610 = vpop.f32.mrb[0].mxu0
        %v7611 = vadd.f32 0.0, %v7610
        %7612 = vdwg.mxu0
        %7613 = vmatprep.subr.mxu0 %v7495
        %7614 = vmatpush1.msra.mxu0 %v7494
        %7615 = vmatprep.subr.mxu0 %v7497
        %7616 = vmatpush1.msra.mxu0 %v7496
        %7617 = vmatprep.subr.mxu0 %v7499
        %7618 = vmatpush1.msra.mxu0 %v7498
        %7619 = vmatprep.subr.mxu0 %v7501
        %7620 = vmatpush1.msra.mxu0 %v7500
        %7621 = vmatprep.subr.mxu0 %v7503
        %7622 = vmatpush1.msra.mxu0 %v7502
        %7623 = vmatprep.subr.mxu0 %v7505
        %7624 = vmatpush1.msra.mxu0 %v7504
        %7625 = vmatprep.subr.mxu0 %v7507
        %7626 = vmatpush1.msra.mxu0 %v7506
        %7627 = vmatprep.subr.mxu0 %v7509
        %7628 = vmatpush1.msra.mxu0 %v7508
        %7629 = vmatprep.subr.mxu0 %v7511
        %7630 = vmatpush1.msra.mxu0 %v7510
        %7631 = vmatprep.subr.mxu0 %v7513
        %7632 = vmatpush1.msra.mxu0 %v7512
        %7633 = vmatprep.subr.mxu0 %v7515
        %7634 = vmatpush1.msra.mxu0 %v7514
        %7635 = vmatprep.subr.mxu0 %v7517
        %7636 = vmatpush1.msra.mxu0 %v7516
        %7637 = vmatprep.subr.mxu0 %v7519
        %7638 = vmatpush1.msra.mxu0 %v7518
        %7639 = vmatprep.subr.mxu0 %v7521
        %7640 = vmatpush1.msra.mxu0 %v7520
        %7641 = vmatprep.subr.mxu0 %v7523
        %7642 = vmatpush1.msra.mxu0 %v7522
        %7643 = vmatprep.subr.mxu0 %v7525
        %7644 = vmatpush1.msra.mxu0 %v7524
        %7645 = vmatprep.subr.mxu0 0.0
        %7646 = vmatpush1.msra.mxu0 0.0
        %7647 = vmatprep.subr.mxu0 0.0
        %7648 = vmatpush1.msra.mxu0 0.0
        %7649 = vmatprep.subr.mxu0 0.0
        %7650 = vmatpush1.msra.mxu0 0.0
        %7651 = vmatprep.subr.mxu0 0.0
        %7652 = vmatpush1.msra.mxu0 0.0
        %7653 = vmatprep.subr.mxu0 0.0
        %7654 = vmatpush1.msra.mxu0 0.0
        %7655 = vmatprep.subr.mxu0 0.0
        %7656 = vmatpush1.msra.mxu0 0.0
        %7657 = vmatprep.subr.mxu0 0.0
        %7658 = vmatpush1.msra.mxu0 0.0
        %7659 = vmatprep.subr.mxu0 0.0
        %7660 = vmatpush1.msra.mxu0 0.0
        %7661 = vmatprep.subr.mxu0 0.0
        %7662 = vmatpush1.msra.mxu0 0.0
        %7663 = vmatprep.subr.mxu0 0.0
        %7664 = vmatpush1.msra.mxu0 0.0
        %7665 = vmatprep.subr.mxu0 0.0
        %7666 = vmatpush1.msra.mxu0 0.0
        %7667 = vmatprep.subr.mxu0 0.0
        %7668 = vmatpush1.msra.mxu0 0.0
        %7669 = vmatprep.subr.mxu0 0.0
        %7670 = vmatpush1.msra.mxu0 0.0
        %7671 = vmatprep.subr.mxu0 0.0
        %7672 = vmatpush1.msra.mxu0 0.0
        %7673 = vmatprep.subr.mxu0 0.0
        %7674 = vmatpush1.msra.mxu0 0.0
        %7675 = vmatprep.subr.mxu0 0.0
        %7676 = vmatpush1.msra.mxu0 0.0
        %7677 = vmatprep.mubr.f32.mxu0 0.0
        %7678 = vmatmul.mubr.f32.gmra.mrb[0].mxu0 %v7538
        %v7679 = vpop.f32.mrb[0].mxu0
        %v7680 = vadd.f32 %v7609, %v7679
        %v7681 = vpop.f32.mrb[0].mxu0
        %v7682 = vadd.f32 %v7611, %v7681
        %7683 = vdwg.mxu0
        %v7684 = vadd.f32 %v7426, %v7680
        %v7685 = vadd.f32 %v7427, %v7682
        %v7686 = vld [vmem:[%s7] sm:$0x3]
        %v7688 = vlaneseq
        %v7689 = vshrl.u32 %v7688, 7
        %v7690 = vsub.s32 0, %v7689
        %v7691 = vrot.slane %v7686, %v7690
        %v7692 = vlaneseq
        %v7693 = vshrl.u32 %v7692, 7
        %v7694 = vsub.s32 1, %v7693
        %v7695 = vrot.slane %v7686, %v7694
        %v7698 = vadd.f32 %v7684, %v7691
        %v7699 = vadd.f32 %v7685, %v7695
        %vm7700 = vcmp.ge.f32.partialorder %v7698, 0.0
        %vm7701 = vcmp.ge.f32.partialorder %v7699, 0.0
        %v7702 = vmul.f32 %v2528, %v7698
        %v7703 = vmul.f32 %v2528, %v7699
        %v7704 = vsel %vm7700, %v7698, %v7702
        %v7705 = vsel %vm7701, %v7699, %v7703
        %v7706 = vld [vmem:[%s8] sm:$0xff]
        %v7707 = vld [vmem:[%s8 + $0x8] sm:$0xff]
        %v7708 = vld [vmem:[%s8 + $0x10] sm:$0xff]
        %v7709 = vld [vmem:[%s8 + $0x18] sm:$0xff]
        %v7710 = vld [vmem:[%s8 + $0x20] sm:$0xff]
        %v7711 = vld [vmem:[%s8 + $0x28] sm:$0xff]
        %v7712 = vld [vmem:[%s8 + $0x30] sm:$0xff]
        %v7713 = vld [vmem:[%s8 + $0x38] sm:$0xff]
        %v7714 = vld [vmem:[%s8 + $0x40] sm:$0xff]
        %v7715 = vld [vmem:[%s8 + $0x48] sm:$0xff]
        %v7716 = vld [vmem:[%s8 + $0x50] sm:$0xff]
        %v7717 = vld [vmem:[%s8 + $0x58] sm:$0xff]
        %v7718 = vld [vmem:[%s8 + $0x60] sm:$0xff]
        %v7719 = vld [vmem:[%s8 + $0x68] sm:$0xff]
        %v7720 = vld [vmem:[%s8 + $0x70] sm:$0xff]
        %v7721 = vld [vmem:[%s8 + $0x78] sm:$0xff]
        %v7722 = vld [vmem:[%s8 + $0x80] sm:$0xff]
        %v7723 = vld [vmem:[%s8 + $0x88] sm:$0xff]
        %v7724 = vld [vmem:[%s8 + $0x90] sm:$0x3f]
        %v7725 = vld [vmem:[%s9] sm:$0x1]
        %vm7726 = vcmask 179200
        %v7728 = vsel %vm7726, %v7705, 0
        %v7731 = vsel %vm4878, %v7724, 0
        %7733 = vmatprep.subr.mxu0 0.0
        %7734 = vmatpush1.msra.mxu0 %v7706
        %7735 = vmatprep.subr.mxu0 0.0
        %7736 = vmatpush1.msra.mxu0 %v7707
        %7737 = vmatprep.subr.mxu0 0.0
        %7738 = vmatpush1.msra.mxu0 %v7708
        %7739 = vmatprep.subr.mxu0 0.0
        %7740 = vmatpush1.msra.mxu0 %v7709
        %7741 = vmatprep.subr.mxu0 0.0
        %7742 = vmatpush1.msra.mxu0 %v7710
        %7743 = vmatprep.subr.mxu0 0.0
        %7744 = vmatpush1.msra.mxu0 %v7711
        %7745 = vmatprep.subr.mxu0 0.0
        %7746 = vmatpush1.msra.mxu0 %v7712
        %7747 = vmatprep.subr.mxu0 0.0
        %7748 = vmatpush1.msra.mxu0 %v7713
        %7749 = vmatprep.subr.mxu0 0.0
        %7750 = vmatpush1.msra.mxu0 %v7714
        %7751 = vmatprep.subr.mxu0 0.0
        %7752 = vmatpush1.msra.mxu0 %v7715
        %7753 = vmatprep.subr.mxu0 0.0
        %7754 = vmatpush1.msra.mxu0 %v7716
        %7755 = vmatprep.subr.mxu0 0.0
        %7756 = vmatpush1.msra.mxu0 %v7717
        %7757 = vmatprep.subr.mxu0 0.0
        %7758 = vmatpush1.msra.mxu0 %v7718
        %7759 = vmatprep.subr.mxu0 0.0
        %7760 = vmatpush1.msra.mxu0 %v7719
        %7761 = vmatprep.subr.mxu0 0.0
        %7762 = vmatpush1.msra.mxu0 %v7720
        %7763 = vmatprep.subr.mxu0 0.0
        %7764 = vmatpush1.msra.mxu0 %v7721
        %7765 = vmatprep.subr.mxu0 0.0
        %7766 = vmatpush1.msra.mxu0 %v7722
        %7767 = vmatprep.subr.mxu0 0.0
        %7768 = vmatpush1.msra.mxu0 %v7723
        %7769 = vmatprep.subr.mxu0 0.0
        %7770 = vmatpush1.msra.mxu0 %v7731
        %7771 = vmatprep.subr.mxu0 0.0
        %7772 = vmatpush1.msra.mxu0 0.0
        %7773 = vmatprep.subr.mxu0 0.0
        %7774 = vmatpush1.msra.mxu0 0.0
        %7775 = vmatprep.subr.mxu0 0.0
        %7776 = vmatpush1.msra.mxu0 0.0
        %7777 = vmatprep.subr.mxu0 0.0
        %7778 = vmatpush1.msra.mxu0 0.0
        %7779 = vmatprep.subr.mxu0 0.0
        %7780 = vmatpush1.msra.mxu0 0.0
        %7781 = vmatprep.subr.mxu0 0.0
        %7782 = vmatpush1.msra.mxu0 0.0
        %7783 = vmatprep.subr.mxu0 0.0
        %7784 = vmatpush1.msra.mxu0 0.0
        %7785 = vmatprep.subr.mxu0 0.0
        %7786 = vmatpush1.msra.mxu0 0.0
        %7787 = vmatprep.subr.mxu0 0.0
        %7788 = vmatpush1.msra.mxu0 0.0
        %7789 = vmatprep.subr.mxu0 0.0
        %7790 = vmatpush1.msra.mxu0 0.0
        %7791 = vmatprep.subr.mxu0 0.0
        %7792 = vmatpush1.msra.mxu0 0.0
        %7793 = vmatprep.subr.mxu0 0.0
        %7794 = vmatpush1.msra.mxu0 0.0
        %7795 = vmatprep.subr.mxu0 0.0
        %7796 = vmatpush1.msra.mxu0 0.0
        %7797 = vmatprep.mubr.f32.mxu0 %v7728
        %7798 = vmatmul.mubr.f32.gmra.mrb[0].mxu0 %v7704
        %v7799 = vpop.f32.mrb[0].mxu0
        %v7800 = vadd.f32 %v7725, %v7799
        %v7801 = vpop.f32.mrb[0].mxu0
        %7802 = vdwg.mxu0
        %vm7803 = vcmp.ge.f32.partialorder %v7800, 0.0
        %v7804 = vmul.f32 %v2528, %v7800
        %v7805 = vsel %vm7803, %v7800, %v7804
        %v7806 = vld [vmem:[%s10] sm:$0xff]
        %v7807 = vld [vmem:[%s10 + $0x8] sm:$0xff]
        %v7808 = vld [vmem:[%s10 + $0x10] sm:$0xff]
        %v7809 = vld [vmem:[%s10 + $0x18] sm:$0xff]
        %v7810 = vld [vmem:[%s10 + $0x20] sm:$0xff]
        %v7811 = vld [vmem:[%s10 + $0x28] sm:$0xff]
        %v7812 = vld [vmem:[%s10 + $0x30] sm:$0xff]
        %v7813 = vld [vmem:[%s10 + $0x38] sm:$0xff]
        %v7814 = vld [vmem:[%s10 + $0x40] sm:$0xff]
        %v7815 = vld [vmem:[%s10 + $0x48] sm:$0xff]
        %v7816 = vld [vmem:[%s10 + $0x50] sm:$0xff]
        %v7817 = vld [vmem:[%s10 + $0x58] sm:$0xff]
        %v7818 = vld [vmem:[%s10 + $0x60] sm:$0xf]
        %v7819 = vld [vmem:[%s11] sm:$0x1]
        %vm7820 = vcmask 818176
        %v7822 = vsel %vm7820, %v7805, 0
        %vm7824 = vcmask 1043456
        %v7826 = vsel %vm7824, %v7818, 0
        %7828 = vmatprep.subr.mxu0 0.0
        %7829 = vmatpush1.msra.mxu0 %v7806
        %7830 = vmatprep.subr.mxu0 0.0
        %7831 = vmatpush1.msra.mxu0 %v7807
        %7832 = vmatprep.subr.mxu0 0.0
        %7833 = vmatpush1.msra.mxu0 %v7808
        %7834 = vmatprep.subr.mxu0 0.0
        %7835 = vmatpush1.msra.mxu0 %v7809
        %7836 = vmatprep.subr.mxu0 0.0
        %7837 = vmatpush1.msra.mxu0 %v7810
        %7838 = vmatprep.subr.mxu0 0.0
        %7839 = vmatpush1.msra.mxu0 %v7811
        %7840 = vmatprep.subr.mxu0 0.0
        %7841 = vmatpush1.msra.mxu0 %v7812
        %7842 = vmatprep.subr.mxu0 0.0
        %7843 = vmatpush1.msra.mxu0 %v7813
        %7844 = vmatprep.subr.mxu0 0.0
        %7845 = vmatpush1.msra.mxu0 %v7814
        %7846 = vmatprep.subr.mxu0 0.0
        %7847 = vmatpush1.msra.mxu0 %v7815
        %7848 = vmatprep.subr.mxu0 0.0
        %7849 = vmatpush1.msra.mxu0 %v7816
        %7850 = vmatprep.subr.mxu0 0.0
        %7851 = vmatpush1.msra.mxu0 %v7817
        %7852 = vmatprep.subr.mxu0 0.0
        %7853 = vmatpush1.msra.mxu0 %v7826
        %7854 = vmatprep.subr.mxu0 0.0
        %7855 = vmatpush1.msra.mxu0 0.0
        %7856 = vmatprep.subr.mxu0 0.0
        %7857 = vmatpush1.msra.mxu0 0.0
        %7858 = vmatprep.subr.mxu0 0.0
        %7859 = vmatpush1.msra.mxu0 0.0
        %7860 = vmatprep.subr.mxu0 0.0
        %7861 = vmatpush1.msra.mxu0 0.0
        %7862 = vmatprep.subr.mxu0 0.0
        %7863 = vmatpush1.msra.mxu0 0.0
        %7864 = vmatprep.subr.mxu0 0.0
        %7865 = vmatpush1.msra.mxu0 0.0
        %7866 = vmatprep.subr.mxu0 0.0
        %7867 = vmatpush1.msra.mxu0 0.0
        %7868 = vmatprep.subr.mxu0 0.0
        %7869 = vmatpush1.msra.mxu0 0.0
        %7870 = vmatprep.subr.mxu0 0.0
        %7871 = vmatpush1.msra.mxu0 0.0
        %7872 = vmatprep.subr.mxu0 0.0
        %7873 = vmatpush1.msra.mxu0 0.0
        %7874 = vmatprep.subr.mxu0 0.0
        %7875 = vmatpush1.msra.mxu0 0.0
        %7876 = vmatprep.subr.mxu0 0.0
        %7877 = vmatpush1.msra.mxu0 0.0
        %7878 = vmatprep.subr.mxu0 0.0
        %7879 = vmatpush1.msra.mxu0 0.0
        %7880 = vmatprep.subr.mxu0 0.0
        %7881 = vmatpush1.msra.mxu0 0.0
        %7882 = vmatprep.subr.mxu0 0.0
        %7883 = vmatpush1.msra.mxu0 0.0
        %7884 = vmatprep.subr.mxu0 0.0
        %7885 = vmatpush1.msra.mxu0 0.0
        %7886 = vmatprep.subr.mxu0 0.0
        %7887 = vmatpush1.msra.mxu0 0.0
        %7888 = vmatprep.subr.mxu0 0.0
        %7889 = vmatpush1.msra.mxu0 0.0
        %7890 = vmatprep.subr.mxu0 0.0
        %7891 = vmatpush1.msra.mxu0 0.0
        %7892 = vmatprep.mubr.f32.mxu0 0.0
        %7893 = vmatmul.mubr.f32.gmra.mrb[0].mxu0 %v7822
        %v7894 = vpop.f32.mrb[0].mxu0
        %v7895 = vadd.f32 %v7819, %v7894
        %v7896 = vpop.f32.mrb[0].mxu0
        %7897 = vdwg.mxu0
        %vm7898 = vcmp.ge.f32.partialorder %v7895, 0.0
        %v7899 = vmul.f32 %v2528, %v7895
        %v7900 = vsel %vm7898, %v7895, %v7899
        %v7901 = vld [vmem:[%s12] sm:$0xff]
        %v7902 = vld [vmem:[%s12 + $0x8] sm:$0xff]
        %v7903 = vld [vmem:[%s12 + $0x10] sm:$0xff]
        %v7904 = vld [vmem:[%s12 + $0x18] sm:$0xff]
        %v7905 = vld [vmem:[%s12 + $0x20] sm:$0xff]
        %v7906 = vld [vmem:[%s12 + $0x28] sm:$0xff]
        %v7907 = vld [vmem:[%s12 + $0x30] sm:$0x3]
        %v7908 = vld [vmem:[%s13] sm:$0x1]
        %vm7909 = vcmask 408576
        %v7911 = vsel %vm7909, %v7900, 0
        %vm7913 = vcmask 1041408
        %v7915 = vsel %vm7913, %v7907, 0
        %7917 = vmatprep.subr.mxu0 0.0
        %7918 = vmatpush1.msra.mxu0 %v7901
        %7919 = vmatprep.subr.mxu0 0.0
        %7920 = vmatpush1.msra.mxu0 %v7902
        %7921 = vmatprep.subr.mxu0 0.0
        %7922 = vmatpush1.msra.mxu0 %v7903
        %7923 = vmatprep.subr.mxu0 0.0
        %7924 = vmatpush1.msra.mxu0 %v7904
        %7925 = vmatprep.subr.mxu0 0.0
        %7926 = vmatpush1.msra.mxu0 %v7905
        %7927 = vmatprep.subr.mxu0 0.0
        %7928 = vmatpush1.msra.mxu0 %v7906
        %7929 = vmatprep.subr.mxu0 0.0
        %7930 = vmatpush1.msra.mxu0 %v7915
        %7931 = vmatprep.subr.mxu0 0.0
        %7932 = vmatpush1.msra.mxu0 0.0
        %7933 = vmatprep.subr.mxu0 0.0
        %7934 = vmatpush1.msra.mxu0 0.0
        %7935 = vmatprep.subr.mxu0 0.0
        %7936 = vmatpush1.msra.mxu0 0.0
        %7937 = vmatprep.subr.mxu0 0.0
        %7938 = vmatpush1.msra.mxu0 0.0
        %7939 = vmatprep.subr.mxu0 0.0
        %7940 = vmatpush1.msra.mxu0 0.0
        %7941 = vmatprep.subr.mxu0 0.0
        %7942 = vmatpush1.msra.mxu0 0.0
        %7943 = vmatprep.subr.mxu0 0.0
        %7944 = vmatpush1.msra.mxu0 0.0
        %7945 = vmatprep.subr.mxu0 0.0
        %7946 = vmatpush1.msra.mxu0 0.0
        %7947 = vmatprep.subr.mxu0 0.0
        %7948 = vmatpush1.msra.mxu0 0.0
        %7949 = vmatprep.subr.mxu0 0.0
        %7950 = vmatpush1.msra.mxu0 0.0
        %7951 = vmatprep.subr.mxu0 0.0
        %7952 = vmatpush1.msra.mxu0 0.0
        %7953 = vmatprep.subr.mxu0 0.0
        %7954 = vmatpush1.msra.mxu0 0.0
        %7955 = vmatprep.subr.mxu0 0.0
        %7956 = vmatpush1.msra.mxu0 0.0
        %7957 = vmatprep.subr.mxu0 0.0
        %7958 = vmatpush1.msra.mxu0 0.0
        %7959 = vmatprep.subr.mxu0 0.0
        %7960 = vmatpush1.msra.mxu0 0.0
        %7961 = vmatprep.subr.mxu0 0.0
        %7962 = vmatpush1.msra.mxu0 0.0
        %7963 = vmatprep.subr.mxu0 0.0
        %7964 = vmatpush1.msra.mxu0 0.0
        %7965 = vmatprep.subr.mxu0 0.0
        %7966 = vmatpush1.msra.mxu0 0.0
        %7967 = vmatprep.subr.mxu0 0.0
        %7968 = vmatpush1.msra.mxu0 0.0
        %7969 = vmatprep.subr.mxu0 0.0
        %7970 = vmatpush1.msra.mxu0 0.0
        %7971 = vmatprep.subr.mxu0 0.0
        %7972 = vmatpush1.msra.mxu0 0.0
        %7973 = vmatprep.subr.mxu0 0.0
        %7974 = vmatpush1.msra.mxu0 0.0
        %7975 = vmatprep.subr.mxu0 0.0
        %7976 = vmatpush1.msra.mxu0 0.0
        %7977 = vmatprep.subr.mxu0 0.0
        %7978 = vmatpush1.msra.mxu0 0.0
        %7979 = vmatprep.subr.mxu0 0.0
        %7980 = vmatpush1.msra.mxu0 0.0
        %7981 = vmatprep.mubr.f32.mxu0 0.0
        %7982 = vmatmul.mubr.f32.gmra.mrb[0].mxu0 %v7911
        %v7983 = vpop.f32.mrb[0].mxu0
        %v7984 = vadd.f32 %v7908, %v7983
        %v7985 = vpop.f32.mrb[0].mxu0
        %7986 = vdwg.mxu0
        %7987 = vst [vmem:[%s475] sm:$0x1] %v7984
        %s7988 = sand.u32 %s337, 1
        %s7989 = scalar_lea.sflag [#allocation9], %s7988
        %s7990 = sand.u32 %s337, 1
        %s7991 = scalar_lea.vmem [#allocation10], %s7990
        // Predicated region
        $region81: #{cnn_forward.1} parent=75 // pred_check
          %p7992 = pneg %p347
        $region82: #{cnn_forward.1} parent=75 // pred_check_branch
          %7994 = sbr.rel (%p7992) target = $region84
        $region83: #{cnn_forward.1} parent=75 // pred_region
          %s7996 = ssub.s32 16, 16
          %7997 = vsyncadd %s7989, %s7996
          %s7998 = smul.addr %s30, 16
          %s7999 = scalar_lea.hbm %s14, %s7998
          %s8001 = sshll.u32 %s7991, 4
          %s8002 = int_to_ptr.vmem [resolvable:$true] %s8001
          %8004 = dma.vmem_to_hbm [thread:$0]  %s8002, 16, %s7999, %s7989
        $region84: #{cnn_forward.1} parent=75 // pred_fallthru
          _
      $region76: #{cnn_forward.1} parent=5 // pred_fallthru
        _
      %p8005 = scmp.le.s32.totalorder 2, %s25
      // Predicated region
      $region85: #{cnn_forward.1} parent=5 // pred_check
        %p8006 = pneg %p8005
      $region86: #{cnn_forward.1} parent=5 // pred_check_branch
        %8008 = sbr.rel (%p8006) target = $region88
      $region87: #{cnn_forward.1} parent=5 // pred_region
        %s8009 = ssub.s32 %s25, 2
        // Predicated region
        $region89: #{cnn_forward.1} parent=87 // pred_check
          %p8010 = pneg %p353
        $region90: #{cnn_forward.1} parent=87 // pred_check_branch
          %8012 = sbr.rel (%p8010) target = $region92
        $region91: #{cnn_forward.1} parent=87 // pred_region
          %s8013 = sand.u32 %s338, 1
          %s8014 = scalar_lea.sflag [#allocation9], %s8013
          %s8015 = sand.u32 %s338, 1
          %s8016 = scalar_lea.vmem [#allocation10], %s8015
          %8017 = dma.done %s8014, 16
        $region92: #{cnn_forward.1} parent=87 // pred_fallthru
          _
      $region88: #{cnn_forward.1} parent=5 // pred_fallthru
        _
    $region6: #{cnn_forward.1} parent=1 // loop_footer
      %s29 = sadd.s32 1, %s25
    $region7: #{cnn_forward.1} parent=1 // loop_footer_branch
      %24 = sbr.rel target = $region3
    $region8: #{cnn_forward.1} parent=1 // loop_exit
      _
    %8018 = vsyncpa [#allocation8], 1
    %s8019 = scalar_lea.sflag [#allocation8], 1
    %8020 = vsyncpa %s8019, 1
    %8021 = vsyncpa [#allocation9], 1
    %s8022 = scalar_lea.sflag [#allocation9], 1
    %8023 = vsyncpa %s8022, 1

</llo_original>
